<compile_context>
chip_gen: v5e
topology: v5e:2x2
jax: 0.10.0
libtpu: 0.0.40
codegen_flags: <defaults>
</compile_context>

<pallas_src>
import functools

import jax
import jax.numpy as jnp
from jax.experimental import pallas as pl
from jax.experimental.pallas import tpu as pltpu


def _rnn_kernel(num_layers, hidden_size, x_ref, emb_ref, *refs):
    """refs = per-layer (w_ih, w_hh, b) * num_layers,
              fc_w_lstm, fc_w_mean, fc_w_max, fc_b, o_ref, seq_scratch"""
    lstm_refs = refs[: 3 * num_layers]
    (fc_lstm_ref, fc_mean_ref, fc_max_ref, fc_b_ref,
     o_ref, seq_ref) = refs[3 * num_layers:]

    H = hidden_size
    x = x_ref[...].astype(jnp.float32)            # (bm, T, I)
    bm, T, I = x.shape

    h_last = None
    for l in range(num_layers):
        # Hoisted: loaded once per layer, reused for every time step.
        w_ih = lstm_refs[3 * l][...]              # (Din, 4H) bf16, order i,f,o,g
        w_hh = lstm_refs[3 * l + 1][...]          # (H,   4H) bf16
        b = lstm_refs[3 * l + 2][...]             # (1,   4H) f32

        if l == 0:
            layer_in = x.reshape(bm * T, I)       # T == 8 sublanes: no-op relayout
        else:
            layer_in = seq_ref[...].reshape(bm * T, H)

        # Batched input projection over all T steps: one MXU matmul per layer.
        x_proj = jnp.dot(layer_in.astype(w_ih.dtype), w_ih,
                         preferred_element_type=jnp.float32) + b
        x_proj = x_proj.reshape(bm, T, 4 * H)

        h = jnp.zeros((bm, H), jnp.float32)
        c = jnp.zeros((bm, H), jnp.float32)
        # T is a small static constant here; for large T switch to lax.fori_loop
        # with (h, c) as carry to bound vreg live ranges.
        for t in range(T):
            gates = x_proj[:, t, :] + jnp.dot(
                h.astype(w_hh.dtype), w_hh, preferred_element_type=jnp.float32)
            sig = jax.nn.sigmoid(gates[:, : 3 * H])    # i, f, o in one wide op
            g_g = jnp.tanh(gates[:, 3 * H:])           # g
            i_g = sig[:, :H]
            f_g = sig[:, H:2 * H]
            o_g = sig[:, 2 * H:3 * H]
            c = f_g * c + i_g * g_g
            h = o_g * jnp.tanh(c)
            if l < num_layers - 1:
                seq_ref[:, t, :] = h                   # feed next layer
        h_last = h                                     # == x_lstm_image[:, -1, :]

    # GlobalConcatPool1d (mean + max over the token axis) on the embeddings.
    emb = emb_ref[...].astype(jnp.float32)             # (bm, L, E)
    emb_mean = jnp.mean(emb, axis=1)                   # (bm, E)
    emb_max = jnp.max(emb, axis=1)                     # (bm, E)

    # BatchNorm1d (eval) is folded into the FC weights in the wrapper; the FC
    # is applied as three partial matmuls instead of concat + BN + matmul.
    out = (
        jnp.dot(h_last.astype(fc_lstm_ref.dtype), fc_lstm_ref[...],
                preferred_element_type=jnp.float32)
        + jnp.dot(emb_mean.astype(fc_mean_ref.dtype), fc_mean_ref[...],
                  preferred_element_type=jnp.float32)
        + jnp.dot(emb_max.astype(fc_max_ref.dtype), fc_max_ref[...],
                  preferred_element_type=jnp.float32)
        + fc_b_ref[...]
    )
    o_ref[...] = out.astype(o_ref.dtype)


def init_params(key, *, input_size, hidden_size, num_layers,
                num_embeddings, embedding_dim, num_classes):
    output_num = hidden_size + embedding_dim * 2
    ks = iter(jax.random.split(key, 4 * num_layers + 4))
    params = {"lstm": []}
    k = 1.0 / jnp.sqrt(hidden_size)
    for l in range(num_layers):
        din = input_size if l == 0 else hidden_size
        w_ih = jax.random.uniform(next(ks), (din, 4 * hidden_size), jnp.float32, -k, k)
        w_hh = jax.random.uniform(next(ks), (hidden_size, 4 * hidden_size), jnp.float32, -k, k)
        b_ih = jax.random.uniform(next(ks), (1, 4 * hidden_size), jnp.float32, -k, k)
        b_hh = jax.random.uniform(next(ks), (1, 4 * hidden_size), jnp.float32, -k, k)
        params["lstm"].append((w_ih, w_hh, b_ih + b_hh))
    params["embedding"] = jax.random.normal(
        next(ks), (num_embeddings + 1, embedding_dim), jnp.float32)
    # BatchNorm1d: fresh init (gamma=1, beta=0, running mean=0, var=1)
    params["bn_gamma"] = jnp.ones((output_num,), jnp.float32)
    params["bn_beta"] = jnp.zeros((output_num,), jnp.float32)
    params["bn_mean"] = jnp.zeros((output_num,), jnp.float32)
    params["bn_var"] = jnp.ones((output_num,), jnp.float32)
    kf = 1.0 / jnp.sqrt(output_num)
    params["fc_w"] = jax.random.uniform(next(ks), (output_num, num_classes), jnp.float32, -kf, kf)
    params["fc_b"] = jax.random.uniform(next(ks), (1, num_classes), jnp.float32, -kf, kf)
    return params


def rnn_forward(x_gray, countrycode, params, *, sequence_length, input_size,
                hidden_size, num_layers, num_classes, eps=1e-5, block_b=8):
    B = x_gray.shape[0]
    T, I, H = sequence_length, input_size, hidden_size

    # mirrors: x_gray.reshape(-1, sequence_length, input_size)
    x_seq = x_gray.reshape(B, T, I).astype(jnp.float32)
    # embedding lookup (gather) kept in glue; pooling done in the kernel.
    emb = jnp.take(params["embedding"], countrycode, axis=0).astype(jnp.float32)
    L, E = emb.shape[1], emb.shape[2]

    # Pad batch to a multiple of the batch block (>= 8 sublanes for f32).
    B_pad = ((B + block_b - 1) // block_b) * block_b
    if B_pad != B:
        x_seq = jnp.pad(x_seq, ((0, B_pad - B), (0, 0), (0, 0)))
        emb = jnp.pad(emb, ((0, B_pad - B), (0, 0), (0, 0)))

    # Gate reorder: PyTorch (i, f, g, o) -> (i, f, o, g) so sigmoid covers one
    # contiguous 3H slice and tanh one H slice inside the kernel.
    perm = jnp.concatenate([jnp.arange(0, H), jnp.arange(H, 2 * H),
                            jnp.arange(3 * H, 4 * H), jnp.arange(2 * H, 3 * H)])

    weight_inputs = []
    for (w_ih, w_hh, b) in params["lstm"]:
        weight_inputs += [
            jnp.take(w_ih, perm, axis=1).astype(jnp.bfloat16),
            jnp.take(w_hh, perm, axis=1).astype(jnp.bfloat16),
            jnp.take(b, perm, axis=1).astype(jnp.float32),
        ]

    # Fold eval-mode BatchNorm1d into the FC layer, then split the FC weight
    # rows so the kernel never builds the lane-misaligned concatenation.
    bn_scale = params["bn_gamma"] / jnp.sqrt(params["bn_var"] + eps)     # (F,)
    bn_shift = params["bn_beta"] - params["bn_mean"] * bn_scale          # (F,)
    fc_w = bn_scale[:, None] * params["fc_w"]                            # (F, C)
    fc_b = (bn_shift[None, :] @ params["fc_w"]) + params["fc_b"]         # (1, C)
    fc_w_lstm = fc_w[:H].astype(jnp.bfloat16)
    fc_w_mean = fc_w[H:H + E].astype(jnp.bfloat16)
    fc_w_max = fc_w[H + E:].astype(jnp.bfloat16)
    fc_b = fc_b.astype(jnp.float32)

    inputs = [x_seq, emb] + weight_inputs + [fc_w_lstm, fc_w_mean, fc_w_max, fc_b]

    def full2d(a):
        return pl.BlockSpec(a.shape, lambda i: (0, 0))

    in_specs = [
        pl.BlockSpec((block_b, T, I), lambda i: (i, 0, 0)),
        pl.BlockSpec((block_b, L, E), lambda i: (i, 0, 0)),
    ] + [full2d(a) for a in weight_inputs] + [
        full2d(fc_w_lstm), full2d(fc_w_mean), full2d(fc_w_max), full2d(fc_b),
    ]

    kernel = functools.partial(_rnn_kernel, num_layers, hidden_size)
    out = pl.pallas_call(
        kernel,
        out_shape=jax.ShapeDtypeStruct((B_pad, num_classes), jnp.float32),
        grid_spec=pltpu.PrefetchScalarGridSpec(
            num_scalar_prefetch=0,
            grid=(B_pad // block_b,),
            in_specs=in_specs,
            out_specs=pl.BlockSpec((block_b, num_classes), lambda i: (i, 0)),
            scratch_shapes=[pltpu.VMEM((block_b, T, H), jnp.float32)],
        ),
        # Batch axis is embarrassingly parallel -> shards across the 2 TCs on v7x.
        compiler_params=pltpu.CompilerParams(
            dimension_semantics=("parallel",)),
    )(*inputs)
    return out[:B]


if __name__ == "__main__":
    # small configuration consistent with the module's forward
    B = 2
    sequence_length = 8
    input_size = 16
    hidden_size = 32
    num_layers = 2
    num_embeddings = 10
    embedding_dim = 8
    num_classes = 5
    L_tokens = 4

    key = jax.random.PRNGKey(0)
    k_par, k_x, k_cc = jax.random.split(key, 3)

    params = init_params(
        k_par,
        input_size=input_size, hidden_size=hidden_size, num_layers=num_layers,
        num_embeddings=num_embeddings, embedding_dim=embedding_dim,
        num_classes=num_classes)

    x_gray = jax.random.normal(k_x, (B, sequence_length * input_size), jnp.float32)
    countrycode = jax.random.randint(k_cc, (B, L_tokens), 0, num_embeddings + 1, jnp.int32)

    out = rnn_forward(
        x_gray, countrycode, params,
        sequence_length=sequence_length, input_size=input_size,
        hidden_size=hidden_size, num_layers=num_layers, num_classes=num_classes)
    jax.block_until_ready(out)
    assert out.shape == (B, num_classes)
    print("KERNEL_OK")
</pallas_src>

<mosaic_0001>
module attributes {stable_mosaic.version = 11 : i64} {
  func.func @_rnn_kernel(%arg0: i32, %arg1: memref<8x8x16xf32, #tpu.memory_space<vmem>>, %arg2: memref<8x4x8xf32, #tpu.memory_space<vmem>>, %arg3: memref<16x128xbf16, #tpu.memory_space<vmem>>, %arg4: memref<32x128xbf16, #tpu.memory_space<vmem>>, %arg5: memref<1x128xf32, #tpu.memory_space<vmem>>, %arg6: memref<32x128xbf16, #tpu.memory_space<vmem>>, %arg7: memref<32x128xbf16, #tpu.memory_space<vmem>>, %arg8: memref<1x128xf32, #tpu.memory_space<vmem>>, %arg9: memref<32x5xbf16, #tpu.memory_space<vmem>>, %arg10: memref<8x5xbf16, #tpu.memory_space<vmem>>, %arg11: memref<8x5xbf16, #tpu.memory_space<vmem>>, %arg12: memref<1x5xf32, #tpu.memory_space<vmem>>, %arg13: memref<8x5xf32, #tpu.memory_space<vmem>>, %arg14: memref<8x8x32xf32, #tpu.memory_space<vmem>>) attributes {dimension_semantics = [#tpu.dimension_semantics<parallel>], iteration_bounds = array<i64: 1>, scalar_prefetch = 0 : i64, scratch_operands = 1 : i64, tpu.core_type = #tpu.core_type<tc>, window_params = [{transform_indices = @transform_0, window_bounds = array<i64: 8, 8, 16>}, {transform_indices = @transform_1, window_bounds = array<i64: 8, 4, 8>}, {pipeline_mode = #tpu.pipeline_mode<synchronous>, transform_indices = @transform_2, window_bounds = array<i64: 16, 128>}, {pipeline_mode = #tpu.pipeline_mode<synchronous>, transform_indices = @transform_3, window_bounds = array<i64: 32, 128>}, {pipeline_mode = #tpu.pipeline_mode<synchronous>, transform_indices = @transform_4, window_bounds = array<i64: 1, 128>}, {pipeline_mode = #tpu.pipeline_mode<synchronous>, transform_indices = @transform_5, window_bounds = array<i64: 32, 128>}, {pipeline_mode = #tpu.pipeline_mode<synchronous>, transform_indices = @transform_6, window_bounds = array<i64: 32, 128>}, {pipeline_mode = #tpu.pipeline_mode<synchronous>, transform_indices = @transform_7, window_bounds = array<i64: 1, 128>}, {pipeline_mode = #tpu.pipeline_mode<synchronous>, transform_indices = @transform_8, window_bounds = array<i64: 32, 5>}, {pipeline_mode = #tpu.pipeline_mode<synchronous>, transform_indices = @transform_9, window_bounds = array<i64: 8, 5>}, {pipeline_mode = #tpu.pipeline_mode<synchronous>, transform_indices = @transform_10, window_bounds = array<i64: 8, 5>}, {pipeline_mode = #tpu.pipeline_mode<synchronous>, transform_indices = @transform_11, window_bounds = array<i64: 1, 5>}, {transform_indices = @transform_12, window_bounds = array<i64: 8, 5>}]} {
    %c0 = arith.constant 0 : index
    %c0_0 = arith.constant 0 : index
    %c0_1 = arith.constant 0 : index
    %0 = vector.load %arg1[%c0, %c0_0, %c0_1] : memref<8x8x16xf32, #tpu.memory_space<vmem>>, vector<8x8x16xf32>
    %c0_2 = arith.constant 0 : index
    %c0_3 = arith.constant 0 : index
    %1 = vector.load %arg3[%c0_2, %c0_3] : memref<16x128xbf16, #tpu.memory_space<vmem>>, vector<16x128xbf16>
    %c0_4 = arith.constant 0 : index
    %c0_5 = arith.constant 0 : index
    %2 = vector.load %arg4[%c0_4, %c0_5] : memref<32x128xbf16, #tpu.memory_space<vmem>>, vector<32x128xbf16>
    %c0_6 = arith.constant 0 : index
    %c0_7 = arith.constant 0 : index
    %3 = vector.load %arg5[%c0_6, %c0_7] : memref<1x128xf32, #tpu.memory_space<vmem>>, vector<1x128xf32>
    %4 = vector.shape_cast %0 : vector<8x8x16xf32> to vector<64x16xf32>
    %5 = arith.truncf %4 : vector<64x16xf32> to vector<64x16xbf16>
    %cst = arith.constant dense<0.000000e+00> : vector<64x128xf32>
    %6 = tpu.matmul %5, %1, %cst {dimension_numbers = #tpu.dot_dimension_numbers<[1], [0], [0], [1], [0, 0, 1, 1], [], []>} : vector<64x16xbf16>, vector<16x128xbf16>, vector<64x128xf32> -> vector<64x128xf32>
    %7 = vector.broadcast %3 : vector<1x128xf32> to vector<64x128xf32>
    %8 = arith.addf %6, %7 : vector<64x128xf32>
    %9 = vector.shape_cast %8 : vector<64x128xf32> to vector<8x8x128xf32>
    %cst_8 = arith.constant 0.000000e+00 : f32
    %10 = vector.broadcast %cst_8 : f32 to vector<8x32xf32>
    %cst_9 = arith.constant 0.000000e+00 : f32
    %11 = vector.broadcast %cst_9 : f32 to vector<8x32xf32>
    %12 = vector.extract_strided_slice %9 {offsets = [0, 0, 0], sizes = [8, 1, 128], strides = [1, 1, 1]} : vector<8x8x128xf32> to vector<8x1x128xf32>
    %13 = vector.shape_cast %12 : vector<8x1x128xf32> to vector<8x128xf32>
    %14 = arith.truncf %10 : vector<8x32xf32> to vector<8x32xbf16>
    %cst_10 = arith.constant dense<0.000000e+00> : vector<8x128xf32>
    %15 = tpu.matmul %14, %2, %cst_10 {dimension_numbers = #tpu.dot_dimension_numbers<[1], [0], [0], [1], [0, 0, 1, 1], [], []>} : vector<8x32xbf16>, vector<32x128xbf16>, vector<8x128xf32> -> vector<8x128xf32>
    %16 = arith.addf %13, %15 : vector<8x128xf32>
    %17 = vector.extract_strided_slice %16 {offsets = [0, 0], sizes = [8, 96], strides = [1, 1]} : vector<8x128xf32> to vector<8x96xf32>
    %18 = arith.negf %17 : vector<8x96xf32>
    %19 = math.exp %18 : vector<8x96xf32>
    %cst_11 = arith.constant 1.000000e+00 : f32
    %20 = vector.broadcast %cst_11 : f32 to vector<8x96xf32>
    %21 = arith.addf %20, %19 : vector<8x96xf32>
    %22 = arith.divf %20, %21 : vector<8x96xf32>
    %23 = vector.extract_strided_slice %16 {offsets = [0, 96], sizes = [8, 32], strides = [1, 1]} : vector<8x128xf32> to vector<8x32xf32>
    %24 = math.tanh %23 : vector<8x32xf32>
    %25 = vector.extract_strided_slice %22 {offsets = [0, 0], sizes = [8, 32], strides = [1, 1]} : vector<8x96xf32> to vector<8x32xf32>
    %26 = vector.extract_strided_slice %22 {offsets = [0, 32], sizes = [8, 32], strides = [1, 1]} : vector<8x96xf32> to vector<8x32xf32>
    %27 = vector.extract_strided_slice %22 {offsets = [0, 64], sizes = [8, 32], strides = [1, 1]} : vector<8x96xf32> to vector<8x32xf32>
    %28 = arith.mulf %26, %11 : vector<8x32xf32>
    %29 = arith.mulf %25, %24 : vector<8x32xf32>
    %30 = arith.addf %28, %29 : vector<8x32xf32>
    %31 = math.tanh %30 : vector<8x32xf32>
    %32 = arith.mulf %27, %31 : vector<8x32xf32>
    %c0_12 = arith.constant 0 : index
    %c0_13 = arith.constant 0 : index
    %c0_14 = arith.constant 0 : index
    %33 = vector.load %arg14[%c0_12, %c0_13, %c0_14] : memref<8x8x32xf32, #tpu.memory_space<vmem>>, vector<8x1x32xf32>
    %34 = vector.shape_cast %33 : vector<8x1x32xf32> to vector<8x32xf32>
    %35 = vector.shape_cast %32 : vector<8x32xf32> to vector<8x1x32xf32>
    tpu.vector_store %arg14[%c0_12, %c0_13, %c0_14], %35 {strides = array<i32>} : memref<8x8x32xf32, #tpu.memory_space<vmem>>, vector<8x1x32xf32>,
    %36 = vector.extract_strided_slice %9 {offsets = [0, 1, 0], sizes = [8, 1, 128], strides = [1, 1, 1]} : vector<8x8x128xf32> to vector<8x1x128xf32>
    %37 = vector.shape_cast %36 : vector<8x1x128xf32> to vector<8x128xf32>
    %38 = arith.truncf %32 : vector<8x32xf32> to vector<8x32xbf16>
    %cst_15 = arith.constant dense<0.000000e+00> : vector<8x128xf32>
    %39 = tpu.matmul %38, %2, %cst_15 {dimension_numbers = #tpu.dot_dimension_numbers<[1], [0], [0], [1], [0, 0, 1, 1], [], []>} : vector<8x32xbf16>, vector<32x128xbf16>, vector<8x128xf32> -> vector<8x128xf32>
    %40 = arith.addf %37, %39 : vector<8x128xf32>
    %41 = vector.extract_strided_slice %40 {offsets = [0, 0], sizes = [8, 96], strides = [1, 1]} : vector<8x128xf32> to vector<8x96xf32>
    %42 = arith.negf %41 : vector<8x96xf32>
    %43 = math.exp %42 : vector<8x96xf32>
    %cst_16 = arith.constant 1.000000e+00 : f32
    %44 = vector.broadcast %cst_16 : f32 to vector<8x96xf32>
    %45 = arith.addf %44, %43 : vector<8x96xf32>
    %46 = arith.divf %44, %45 : vector<8x96xf32>
    %47 = vector.extract_strided_slice %40 {offsets = [0, 96], sizes = [8, 32], strides = [1, 1]} : vector<8x128xf32> to vector<8x32xf32>
    %48 = math.tanh %47 : vector<8x32xf32>
    %49 = vector.extract_strided_slice %46 {offsets = [0, 0], sizes = [8, 32], strides = [1, 1]} : vector<8x96xf32> to vector<8x32xf32>
    %50 = vector.extract_strided_slice %46 {offsets = [0, 32], sizes = [8, 32], strides = [1, 1]} : vector<8x96xf32> to vector<8x32xf32>
    %51 = vector.extract_strided_slice %46 {offsets = [0, 64], sizes = [8, 32], strides = [1, 1]} : vector<8x96xf32> to vector<8x32xf32>
    %52 = arith.mulf %50, %30 : vector<8x32xf32>
    %53 = arith.mulf %49, %48 : vector<8x32xf32>
    %54 = arith.addf %52, %53 : vector<8x32xf32>
    %55 = math.tanh %54 : vector<8x32xf32>
    %56 = arith.mulf %51, %55 : vector<8x32xf32>
    %c0_17 = arith.constant 0 : index
    %c1 = arith.constant 1 : index
    %c0_18 = arith.constant 0 : index
    %57 = vector.load %arg14[%c0_17, %c1, %c0_18] : memref<8x8x32xf32, #tpu.memory_space<vmem>>, vector<8x1x32xf32>
    %58 = vector.shape_cast %57 : vector<8x1x32xf32> to vector<8x32xf32>
    %59 = vector.shape_cast %56 : vector<8x32xf32> to vector<8x1x32xf32>
    tpu.vector_store %arg14[%c0_17, %c1, %c0_18], %59 {strides = array<i32>} : memref<8x8x32xf32, #tpu.memory_space<vmem>>, vector<8x1x32xf32>,
    %60 = vector.extract_strided_slice %9 {offsets = [0, 2, 0], sizes = [8, 1, 128], strides = [1, 1, 1]} : vector<8x8x128xf32> to vector<8x1x128xf32>
    %61 = vector.shape_cast %60 : vector<8x1x128xf32> to vector<8x128xf32>
    %62 = arith.truncf %56 : vector<8x32xf32> to vector<8x32xbf16>
    %cst_19 = arith.constant dense<0.000000e+00> : vector<8x128xf32>
    %63 = tpu.matmul %62, %2, %cst_19 {dimension_numbers = #tpu.dot_dimension_numbers<[1], [0], [0], [1], [0, 0, 1, 1], [], []>} : vector<8x32xbf16>, vector<32x128xbf16>, vector<8x128xf32> -> vector<8x128xf32>
    %64 = arith.addf %61, %63 : vector<8x128xf32>
    %65 = vector.extract_strided_slice %64 {offsets = [0, 0], sizes = [8, 96], strides = [1, 1]} : vector<8x128xf32> to vector<8x96xf32>
    %66 = arith.negf %65 : vector<8x96xf32>
    %67 = math.exp %66 : vector<8x96xf32>
    %cst_20 = arith.constant 1.000000e+00 : f32
    %68 = vector.broadcast %cst_20 : f32 to vector<8x96xf32>
    %69 = arith.addf %68, %67 : vector<8x96xf32>
    %70 = arith.divf %68, %69 : vector<8x96xf32>
    %71 = vector.extract_strided_slice %64 {offsets = [0, 96], sizes = [8, 32], strides = [1, 1]} : vector<8x128xf32> to vector<8x32xf32>
    %72 = math.tanh %71 : vector<8x32xf32>
    %73 = vector.extract_strided_slice %70 {offsets = [0, 0], sizes = [8, 32], strides = [1, 1]} : vector<8x96xf32> to vector<8x32xf32>
    %74 = vector.extract_strided_slice %70 {offsets = [0, 32], sizes = [8, 32], strides = [1, 1]} : vector<8x96xf32> to vector<8x32xf32>
    %75 = vector.extract_strided_slice %70 {offsets = [0, 64], sizes = [8, 32], strides = [1, 1]} : vector<8x96xf32> to vector<8x32xf32>
    %76 = arith.mulf %74, %54 : vector<8x32xf32>
    %77 = arith.mulf %73, %72 : vector<8x32xf32>
    %78 = arith.addf %76, %77 : vector<8x32xf32>
    %79 = math.tanh %78 : vector<8x32xf32>
    %80 = arith.mulf %75, %79 : vector<8x32xf32>
    %c0_21 = arith.constant 0 : index
    %c2 = arith.constant 2 : index
    %c0_22 = arith.constant 0 : index
    %81 = vector.load %arg14[%c0_21, %c2, %c0_22] : memref<8x8x32xf32, #tpu.memory_space<vmem>>, vector<8x1x32xf32>
    %82 = vector.shape_cast %81 : vector<8x1x32xf32> to vector<8x32xf32>
    %83 = vector.shape_cast %80 : vector<8x32xf32> to vector<8x1x32xf32>
    tpu.vector_store %arg14[%c0_21, %c2, %c0_22], %83 {strides = array<i32>} : memref<8x8x32xf32, #tpu.memory_space<vmem>>, vector<8x1x32xf32>,
    %84 = vector.extract_strided_slice %9 {offsets = [0, 3, 0], sizes = [8, 1, 128], strides = [1, 1, 1]} : vector<8x8x128xf32> to vector<8x1x128xf32>
    %85 = vector.shape_cast %84 : vector<8x1x128xf32> to vector<8x128xf32>
    %86 = arith.truncf %80 : vector<8x32xf32> to vector<8x32xbf16>
    %cst_23 = arith.constant dense<0.000000e+00> : vector<8x128xf32>
    %87 = tpu.matmul %86, %2, %cst_23 {dimension_numbers = #tpu.dot_dimension_numbers<[1], [0], [0], [1], [0, 0, 1, 1], [], []>} : vector<8x32xbf16>, vector<32x128xbf16>, vector<8x128xf32> -> vector<8x128xf32>
    %88 = arith.addf %85, %87 : vector<8x128xf32>
    %89 = vector.extract_strided_slice %88 {offsets = [0, 0], sizes = [8, 96], strides = [1, 1]} : vector<8x128xf32> to vector<8x96xf32>
    %90 = arith.negf %89 : vector<8x96xf32>
    %91 = math.exp %90 : vector<8x96xf32>
    %cst_24 = arith.constant 1.000000e+00 : f32
    %92 = vector.broadcast %cst_24 : f32 to vector<8x96xf32>
    %93 = arith.addf %92, %91 : vector<8x96xf32>
    %94 = arith.divf %92, %93 : vector<8x96xf32>
    %95 = vector.extract_strided_slice %88 {offsets = [0, 96], sizes = [8, 32], strides = [1, 1]} : vector<8x128xf32> to vector<8x32xf32>
    %96 = math.tanh %95 : vector<8x32xf32>
    %97 = vector.extract_strided_slice %94 {offsets = [0, 0], sizes = [8, 32], strides = [1, 1]} : vector<8x96xf32> to vector<8x32xf32>
    %98 = vector.extract_strided_slice %94 {offsets = [0, 32], sizes = [8, 32], strides = [1, 1]} : vector<8x96xf32> to vector<8x32xf32>
    %99 = vector.extract_strided_slice %94 {offsets = [0, 64], sizes = [8, 32], strides = [1, 1]} : vector<8x96xf32> to vector<8x32xf32>
    %100 = arith.mulf %98, %78 : vector<8x32xf32>
    %101 = arith.mulf %97, %96 : vector<8x32xf32>
    %102 = arith.addf %100, %101 : vector<8x32xf32>
    %103 = math.tanh %102 : vector<8x32xf32>
    %104 = arith.mulf %99, %103 : vector<8x32xf32>
    %c0_25 = arith.constant 0 : index
    %c3 = arith.constant 3 : index
    %c0_26 = arith.constant 0 : index
    %105 = vector.load %arg14[%c0_25, %c3, %c0_26] : memref<8x8x32xf32, #tpu.memory_space<vmem>>, vector<8x1x32xf32>
    %106 = vector.shape_cast %105 : vector<8x1x32xf32> to vector<8x32xf32>
    %107 = vector.shape_cast %104 : vector<8x32xf32> to vector<8x1x32xf32>
    tpu.vector_store %arg14[%c0_25, %c3, %c0_26], %107 {strides = array<i32>} : memref<8x8x32xf32, #tpu.memory_space<vmem>>, vector<8x1x32xf32>,
    %108 = vector.extract_strided_slice %9 {offsets = [0, 4, 0], sizes = [8, 1, 128], strides = [1, 1, 1]} : vector<8x8x128xf32> to vector<8x1x128xf32>
    %109 = vector.shape_cast %108 : vector<8x1x128xf32> to vector<8x128xf32>
    %110 = arith.truncf %104 : vector<8x32xf32> to vector<8x32xbf16>
    %cst_27 = arith.constant dense<0.000000e+00> : vector<8x128xf32>
    %111 = tpu.matmul %110, %2, %cst_27 {dimension_numbers = #tpu.dot_dimension_numbers<[1], [0], [0], [1], [0, 0, 1, 1], [], []>} : vector<8x32xbf16>, vector<32x128xbf16>, vector<8x128xf32> -> vector<8x128xf32>
    %112 = arith.addf %109, %111 : vector<8x128xf32>
    %113 = vector.extract_strided_slice %112 {offsets = [0, 0], sizes = [8, 96], strides = [1, 1]} : vector<8x128xf32> to vector<8x96xf32>
    %114 = arith.negf %113 : vector<8x96xf32>
    %115 = math.exp %114 : vector<8x96xf32>
    %cst_28 = arith.constant 1.000000e+00 : f32
    %116 = vector.broadcast %cst_28 : f32 to vector<8x96xf32>
    %117 = arith.addf %116, %115 : vector<8x96xf32>
    %118 = arith.divf %116, %117 : vector<8x96xf32>
    %119 = vector.extract_strided_slice %112 {offsets = [0, 96], sizes = [8, 32], strides = [1, 1]} : vector<8x128xf32> to vector<8x32xf32>
    %120 = math.tanh %119 : vector<8x32xf32>
    %121 = vector.extract_strided_slice %118 {offsets = [0, 0], sizes = [8, 32], strides = [1, 1]} : vector<8x96xf32> to vector<8x32xf32>
    %122 = vector.extract_strided_slice %118 {offsets = [0, 32], sizes = [8, 32], strides = [1, 1]} : vector<8x96xf32> to vector<8x32xf32>
    %123 = vector.extract_strided_slice %118 {offsets = [0, 64], sizes = [8, 32], strides = [1, 1]} : vector<8x96xf32> to vector<8x32xf32>
    %124 = arith.mulf %122, %102 : vector<8x32xf32>
    %125 = arith.mulf %121, %120 : vector<8x32xf32>
    %126 = arith.addf %124, %125 : vector<8x32xf32>
    %127 = math.tanh %126 : vector<8x32xf32>
    %128 = arith.mulf %123, %127 : vector<8x32xf32>
    %c0_29 = arith.constant 0 : index
    %c4 = arith.constant 4 : index
    %c0_30 = arith.constant 0 : index
    %129 = vector.load %arg14[%c0_29, %c4, %c0_30] : memref<8x8x32xf32, #tpu.memory_space<vmem>>, vector<8x1x32xf32>
    %130 = vector.shape_cast %129 : vector<8x1x32xf32> to vector<8x32xf32>
    %131 = vector.shape_cast %128 : vector<8x32xf32> to vector<8x1x32xf32>
    tpu.vector_store %arg14[%c0_29, %c4, %c0_30], %131 {strides = array<i32>} : memref<8x8x32xf32, #tpu.memory_space<vmem>>, vector<8x1x32xf32>,
    %132 = vector.extract_strided_slice %9 {offsets = [0, 5, 0], sizes = [8, 1, 128], strides = [1, 1, 1]} : vector<8x8x128xf32> to vector<8x1x128xf32>
    %133 = vector.shape_cast %132 : vector<8x1x128xf32> to vector<8x128xf32>
    %134 = arith.truncf %128 : vector<8x32xf32> to vector<8x32xbf16>
    %cst_31 = arith.constant dense<0.000000e+00> : vector<8x128xf32>
    %135 = tpu.matmul %134, %2, %cst_31 {dimension_numbers = #tpu.dot_dimension_numbers<[1], [0], [0], [1], [0, 0, 1, 1], [], []>} : vector<8x32xbf16>, vector<32x128xbf16>, vector<8x128xf32> -> vector<8x128xf32>
    %136 = arith.addf %133, %135 : vector<8x128xf32>
    %137 = vector.extract_strided_slice %136 {offsets = [0, 0], sizes = [8, 96], strides = [1, 1]} : vector<8x128xf32> to vector<8x96xf32>
    %138 = arith.negf %137 : vector<8x96xf32>
    %139 = math.exp %138 : vector<8x96xf32>
    %cst_32 = arith.constant 1.000000e+00 : f32
    %140 = vector.broadcast %cst_32 : f32 to vector<8x96xf32>
    %141 = arith.addf %140, %139 : vector<8x96xf32>
    %142 = arith.divf %140, %141 : vector<8x96xf32>
    %143 = vector.extract_strided_slice %136 {offsets = [0, 96], sizes = [8, 32], strides = [1, 1]} : vector<8x128xf32> to vector<8x32xf32>
    %144 = math.tanh %143 : vector<8x32xf32>
    %145 = vector.extract_strided_slice %142 {offsets = [0, 0], sizes = [8, 32], strides = [1, 1]} : vector<8x96xf32> to vector<8x32xf32>
    %146 = vector.extract_strided_slice %142 {offsets = [0, 32], sizes = [8, 32], strides = [1, 1]} : vector<8x96xf32> to vector<8x32xf32>
    %147 = vector.extract_strided_slice %142 {offsets = [0, 64], sizes = [8, 32], strides = [1, 1]} : vector<8x96xf32> to vector<8x32xf32>
    %148 = arith.mulf %146, %126 : vector<8x32xf32>
    %149 = arith.mulf %145, %144 : vector<8x32xf32>
    %150 = arith.addf %148, %149 : vector<8x32xf32>
    %151 = math.tanh %150 : vector<8x32xf32>
    %152 = arith.mulf %147, %151 : vector<8x32xf32>
    %c0_33 = arith.constant 0 : index
    %c5 = arith.constant 5 : index
    %c0_34 = arith.constant 0 : index
    %153 = vector.load %arg14[%c0_33, %c5, %c0_34] : memref<8x8x32xf32, #tpu.memory_space<vmem>>, vector<8x1x32xf32>
    %154 = vector.shape_cast %153 : vector<8x1x32xf32> to vector<8x32xf32>
    %155 = vector.shape_cast %152 : vector<8x32xf32> to vector<8x1x32xf32>
    tpu.vector_store %arg14[%c0_33, %c5, %c0_34], %155 {strides = array<i32>} : memref<8x8x32xf32, #tpu.memory_space<vmem>>, vector<8x1x32xf32>,
    %156 = vector.extract_strided_slice %9 {offsets = [0, 6, 0], sizes = [8, 1, 128], strides = [1, 1, 1]} : vector<8x8x128xf32> to vector<8x1x128xf32>
    %157 = vector.shape_cast %156 : vector<8x1x128xf32> to vector<8x128xf32>
    %158 = arith.truncf %152 : vector<8x32xf32> to vector<8x32xbf16>
    %cst_35 = arith.constant dense<0.000000e+00> : vector<8x128xf32>
    %159 = tpu.matmul %158, %2, %cst_35 {dimension_numbers = #tpu.dot_dimension_numbers<[1], [0], [0], [1], [0, 0, 1, 1], [], []>} : vector<8x32xbf16>, vector<32x128xbf16>, vector<8x128xf32> -> vector<8x128xf32>
    %160 = arith.addf %157, %159 : vector<8x128xf32>
    %161 = vector.extract_strided_slice %160 {offsets = [0, 0], sizes = [8, 96], strides = [1, 1]} : vector<8x128xf32> to vector<8x96xf32>
    %162 = arith.negf %161 : vector<8x96xf32>
    %163 = math.exp %162 : vector<8x96xf32>
    %cst_36 = arith.constant 1.000000e+00 : f32
    %164 = vector.broadcast %cst_36 : f32 to vector<8x96xf32>
    %165 = arith.addf %164, %163 : vector<8x96xf32>
    %166 = arith.divf %164, %165 : vector<8x96xf32>
    %167 = vector.extract_strided_slice %160 {offsets = [0, 96], sizes = [8, 32], strides = [1, 1]} : vector<8x128xf32> to vector<8x32xf32>
    %168 = math.tanh %167 : vector<8x32xf32>
    %169 = vector.extract_strided_slice %166 {offsets = [0, 0], sizes = [8, 32], strides = [1, 1]} : vector<8x96xf32> to vector<8x32xf32>
    %170 = vector.extract_strided_slice %166 {offsets = [0, 32], sizes = [8, 32], strides = [1, 1]} : vector<8x96xf32> to vector<8x32xf32>
    %171 = vector.extract_strided_slice %166 {offsets = [0, 64], sizes = [8, 32], strides = [1, 1]} : vector<8x96xf32> to vector<8x32xf32>
    %172 = arith.mulf %170, %150 : vector<8x32xf32>
    %173 = arith.mulf %169, %168 : vector<8x32xf32>
    %174 = arith.addf %172, %173 : vector<8x32xf32>
    %175 = math.tanh %174 : vector<8x32xf32>
    %176 = arith.mulf %171, %175 : vector<8x32xf32>
    %c0_37 = arith.constant 0 : index
    %c6 = arith.constant 6 : index
    %c0_38 = arith.constant 0 : index
    %177 = vector.load %arg14[%c0_37, %c6, %c0_38] : memref<8x8x32xf32, #tpu.memory_space<vmem>>, vector<8x1x32xf32>
    %178 = vector.shape_cast %177 : vector<8x1x32xf32> to vector<8x32xf32>
    %179 = vector.shape_cast %176 : vector<8x32xf32> to vector<8x1x32xf32>
    tpu.vector_store %arg14[%c0_37, %c6, %c0_38], %179 {strides = array<i32>} : memref<8x8x32xf32, #tpu.memory_space<vmem>>, vector<8x1x32xf32>,
    %180 = vector.extract_strided_slice %9 {offsets = [0, 7, 0], sizes = [8, 1, 128], strides = [1, 1, 1]} : vector<8x8x128xf32> to vector<8x1x128xf32>
    %181 = vector.shape_cast %180 : vector<8x1x128xf32> to vector<8x128xf32>
    %182 = arith.truncf %176 : vector<8x32xf32> to vector<8x32xbf16>
    %cst_39 = arith.constant dense<0.000000e+00> : vector<8x128xf32>
    %183 = tpu.matmul %182, %2, %cst_39 {dimension_numbers = #tpu.dot_dimension_numbers<[1], [0], [0], [1], [0, 0, 1, 1], [], []>} : vector<8x32xbf16>, vector<32x128xbf16>, vector<8x128xf32> -> vector<8x128xf32>
    %184 = arith.addf %181, %183 : vector<8x128xf32>
    %185 = vector.extract_strided_slice %184 {offsets = [0, 0], sizes = [8, 96], strides = [1, 1]} : vector<8x128xf32> to vector<8x96xf32>
    %186 = arith.negf %185 : vector<8x96xf32>
    %187 = math.exp %186 : vector<8x96xf32>
    %cst_40 = arith.constant 1.000000e+00 : f32
    %188 = vector.broadcast %cst_40 : f32 to vector<8x96xf32>
    %189 = arith.addf %188, %187 : vector<8x96xf32>
    %190 = arith.divf %188, %189 : vector<8x96xf32>
    %191 = vector.extract_strided_slice %184 {offsets = [0, 96], sizes = [8, 32], strides = [1, 1]} : vector<8x128xf32> to vector<8x32xf32>
    %192 = math.tanh %191 : vector<8x32xf32>
    %193 = vector.extract_strided_slice %190 {offsets = [0, 0], sizes = [8, 32], strides = [1, 1]} : vector<8x96xf32> to vector<8x32xf32>
    %194 = vector.extract_strided_slice %190 {offsets = [0, 32], sizes = [8, 32], strides = [1, 1]} : vector<8x96xf32> to vector<8x32xf32>
    %195 = vector.extract_strided_slice %190 {offsets = [0, 64], sizes = [8, 32], strides = [1, 1]} : vector<8x96xf32> to vector<8x32xf32>
    %196 = arith.mulf %194, %174 : vector<8x32xf32>
    %197 = arith.mulf %193, %192 : vector<8x32xf32>
    %198 = arith.addf %196, %197 : vector<8x32xf32>
    %199 = math.tanh %198 : vector<8x32xf32>
    %200 = arith.mulf %195, %199 : vector<8x32xf32>
    %c0_41 = arith.constant 0 : index
    %c7 = arith.constant 7 : index
    %c0_42 = arith.constant 0 : index
    %201 = vector.load %arg14[%c0_41, %c7, %c0_42] : memref<8x8x32xf32, #tpu.memory_space<vmem>>, vector<8x1x32xf32>
    %202 = vector.shape_cast %201 : vector<8x1x32xf32> to vector<8x32xf32>
    %203 = vector.shape_cast %200 : vector<8x32xf32> to vector<8x1x32xf32>
    tpu.vector_store %arg14[%c0_41, %c7, %c0_42], %203 {strides = array<i32>} : memref<8x8x32xf32, #tpu.memory_space<vmem>>, vector<8x1x32xf32>,
    %c0_43 = arith.constant 0 : index
    %c0_44 = arith.constant 0 : index
    %204 = vector.load %arg6[%c0_43, %c0_44] : memref<32x128xbf16, #tpu.memory_space<vmem>>, vector<32x128xbf16>
    %c0_45 = arith.constant 0 : index
    %c0_46 = arith.constant 0 : index
    %205 = vector.load %arg7[%c0_45, %c0_46] : memref<32x128xbf16, #tpu.memory_space<vmem>>, vector<32x128xbf16>
    %c0_47 = arith.constant 0 : index
    %c0_48 = arith.constant 0 : index
    %206 = vector.load %arg8[%c0_47, %c0_48] : memref<1x128xf32, #tpu.memory_space<vmem>>, vector<1x128xf32>
    %c0_49 = arith.constant 0 : index
    %c0_50 = arith.constant 0 : index
    %c0_51 = arith.constant 0 : index
    %207 = vector.load %arg14[%c0_49, %c0_50, %c0_51] : memref<8x8x32xf32, #tpu.memory_space<vmem>>, vector<8x8x32xf32>
    %208 = vector.shape_cast %207 : vector<8x8x32xf32> to vector<64x32xf32>
    %209 = arith.truncf %208 : vector<64x32xf32> to vector<64x32xbf16>
    %cst_52 = arith.constant dense<0.000000e+00> : vector<64x128xf32>
    %210 = tpu.matmul %209, %204, %cst_52 {dimension_numbers = #tpu.dot_dimension_numbers<[1], [0], [0], [1], [0, 0, 1, 1], [], []>} : vector<64x32xbf16>, vector<32x128xbf16>, vector<64x128xf32> -> vector<64x128xf32>
    %211 = vector.broadcast %206 : vector<1x128xf32> to vector<64x128xf32>
    %212 = arith.addf %210, %211 : vector<64x128xf32>
    %213 = vector.shape_cast %212 : vector<64x128xf32> to vector<8x8x128xf32>
    %cst_53 = arith.constant 0.000000e+00 : f32
    %214 = vector.broadcast %cst_53 : f32 to vector<8x32xf32>
    %cst_54 = arith.constant 0.000000e+00 : f32
    %215 = vector.broadcast %cst_54 : f32 to vector<8x32xf32>
    %216 = vector.extract_strided_slice %213 {offsets = [0, 0, 0], sizes = [8, 1, 128], strides = [1, 1, 1]} : vector<8x8x128xf32> to vector<8x1x128xf32>
    %217 = vector.shape_cast %216 : vector<8x1x128xf32> to vector<8x128xf32>
    %218 = arith.truncf %214 : vector<8x32xf32> to vector<8x32xbf16>
    %cst_55 = arith.constant dense<0.000000e+00> : vector<8x128xf32>
    %219 = tpu.matmul %218, %205, %cst_55 {dimension_numbers = #tpu.dot_dimension_numbers<[1], [0], [0], [1], [0, 0, 1, 1], [], []>} : vector<8x32xbf16>, vector<32x128xbf16>, vector<8x128xf32> -> vector<8x128xf32>
    %220 = arith.addf %217, %219 : vector<8x128xf32>
    %221 = vector.extract_strided_slice %220 {offsets = [0, 0], sizes = [8, 96], strides = [1, 1]} : vector<8x128xf32> to vector<8x96xf32>
    %222 = arith.negf %221 : vector<8x96xf32>
    %223 = math.exp %222 : vector<8x96xf32>
    %cst_56 = arith.constant 1.000000e+00 : f32
    %224 = vector.broadcast %cst_56 : f32 to vector<8x96xf32>
    %225 = arith.addf %224, %223 : vector<8x96xf32>
    %226 = arith.divf %224, %225 : vector<8x96xf32>
    %227 = vector.extract_strided_slice %220 {offsets = [0, 96], sizes = [8, 32], strides = [1, 1]} : vector<8x128xf32> to vector<8x32xf32>
    %228 = math.tanh %227 : vector<8x32xf32>
    %229 = vector.extract_strided_slice %226 {offsets = [0, 0], sizes = [8, 32], strides = [1, 1]} : vector<8x96xf32> to vector<8x32xf32>
    %230 = vector.extract_strided_slice %226 {offsets = [0, 32], sizes = [8, 32], strides = [1, 1]} : vector<8x96xf32> to vector<8x32xf32>
    %231 = vector.extract_strided_slice %226 {offsets = [0, 64], sizes = [8, 32], strides = [1, 1]} : vector<8x96xf32> to vector<8x32xf32>
    %232 = arith.mulf %230, %215 : vector<8x32xf32>
    %233 = arith.mulf %229, %228 : vector<8x32xf32>
    %234 = arith.addf %232, %233 : vector<8x32xf32>
    %235 = math.tanh %234 : vector<8x32xf32>
    %236 = arith.mulf %231, %235 : vector<8x32xf32>
    %237 = vector.extract_strided_slice %213 {offsets = [0, 1, 0], sizes = [8, 1, 128], strides = [1, 1, 1]} : vector<8x8x128xf32> to vector<8x1x128xf32>
    %238 = vector.shape_cast %237 : vector<8x1x128xf32> to vector<8x128xf32>
    %239 = arith.truncf %236 : vector<8x32xf32> to vector<8x32xbf16>
    %cst_57 = arith.constant dense<0.000000e+00> : vector<8x128xf32>
    %240 = tpu.matmul %239, %205, %cst_57 {dimension_numbers = #tpu.dot_dimension_numbers<[1], [0], [0], [1], [0, 0, 1, 1], [], []>} : vector<8x32xbf16>, vector<32x128xbf16>, vector<8x128xf32> -> vector<8x128xf32>
    %241 = arith.addf %238, %240 : vector<8x128xf32>
    %242 = vector.extract_strided_slice %241 {offsets = [0, 0], sizes = [8, 96], strides = [1, 1]} : vector<8x128xf32> to vector<8x96xf32>
    %243 = arith.negf %242 : vector<8x96xf32>
    %244 = math.exp %243 : vector<8x96xf32>
    %cst_58 = arith.constant 1.000000e+00 : f32
    %245 = vector.broadcast %cst_58 : f32 to vector<8x96xf32>
    %246 = arith.addf %245, %244 : vector<8x96xf32>
    %247 = arith.divf %245, %246 : vector<8x96xf32>
    %248 = vector.extract_strided_slice %241 {offsets = [0, 96], sizes = [8, 32], strides = [1, 1]} : vector<8x128xf32> to vector<8x32xf32>
    %249 = math.tanh %248 : vector<8x32xf32>
    %250 = vector.extract_strided_slice %247 {offsets = [0, 0], sizes = [8, 32], strides = [1, 1]} : vector<8x96xf32> to vector<8x32xf32>
    %251 = vector.extract_strided_slice %247 {offsets = [0, 32], sizes = [8, 32], strides = [1, 1]} : vector<8x96xf32> to vector<8x32xf32>
    %252 = vector.extract_strided_slice %247 {offsets = [0, 64], sizes = [8, 32], strides = [1, 1]} : vector<8x96xf32> to vector<8x32xf32>
    %253 = arith.mulf %251, %234 : vector<8x32xf32>
    %254 = arith.mulf %250, %249 : vector<8x32xf32>
    %255 = arith.addf %253, %254 : vector<8x32xf32>
    %256 = math.tanh %255 : vector<8x32xf32>
    %257 = arith.mulf %252, %256 : vector<8x32xf32>
    %258 = vector.extract_strided_slice %213 {offsets = [0, 2, 0], sizes = [8, 1, 128], strides = [1, 1, 1]} : vector<8x8x128xf32> to vector<8x1x128xf32>
    %259 = vector.shape_cast %258 : vector<8x1x128xf32> to vector<8x128xf32>
    %260 = arith.truncf %257 : vector<8x32xf32> to vector<8x32xbf16>
    %cst_59 = arith.constant dense<0.000000e+00> : vector<8x128xf32>
    %261 = tpu.matmul %260, %205, %cst_59 {dimension_numbers = #tpu.dot_dimension_numbers<[1], [0], [0], [1], [0, 0, 1, 1], [], []>} : vector<8x32xbf16>, vector<32x128xbf16>, vector<8x128xf32> -> vector<8x128xf32>
    %262 = arith.addf %259, %261 : vector<8x128xf32>
    %263 = vector.extract_strided_slice %262 {offsets = [0, 0], sizes = [8, 96], strides = [1, 1]} : vector<8x128xf32> to vector<8x96xf32>
    %264 = arith.negf %263 : vector<8x96xf32>
    %265 = math.exp %264 : vector<8x96xf32>
    %cst_60 = arith.constant 1.000000e+00 : f32
    %266 = vector.broadcast %cst_60 : f32 to vector<8x96xf32>
    %267 = arith.addf %266, %265 : vector<8x96xf32>
    %268 = arith.divf %266, %267 : vector<8x96xf32>
    %269 = vector.extract_strided_slice %262 {offsets = [0, 96], sizes = [8, 32], strides = [1, 1]} : vector<8x128xf32> to vector<8x32xf32>
    %270 = math.tanh %269 : vector<8x32xf32>
    %271 = vector.extract_strided_slice %268 {offsets = [0, 0], sizes = [8, 32], strides = [1, 1]} : vector<8x96xf32> to vector<8x32xf32>
    %272 = vector.extract_strided_slice %268 {offsets = [0, 32], sizes = [8, 32], strides = [1, 1]} : vector<8x96xf32> to vector<8x32xf32>
    %273 = vector.extract_strided_slice %268 {offsets = [0, 64], sizes = [8, 32], strides = [1, 1]} : vector<8x96xf32> to vector<8x32xf32>
    %274 = arith.mulf %272, %255 : vector<8x32xf32>
    %275 = arith.mulf %271, %270 : vector<8x32xf32>
    %276 = arith.addf %274, %275 : vector<8x32xf32>
    %277 = math.tanh %276 : vector<8x32xf32>
    %278 = arith.mulf %273, %277 : vector<8x32xf32>
    %279 = vector.extract_strided_slice %213 {offsets = [0, 3, 0], sizes = [8, 1, 128], strides = [1, 1, 1]} : vector<8x8x128xf32> to vector<8x1x128xf32>
    %280 = vector.shape_cast %279 : vector<8x1x128xf32> to vector<8x128xf32>
    %281 = arith.truncf %278 : vector<8x32xf32> to vector<8x32xbf16>
    %cst_61 = arith.constant dense<0.000000e+00> : vector<8x128xf32>
    %282 = tpu.matmul %281, %205, %cst_61 {dimension_numbers = #tpu.dot_dimension_numbers<[1], [0], [0], [1], [0, 0, 1, 1], [], []>} : vector<8x32xbf16>, vector<32x128xbf16>, vector<8x128xf32> -> vector<8x128xf32>
    %283 = arith.addf %280, %282 : vector<8x128xf32>
    %284 = vector.extract_strided_slice %283 {offsets = [0, 0], sizes = [8, 96], strides = [1, 1]} : vector<8x128xf32> to vector<8x96xf32>
    %285 = arith.negf %284 : vector<8x96xf32>
    %286 = math.exp %285 : vector<8x96xf32>
    %cst_62 = arith.constant 1.000000e+00 : f32
    %287 = vector.broadcast %cst_62 : f32 to vector<8x96xf32>
    %288 = arith.addf %287, %286 : vector<8x96xf32>
    %289 = arith.divf %287, %288 : vector<8x96xf32>
    %290 = vector.extract_strided_slice %283 {offsets = [0, 96], sizes = [8, 32], strides = [1, 1]} : vector<8x128xf32> to vector<8x32xf32>
    %291 = math.tanh %290 : vector<8x32xf32>
    %292 = vector.extract_strided_slice %289 {offsets = [0, 0], sizes = [8, 32], strides = [1, 1]} : vector<8x96xf32> to vector<8x32xf32>
    %293 = vector.extract_strided_slice %289 {offsets = [0, 32], sizes = [8, 32], strides = [1, 1]} : vector<8x96xf32> to vector<8x32xf32>
    %294 = vector.extract_strided_slice %289 {offsets = [0, 64], sizes = [8, 32], strides = [1, 1]} : vector<8x96xf32> to vector<8x32xf32>
    %295 = arith.mulf %293, %276 : vector<8x32xf32>
    %296 = arith.mulf %292, %291 : vector<8x32xf32>
    %297 = arith.addf %295, %296 : vector<8x32xf32>
    %298 = math.tanh %297 : vector<8x32xf32>
    %299 = arith.mulf %294, %298 : vector<8x32xf32>
    %300 = vector.extract_strided_slice %213 {offsets = [0, 4, 0], sizes = [8, 1, 128], strides = [1, 1, 1]} : vector<8x8x128xf32> to vector<8x1x128xf32>
    %301 = vector.shape_cast %300 : vector<8x1x128xf32> to vector<8x128xf32>
    %302 = arith.truncf %299 : vector<8x32xf32> to vector<8x32xbf16>
    %cst_63 = arith.constant dense<0.000000e+00> : vector<8x128xf32>
    %303 = tpu.matmul %302, %205, %cst_63 {dimension_numbers = #tpu.dot_dimension_numbers<[1], [0], [0], [1], [0, 0, 1, 1], [], []>} : vector<8x32xbf16>, vector<32x128xbf16>, vector<8x128xf32> -> vector<8x128xf32>
    %304 = arith.addf %301, %303 : vector<8x128xf32>
    %305 = vector.extract_strided_slice %304 {offsets = [0, 0], sizes = [8, 96], strides = [1, 1]} : vector<8x128xf32> to vector<8x96xf32>
    %306 = arith.negf %305 : vector<8x96xf32>
    %307 = math.exp %306 : vector<8x96xf32>
    %cst_64 = arith.constant 1.000000e+00 : f32
    %308 = vector.broadcast %cst_64 : f32 to vector<8x96xf32>
    %309 = arith.addf %308, %307 : vector<8x96xf32>
    %310 = arith.divf %308, %309 : vector<8x96xf32>
    %311 = vector.extract_strided_slice %304 {offsets = [0, 96], sizes = [8, 32], strides = [1, 1]} : vector<8x128xf32> to vector<8x32xf32>
    %312 = math.tanh %311 : vector<8x32xf32>
    %313 = vector.extract_strided_slice %310 {offsets = [0, 0], sizes = [8, 32], strides = [1, 1]} : vector<8x96xf32> to vector<8x32xf32>
    %314 = vector.extract_strided_slice %310 {offsets = [0, 32], sizes = [8, 32], strides = [1, 1]} : vector<8x96xf32> to vector<8x32xf32>
    %315 = vector.extract_strided_slice %310 {offsets = [0, 64], sizes = [8, 32], strides = [1, 1]} : vector<8x96xf32> to vector<8x32xf32>
    %316 = arith.mulf %314, %297 : vector<8x32xf32>
    %317 = arith.mulf %313, %312 : vector<8x32xf32>
    %318 = arith.addf %316, %317 : vector<8x32xf32>
    %319 = math.tanh %318 : vector<8x32xf32>
    %320 = arith.mulf %315, %319 : vector<8x32xf32>
    %321 = vector.extract_strided_slice %213 {offsets = [0, 5, 0], sizes = [8, 1, 128], strides = [1, 1, 1]} : vector<8x8x128xf32> to vector<8x1x128xf32>
    %322 = vector.shape_cast %321 : vector<8x1x128xf32> to vector<8x128xf32>
    %323 = arith.truncf %320 : vector<8x32xf32> to vector<8x32xbf16>
    %cst_65 = arith.constant dense<0.000000e+00> : vector<8x128xf32>
    %324 = tpu.matmul %323, %205, %cst_65 {dimension_numbers = #tpu.dot_dimension_numbers<[1], [0], [0], [1], [0, 0, 1, 1], [], []>} : vector<8x32xbf16>, vector<32x128xbf16>, vector<8x128xf32> -> vector<8x128xf32>
    %325 = arith.addf %322, %324 : vector<8x128xf32>
    %326 = vector.extract_strided_slice %325 {offsets = [0, 0], sizes = [8, 96], strides = [1, 1]} : vector<8x128xf32> to vector<8x96xf32>
    %327 = arith.negf %326 : vector<8x96xf32>
    %328 = math.exp %327 : vector<8x96xf32>
    %cst_66 = arith.constant 1.000000e+00 : f32
    %329 = vector.broadcast %cst_66 : f32 to vector<8x96xf32>
    %330 = arith.addf %329, %328 : vector<8x96xf32>
    %331 = arith.divf %329, %330 : vector<8x96xf32>
    %332 = vector.extract_strided_slice %325 {offsets = [0, 96], sizes = [8, 32], strides = [1, 1]} : vector<8x128xf32> to vector<8x32xf32>
    %333 = math.tanh %332 : vector<8x32xf32>
    %334 = vector.extract_strided_slice %331 {offsets = [0, 0], sizes = [8, 32], strides = [1, 1]} : vector<8x96xf32> to vector<8x32xf32>
    %335 = vector.extract_strided_slice %331 {offsets = [0, 32], sizes = [8, 32], strides = [1, 1]} : vector<8x96xf32> to vector<8x32xf32>
    %336 = vector.extract_strided_slice %331 {offsets = [0, 64], sizes = [8, 32], strides = [1, 1]} : vector<8x96xf32> to vector<8x32xf32>
    %337 = arith.mulf %335, %318 : vector<8x32xf32>
    %338 = arith.mulf %334, %333 : vector<8x32xf32>
    %339 = arith.addf %337, %338 : vector<8x32xf32>
    %340 = math.tanh %339 : vector<8x32xf32>
    %341 = arith.mulf %336, %340 : vector<8x32xf32>
    %342 = vector.extract_strided_slice %213 {offsets = [0, 6, 0], sizes = [8, 1, 128], strides = [1, 1, 1]} : vector<8x8x128xf32> to vector<8x1x128xf32>
    %343 = vector.shape_cast %342 : vector<8x1x128xf32> to vector<8x128xf32>
    %344 = arith.truncf %341 : vector<8x32xf32> to vector<8x32xbf16>
    %cst_67 = arith.constant dense<0.000000e+00> : vector<8x128xf32>
    %345 = tpu.matmul %344, %205, %cst_67 {dimension_numbers = #tpu.dot_dimension_numbers<[1], [0], [0], [1], [0, 0, 1, 1], [], []>} : vector<8x32xbf16>, vector<32x128xbf16>, vector<8x128xf32> -> vector<8x128xf32>
    %346 = arith.addf %343, %345 : vector<8x128xf32>
    %347 = vector.extract_strided_slice %346 {offsets = [0, 0], sizes = [8, 96], strides = [1, 1]} : vector<8x128xf32> to vector<8x96xf32>
    %348 = arith.negf %347 : vector<8x96xf32>
    %349 = math.exp %348 : vector<8x96xf32>
    %cst_68 = arith.constant 1.000000e+00 : f32
    %350 = vector.broadcast %cst_68 : f32 to vector<8x96xf32>
    %351 = arith.addf %350, %349 : vector<8x96xf32>
    %352 = arith.divf %350, %351 : vector<8x96xf32>
    %353 = vector.extract_strided_slice %346 {offsets = [0, 96], sizes = [8, 32], strides = [1, 1]} : vector<8x128xf32> to vector<8x32xf32>
    %354 = math.tanh %353 : vector<8x32xf32>
    %355 = vector.extract_strided_slice %352 {offsets = [0, 0], sizes = [8, 32], strides = [1, 1]} : vector<8x96xf32> to vector<8x32xf32>
    %356 = vector.extract_strided_slice %352 {offsets = [0, 32], sizes = [8, 32], strides = [1, 1]} : vector<8x96xf32> to vector<8x32xf32>
    %357 = vector.extract_strided_slice %352 {offsets = [0, 64], sizes = [8, 32], strides = [1, 1]} : vector<8x96xf32> to vector<8x32xf32>
    %358 = arith.mulf %356, %339 : vector<8x32xf32>
    %359 = arith.mulf %355, %354 : vector<8x32xf32>
    %360 = arith.addf %358, %359 : vector<8x32xf32>
    %361 = math.tanh %360 : vector<8x32xf32>
    %362 = arith.mulf %357, %361 : vector<8x32xf32>
    %363 = vector.extract_strided_slice %213 {offsets = [0, 7, 0], sizes = [8, 1, 128], strides = [1, 1, 1]} : vector<8x8x128xf32> to vector<8x1x128xf32>
    %364 = vector.shape_cast %363 : vector<8x1x128xf32> to vector<8x128xf32>
    %365 = arith.truncf %362 : vector<8x32xf32> to vector<8x32xbf16>
    %cst_69 = arith.constant dense<0.000000e+00> : vector<8x128xf32>
    %366 = tpu.matmul %365, %205, %cst_69 {dimension_numbers = #tpu.dot_dimension_numbers<[1], [0], [0], [1], [0, 0, 1, 1], [], []>} : vector<8x32xbf16>, vector<32x128xbf16>, vector<8x128xf32> -> vector<8x128xf32>
    %367 = arith.addf %364, %366 : vector<8x128xf32>
    %368 = vector.extract_strided_slice %367 {offsets = [0, 0], sizes = [8, 96], strides = [1, 1]} : vector<8x128xf32> to vector<8x96xf32>
    %369 = arith.negf %368 : vector<8x96xf32>
    %370 = math.exp %369 : vector<8x96xf32>
    %cst_70 = arith.constant 1.000000e+00 : f32
    %371 = vector.broadcast %cst_70 : f32 to vector<8x96xf32>
    %372 = arith.addf %371, %370 : vector<8x96xf32>
    %373 = arith.divf %371, %372 : vector<8x96xf32>
    %374 = vector.extract_strided_slice %367 {offsets = [0, 96], sizes = [8, 32], strides = [1, 1]} : vector<8x128xf32> to vector<8x32xf32>
    %375 = math.tanh %374 : vector<8x32xf32>
    %376 = vector.extract_strided_slice %373 {offsets = [0, 0], sizes = [8, 32], strides = [1, 1]} : vector<8x96xf32> to vector<8x32xf32>
    %377 = vector.extract_strided_slice %373 {offsets = [0, 32], sizes = [8, 32], strides = [1, 1]} : vector<8x96xf32> to vector<8x32xf32>
    %378 = vector.extract_strided_slice %373 {offsets = [0, 64], sizes = [8, 32], strides = [1, 1]} : vector<8x96xf32> to vector<8x32xf32>
    %379 = arith.mulf %377, %360 : vector<8x32xf32>
    %380 = arith.mulf %376, %375 : vector<8x32xf32>
    %381 = arith.addf %379, %380 : vector<8x32xf32>
    %382 = math.tanh %381 : vector<8x32xf32>
    %383 = arith.mulf %378, %382 : vector<8x32xf32>
    %c0_71 = arith.constant 0 : index
    %c0_72 = arith.constant 0 : index
    %c0_73 = arith.constant 0 : index
    %384 = vector.load %arg2[%c0_71, %c0_72, %c0_73] : memref<8x4x8xf32, #tpu.memory_space<vmem>>, vector<8x4x8xf32>
    %cst_74 = arith.constant dense<0.000000e+00> : vector<8x8xf32>
    %385 = vector.multi_reduction <add>, %384, %cst_74 [1] : vector<8x4x8xf32> to vector<8x8xf32>
    %cst_75 = arith.constant 4.000000e+00 : f32
    %386 = vector.broadcast %cst_75 : f32 to vector<8x8xf32>
    %387 = arith.divf %385, %386 : vector<8x8xf32>
    %cst_76 = arith.constant dense<0xFF800000> : vector<8x8xf32>
    %388 = vector.multi_reduction <maximumf>, %384, %cst_76 [1] : vector<8x4x8xf32> to vector<8x8xf32>
    %389 = arith.truncf %383 : vector<8x32xf32> to vector<8x32xbf16>
    %c0_77 = arith.constant 0 : index
    %c0_78 = arith.constant 0 : index
    %390 = vector.load %arg9[%c0_77, %c0_78] : memref<32x5xbf16, #tpu.memory_space<vmem>>, vector<32x5xbf16>
    %cst_79 = arith.constant dense<0.000000e+00> : vector<8x5xf32>
    %391 = tpu.matmul %389, %390, %cst_79 {dimension_numbers = #tpu.dot_dimension_numbers<[1], [0], [0], [1], [0, 0, 1, 1], [], []>} : vector<8x32xbf16>, vector<32x5xbf16>, vector<8x5xf32> -> vector<8x5xf32>
    %392 = arith.truncf %387 : vector<8x8xf32> to vector<8x8xbf16>
    %c0_80 = arith.constant 0 : index
    %c0_81 = arith.constant 0 : index
    %393 = vector.load %arg10[%c0_80, %c0_81] : memref<8x5xbf16, #tpu.memory_space<vmem>>, vector<8x5xbf16>
    %cst_82 = arith.constant dense<0.000000e+00> : vector<8x5xf32>
    %394 = tpu.matmul %392, %393, %cst_82 {dimension_numbers = #tpu.dot_dimension_numbers<[1], [0], [0], [1], [0, 0, 1, 1], [], []>} : vector<8x8xbf16>, vector<8x5xbf16>, vector<8x5xf32> -> vector<8x5xf32>
    %395 = arith.addf %391, %394 : vector<8x5xf32>
    %396 = arith.truncf %388 : vector<8x8xf32> to vector<8x8xbf16>
    %c0_83 = arith.constant 0 : index
    %c0_84 = arith.constant 0 : index
    %397 = vector.load %arg11[%c0_83, %c0_84] : memref<8x5xbf16, #tpu.memory_space<vmem>>, vector<8x5xbf16>
    %cst_85 = arith.constant dense<0.000000e+00> : vector<8x5xf32>
    %398 = tpu.matmul %396, %397, %cst_85 {dimension_numbers = #tpu.dot_dimension_numbers<[1], [0], [0], [1], [0, 0, 1, 1], [], []>} : vector<8x8xbf16>, vector<8x5xbf16>, vector<8x5xf32> -> vector<8x5xf32>
    %399 = arith.addf %395, %398 : vector<8x5xf32>
    %c0_86 = arith.constant 0 : index
    %c0_87 = arith.constant 0 : index
    %400 = vector.load %arg12[%c0_86, %c0_87] : memref<1x5xf32, #tpu.memory_space<vmem>>, vector<1x5xf32>
    %401 = vector.broadcast %400 : vector<1x5xf32> to vector<8x5xf32>
    %402 = arith.addf %399, %401 : vector<8x5xf32>
    %c0_88 = arith.constant 0 : index
    %c0_89 = arith.constant 0 : index
    %403 = vector.load %arg13[%c0_88, %c0_89] : memref<8x5xf32, #tpu.memory_space<vmem>>, vector<8x5xf32>
    tpu.vector_store %arg13[%c0_88, %c0_89], %402 {strides = array<i32>} : memref<8x5xf32, #tpu.memory_space<vmem>>, vector<8x5xf32>,
    return
  }
  func.func @transform_0(%arg0: i32) -> (i32, i32, i32) {
    %c0_i32 = arith.constant 0 : i32
    %c0_i32_0 = arith.constant 0 : i32
    %c0_i32_1 = arith.constant 0 : i32
    return %arg0, %c0_i32, %c0_i32_0 : i32, i32, i32
  }
  func.func @transform_1(%arg0: i32) -> (i32, i32, i32) {
    %c0_i32 = arith.constant 0 : i32
    %c0_i32_0 = arith.constant 0 : i32
    %c0_i32_1 = arith.constant 0 : i32
    return %arg0, %c0_i32, %c0_i32_0 : i32, i32, i32
  }
  func.func @transform_2(%arg0: i32) -> (i32, i32) {
    %c0_i32 = arith.constant 0 : i32
    %c0_i32_0 = arith.constant 0 : i32
    %c0_i32_1 = arith.constant 0 : i32
    return %c0_i32, %c0_i32_0 : i32, i32
  }
  func.func @transform_3(%arg0: i32) -> (i32, i32) {
    %c0_i32 = arith.constant 0 : i32
    %c0_i32_0 = arith.constant 0 : i32
    %c0_i32_1 = arith.constant 0 : i32
    return %c0_i32, %c0_i32_0 : i32, i32
  }
  func.func @transform_4(%arg0: i32) -> (i32, i32) {
    %c0_i32 = arith.constant 0 : i32
    %c0_i32_0 = arith.constant 0 : i32
    %c0_i32_1 = arith.constant 0 : i32
    return %c0_i32, %c0_i32_0 : i32, i32
  }
  func.func @transform_5(%arg0: i32) -> (i32, i32) {
    %c0_i32 = arith.constant 0 : i32
    %c0_i32_0 = arith.constant 0 : i32
    %c0_i32_1 = arith.constant 0 : i32
    return %c0_i32, %c0_i32_0 : i32, i32
  }
  func.func @transform_6(%arg0: i32) -> (i32, i32) {
    %c0_i32 = arith.constant 0 : i32
    %c0_i32_0 = arith.constant 0 : i32
    %c0_i32_1 = arith.constant 0 : i32
    return %c0_i32, %c0_i32_0 : i32, i32
  }
  func.func @transform_7(%arg0: i32) -> (i32, i32) {
    %c0_i32 = arith.constant 0 : i32
    %c0_i32_0 = arith.constant 0 : i32
    %c0_i32_1 = arith.constant 0 : i32
    return %c0_i32, %c0_i32_0 : i32, i32
  }
  func.func @transform_8(%arg0: i32) -> (i32, i32) {
    %c0_i32 = arith.constant 0 : i32
    %c0_i32_0 = arith.constant 0 : i32
    %c0_i32_1 = arith.constant 0 : i32
    return %c0_i32, %c0_i32_0 : i32, i32
  }
  func.func @transform_9(%arg0: i32) -> (i32, i32) {
    %c0_i32 = arith.constant 0 : i32
    %c0_i32_0 = arith.constant 0 : i32
    %c0_i32_1 = arith.constant 0 : i32
    return %c0_i32, %c0_i32_0 : i32, i32
  }
  func.func @transform_10(%arg0: i32) -> (i32, i32) {
    %c0_i32 = arith.constant 0 : i32
    %c0_i32_0 = arith.constant 0 : i32
    %c0_i32_1 = arith.constant 0 : i32
    return %c0_i32, %c0_i32_0 : i32, i32
  }
  func.func @transform_11(%arg0: i32) -> (i32, i32) {
    %c0_i32 = arith.constant 0 : i32
    %c0_i32_0 = arith.constant 0 : i32
    %c0_i32_1 = arith.constant 0 : i32
    return %c0_i32, %c0_i32_0 : i32, i32
  }
  func.func @transform_12(%arg0: i32) -> (i32, i32) {
    %c0_i32 = arith.constant 0 : i32
    %c0_i32_0 = arith.constant 0 : i32
    return %arg0, %c0_i32 : i32, i32
  }
}

</mosaic_0001>

<llo_original>
// kernel: tpu_custom_call.1
$region0: #{tpu_custom_call.1}
  #allocation0 [shape = 'u32[]', space=smem, size = 0x4, offset = 0x4, fixed_abs, tag = 'smem constant byte address 0x4 - core index']
  #allocation1 [shape = 'u32[72,128]{1,0:T(1,128)}', space=vmem, size = 0x9000, scoped, tag = 'internal scratch']
  #allocation2 [shape = 'f32[8,8,32]{2,1,0:T(8,128)}', space=vmem, size = 0x8000, scoped, tag = 'scratch operand']
  %s0 = inlined_call_operand.hbm [shape: f32[8,8,16], index: 0, kind: input, shape index: {}]
  %s1 = inlined_call_operand.hbm [shape: f32[8,4,8], index: 1, kind: input, shape index: {}]
  %s2 = inlined_call_operand.hbm [shape: bf16[16,128], index: 2, kind: input, shape index: {}]
  %s3 = inlined_call_operand.vmem [shape: bf16[32,128], index: 3, kind: input, shape index: {}]
  %s4 = inlined_call_operand.hbm [shape: f32[1,128], index: 4, kind: input, shape index: {}]
  %s5 = inlined_call_operand.hbm [shape: bf16[32,128], index: 5, kind: input, shape index: {}]
  %s6 = inlined_call_operand.hbm [shape: bf16[32,128], index: 6, kind: input, shape index: {}]
  %s7 = inlined_call_operand.hbm [shape: f32[1,128], index: 7, kind: input, shape index: {}]
  %s8 = inlined_call_operand.vmem [shape: bf16[32,5], index: 8, kind: input, shape index: {}]
  %s9 = inlined_call_operand.vmem [shape: bf16[8,5], index: 9, kind: input, shape index: {}]
  %s10 = inlined_call_operand.vmem [shape: bf16[8,5], index: 10, kind: input, shape index: {}]
  %s11 = inlined_call_operand.vmem [shape: f32[1,5], index: 11, kind: input, shape index: {}]
  %s12 = inlined_call_operand.hbm [shape: f32[8,5], index: 12, kind: output, shape index: {}]
  %s13 = sld [smem:[#allocation0]]
  $region86: #{tpu_custom_call.1} parent=0
    _
  %s15 = ssub.s32 1, %s13
  %s16 = scalar_select 0, %s15, %s13
  $region1: #{tpu_custom_call.1} parent=0
    #allocation3 [shape = 'u8[32768]{0}', space=vmem, size = 0x8000, scoped, tag = 'input window, operand 0, single buffered']
    #allocation4 [shape = 's32[1]{0}', space=sflag, size = 0x4, scoped, tag = 'scoped memory for tpu_custom_call.1']
    #allocation5 [shape = 's32[1]{0}', space=sflag, size = 0x4, scoped, tag = 'scoped memory for tpu_custom_call.1']
    #allocation6 [shape = 'u8[16384]{0}', space=vmem, size = 0x4000, scoped, tag = 'input window, operand 1, single buffered']
    #allocation7 [shape = 's32[1]{0}', space=sflag, size = 0x4, scoped, tag = 'scoped memory for tpu_custom_call.1']
    #allocation8 [shape = 'u8[4096]{0}', space=vmem, size = 0x1000, scoped, tag = 'input window, operand 2, single buffered']
    #allocation9 [shape = 'u8[512]{0}', space=vmem, size = 0x400, scoped, tag = 'input window, operand 4, single buffered']
    #allocation10 [shape = 's32[1]{0}', space=sflag, size = 0x4, scoped, tag = 'scoped memory for tpu_custom_call.1']
    #allocation11 [shape = 'u8[8192]{0}', space=vmem, size = 0x2000, scoped, tag = 'input window, operand 5, single buffered']
    #allocation12 [shape = 'u8[8192]{0}', space=vmem, size = 0x2000, scoped, tag = 'input window, operand 6, single buffered']
    #allocation13 [shape = 's32[1]{0}', space=sflag, size = 0x4, scoped, tag = 'scoped memory for tpu_custom_call.1']
    #allocation14 [shape = 'u8[512]{0}', space=vmem, size = 0x400, scoped, tag = 'input window, operand 7, single buffered']
    #allocation15 [shape = 'u8[4096]{0}', space=vmem, size = 0x1000, scoped, tag = 'output window, operand 0, single buffered']
    %17 = vsyncpa [#allocation4], 0
    %18 = vsyncpa [#allocation7], 0
    %19 = vsyncpa [#allocation10], 0
    %20 = vsyncpa [#allocation13], 0
    %21 = vsyncpa [#allocation5], 0
    // Predicated region
    $region2: #{tpu_custom_call.1} parent=1 // pred_check
      _
    $region3: #{tpu_custom_call.1} parent=1 // pred_check_branch
      %23 = sbr.rel (0) target = $region5
    $region4: #{tpu_custom_call.1} parent=1 // pred_region
      %25 = vsyncadd [#allocation4], 0
      %s26 = sshll.u32 %s0, 4
      %s27 = int_to_ptr.hbm [resolvable:$true] %s26
      %s28 = sshll.u32 [#allocation3], 4
      %s29 = int_to_ptr.vmem [resolvable:$true] %s28
      %34 = dma.hbm_to_vmem [thread:$0]  %s27, 1024, %s29, [#allocation4], 128, 128, 8
    $region5: #{tpu_custom_call.1} parent=1 // pred_fallthru
      _
    // Predicated region
    $region6: #{tpu_custom_call.1} parent=1 // pred_check
      _
    $region7: #{tpu_custom_call.1} parent=1 // pred_check_branch
      %36 = sbr.rel (0) target = $region9
    $region8: #{tpu_custom_call.1} parent=1 // pred_region
      %38 = vsyncadd [#allocation7], 0
      %s39 = sshll.u32 %s1, 4
      %s40 = int_to_ptr.hbm [resolvable:$true] %s39
      %s41 = sshll.u32 [#allocation6], 4
      %s42 = int_to_ptr.vmem [resolvable:$true] %s41
      %47 = dma.hbm_to_vmem [thread:$0]  %s40, 512, %s42, [#allocation7], 64, 64, 4
    $region9: #{tpu_custom_call.1} parent=1 // pred_fallthru
      _
    // Predicated region
    $region10: #{tpu_custom_call.1} parent=1 // pred_check
      _
    $region11: #{tpu_custom_call.1} parent=1 // pred_check_branch
      %49 = sbr.rel (0) target = $region13
    $region12: #{tpu_custom_call.1} parent=1 // pred_region
      %51 = vsyncadd [#allocation7], 0
      %s52 = sshll.u32 %s2, 4
      %s53 = int_to_ptr.hbm [resolvable:$true] %s52
      %s54 = sshll.u32 [#allocation8], 4
      %s55 = int_to_ptr.vmem [resolvable:$true] %s54
      %60 = dma.hbm_to_vmem [thread:$0]  %s53, 128, %s55, [#allocation7], 64, 64, 4
    $region13: #{tpu_custom_call.1} parent=1 // pred_fallthru
      _
    // Predicated region
    $region14: #{tpu_custom_call.1} parent=1 // pred_check
      _
    $region15: #{tpu_custom_call.1} parent=1 // pred_check_branch
      %62 = sbr.rel (0) target = $region17
    $region16: #{tpu_custom_call.1} parent=1 // pred_region
      _
    $region17: #{tpu_custom_call.1} parent=1 // pred_fallthru
      _
    // Predicated region
    $region18: #{tpu_custom_call.1} parent=1 // pred_check
      _
    $region19: #{tpu_custom_call.1} parent=1 // pred_check_branch
      %64 = sbr.rel (0) target = $region21
    $region20: #{tpu_custom_call.1} parent=1 // pred_region
      %66 = vsyncadd [#allocation10], 0
      %s68 = sshll.u32 %s4, 4
      %s69 = int_to_ptr.hbm [resolvable:$true] %s68
      %s70 = sshll.u32 [#allocation9], 4
      %s71 = int_to_ptr.vmem [resolvable:$true] %s70
      %73 = dma.hbm_to_vmem [thread:$0]  %s69, 16, %s71, [#allocation10]
    $region21: #{tpu_custom_call.1} parent=1 // pred_fallthru
      _
    // Predicated region
    $region22: #{tpu_custom_call.1} parent=1 // pred_check
      _
    $region23: #{tpu_custom_call.1} parent=1 // pred_check_branch
      %75 = sbr.rel (0) target = $region25
    $region24: #{tpu_custom_call.1} parent=1 // pred_region
      %77 = vsyncadd [#allocation10], 0
      %s78 = sshll.u32 %s5, 4
      %s79 = int_to_ptr.hbm [resolvable:$true] %s78
      %s80 = sshll.u32 [#allocation11], 4
      %s81 = int_to_ptr.vmem [resolvable:$true] %s80
      %86 = dma.hbm_to_vmem [thread:$0]  %s79, 256, %s81, [#allocation10], 64, 64, 4
    $region25: #{tpu_custom_call.1} parent=1 // pred_fallthru
      _
    // Predicated region
    $region26: #{tpu_custom_call.1} parent=1 // pred_check
      _
    $region27: #{tpu_custom_call.1} parent=1 // pred_check_branch
      %88 = sbr.rel (0) target = $region29
    $region28: #{tpu_custom_call.1} parent=1 // pred_region
      %90 = vsyncadd [#allocation13], 0
      %s91 = sshll.u32 %s6, 4
      %s92 = int_to_ptr.hbm [resolvable:$true] %s91
      %s93 = sshll.u32 [#allocation12], 4
      %s94 = int_to_ptr.vmem [resolvable:$true] %s93
      %99 = dma.hbm_to_vmem [thread:$0]  %s92, 256, %s94, [#allocation13], 64, 64, 4
    $region29: #{tpu_custom_call.1} parent=1 // pred_fallthru
      _
    // Predicated region
    $region30: #{tpu_custom_call.1} parent=1 // pred_check
      _
    $region31: #{tpu_custom_call.1} parent=1 // pred_check_branch
      %101 = sbr.rel (0) target = $region33
    $region32: #{tpu_custom_call.1} parent=1 // pred_region
      %103 = vsyncadd [#allocation13], 0
      %s105 = sshll.u32 %s7, 4
      %s106 = int_to_ptr.hbm [resolvable:$true] %s105
      %s107 = sshll.u32 [#allocation14], 4
      %s108 = int_to_ptr.vmem [resolvable:$true] %s107
      %110 = dma.hbm_to_vmem [thread:$0]  %s106, 16, %s108, [#allocation13]
    $region33: #{tpu_custom_call.1} parent=1 // pred_fallthru
      _
    // Predicated region
    $region34: #{tpu_custom_call.1} parent=1 // pred_check
      _
    $region35: #{tpu_custom_call.1} parent=1 // pred_check_branch
      %112 = sbr.rel (0) target = $region37
    $region36: #{tpu_custom_call.1} parent=1 // pred_region
      _
    $region37: #{tpu_custom_call.1} parent=1 // pred_fallthru
      _
    // Predicated region
    $region38: #{tpu_custom_call.1} parent=1 // pred_check
      _
    $region39: #{tpu_custom_call.1} parent=1 // pred_check_branch
      %114 = sbr.rel (0) target = $region41
    $region40: #{tpu_custom_call.1} parent=1 // pred_region
      _
    $region41: #{tpu_custom_call.1} parent=1 // pred_fallthru
      _
    // Predicated region
    $region42: #{tpu_custom_call.1} parent=1 // pred_check
      _
    $region43: #{tpu_custom_call.1} parent=1 // pred_check_branch
      %116 = sbr.rel (0) target = $region45
    $region44: #{tpu_custom_call.1} parent=1 // pred_region
      _
    $region45: #{tpu_custom_call.1} parent=1 // pred_fallthru
      _
    // Predicated region
    $region46: #{tpu_custom_call.1} parent=1 // pred_check
      _
    $region47: #{tpu_custom_call.1} parent=1 // pred_check_branch
      %118 = sbr.rel (0) target = $region49
    $region48: #{tpu_custom_call.1} parent=1 // pred_region
      _
    $region49: #{tpu_custom_call.1} parent=1 // pred_fallthru
      _
    // Predicated region
    $region50: #{tpu_custom_call.1} parent=1 // pred_check
      _
    $region51: #{tpu_custom_call.1} parent=1 // pred_check_branch
      %120 = sbr.rel (0) target = $region53
    $region52: #{tpu_custom_call.1} parent=1 // pred_region
      %122 = dma.done [#allocation4], 1024
    $region53: #{tpu_custom_call.1} parent=1 // pred_fallthru
      _
    // Predicated region
    $region54: #{tpu_custom_call.1} parent=1 // pred_check
      _
    $region55: #{tpu_custom_call.1} parent=1 // pred_check_branch
      %124 = sbr.rel (0) target = $region57
    $region56: #{tpu_custom_call.1} parent=1 // pred_region
      %126 = dma.done [#allocation7], 512
    $region57: #{tpu_custom_call.1} parent=1 // pred_fallthru
      _
    // Predicated region
    $region58: #{tpu_custom_call.1} parent=1 // pred_check
      _
    $region59: #{tpu_custom_call.1} parent=1 // pred_check_branch
      %128 = sbr.rel (0) target = $region61
    $region60: #{tpu_custom_call.1} parent=1 // pred_region
      %130 = dma.done [#allocation7], 128
    $region61: #{tpu_custom_call.1} parent=1 // pred_fallthru
      _
    // Predicated region
    $region62: #{tpu_custom_call.1} parent=1 // pred_check
      _
    $region63: #{tpu_custom_call.1} parent=1 // pred_check_branch
      %132 = sbr.rel (0) target = $region65
    $region64: #{tpu_custom_call.1} parent=1 // pred_region
      %134 = dma.done [#allocation10], 16
    $region65: #{tpu_custom_call.1} parent=1 // pred_fallthru
      _
    // Predicated region
    $region66: #{tpu_custom_call.1} parent=1 // pred_check
      _
    $region67: #{tpu_custom_call.1} parent=1 // pred_check_branch
      %136 = sbr.rel (0) target = $region69
    $region68: #{tpu_custom_call.1} parent=1 // pred_region
      %138 = dma.done [#allocation10], 256
    $region69: #{tpu_custom_call.1} parent=1 // pred_fallthru
      _
    // Predicated region
    $region70: #{tpu_custom_call.1} parent=1 // pred_check
      _
    $region71: #{tpu_custom_call.1} parent=1 // pred_check_branch
      %140 = sbr.rel (0) target = $region73
    $region72: #{tpu_custom_call.1} parent=1 // pred_region
      %142 = dma.done [#allocation13], 256
    $region73: #{tpu_custom_call.1} parent=1 // pred_fallthru
      _
    // Predicated region
    $region74: #{tpu_custom_call.1} parent=1 // pred_check
      _
    $region75: #{tpu_custom_call.1} parent=1 // pred_check_branch
      %144 = sbr.rel (0) target = $region77
    $region76: #{tpu_custom_call.1} parent=1 // pred_region
      %146 = dma.done [#allocation13], 16
    $region77: #{tpu_custom_call.1} parent=1 // pred_fallthru
      _
    %v148 = vld [vmem:[#allocation3] sm:$0xff]
    %v149 = vld [vmem:[#allocation3 + $0x8] sm:$0xff]
    %v150 = vld [vmem:[#allocation3 + $0x10] sm:$0xff]
    %v151 = vld [vmem:[#allocation3 + $0x18] sm:$0xff]
    %v152 = vld [vmem:[#allocation3 + $0x20] sm:$0xff]
    %v153 = vld [vmem:[#allocation3 + $0x28] sm:$0xff]
    %v154 = vld [vmem:[#allocation3 + $0x30] sm:$0xff]
    %v155 = vld [vmem:[#allocation3 + $0x38] sm:$0xff]
    %v156 = vld [vmem:[#allocation8] sm:$0xf]
    %v157 = vld [vmem:[#allocation8 + $0x4] sm:$0xf]
    %v158 = vld [vmem:[%s3] sm:$0xf]
    %v159 = vld [vmem:[%s3 + $0x4] sm:$0xf]
    %v160 = vld [vmem:[%s3 + $0x8] sm:$0xf]
    %v161 = vld [vmem:[%s3 + $0xc] sm:$0xf]
    %v162 = vld [vmem:[#allocation9] sm:$0x1]
    %v163 = vpack.c.bf16 %v149, %v148
    %v164 = vpack.c.bf16 %v151, %v150
    %v165 = vpack.c.bf16 %v153, %v152
    %v166 = vpack.c.bf16 %v155, %v154
    %v168 = vperm.slane %v162, 0
    %v172 = vunpack.c.l.b16 %v156
    %v173 = vunpack.c.l.b16 %v157
    %v174 = vpack.c.b16 %v173, %v172
    %vm176 = vcmask 130048
    %v178 = vsel %vm176, %v163, 0
    %v181 = vsel %vm176, %v164, 0
    %v184 = vsel %vm176, %v165, 0
    %v187 = vsel %vm176, %v166, 0
    %189 = vmatpush.bf16.msra.mxu0 0
    %190 = vmatpush.bf16.msra.mxu0 0
    %191 = vmatpush.bf16.msra.mxu0 0
    %192 = vmatpush.bf16.msra.mxu0 0
    %193 = vmatpush.bf16.msra.mxu0 0
    %194 = vmatpush.bf16.msra.mxu0 0
    %195 = vmatpush.bf16.msra.mxu0 0
    %196 = vmatpush.bf16.msra.mxu0 %v174
    %197 = vmatmul.bf16.gmra.mxu0 %v178
    %v198 = vpop.f32.mrf.mxu0
    %v199 = vadd.f32 %v168, %v198
    %v200 = vpop.f32.mrf.mxu0
    %v201 = vadd.f32 %v168, %v200
    %202 = vmatmul.bf16.gmra.mxu0 %v181
    %v203 = vpop.f32.mrf.mxu0
    %v204 = vadd.f32 %v168, %v203
    %v205 = vpop.f32.mrf.mxu0
    %v206 = vadd.f32 %v168, %v205
    %207 = vmatmul.bf16.gmra.mxu0 %v184
    %v208 = vpop.f32.mrf.mxu0
    %v209 = vadd.f32 %v168, %v208
    %v210 = vpop.f32.mrf.mxu0
    %v211 = vadd.f32 %v168, %v210
    %212 = vmatmul.bf16.gmra.mxu0 %v187
    %v213 = vpop.f32.mrf.mxu0
    %v214 = vadd.f32 %v168, %v213
    %v215 = vpop.f32.mrf.mxu0
    %v216 = vadd.f32 %v168, %v215
    %217 = vdwg.mxu0
    %v222 = vunpack.c.l.b16 %v158
    %v223 = vunpack.c.l.b16 %v159
    %v224 = vunpack.c.l.b16 %v160
    %v225 = vunpack.c.l.b16 %v161
    %v226 = vpack.c.b16 %v223, %v222
    %v227 = vpack.c.b16 %v225, %v224
    %vm230 = vcmask 261120
    %v232 = vsel %vm230, 0, 0
    %234 = vmatpush.bf16.msra.mxu0 0
    %235 = vmatpush.bf16.msra.mxu0 0
    %236 = vmatpush.bf16.msra.mxu0 0
    %237 = vmatpush.bf16.msra.mxu0 0
    %238 = vmatpush.bf16.msra.mxu0 0
    %239 = vmatpush.bf16.msra.mxu0 0
    %240 = vmatpush.bf16.msra.mxu0 %v227
    %241 = vmatpush.bf16.msra.mxu0 %v226
    %242 = vmatmul.bf16.gmra.mxu0 %v232
    %v243 = vpop.f32.mrf.mxu0
    %v244 = vadd.f32 0.0, %v243
    %v245 = vpop.f32.mrf.mxu0
    %246 = vdwg.mxu0
    %v248 = vrot.slane %v244, 1
    %v249 = vrot.slane %v244, 2
    %v250 = vrot.slane %v244, 3
    %v251 = vrot.slane %v244, 4
    %v252 = vrot.slane %v244, 5
    %v253 = vrot.slane %v244, 6
    %v254 = vrot.slane %v244, 7
    %v263 = vadd.f32 %v199, %v244
    %v264 = vadd.f32 %v201, %v248
    %v265 = vadd.f32 %v204, %v249
    %v266 = vadd.f32 %v206, %v250
    %v267 = vadd.f32 %v209, %v251
    %v268 = vadd.f32 %v211, %v252
    %v269 = vadd.f32 %v214, %v253
    %v270 = vadd.f32 %v216, %v254
    %v271 = vxor.u32 %v263, 2147483648
    %v272 = vxor.u32 %v264, 2147483648
    %v273 = vxor.u32 %v265, 2147483648
    %v274 = vxor.u32 %v266, 2147483648
    %v275 = vxor.u32 %v267, 2147483648
    %v276 = vxor.u32 %v268, 2147483648
    %v277 = vxor.u32 %v269, 2147483648
    %v278 = vxor.u32 %v270, 2147483648
    %v279 = vmul.f32 %v271, 1.442695
    %v280 = vpow.pop %v279
    %v281 = vmul.f32 %v272, 1.442695
    %v282 = vpow.pop %v281
    %v283 = vmul.f32 %v273, 1.442695
    %v284 = vpow.pop %v283
    %v285 = vmul.f32 %v274, 1.442695
    %v286 = vpow.pop %v285
    %v287 = vmul.f32 %v275, 1.442695
    %v288 = vpow.pop %v287
    %v289 = vmul.f32 %v276, 1.442695
    %v290 = vpow.pop %v289
    %v291 = vmul.f32 %v277, 1.442695
    %v292 = vpow.pop %v291
    %v293 = vmul.f32 %v278, 1.442695
    %v294 = vpow.pop %v293
    %v295 = vadd.f32 %v280, 1.0
    %v296 = vadd.f32 %v282, 1.0
    %v297 = vadd.f32 %v284, 1.0
    %v298 = vadd.f32 %v286, 1.0
    %v299 = vadd.f32 %v288, 1.0
    %v300 = vadd.f32 %v290, 1.0
    %v301 = vadd.f32 %v292, 1.0
    %v302 = vadd.f32 %v294, 1.0
    %v303 = vrcp.pop %v295
    %v304 = vmul.f32 %v295, %v303
    %v305 = vsub.f32 1.0, %v304
    %v306 = vmul.f32 %v303, %v305
    %v307 = vadd.f32 %v303, %v306
    %vm308 = vweird.f32 %v295
    %vm309 = vweird.f32 %v303
    %vm310 = vmor %vm308, %vm309
    %v311 = vsel %vm310, %v303, %v307
    %v312 = vand.u32 2147483647, %v295
    %vm313 = vcmp.eq.f32.partialorder %v312, 8.507059e+37
    %v314 = vand.u32 %v295, 2147483648
    %v315 = vor.u32 1.1754944e-38, %v314
    %v316 = vsel %vm313, %v315, %v311
    %v317 = vmul.f32 1.0, %v316
    %v318 = vrcp.pop %v296
    %v319 = vmul.f32 %v296, %v318
    %v320 = vsub.f32 1.0, %v319
    %v321 = vmul.f32 %v318, %v320
    %v322 = vadd.f32 %v318, %v321
    %vm323 = vweird.f32 %v296
    %vm324 = vweird.f32 %v318
    %vm325 = vmor %vm323, %vm324
    %v326 = vsel %vm325, %v318, %v322
    %v327 = vand.u32 2147483647, %v296
    %vm328 = vcmp.eq.f32.partialorder %v327, 8.507059e+37
    %v329 = vand.u32 %v296, 2147483648
    %v330 = vor.u32 1.1754944e-38, %v329
    %v331 = vsel %vm328, %v330, %v326
    %v332 = vmul.f32 1.0, %v331
    %v333 = vrcp.pop %v297
    %v334 = vmul.f32 %v297, %v333
    %v335 = vsub.f32 1.0, %v334
    %v336 = vmul.f32 %v333, %v335
    %v337 = vadd.f32 %v333, %v336
    %vm338 = vweird.f32 %v297
    %vm339 = vweird.f32 %v333
    %vm340 = vmor %vm338, %vm339
    %v341 = vsel %vm340, %v333, %v337
    %v342 = vand.u32 2147483647, %v297
    %vm343 = vcmp.eq.f32.partialorder %v342, 8.507059e+37
    %v344 = vand.u32 %v297, 2147483648
    %v345 = vor.u32 1.1754944e-38, %v344
    %v346 = vsel %vm343, %v345, %v341
    %v347 = vmul.f32 1.0, %v346
    %v348 = vrcp.pop %v298
    %v349 = vmul.f32 %v298, %v348
    %v350 = vsub.f32 1.0, %v349
    %v351 = vmul.f32 %v348, %v350
    %v352 = vadd.f32 %v348, %v351
    %vm353 = vweird.f32 %v298
    %vm354 = vweird.f32 %v348
    %vm355 = vmor %vm353, %vm354
    %v356 = vsel %vm355, %v348, %v352
    %v357 = vand.u32 2147483647, %v298
    %vm358 = vcmp.eq.f32.partialorder %v357, 8.507059e+37
    %v359 = vand.u32 %v298, 2147483648
    %v360 = vor.u32 1.1754944e-38, %v359
    %v361 = vsel %vm358, %v360, %v356
    %v362 = vmul.f32 1.0, %v361
    %v363 = vrcp.pop %v299
    %v364 = vmul.f32 %v299, %v363
    %v365 = vsub.f32 1.0, %v364
    %v366 = vmul.f32 %v363, %v365
    %v367 = vadd.f32 %v363, %v366
    %vm368 = vweird.f32 %v299
    %vm369 = vweird.f32 %v363
    %vm370 = vmor %vm368, %vm369
    %v371 = vsel %vm370, %v363, %v367
    %v372 = vand.u32 2147483647, %v299
    %vm373 = vcmp.eq.f32.partialorder %v372, 8.507059e+37
    %v374 = vand.u32 %v299, 2147483648
    %v375 = vor.u32 1.1754944e-38, %v374
    %v376 = vsel %vm373, %v375, %v371
    %v377 = vmul.f32 1.0, %v376
    %v378 = vrcp.pop %v300
    %v379 = vmul.f32 %v300, %v378
    %v380 = vsub.f32 1.0, %v379
    %v381 = vmul.f32 %v378, %v380
    %v382 = vadd.f32 %v378, %v381
    %vm383 = vweird.f32 %v300
    %vm384 = vweird.f32 %v378
    %vm385 = vmor %vm383, %vm384
    %v386 = vsel %vm385, %v378, %v382
    %v387 = vand.u32 2147483647, %v300
    %vm388 = vcmp.eq.f32.partialorder %v387, 8.507059e+37
    %v389 = vand.u32 %v300, 2147483648
    %v390 = vor.u32 1.1754944e-38, %v389
    %v391 = vsel %vm388, %v390, %v386
    %v392 = vmul.f32 1.0, %v391
    %v393 = vrcp.pop %v301
    %v394 = vmul.f32 %v301, %v393
    %v395 = vsub.f32 1.0, %v394
    %v396 = vmul.f32 %v393, %v395
    %v397 = vadd.f32 %v393, %v396
    %vm398 = vweird.f32 %v301
    %vm399 = vweird.f32 %v393
    %vm400 = vmor %vm398, %vm399
    %v401 = vsel %vm400, %v393, %v397
    %v402 = vand.u32 2147483647, %v301
    %vm403 = vcmp.eq.f32.partialorder %v402, 8.507059e+37
    %v404 = vand.u32 %v301, 2147483648
    %v405 = vor.u32 1.1754944e-38, %v404
    %v406 = vsel %vm403, %v405, %v401
    %v407 = vmul.f32 1.0, %v406
    %v408 = vrcp.pop %v302
    %v409 = vmul.f32 %v302, %v408
    %v410 = vsub.f32 1.0, %v409
    %v411 = vmul.f32 %v408, %v410
    %v412 = vadd.f32 %v408, %v411
    %vm413 = vweird.f32 %v302
    %vm414 = vweird.f32 %v408
    %vm415 = vmor %vm413, %vm414
    %v416 = vsel %vm415, %v408, %v412
    %v417 = vand.u32 2147483647, %v302
    %vm418 = vcmp.eq.f32.partialorder %v417, 8.507059e+37
    %v419 = vand.u32 %v302, 2147483648
    %v420 = vor.u32 1.1754944e-38, %v419
    %v421 = vsel %vm418, %v420, %v416
    %v422 = vmul.f32 1.0, %v421
    %v423 = vtanh.pop %v263
    %v424 = vtanh.pop %v264
    %v425 = vtanh.pop %v265
    %v426 = vtanh.pop %v266
    %v427 = vtanh.pop %v267
    %v428 = vtanh.pop %v268
    %v429 = vtanh.pop %v269
    %v430 = vtanh.pop %v270
    %v431 = vmul.f32 %v317, 0.0
    %v432 = vmul.f32 %v332, 0.0
    %v433 = vmul.f32 %v347, 0.0
    %v434 = vmul.f32 %v362, 0.0
    %v435 = vmul.f32 %v377, 0.0
    %v436 = vmul.f32 %v392, 0.0
    %v437 = vmul.f32 %v407, 0.0
    %v438 = vmul.f32 %v422, 0.0
    %447 = vrot.lane.b32.xlu0 %v423, 32
    %v448 = vpop.permute.xlu0 %447
    %449 = vrot.lane.b32.xlu0 %v424, 32
    %v450 = vpop.permute.xlu0 %449
    %451 = vrot.lane.b32.xlu0 %v425, 32
    %v452 = vpop.permute.xlu0 %451
    %453 = vrot.lane.b32.xlu0 %v426, 32
    %v454 = vpop.permute.xlu0 %453
    %455 = vrot.lane.b32.xlu0 %v427, 32
    %v456 = vpop.permute.xlu0 %455
    %457 = vrot.lane.b32.xlu0 %v428, 32
    %v458 = vpop.permute.xlu0 %457
    %459 = vrot.lane.b32.xlu0 %v429, 32
    %v460 = vpop.permute.xlu0 %459
    %461 = vrot.lane.b32.xlu0 %v430, 32
    %v462 = vpop.permute.xlu0 %461
    %v471 = vmul.f32 %v317, %v448
    %v472 = vmul.f32 %v332, %v450
    %v473 = vmul.f32 %v347, %v452
    %v474 = vmul.f32 %v362, %v454
    %v475 = vmul.f32 %v377, %v456
    %v476 = vmul.f32 %v392, %v458
    %v477 = vmul.f32 %v407, %v460
    %v478 = vmul.f32 %v422, %v462
    %487 = vrot.lane.b32.xlu0 %v471, 32
    %v488 = vpop.permute.xlu0 %487
    %489 = vrot.lane.b32.xlu0 %v472, 32
    %v490 = vpop.permute.xlu0 %489
    %491 = vrot.lane.b32.xlu0 %v473, 32
    %v492 = vpop.permute.xlu0 %491
    %493 = vrot.lane.b32.xlu0 %v474, 32
    %v494 = vpop.permute.xlu0 %493
    %495 = vrot.lane.b32.xlu0 %v475, 32
    %v496 = vpop.permute.xlu0 %495
    %497 = vrot.lane.b32.xlu0 %v476, 32
    %v498 = vpop.permute.xlu0 %497
    %499 = vrot.lane.b32.xlu0 %v477, 32
    %v500 = vpop.permute.xlu0 %499
    %501 = vrot.lane.b32.xlu0 %v478, 32
    %v502 = vpop.permute.xlu0 %501
    %v511 = vadd.f32 %v431, %v488
    %v512 = vadd.f32 %v432, %v490
    %v513 = vadd.f32 %v433, %v492
    %v514 = vadd.f32 %v434, %v494
    %v515 = vadd.f32 %v435, %v496
    %v516 = vadd.f32 %v436, %v498
    %v517 = vadd.f32 %v437, %v500
    %v518 = vadd.f32 %v438, %v502
    %v519 = vtanh.pop %v511
    %v520 = vtanh.pop %v512
    %v521 = vtanh.pop %v513
    %v522 = vtanh.pop %v514
    %v523 = vtanh.pop %v515
    %v524 = vtanh.pop %v516
    %v525 = vtanh.pop %v517
    %v526 = vtanh.pop %v518
    %535 = vrot.lane.b32.xlu0 %v519, 32
    %v536 = vpop.permute.xlu0 %535
    %537 = vrot.lane.b32.xlu0 %v520, 32
    %v538 = vpop.permute.xlu0 %537
    %539 = vrot.lane.b32.xlu0 %v521, 32
    %v540 = vpop.permute.xlu0 %539
    %541 = vrot.lane.b32.xlu0 %v522, 32
    %v542 = vpop.permute.xlu0 %541
    %543 = vrot.lane.b32.xlu0 %v523, 32
    %v544 = vpop.permute.xlu0 %543
    %545 = vrot.lane.b32.xlu0 %v524, 32
    %v546 = vpop.permute.xlu0 %545
    %547 = vrot.lane.b32.xlu0 %v525, 32
    %v548 = vpop.permute.xlu0 %547
    %549 = vrot.lane.b32.xlu0 %v526, 32
    %v550 = vpop.permute.xlu0 %549
    %v559 = vmul.f32 %v317, %v536
    %v560 = vmul.f32 %v332, %v538
    %v561 = vmul.f32 %v347, %v540
    %v562 = vmul.f32 %v362, %v542
    %v563 = vmul.f32 %v377, %v544
    %v564 = vmul.f32 %v392, %v546
    %v565 = vmul.f32 %v407, %v548
    %v566 = vmul.f32 %v422, %v550
    %575 = vrot.lane.b32.xlu0 %v559, 64
    %v576 = vpop.permute.xlu0 %575
    %577 = vrot.lane.b32.xlu0 %v560, 64
    %v578 = vpop.permute.xlu0 %577
    %579 = vrot.lane.b32.xlu0 %v561, 64
    %v580 = vpop.permute.xlu0 %579
    %581 = vrot.lane.b32.xlu0 %v562, 64
    %v582 = vpop.permute.xlu0 %581
    %583 = vrot.lane.b32.xlu0 %v563, 64
    %v584 = vpop.permute.xlu0 %583
    %585 = vrot.lane.b32.xlu0 %v564, 64
    %v586 = vpop.permute.xlu0 %585
    %587 = vrot.lane.b32.xlu0 %v565, 64
    %v588 = vpop.permute.xlu0 %587
    %589 = vrot.lane.b32.xlu0 %v566, 64
    %v590 = vpop.permute.xlu0 %589
    %vm599 = vcmask 253952
    %600 = vst.msk [vmem:[#allocation2] sm:$0x1] %vm599, %v576
    %601 = vst.msk [vmem:[#allocation2 + $0x8] sm:$0x1] %vm599, %v578
    %602 = vst.msk [vmem:[#allocation2 + $0x10] sm:$0x1] %vm599, %v580
    %603 = vst.msk [vmem:[#allocation2 + $0x18] sm:$0x1] %vm599, %v582
    %604 = vst.msk [vmem:[#allocation2 + $0x20] sm:$0x1] %vm599, %v584
    %605 = vst.msk [vmem:[#allocation2 + $0x28] sm:$0x1] %vm599, %v586
    %606 = vst.msk [vmem:[#allocation2 + $0x30] sm:$0x1] %vm599, %v588
    %607 = vst.msk [vmem:[#allocation2 + $0x38] sm:$0x1] %vm599, %v590
    %v608 = vpack.c.bf16 %v559, %v559
    %v609 = vpack.c.bf16 %v560, %v560
    %v610 = vpack.c.bf16 %v561, %v561
    %v611 = vpack.c.bf16 %v562, %v562
    %v612 = vpack.c.bf16 %v563, %v563
    %v613 = vpack.c.bf16 %v564, %v564
    %v614 = vpack.c.bf16 %v565, %v565
    %v615 = vpack.c.bf16 %v566, %v566
    %v624 = vunpack.c.l.b16 %v608
    %v625 = vunpack.c.l.b16 %v609
    %v626 = vunpack.c.l.b16 %v610
    %v627 = vunpack.c.l.b16 %v611
    %v628 = vunpack.c.l.b16 %v612
    %v629 = vunpack.c.l.b16 %v613
    %v630 = vunpack.c.l.b16 %v614
    %v631 = vunpack.c.l.b16 %v615
    %v632 = vrot.slane %v625, 7
    %vm633 = vcmask 1041409
    %v634 = vsel %vm633, %v632, %v624
    %v635 = vrot.slane %v626, 6
    %vm636 = vcmask 1042434
    %v637 = vsel %vm636, %v635, %v634
    %v638 = vrot.slane %v627, 5
    %vm639 = vcmask 1043459
    %v640 = vsel %vm639, %v638, %v637
    %v641 = vrot.slane %v628, 4
    %vm642 = vcmask 1044484
    %v643 = vsel %vm642, %v641, %v640
    %v644 = vrot.slane %v629, 3
    %vm645 = vcmask 1045509
    %v646 = vsel %vm645, %v644, %v643
    %v647 = vrot.slane %v630, 2
    %vm648 = vcmask 1046534
    %v649 = vsel %vm648, %v647, %v646
    %v650 = vrot.slane %v631, 1
    %vm651 = vcmask 1047559
    %v652 = vsel %vm651, %v650, %v649
    %v653 = vpack.c.b16 %v652, %v652
    %654 = vrot.lane.b32.xlu0 %v653, 64
    %v655 = vpop.permute.xlu0 %654
    %v657 = vsel %vm230, %v655, 0
    %659 = vmatpush.bf16.msra.mxu0 0
    %660 = vmatpush.bf16.msra.mxu0 0
    %661 = vmatpush.bf16.msra.mxu0 0
    %662 = vmatpush.bf16.msra.mxu0 0
    %663 = vmatpush.bf16.msra.mxu0 0
    %664 = vmatpush.bf16.msra.mxu0 0
    %665 = vmatpush.bf16.msra.mxu0 %v227
    %666 = vmatpush.bf16.msra.mxu0 %v226
    %667 = vmatmul.bf16.gmra.mxu0 %v657
    %v668 = vpop.f32.mrf.mxu0
    %v669 = vadd.f32 0.0, %v668
    %v670 = vpop.f32.mrf.mxu0
    %671 = vdwg.mxu0
    %v673 = vrot.slane %v669, 7
    %v674 = vrot.slane %v669, 1
    %v675 = vrot.slane %v669, 2
    %v676 = vrot.slane %v669, 3
    %v677 = vrot.slane %v669, 4
    %v678 = vrot.slane %v669, 5
    %v679 = vrot.slane %v669, 6
    %v688 = vadd.f32 %v199, %v673
    %v689 = vadd.f32 %v201, %v669
    %v690 = vadd.f32 %v204, %v674
    %v691 = vadd.f32 %v206, %v675
    %v692 = vadd.f32 %v209, %v676
    %v693 = vadd.f32 %v211, %v677
    %v694 = vadd.f32 %v214, %v678
    %v695 = vadd.f32 %v216, %v679
    %v696 = vxor.u32 %v688, 2147483648
    %v697 = vxor.u32 %v689, 2147483648
    %v698 = vxor.u32 %v690, 2147483648
    %v699 = vxor.u32 %v691, 2147483648
    %v700 = vxor.u32 %v692, 2147483648
    %v701 = vxor.u32 %v693, 2147483648
    %v702 = vxor.u32 %v694, 2147483648
    %v703 = vxor.u32 %v695, 2147483648
    %v704 = vmul.f32 %v696, 1.442695
    %v705 = vpow.pop %v704
    %v706 = vmul.f32 %v697, 1.442695
    %v707 = vpow.pop %v706
    %v708 = vmul.f32 %v698, 1.442695
    %v709 = vpow.pop %v708
    %v710 = vmul.f32 %v699, 1.442695
    %v711 = vpow.pop %v710
    %v712 = vmul.f32 %v700, 1.442695
    %v713 = vpow.pop %v712
    %v714 = vmul.f32 %v701, 1.442695
    %v715 = vpow.pop %v714
    %v716 = vmul.f32 %v702, 1.442695
    %v717 = vpow.pop %v716
    %v718 = vmul.f32 %v703, 1.442695
    %v719 = vpow.pop %v718
    %v720 = vadd.f32 %v705, 1.0
    %v721 = vadd.f32 %v707, 1.0
    %v722 = vadd.f32 %v709, 1.0
    %v723 = vadd.f32 %v711, 1.0
    %v724 = vadd.f32 %v713, 1.0
    %v725 = vadd.f32 %v715, 1.0
    %v726 = vadd.f32 %v717, 1.0
    %v727 = vadd.f32 %v719, 1.0
    %v728 = vrcp.pop %v720
    %v729 = vmul.f32 %v720, %v728
    %v730 = vsub.f32 1.0, %v729
    %v731 = vmul.f32 %v728, %v730
    %v732 = vadd.f32 %v728, %v731
    %vm733 = vweird.f32 %v720
    %vm734 = vweird.f32 %v728
    %vm735 = vmor %vm733, %vm734
    %v736 = vsel %vm735, %v728, %v732
    %v737 = vand.u32 2147483647, %v720
    %vm738 = vcmp.eq.f32.partialorder %v737, 8.507059e+37
    %v739 = vand.u32 %v720, 2147483648
    %v740 = vor.u32 1.1754944e-38, %v739
    %v741 = vsel %vm738, %v740, %v736
    %v742 = vmul.f32 1.0, %v741
    %v743 = vrcp.pop %v721
    %v744 = vmul.f32 %v721, %v743
    %v745 = vsub.f32 1.0, %v744
    %v746 = vmul.f32 %v743, %v745
    %v747 = vadd.f32 %v743, %v746
    %vm748 = vweird.f32 %v721
    %vm749 = vweird.f32 %v743
    %vm750 = vmor %vm748, %vm749
    %v751 = vsel %vm750, %v743, %v747
    %v752 = vand.u32 2147483647, %v721
    %vm753 = vcmp.eq.f32.partialorder %v752, 8.507059e+37
    %v754 = vand.u32 %v721, 2147483648
    %v755 = vor.u32 1.1754944e-38, %v754
    %v756 = vsel %vm753, %v755, %v751
    %v757 = vmul.f32 1.0, %v756
    %v758 = vrcp.pop %v722
    %v759 = vmul.f32 %v722, %v758
    %v760 = vsub.f32 1.0, %v759
    %v761 = vmul.f32 %v758, %v760
    %v762 = vadd.f32 %v758, %v761
    %vm763 = vweird.f32 %v722
    %vm764 = vweird.f32 %v758
    %vm765 = vmor %vm763, %vm764
    %v766 = vsel %vm765, %v758, %v762
    %v767 = vand.u32 2147483647, %v722
    %vm768 = vcmp.eq.f32.partialorder %v767, 8.507059e+37
    %v769 = vand.u32 %v722, 2147483648
    %v770 = vor.u32 1.1754944e-38, %v769
    %v771 = vsel %vm768, %v770, %v766
    %v772 = vmul.f32 1.0, %v771
    %v773 = vrcp.pop %v723
    %v774 = vmul.f32 %v723, %v773
    %v775 = vsub.f32 1.0, %v774
    %v776 = vmul.f32 %v773, %v775
    %v777 = vadd.f32 %v773, %v776
    %vm778 = vweird.f32 %v723
    %vm779 = vweird.f32 %v773
    %vm780 = vmor %vm778, %vm779
    %v781 = vsel %vm780, %v773, %v777
    %v782 = vand.u32 2147483647, %v723
    %vm783 = vcmp.eq.f32.partialorder %v782, 8.507059e+37
    %v784 = vand.u32 %v723, 2147483648
    %v785 = vor.u32 1.1754944e-38, %v784
    %v786 = vsel %vm783, %v785, %v781
    %v787 = vmul.f32 1.0, %v786
    %v788 = vrcp.pop %v724
    %v789 = vmul.f32 %v724, %v788
    %v790 = vsub.f32 1.0, %v789
    %v791 = vmul.f32 %v788, %v790
    %v792 = vadd.f32 %v788, %v791
    %vm793 = vweird.f32 %v724
    %vm794 = vweird.f32 %v788
    %vm795 = vmor %vm793, %vm794
    %v796 = vsel %vm795, %v788, %v792
    %v797 = vand.u32 2147483647, %v724
    %vm798 = vcmp.eq.f32.partialorder %v797, 8.507059e+37
    %v799 = vand.u32 %v724, 2147483648
    %v800 = vor.u32 1.1754944e-38, %v799
    %v801 = vsel %vm798, %v800, %v796
    %v802 = vmul.f32 1.0, %v801
    %v803 = vrcp.pop %v725
    %v804 = vmul.f32 %v725, %v803
    %v805 = vsub.f32 1.0, %v804
    %v806 = vmul.f32 %v803, %v805
    %v807 = vadd.f32 %v803, %v806
    %vm808 = vweird.f32 %v725
    %vm809 = vweird.f32 %v803
    %vm810 = vmor %vm808, %vm809
    %v811 = vsel %vm810, %v803, %v807
    %v812 = vand.u32 2147483647, %v725
    %vm813 = vcmp.eq.f32.partialorder %v812, 8.507059e+37
    %v814 = vand.u32 %v725, 2147483648
    %v815 = vor.u32 1.1754944e-38, %v814
    %v816 = vsel %vm813, %v815, %v811
    %v817 = vmul.f32 1.0, %v816
    %v818 = vrcp.pop %v726
    %v819 = vmul.f32 %v726, %v818
    %v820 = vsub.f32 1.0, %v819
    %v821 = vmul.f32 %v818, %v820
    %v822 = vadd.f32 %v818, %v821
    %vm823 = vweird.f32 %v726
    %vm824 = vweird.f32 %v818
    %vm825 = vmor %vm823, %vm824
    %v826 = vsel %vm825, %v818, %v822
    %v827 = vand.u32 2147483647, %v726
    %vm828 = vcmp.eq.f32.partialorder %v827, 8.507059e+37
    %v829 = vand.u32 %v726, 2147483648
    %v830 = vor.u32 1.1754944e-38, %v829
    %v831 = vsel %vm828, %v830, %v826
    %v832 = vmul.f32 1.0, %v831
    %v833 = vrcp.pop %v727
    %v834 = vmul.f32 %v727, %v833
    %v835 = vsub.f32 1.0, %v834
    %v836 = vmul.f32 %v833, %v835
    %v837 = vadd.f32 %v833, %v836
    %vm838 = vweird.f32 %v727
    %vm839 = vweird.f32 %v833
    %vm840 = vmor %vm838, %vm839
    %v841 = vsel %vm840, %v833, %v837
    %v842 = vand.u32 2147483647, %v727
    %vm843 = vcmp.eq.f32.partialorder %v842, 8.507059e+37
    %v844 = vand.u32 %v727, 2147483648
    %v845 = vor.u32 1.1754944e-38, %v844
    %v846 = vsel %vm843, %v845, %v841
    %v847 = vmul.f32 1.0, %v846
    %v848 = vtanh.pop %v688
    %v849 = vtanh.pop %v689
    %v850 = vtanh.pop %v690
    %v851 = vtanh.pop %v691
    %v852 = vtanh.pop %v692
    %v853 = vtanh.pop %v693
    %v854 = vtanh.pop %v694
    %v855 = vtanh.pop %v695
    %v864 = vrot.slane %v511, 7
    %v865 = vrot.slane %v512, 7
    %v866 = vrot.slane %v513, 7
    %v867 = vrot.slane %v514, 7
    %v868 = vrot.slane %v515, 7
    %v869 = vrot.slane %v516, 7
    %v870 = vrot.slane %v517, 7
    %v871 = vrot.slane %v518, 7
    %v880 = vmul.f32 %v742, %v864
    %v881 = vmul.f32 %v757, %v865
    %v882 = vmul.f32 %v772, %v866
    %v883 = vmul.f32 %v787, %v867
    %v884 = vmul.f32 %v802, %v868
    %v885 = vmul.f32 %v817, %v869
    %v886 = vmul.f32 %v832, %v870
    %v887 = vmul.f32 %v847, %v871
    %896 = vrot.lane.b32.xlu0 %v848, 32
    %v897 = vpop.permute.xlu0 %896
    %898 = vrot.lane.b32.xlu0 %v849, 32
    %v899 = vpop.permute.xlu0 %898
    %900 = vrot.lane.b32.xlu0 %v850, 32
    %v901 = vpop.permute.xlu0 %900
    %902 = vrot.lane.b32.xlu0 %v851, 32
    %v903 = vpop.permute.xlu0 %902
    %904 = vrot.lane.b32.xlu0 %v852, 32
    %v905 = vpop.permute.xlu0 %904
    %906 = vrot.lane.b32.xlu0 %v853, 32
    %v907 = vpop.permute.xlu0 %906
    %908 = vrot.lane.b32.xlu0 %v854, 32
    %v909 = vpop.permute.xlu0 %908
    %910 = vrot.lane.b32.xlu0 %v855, 32
    %v911 = vpop.permute.xlu0 %910
    %v920 = vmul.f32 %v742, %v897
    %v921 = vmul.f32 %v757, %v899
    %v922 = vmul.f32 %v772, %v901
    %v923 = vmul.f32 %v787, %v903
    %v924 = vmul.f32 %v802, %v905
    %v925 = vmul.f32 %v817, %v907
    %v926 = vmul.f32 %v832, %v909
    %v927 = vmul.f32 %v847, %v911
    %936 = vrot.lane.b32.xlu0 %v920, 32
    %v937 = vpop.permute.xlu0 %936
    %938 = vrot.lane.b32.xlu0 %v921, 32
    %v939 = vpop.permute.xlu0 %938
    %940 = vrot.lane.b32.xlu0 %v922, 32
    %v941 = vpop.permute.xlu0 %940
    %942 = vrot.lane.b32.xlu0 %v923, 32
    %v943 = vpop.permute.xlu0 %942
    %944 = vrot.lane.b32.xlu0 %v924, 32
    %v945 = vpop.permute.xlu0 %944
    %946 = vrot.lane.b32.xlu0 %v925, 32
    %v947 = vpop.permute.xlu0 %946
    %948 = vrot.lane.b32.xlu0 %v926, 32
    %v949 = vpop.permute.xlu0 %948
    %950 = vrot.lane.b32.xlu0 %v927, 32
    %v951 = vpop.permute.xlu0 %950
    %v960 = vadd.f32 %v880, %v937
    %v961 = vadd.f32 %v881, %v939
    %v962 = vadd.f32 %v882, %v941
    %v963 = vadd.f32 %v883, %v943
    %v964 = vadd.f32 %v884, %v945
    %v965 = vadd.f32 %v885, %v947
    %v966 = vadd.f32 %v886, %v949
    %v967 = vadd.f32 %v887, %v951
    %v968 = vtanh.pop %v960
    %v969 = vtanh.pop %v961
    %v970 = vtanh.pop %v962
    %v971 = vtanh.pop %v963
    %v972 = vtanh.pop %v964
    %v973 = vtanh.pop %v965
    %v974 = vtanh.pop %v966
    %v975 = vtanh.pop %v967
    %984 = vrot.lane.b32.xlu0 %v968, 32
    %v985 = vpop.permute.xlu0 %984
    %986 = vrot.lane.b32.xlu0 %v969, 32
    %v987 = vpop.permute.xlu0 %986
    %988 = vrot.lane.b32.xlu0 %v970, 32
    %v989 = vpop.permute.xlu0 %988
    %990 = vrot.lane.b32.xlu0 %v971, 32
    %v991 = vpop.permute.xlu0 %990
    %992 = vrot.lane.b32.xlu0 %v972, 32
    %v993 = vpop.permute.xlu0 %992
    %994 = vrot.lane.b32.xlu0 %v973, 32
    %v995 = vpop.permute.xlu0 %994
    %996 = vrot.lane.b32.xlu0 %v974, 32
    %v997 = vpop.permute.xlu0 %996
    %998 = vrot.lane.b32.xlu0 %v975, 32
    %v999 = vpop.permute.xlu0 %998
    %v1008 = vmul.f32 %v742, %v985
    %v1009 = vmul.f32 %v757, %v987
    %v1010 = vmul.f32 %v772, %v989
    %v1011 = vmul.f32 %v787, %v991
    %v1012 = vmul.f32 %v802, %v993
    %v1013 = vmul.f32 %v817, %v995
    %v1014 = vmul.f32 %v832, %v997
    %v1015 = vmul.f32 %v847, %v999
    %1024 = vrot.lane.b32.xlu0 %v1008, 64
    %v1025 = vpop.permute.xlu0 %1024
    %1026 = vrot.lane.b32.xlu0 %v1009, 64
    %v1027 = vpop.permute.xlu0 %1026
    %1028 = vrot.lane.b32.xlu0 %v1010, 64
    %v1029 = vpop.permute.xlu0 %1028
    %1030 = vrot.lane.b32.xlu0 %v1011, 64
    %v1031 = vpop.permute.xlu0 %1030
    %1032 = vrot.lane.b32.xlu0 %v1012, 64
    %v1033 = vpop.permute.xlu0 %1032
    %1034 = vrot.lane.b32.xlu0 %v1013, 64
    %v1035 = vpop.permute.xlu0 %1034
    %1036 = vrot.lane.b32.xlu0 %v1014, 64
    %v1037 = vpop.permute.xlu0 %1036
    %1038 = vrot.lane.b32.xlu0 %v1015, 64
    %v1039 = vpop.permute.xlu0 %1038
    %vm1048 = vcmask 254977
    %1049 = vst.msk [vmem:[#allocation2] sm:$0x2] %vm1048, %v1025
    %1050 = vst.msk [vmem:[#allocation2 + $0x8] sm:$0x2] %vm1048, %v1027
    %1051 = vst.msk [vmem:[#allocation2 + $0x10] sm:$0x2] %vm1048, %v1029
    %1052 = vst.msk [vmem:[#allocation2 + $0x18] sm:$0x2] %vm1048, %v1031
    %1053 = vst.msk [vmem:[#allocation2 + $0x20] sm:$0x2] %vm1048, %v1033
    %1054 = vst.msk [vmem:[#allocation2 + $0x28] sm:$0x2] %vm1048, %v1035
    %1055 = vst.msk [vmem:[#allocation2 + $0x30] sm:$0x2] %vm1048, %v1037
    %1056 = vst.msk [vmem:[#allocation2 + $0x38] sm:$0x2] %vm1048, %v1039
    %v1057 = vpack.c.bf16 %v1008, %v1008
    %v1058 = vpack.c.bf16 %v1009, %v1009
    %v1059 = vpack.c.bf16 %v1010, %v1010
    %v1060 = vpack.c.bf16 %v1011, %v1011
    %v1061 = vpack.c.bf16 %v1012, %v1012
    %v1062 = vpack.c.bf16 %v1013, %v1013
    %v1063 = vpack.c.bf16 %v1014, %v1014
    %v1064 = vpack.c.bf16 %v1015, %v1015
    %v1073 = vunpack.c.l.b16 %v1057
    %v1074 = vunpack.c.l.b16 %v1058
    %v1075 = vunpack.c.l.b16 %v1059
    %v1076 = vunpack.c.l.b16 %v1060
    %v1077 = vunpack.c.l.b16 %v1061
    %v1078 = vunpack.c.l.b16 %v1062
    %v1079 = vunpack.c.l.b16 %v1063
    %v1080 = vunpack.c.l.b16 %v1064
    %v1081 = vrot.slane %v1073, 1
    %v1082 = vsel %vm633, %v1074, %v1081
    %v1083 = vrot.slane %v1075, 7
    %v1084 = vsel %vm636, %v1083, %v1082
    %v1085 = vrot.slane %v1076, 6
    %v1086 = vsel %vm639, %v1085, %v1084
    %v1087 = vrot.slane %v1077, 5
    %v1088 = vsel %vm642, %v1087, %v1086
    %v1089 = vrot.slane %v1078, 4
    %v1090 = vsel %vm645, %v1089, %v1088
    %v1091 = vrot.slane %v1079, 3
    %v1092 = vsel %vm648, %v1091, %v1090
    %v1093 = vrot.slane %v1080, 2
    %v1094 = vsel %vm651, %v1093, %v1092
    %v1095 = vpack.c.b16 %v1094, %v1094
    %1096 = vrot.lane.b32.xlu0 %v1095, 64
    %v1097 = vpop.permute.xlu0 %1096
    %v1099 = vsel %vm230, %v1097, 0
    %1101 = vmatpush.bf16.msra.mxu0 0
    %1102 = vmatpush.bf16.msra.mxu0 0
    %1103 = vmatpush.bf16.msra.mxu0 0
    %1104 = vmatpush.bf16.msra.mxu0 0
    %1105 = vmatpush.bf16.msra.mxu0 0
    %1106 = vmatpush.bf16.msra.mxu0 0
    %1107 = vmatpush.bf16.msra.mxu0 %v227
    %1108 = vmatpush.bf16.msra.mxu0 %v226
    %1109 = vmatmul.bf16.gmra.mxu0 %v1099
    %v1110 = vpop.f32.mrf.mxu0
    %v1111 = vadd.f32 0.0, %v1110
    %v1112 = vpop.f32.mrf.mxu0
    %1113 = vdwg.mxu0
    %v1115 = vrot.slane %v1111, 6
    %v1116 = vrot.slane %v1111, 7
    %v1117 = vrot.slane %v1111, 1
    %v1118 = vrot.slane %v1111, 2
    %v1119 = vrot.slane %v1111, 3
    %v1120 = vrot.slane %v1111, 4
    %v1121 = vrot.slane %v1111, 5
    %v1130 = vadd.f32 %v199, %v1115
    %v1131 = vadd.f32 %v201, %v1116
    %v1132 = vadd.f32 %v204, %v1111
    %v1133 = vadd.f32 %v206, %v1117
    %v1134 = vadd.f32 %v209, %v1118
    %v1135 = vadd.f32 %v211, %v1119
    %v1136 = vadd.f32 %v214, %v1120
    %v1137 = vadd.f32 %v216, %v1121
    %v1138 = vxor.u32 %v1130, 2147483648
    %v1139 = vxor.u32 %v1131, 2147483648
    %v1140 = vxor.u32 %v1132, 2147483648
    %v1141 = vxor.u32 %v1133, 2147483648
    %v1142 = vxor.u32 %v1134, 2147483648
    %v1143 = vxor.u32 %v1135, 2147483648
    %v1144 = vxor.u32 %v1136, 2147483648
    %v1145 = vxor.u32 %v1137, 2147483648
    %v1146 = vmul.f32 %v1138, 1.442695
    %v1147 = vpow.pop %v1146
    %v1148 = vmul.f32 %v1139, 1.442695
    %v1149 = vpow.pop %v1148
    %v1150 = vmul.f32 %v1140, 1.442695
    %v1151 = vpow.pop %v1150
    %v1152 = vmul.f32 %v1141, 1.442695
    %v1153 = vpow.pop %v1152
    %v1154 = vmul.f32 %v1142, 1.442695
    %v1155 = vpow.pop %v1154
    %v1156 = vmul.f32 %v1143, 1.442695
    %v1157 = vpow.pop %v1156
    %v1158 = vmul.f32 %v1144, 1.442695
    %v1159 = vpow.pop %v1158
    %v1160 = vmul.f32 %v1145, 1.442695
    %v1161 = vpow.pop %v1160
    %v1162 = vadd.f32 %v1147, 1.0
    %v1163 = vadd.f32 %v1149, 1.0
    %v1164 = vadd.f32 %v1151, 1.0
    %v1165 = vadd.f32 %v1153, 1.0
    %v1166 = vadd.f32 %v1155, 1.0
    %v1167 = vadd.f32 %v1157, 1.0
    %v1168 = vadd.f32 %v1159, 1.0
    %v1169 = vadd.f32 %v1161, 1.0
    %v1170 = vrcp.pop %v1162
    %v1171 = vmul.f32 %v1162, %v1170
    %v1172 = vsub.f32 1.0, %v1171
    %v1173 = vmul.f32 %v1170, %v1172
    %v1174 = vadd.f32 %v1170, %v1173
    %vm1175 = vweird.f32 %v1162
    %vm1176 = vweird.f32 %v1170
    %vm1177 = vmor %vm1175, %vm1176
    %v1178 = vsel %vm1177, %v1170, %v1174
    %v1179 = vand.u32 2147483647, %v1162
    %vm1180 = vcmp.eq.f32.partialorder %v1179, 8.507059e+37
    %v1181 = vand.u32 %v1162, 2147483648
    %v1182 = vor.u32 1.1754944e-38, %v1181
    %v1183 = vsel %vm1180, %v1182, %v1178
    %v1184 = vmul.f32 1.0, %v1183
    %v1185 = vrcp.pop %v1163
    %v1186 = vmul.f32 %v1163, %v1185
    %v1187 = vsub.f32 1.0, %v1186
    %v1188 = vmul.f32 %v1185, %v1187
    %v1189 = vadd.f32 %v1185, %v1188
    %vm1190 = vweird.f32 %v1163
    %vm1191 = vweird.f32 %v1185
    %vm1192 = vmor %vm1190, %vm1191
    %v1193 = vsel %vm1192, %v1185, %v1189
    %v1194 = vand.u32 2147483647, %v1163
    %vm1195 = vcmp.eq.f32.partialorder %v1194, 8.507059e+37
    %v1196 = vand.u32 %v1163, 2147483648
    %v1197 = vor.u32 1.1754944e-38, %v1196
    %v1198 = vsel %vm1195, %v1197, %v1193
    %v1199 = vmul.f32 1.0, %v1198
    %v1200 = vrcp.pop %v1164
    %v1201 = vmul.f32 %v1164, %v1200
    %v1202 = vsub.f32 1.0, %v1201
    %v1203 = vmul.f32 %v1200, %v1202
    %v1204 = vadd.f32 %v1200, %v1203
    %vm1205 = vweird.f32 %v1164
    %vm1206 = vweird.f32 %v1200
    %vm1207 = vmor %vm1205, %vm1206
    %v1208 = vsel %vm1207, %v1200, %v1204
    %v1209 = vand.u32 2147483647, %v1164
    %vm1210 = vcmp.eq.f32.partialorder %v1209, 8.507059e+37
    %v1211 = vand.u32 %v1164, 2147483648
    %v1212 = vor.u32 1.1754944e-38, %v1211
    %v1213 = vsel %vm1210, %v1212, %v1208
    %v1214 = vmul.f32 1.0, %v1213
    %v1215 = vrcp.pop %v1165
    %v1216 = vmul.f32 %v1165, %v1215
    %v1217 = vsub.f32 1.0, %v1216
    %v1218 = vmul.f32 %v1215, %v1217
    %v1219 = vadd.f32 %v1215, %v1218
    %vm1220 = vweird.f32 %v1165
    %vm1221 = vweird.f32 %v1215
    %vm1222 = vmor %vm1220, %vm1221
    %v1223 = vsel %vm1222, %v1215, %v1219
    %v1224 = vand.u32 2147483647, %v1165
    %vm1225 = vcmp.eq.f32.partialorder %v1224, 8.507059e+37
    %v1226 = vand.u32 %v1165, 2147483648
    %v1227 = vor.u32 1.1754944e-38, %v1226
    %v1228 = vsel %vm1225, %v1227, %v1223
    %v1229 = vmul.f32 1.0, %v1228
    %v1230 = vrcp.pop %v1166
    %v1231 = vmul.f32 %v1166, %v1230
    %v1232 = vsub.f32 1.0, %v1231
    %v1233 = vmul.f32 %v1230, %v1232
    %v1234 = vadd.f32 %v1230, %v1233
    %vm1235 = vweird.f32 %v1166
    %vm1236 = vweird.f32 %v1230
    %vm1237 = vmor %vm1235, %vm1236
    %v1238 = vsel %vm1237, %v1230, %v1234
    %v1239 = vand.u32 2147483647, %v1166
    %vm1240 = vcmp.eq.f32.partialorder %v1239, 8.507059e+37
    %v1241 = vand.u32 %v1166, 2147483648
    %v1242 = vor.u32 1.1754944e-38, %v1241
    %v1243 = vsel %vm1240, %v1242, %v1238
    %v1244 = vmul.f32 1.0, %v1243
    %v1245 = vrcp.pop %v1167
    %v1246 = vmul.f32 %v1167, %v1245
    %v1247 = vsub.f32 1.0, %v1246
    %v1248 = vmul.f32 %v1245, %v1247
    %v1249 = vadd.f32 %v1245, %v1248
    %vm1250 = vweird.f32 %v1167
    %vm1251 = vweird.f32 %v1245
    %vm1252 = vmor %vm1250, %vm1251
    %v1253 = vsel %vm1252, %v1245, %v1249
    %v1254 = vand.u32 2147483647, %v1167
    %vm1255 = vcmp.eq.f32.partialorder %v1254, 8.507059e+37
    %v1256 = vand.u32 %v1167, 2147483648
    %v1257 = vor.u32 1.1754944e-38, %v1256
    %v1258 = vsel %vm1255, %v1257, %v1253
    %v1259 = vmul.f32 1.0, %v1258
    %v1260 = vrcp.pop %v1168
    %v1261 = vmul.f32 %v1168, %v1260
    %v1262 = vsub.f32 1.0, %v1261
    %v1263 = vmul.f32 %v1260, %v1262
    %v1264 = vadd.f32 %v1260, %v1263
    %vm1265 = vweird.f32 %v1168
    %vm1266 = vweird.f32 %v1260
    %vm1267 = vmor %vm1265, %vm1266
    %v1268 = vsel %vm1267, %v1260, %v1264
    %v1269 = vand.u32 2147483647, %v1168
    %vm1270 = vcmp.eq.f32.partialorder %v1269, 8.507059e+37
    %v1271 = vand.u32 %v1168, 2147483648
    %v1272 = vor.u32 1.1754944e-38, %v1271
    %v1273 = vsel %vm1270, %v1272, %v1268
    %v1274 = vmul.f32 1.0, %v1273
    %v1275 = vrcp.pop %v1169
    %v1276 = vmul.f32 %v1169, %v1275
    %v1277 = vsub.f32 1.0, %v1276
    %v1278 = vmul.f32 %v1275, %v1277
    %v1279 = vadd.f32 %v1275, %v1278
    %vm1280 = vweird.f32 %v1169
    %vm1281 = vweird.f32 %v1275
    %vm1282 = vmor %vm1280, %vm1281
    %v1283 = vsel %vm1282, %v1275, %v1279
    %v1284 = vand.u32 2147483647, %v1169
    %vm1285 = vcmp.eq.f32.partialorder %v1284, 8.507059e+37
    %v1286 = vand.u32 %v1169, 2147483648
    %v1287 = vor.u32 1.1754944e-38, %v1286
    %v1288 = vsel %vm1285, %v1287, %v1283
    %v1289 = vmul.f32 1.0, %v1288
    %v1290 = vtanh.pop %v1130
    %v1291 = vtanh.pop %v1131
    %v1292 = vtanh.pop %v1132
    %v1293 = vtanh.pop %v1133
    %v1294 = vtanh.pop %v1134
    %v1295 = vtanh.pop %v1135
    %v1296 = vtanh.pop %v1136
    %v1297 = vtanh.pop %v1137
    %v1306 = vrot.slane %v960, 7
    %v1307 = vrot.slane %v961, 7
    %v1308 = vrot.slane %v962, 7
    %v1309 = vrot.slane %v963, 7
    %v1310 = vrot.slane %v964, 7
    %v1311 = vrot.slane %v965, 7
    %v1312 = vrot.slane %v966, 7
    %v1313 = vrot.slane %v967, 7
    %v1322 = vmul.f32 %v1184, %v1306
    %v1323 = vmul.f32 %v1199, %v1307
    %v1324 = vmul.f32 %v1214, %v1308
    %v1325 = vmul.f32 %v1229, %v1309
    %v1326 = vmul.f32 %v1244, %v1310
    %v1327 = vmul.f32 %v1259, %v1311
    %v1328 = vmul.f32 %v1274, %v1312
    %v1329 = vmul.f32 %v1289, %v1313
    %1338 = vrot.lane.b32.xlu0 %v1290, 32
    %v1339 = vpop.permute.xlu0 %1338
    %1340 = vrot.lane.b32.xlu0 %v1291, 32
    %v1341 = vpop.permute.xlu0 %1340
    %1342 = vrot.lane.b32.xlu0 %v1292, 32
    %v1343 = vpop.permute.xlu0 %1342
    %1344 = vrot.lane.b32.xlu0 %v1293, 32
    %v1345 = vpop.permute.xlu0 %1344
    %1346 = vrot.lane.b32.xlu0 %v1294, 32
    %v1347 = vpop.permute.xlu0 %1346
    %1348 = vrot.lane.b32.xlu0 %v1295, 32
    %v1349 = vpop.permute.xlu0 %1348
    %1350 = vrot.lane.b32.xlu0 %v1296, 32
    %v1351 = vpop.permute.xlu0 %1350
    %1352 = vrot.lane.b32.xlu0 %v1297, 32
    %v1353 = vpop.permute.xlu0 %1352
    %v1362 = vmul.f32 %v1184, %v1339
    %v1363 = vmul.f32 %v1199, %v1341
    %v1364 = vmul.f32 %v1214, %v1343
    %v1365 = vmul.f32 %v1229, %v1345
    %v1366 = vmul.f32 %v1244, %v1347
    %v1367 = vmul.f32 %v1259, %v1349
    %v1368 = vmul.f32 %v1274, %v1351
    %v1369 = vmul.f32 %v1289, %v1353
    %1378 = vrot.lane.b32.xlu0 %v1362, 32
    %v1379 = vpop.permute.xlu0 %1378
    %1380 = vrot.lane.b32.xlu0 %v1363, 32
    %v1381 = vpop.permute.xlu0 %1380
    %1382 = vrot.lane.b32.xlu0 %v1364, 32
    %v1383 = vpop.permute.xlu0 %1382
    %1384 = vrot.lane.b32.xlu0 %v1365, 32
    %v1385 = vpop.permute.xlu0 %1384
    %1386 = vrot.lane.b32.xlu0 %v1366, 32
    %v1387 = vpop.permute.xlu0 %1386
    %1388 = vrot.lane.b32.xlu0 %v1367, 32
    %v1389 = vpop.permute.xlu0 %1388
    %1390 = vrot.lane.b32.xlu0 %v1368, 32
    %v1391 = vpop.permute.xlu0 %1390
    %1392 = vrot.lane.b32.xlu0 %v1369, 32
    %v1393 = vpop.permute.xlu0 %1392
    %v1402 = vadd.f32 %v1322, %v1379
    %v1403 = vadd.f32 %v1323, %v1381
    %v1404 = vadd.f32 %v1324, %v1383
    %v1405 = vadd.f32 %v1325, %v1385
    %v1406 = vadd.f32 %v1326, %v1387
    %v1407 = vadd.f32 %v1327, %v1389
    %v1408 = vadd.f32 %v1328, %v1391
    %v1409 = vadd.f32 %v1329, %v1393
    %v1410 = vtanh.pop %v1402
    %v1411 = vtanh.pop %v1403
    %v1412 = vtanh.pop %v1404
    %v1413 = vtanh.pop %v1405
    %v1414 = vtanh.pop %v1406
    %v1415 = vtanh.pop %v1407
    %v1416 = vtanh.pop %v1408
    %v1417 = vtanh.pop %v1409
    %1426 = vrot.lane.b32.xlu0 %v1410, 32
    %v1427 = vpop.permute.xlu0 %1426
    %1428 = vrot.lane.b32.xlu0 %v1411, 32
    %v1429 = vpop.permute.xlu0 %1428
    %1430 = vrot.lane.b32.xlu0 %v1412, 32
    %v1431 = vpop.permute.xlu0 %1430
    %1432 = vrot.lane.b32.xlu0 %v1413, 32
    %v1433 = vpop.permute.xlu0 %1432
    %1434 = vrot.lane.b32.xlu0 %v1414, 32
    %v1435 = vpop.permute.xlu0 %1434
    %1436 = vrot.lane.b32.xlu0 %v1415, 32
    %v1437 = vpop.permute.xlu0 %1436
    %1438 = vrot.lane.b32.xlu0 %v1416, 32
    %v1439 = vpop.permute.xlu0 %1438
    %1440 = vrot.lane.b32.xlu0 %v1417, 32
    %v1441 = vpop.permute.xlu0 %1440
    %v1450 = vmul.f32 %v1184, %v1427
    %v1451 = vmul.f32 %v1199, %v1429
    %v1452 = vmul.f32 %v1214, %v1431
    %v1453 = vmul.f32 %v1229, %v1433
    %v1454 = vmul.f32 %v1244, %v1435
    %v1455 = vmul.f32 %v1259, %v1437
    %v1456 = vmul.f32 %v1274, %v1439
    %v1457 = vmul.f32 %v1289, %v1441
    %1466 = vrot.lane.b32.xlu0 %v1450, 64
    %v1467 = vpop.permute.xlu0 %1466
    %1468 = vrot.lane.b32.xlu0 %v1451, 64
    %v1469 = vpop.permute.xlu0 %1468
    %1470 = vrot.lane.b32.xlu0 %v1452, 64
    %v1471 = vpop.permute.xlu0 %1470
    %1472 = vrot.lane.b32.xlu0 %v1453, 64
    %v1473 = vpop.permute.xlu0 %1472
    %1474 = vrot.lane.b32.xlu0 %v1454, 64
    %v1475 = vpop.permute.xlu0 %1474
    %1476 = vrot.lane.b32.xlu0 %v1455, 64
    %v1477 = vpop.permute.xlu0 %1476
    %1478 = vrot.lane.b32.xlu0 %v1456, 64
    %v1479 = vpop.permute.xlu0 %1478
    %1480 = vrot.lane.b32.xlu0 %v1457, 64
    %v1481 = vpop.permute.xlu0 %1480
    %vm1490 = vcmask 256002
    %1491 = vst.msk [vmem:[#allocation2] sm:$0x4] %vm1490, %v1467
    %1492 = vst.msk [vmem:[#allocation2 + $0x8] sm:$0x4] %vm1490, %v1469
    %1493 = vst.msk [vmem:[#allocation2 + $0x10] sm:$0x4] %vm1490, %v1471
    %1494 = vst.msk [vmem:[#allocation2 + $0x18] sm:$0x4] %vm1490, %v1473
    %1495 = vst.msk [vmem:[#allocation2 + $0x20] sm:$0x4] %vm1490, %v1475
    %1496 = vst.msk [vmem:[#allocation2 + $0x28] sm:$0x4] %vm1490, %v1477
    %1497 = vst.msk [vmem:[#allocation2 + $0x30] sm:$0x4] %vm1490, %v1479
    %1498 = vst.msk [vmem:[#allocation2 + $0x38] sm:$0x4] %vm1490, %v1481
    %v1499 = vpack.c.bf16 %v1450, %v1450
    %v1500 = vpack.c.bf16 %v1451, %v1451
    %v1501 = vpack.c.bf16 %v1452, %v1452
    %v1502 = vpack.c.bf16 %v1453, %v1453
    %v1503 = vpack.c.bf16 %v1454, %v1454
    %v1504 = vpack.c.bf16 %v1455, %v1455
    %v1505 = vpack.c.bf16 %v1456, %v1456
    %v1506 = vpack.c.bf16 %v1457, %v1457
    %v1515 = vunpack.c.l.b16 %v1499
    %v1516 = vunpack.c.l.b16 %v1500
    %v1517 = vunpack.c.l.b16 %v1501
    %v1518 = vunpack.c.l.b16 %v1502
    %v1519 = vunpack.c.l.b16 %v1503
    %v1520 = vunpack.c.l.b16 %v1504
    %v1521 = vunpack.c.l.b16 %v1505
    %v1522 = vunpack.c.l.b16 %v1506
    %v1523 = vrot.slane %v1515, 2
    %v1524 = vrot.slane %v1516, 1
    %v1525 = vsel %vm633, %v1524, %v1523
    %v1526 = vsel %vm636, %v1517, %v1525
    %v1527 = vrot.slane %v1518, 7
    %v1528 = vsel %vm639, %v1527, %v1526
    %v1529 = vrot.slane %v1519, 6
    %v1530 = vsel %vm642, %v1529, %v1528
    %v1531 = vrot.slane %v1520, 5
    %v1532 = vsel %vm645, %v1531, %v1530
    %v1533 = vrot.slane %v1521, 4
    %v1534 = vsel %vm648, %v1533, %v1532
    %v1535 = vrot.slane %v1522, 3
    %v1536 = vsel %vm651, %v1535, %v1534
    %v1537 = vpack.c.b16 %v1536, %v1536
    %1538 = vrot.lane.b32.xlu0 %v1537, 64
    %v1539 = vpop.permute.xlu0 %1538
    %v1541 = vsel %vm230, %v1539, 0
    %1543 = vmatpush.bf16.msra.mxu0 0
    %1544 = vmatpush.bf16.msra.mxu0 0
    %1545 = vmatpush.bf16.msra.mxu0 0
    %1546 = vmatpush.bf16.msra.mxu0 0
    %1547 = vmatpush.bf16.msra.mxu0 0
    %1548 = vmatpush.bf16.msra.mxu0 0
    %1549 = vmatpush.bf16.msra.mxu0 %v227
    %1550 = vmatpush.bf16.msra.mxu0 %v226
    %1551 = vmatmul.bf16.gmra.mxu0 %v1541
    %v1552 = vpop.f32.mrf.mxu0
    %v1553 = vadd.f32 0.0, %v1552
    %v1554 = vpop.f32.mrf.mxu0
    %1555 = vdwg.mxu0
    %v1557 = vrot.slane %v1553, 5
    %v1558 = vrot.slane %v1553, 6
    %v1559 = vrot.slane %v1553, 7
    %v1560 = vrot.slane %v1553, 1
    %v1561 = vrot.slane %v1553, 2
    %v1562 = vrot.slane %v1553, 3
    %v1563 = vrot.slane %v1553, 4
    %v1572 = vadd.f32 %v199, %v1557
    %v1573 = vadd.f32 %v201, %v1558
    %v1574 = vadd.f32 %v204, %v1559
    %v1575 = vadd.f32 %v206, %v1553
    %v1576 = vadd.f32 %v209, %v1560
    %v1577 = vadd.f32 %v211, %v1561
    %v1578 = vadd.f32 %v214, %v1562
    %v1579 = vadd.f32 %v216, %v1563
    %v1580 = vxor.u32 %v1572, 2147483648
    %v1581 = vxor.u32 %v1573, 2147483648
    %v1582 = vxor.u32 %v1574, 2147483648
    %v1583 = vxor.u32 %v1575, 2147483648
    %v1584 = vxor.u32 %v1576, 2147483648
    %v1585 = vxor.u32 %v1577, 2147483648
    %v1586 = vxor.u32 %v1578, 2147483648
    %v1587 = vxor.u32 %v1579, 2147483648
    %v1588 = vmul.f32 %v1580, 1.442695
    %v1589 = vpow.pop %v1588
    %v1590 = vmul.f32 %v1581, 1.442695
    %v1591 = vpow.pop %v1590
    %v1592 = vmul.f32 %v1582, 1.442695
    %v1593 = vpow.pop %v1592
    %v1594 = vmul.f32 %v1583, 1.442695
    %v1595 = vpow.pop %v1594
    %v1596 = vmul.f32 %v1584, 1.442695
    %v1597 = vpow.pop %v1596
    %v1598 = vmul.f32 %v1585, 1.442695
    %v1599 = vpow.pop %v1598
    %v1600 = vmul.f32 %v1586, 1.442695
    %v1601 = vpow.pop %v1600
    %v1602 = vmul.f32 %v1587, 1.442695
    %v1603 = vpow.pop %v1602
    %v1604 = vadd.f32 %v1589, 1.0
    %v1605 = vadd.f32 %v1591, 1.0
    %v1606 = vadd.f32 %v1593, 1.0
    %v1607 = vadd.f32 %v1595, 1.0
    %v1608 = vadd.f32 %v1597, 1.0
    %v1609 = vadd.f32 %v1599, 1.0
    %v1610 = vadd.f32 %v1601, 1.0
    %v1611 = vadd.f32 %v1603, 1.0
    %v1612 = vrcp.pop %v1604
    %v1613 = vmul.f32 %v1604, %v1612
    %v1614 = vsub.f32 1.0, %v1613
    %v1615 = vmul.f32 %v1612, %v1614
    %v1616 = vadd.f32 %v1612, %v1615
    %vm1617 = vweird.f32 %v1604
    %vm1618 = vweird.f32 %v1612
    %vm1619 = vmor %vm1617, %vm1618
    %v1620 = vsel %vm1619, %v1612, %v1616
    %v1621 = vand.u32 2147483647, %v1604
    %vm1622 = vcmp.eq.f32.partialorder %v1621, 8.507059e+37
    %v1623 = vand.u32 %v1604, 2147483648
    %v1624 = vor.u32 1.1754944e-38, %v1623
    %v1625 = vsel %vm1622, %v1624, %v1620
    %v1626 = vmul.f32 1.0, %v1625
    %v1627 = vrcp.pop %v1605
    %v1628 = vmul.f32 %v1605, %v1627
    %v1629 = vsub.f32 1.0, %v1628
    %v1630 = vmul.f32 %v1627, %v1629
    %v1631 = vadd.f32 %v1627, %v1630
    %vm1632 = vweird.f32 %v1605
    %vm1633 = vweird.f32 %v1627
    %vm1634 = vmor %vm1632, %vm1633
    %v1635 = vsel %vm1634, %v1627, %v1631
    %v1636 = vand.u32 2147483647, %v1605
    %vm1637 = vcmp.eq.f32.partialorder %v1636, 8.507059e+37
    %v1638 = vand.u32 %v1605, 2147483648
    %v1639 = vor.u32 1.1754944e-38, %v1638
    %v1640 = vsel %vm1637, %v1639, %v1635
    %v1641 = vmul.f32 1.0, %v1640
    %v1642 = vrcp.pop %v1606
    %v1643 = vmul.f32 %v1606, %v1642
    %v1644 = vsub.f32 1.0, %v1643
    %v1645 = vmul.f32 %v1642, %v1644
    %v1646 = vadd.f32 %v1642, %v1645
    %vm1647 = vweird.f32 %v1606
    %vm1648 = vweird.f32 %v1642
    %vm1649 = vmor %vm1647, %vm1648
    %v1650 = vsel %vm1649, %v1642, %v1646
    %v1651 = vand.u32 2147483647, %v1606
    %vm1652 = vcmp.eq.f32.partialorder %v1651, 8.507059e+37
    %v1653 = vand.u32 %v1606, 2147483648
    %v1654 = vor.u32 1.1754944e-38, %v1653
    %v1655 = vsel %vm1652, %v1654, %v1650
    %v1656 = vmul.f32 1.0, %v1655
    %v1657 = vrcp.pop %v1607
    %v1658 = vmul.f32 %v1607, %v1657
    %v1659 = vsub.f32 1.0, %v1658
    %v1660 = vmul.f32 %v1657, %v1659
    %v1661 = vadd.f32 %v1657, %v1660
    %vm1662 = vweird.f32 %v1607
    %vm1663 = vweird.f32 %v1657
    %vm1664 = vmor %vm1662, %vm1663
    %v1665 = vsel %vm1664, %v1657, %v1661
    %v1666 = vand.u32 2147483647, %v1607
    %vm1667 = vcmp.eq.f32.partialorder %v1666, 8.507059e+37
    %v1668 = vand.u32 %v1607, 2147483648
    %v1669 = vor.u32 1.1754944e-38, %v1668
    %v1670 = vsel %vm1667, %v1669, %v1665
    %v1671 = vmul.f32 1.0, %v1670
    %v1672 = vrcp.pop %v1608
    %v1673 = vmul.f32 %v1608, %v1672
    %v1674 = vsub.f32 1.0, %v1673
    %v1675 = vmul.f32 %v1672, %v1674
    %v1676 = vadd.f32 %v1672, %v1675
    %vm1677 = vweird.f32 %v1608
    %vm1678 = vweird.f32 %v1672
    %vm1679 = vmor %vm1677, %vm1678
    %v1680 = vsel %vm1679, %v1672, %v1676
    %v1681 = vand.u32 2147483647, %v1608
    %vm1682 = vcmp.eq.f32.partialorder %v1681, 8.507059e+37
    %v1683 = vand.u32 %v1608, 2147483648
    %v1684 = vor.u32 1.1754944e-38, %v1683
    %v1685 = vsel %vm1682, %v1684, %v1680
    %v1686 = vmul.f32 1.0, %v1685
    %v1687 = vrcp.pop %v1609
    %v1688 = vmul.f32 %v1609, %v1687
    %v1689 = vsub.f32 1.0, %v1688
    %v1690 = vmul.f32 %v1687, %v1689
    %v1691 = vadd.f32 %v1687, %v1690
    %vm1692 = vweird.f32 %v1609
    %vm1693 = vweird.f32 %v1687
    %vm1694 = vmor %vm1692, %vm1693
    %v1695 = vsel %vm1694, %v1687, %v1691
    %v1696 = vand.u32 2147483647, %v1609
    %vm1697 = vcmp.eq.f32.partialorder %v1696, 8.507059e+37
    %v1698 = vand.u32 %v1609, 2147483648
    %v1699 = vor.u32 1.1754944e-38, %v1698
    %v1700 = vsel %vm1697, %v1699, %v1695
    %v1701 = vmul.f32 1.0, %v1700
    %v1702 = vrcp.pop %v1610
    %v1703 = vmul.f32 %v1610, %v1702
    %v1704 = vsub.f32 1.0, %v1703
    %v1705 = vmul.f32 %v1702, %v1704
    %v1706 = vadd.f32 %v1702, %v1705
    %vm1707 = vweird.f32 %v1610
    %vm1708 = vweird.f32 %v1702
    %vm1709 = vmor %vm1707, %vm1708
    %v1710 = vsel %vm1709, %v1702, %v1706
    %v1711 = vand.u32 2147483647, %v1610
    %vm1712 = vcmp.eq.f32.partialorder %v1711, 8.507059e+37
    %v1713 = vand.u32 %v1610, 2147483648
    %v1714 = vor.u32 1.1754944e-38, %v1713
    %v1715 = vsel %vm1712, %v1714, %v1710
    %v1716 = vmul.f32 1.0, %v1715
    %v1717 = vrcp.pop %v1611
    %v1718 = vmul.f32 %v1611, %v1717
    %v1719 = vsub.f32 1.0, %v1718
    %v1720 = vmul.f32 %v1717, %v1719
    %v1721 = vadd.f32 %v1717, %v1720
    %vm1722 = vweird.f32 %v1611
    %vm1723 = vweird.f32 %v1717
    %vm1724 = vmor %vm1722, %vm1723
    %v1725 = vsel %vm1724, %v1717, %v1721
    %v1726 = vand.u32 2147483647, %v1611
    %vm1727 = vcmp.eq.f32.partialorder %v1726, 8.507059e+37
    %v1728 = vand.u32 %v1611, 2147483648
    %v1729 = vor.u32 1.1754944e-38, %v1728
    %v1730 = vsel %vm1727, %v1729, %v1725
    %v1731 = vmul.f32 1.0, %v1730
    %v1732 = vtanh.pop %v1572
    %v1733 = vtanh.pop %v1573
    %v1734 = vtanh.pop %v1574
    %v1735 = vtanh.pop %v1575
    %v1736 = vtanh.pop %v1576
    %v1737 = vtanh.pop %v1577
    %v1738 = vtanh.pop %v1578
    %v1739 = vtanh.pop %v1579
    %v1748 = vrot.slane %v1402, 7
    %v1749 = vrot.slane %v1403, 7
    %v1750 = vrot.slane %v1404, 7
    %v1751 = vrot.slane %v1405, 7
    %v1752 = vrot.slane %v1406, 7
    %v1753 = vrot.slane %v1407, 7
    %v1754 = vrot.slane %v1408, 7
    %v1755 = vrot.slane %v1409, 7
    %v1764 = vmul.f32 %v1626, %v1748
    %v1765 = vmul.f32 %v1641, %v1749
    %v1766 = vmul.f32 %v1656, %v1750
    %v1767 = vmul.f32 %v1671, %v1751
    %v1768 = vmul.f32 %v1686, %v1752
    %v1769 = vmul.f32 %v1701, %v1753
    %v1770 = vmul.f32 %v1716, %v1754
    %v1771 = vmul.f32 %v1731, %v1755
    %1780 = vrot.lane.b32.xlu0 %v1732, 32
    %v1781 = vpop.permute.xlu0 %1780
    %1782 = vrot.lane.b32.xlu0 %v1733, 32
    %v1783 = vpop.permute.xlu0 %1782
    %1784 = vrot.lane.b32.xlu0 %v1734, 32
    %v1785 = vpop.permute.xlu0 %1784
    %1786 = vrot.lane.b32.xlu0 %v1735, 32
    %v1787 = vpop.permute.xlu0 %1786
    %1788 = vrot.lane.b32.xlu0 %v1736, 32
    %v1789 = vpop.permute.xlu0 %1788
    %1790 = vrot.lane.b32.xlu0 %v1737, 32
    %v1791 = vpop.permute.xlu0 %1790
    %1792 = vrot.lane.b32.xlu0 %v1738, 32
    %v1793 = vpop.permute.xlu0 %1792
    %1794 = vrot.lane.b32.xlu0 %v1739, 32
    %v1795 = vpop.permute.xlu0 %1794
    %v1804 = vmul.f32 %v1626, %v1781
    %v1805 = vmul.f32 %v1641, %v1783
    %v1806 = vmul.f32 %v1656, %v1785
    %v1807 = vmul.f32 %v1671, %v1787
    %v1808 = vmul.f32 %v1686, %v1789
    %v1809 = vmul.f32 %v1701, %v1791
    %v1810 = vmul.f32 %v1716, %v1793
    %v1811 = vmul.f32 %v1731, %v1795
    %1820 = vrot.lane.b32.xlu0 %v1804, 32
    %v1821 = vpop.permute.xlu0 %1820
    %1822 = vrot.lane.b32.xlu0 %v1805, 32
    %v1823 = vpop.permute.xlu0 %1822
    %1824 = vrot.lane.b32.xlu0 %v1806, 32
    %v1825 = vpop.permute.xlu0 %1824
    %1826 = vrot.lane.b32.xlu0 %v1807, 32
    %v1827 = vpop.permute.xlu0 %1826
    %1828 = vrot.lane.b32.xlu0 %v1808, 32
    %v1829 = vpop.permute.xlu0 %1828
    %1830 = vrot.lane.b32.xlu0 %v1809, 32
    %v1831 = vpop.permute.xlu0 %1830
    %1832 = vrot.lane.b32.xlu0 %v1810, 32
    %v1833 = vpop.permute.xlu0 %1832
    %1834 = vrot.lane.b32.xlu0 %v1811, 32
    %v1835 = vpop.permute.xlu0 %1834
    %v1844 = vadd.f32 %v1764, %v1821
    %v1845 = vadd.f32 %v1765, %v1823
    %v1846 = vadd.f32 %v1766, %v1825
    %v1847 = vadd.f32 %v1767, %v1827
    %v1848 = vadd.f32 %v1768, %v1829
    %v1849 = vadd.f32 %v1769, %v1831
    %v1850 = vadd.f32 %v1770, %v1833
    %v1851 = vadd.f32 %v1771, %v1835
    %v1852 = vtanh.pop %v1844
    %v1853 = vtanh.pop %v1845
    %v1854 = vtanh.pop %v1846
    %v1855 = vtanh.pop %v1847
    %v1856 = vtanh.pop %v1848
    %v1857 = vtanh.pop %v1849
    %v1858 = vtanh.pop %v1850
    %v1859 = vtanh.pop %v1851
    %1868 = vrot.lane.b32.xlu0 %v1852, 32
    %v1869 = vpop.permute.xlu0 %1868
    %1870 = vrot.lane.b32.xlu0 %v1853, 32
    %v1871 = vpop.permute.xlu0 %1870
    %1872 = vrot.lane.b32.xlu0 %v1854, 32
    %v1873 = vpop.permute.xlu0 %1872
    %1874 = vrot.lane.b32.xlu0 %v1855, 32
    %v1875 = vpop.permute.xlu0 %1874
    %1876 = vrot.lane.b32.xlu0 %v1856, 32
    %v1877 = vpop.permute.xlu0 %1876
    %1878 = vrot.lane.b32.xlu0 %v1857, 32
    %v1879 = vpop.permute.xlu0 %1878
    %1880 = vrot.lane.b32.xlu0 %v1858, 32
    %v1881 = vpop.permute.xlu0 %1880
    %1882 = vrot.lane.b32.xlu0 %v1859, 32
    %v1883 = vpop.permute.xlu0 %1882
    %v1892 = vmul.f32 %v1626, %v1869
    %v1893 = vmul.f32 %v1641, %v1871
    %v1894 = vmul.f32 %v1656, %v1873
    %v1895 = vmul.f32 %v1671, %v1875
    %v1896 = vmul.f32 %v1686, %v1877
    %v1897 = vmul.f32 %v1701, %v1879
    %v1898 = vmul.f32 %v1716, %v1881
    %v1899 = vmul.f32 %v1731, %v1883
    %1908 = vrot.lane.b32.xlu0 %v1892, 64
    %v1909 = vpop.permute.xlu0 %1908
    %1910 = vrot.lane.b32.xlu0 %v1893, 64
    %v1911 = vpop.permute.xlu0 %1910
    %1912 = vrot.lane.b32.xlu0 %v1894, 64
    %v1913 = vpop.permute.xlu0 %1912
    %1914 = vrot.lane.b32.xlu0 %v1895, 64
    %v1915 = vpop.permute.xlu0 %1914
    %1916 = vrot.lane.b32.xlu0 %v1896, 64
    %v1917 = vpop.permute.xlu0 %1916
    %1918 = vrot.lane.b32.xlu0 %v1897, 64
    %v1919 = vpop.permute.xlu0 %1918
    %1920 = vrot.lane.b32.xlu0 %v1898, 64
    %v1921 = vpop.permute.xlu0 %1920
    %1922 = vrot.lane.b32.xlu0 %v1899, 64
    %v1923 = vpop.permute.xlu0 %1922
    %vm1932 = vcmask 257027
    %1933 = vst.msk [vmem:[#allocation2] sm:$0x8] %vm1932, %v1909
    %1934 = vst.msk [vmem:[#allocation2 + $0x8] sm:$0x8] %vm1932, %v1911
    %1935 = vst.msk [vmem:[#allocation2 + $0x10] sm:$0x8] %vm1932, %v1913
    %1936 = vst.msk [vmem:[#allocation2 + $0x18] sm:$0x8] %vm1932, %v1915
    %1937 = vst.msk [vmem:[#allocation2 + $0x20] sm:$0x8] %vm1932, %v1917
    %1938 = vst.msk [vmem:[#allocation2 + $0x28] sm:$0x8] %vm1932, %v1919
    %1939 = vst.msk [vmem:[#allocation2 + $0x30] sm:$0x8] %vm1932, %v1921
    %1940 = vst.msk [vmem:[#allocation2 + $0x38] sm:$0x8] %vm1932, %v1923
    %v1941 = vpack.c.bf16 %v1892, %v1892
    %v1942 = vpack.c.bf16 %v1893, %v1893
    %v1943 = vpack.c.bf16 %v1894, %v1894
    %v1944 = vpack.c.bf16 %v1895, %v1895
    %v1945 = vpack.c.bf16 %v1896, %v1896
    %v1946 = vpack.c.bf16 %v1897, %v1897
    %v1947 = vpack.c.bf16 %v1898, %v1898
    %v1948 = vpack.c.bf16 %v1899, %v1899
    %v1957 = vunpack.c.l.b16 %v1941
    %v1958 = vunpack.c.l.b16 %v1942
    %v1959 = vunpack.c.l.b16 %v1943
    %v1960 = vunpack.c.l.b16 %v1944
    %v1961 = vunpack.c.l.b16 %v1945
    %v1962 = vunpack.c.l.b16 %v1946
    %v1963 = vunpack.c.l.b16 %v1947
    %v1964 = vunpack.c.l.b16 %v1948
    %v1965 = vrot.slane %v1957, 3
    %v1966 = vrot.slane %v1958, 2
    %v1967 = vsel %vm633, %v1966, %v1965
    %v1968 = vrot.slane %v1959, 1
    %v1969 = vsel %vm636, %v1968, %v1967
    %v1970 = vsel %vm639, %v1960, %v1969
    %v1971 = vrot.slane %v1961, 7
    %v1972 = vsel %vm642, %v1971, %v1970
    %v1973 = vrot.slane %v1962, 6
    %v1974 = vsel %vm645, %v1973, %v1972
    %v1975 = vrot.slane %v1963, 5
    %v1976 = vsel %vm648, %v1975, %v1974
    %v1977 = vrot.slane %v1964, 4
    %v1978 = vsel %vm651, %v1977, %v1976
    %v1979 = vpack.c.b16 %v1978, %v1978
    %1980 = vrot.lane.b32.xlu0 %v1979, 64
    %v1981 = vpop.permute.xlu0 %1980
    %v1983 = vsel %vm230, %v1981, 0
    %1985 = vmatpush.bf16.msra.mxu0 0
    %1986 = vmatpush.bf16.msra.mxu0 0
    %1987 = vmatpush.bf16.msra.mxu0 0
    %1988 = vmatpush.bf16.msra.mxu0 0
    %1989 = vmatpush.bf16.msra.mxu0 0
    %1990 = vmatpush.bf16.msra.mxu0 0
    %1991 = vmatpush.bf16.msra.mxu0 %v227
    %1992 = vmatpush.bf16.msra.mxu0 %v226
    %1993 = vmatmul.bf16.gmra.mxu0 %v1983
    %v1994 = vpop.f32.mrf.mxu0
    %v1995 = vadd.f32 0.0, %v1994
    %v1996 = vpop.f32.mrf.mxu0
    %1997 = vdwg.mxu0
    %v1999 = vrot.slane %v1995, 4
    %v2000 = vrot.slane %v1995, 5
    %v2001 = vrot.slane %v1995, 6
    %v2002 = vrot.slane %v1995, 7
    %v2003 = vrot.slane %v1995, 1
    %v2004 = vrot.slane %v1995, 2
    %v2005 = vrot.slane %v1995, 3
    %v2014 = vadd.f32 %v199, %v1999
    %v2015 = vadd.f32 %v201, %v2000
    %v2016 = vadd.f32 %v204, %v2001
    %v2017 = vadd.f32 %v206, %v2002
    %v2018 = vadd.f32 %v209, %v1995
    %v2019 = vadd.f32 %v211, %v2003
    %v2020 = vadd.f32 %v214, %v2004
    %v2021 = vadd.f32 %v216, %v2005
    %v2022 = vxor.u32 %v2014, 2147483648
    %v2023 = vxor.u32 %v2015, 2147483648
    %v2024 = vxor.u32 %v2016, 2147483648
    %v2025 = vxor.u32 %v2017, 2147483648
    %v2026 = vxor.u32 %v2018, 2147483648
    %v2027 = vxor.u32 %v2019, 2147483648
    %v2028 = vxor.u32 %v2020, 2147483648
    %v2029 = vxor.u32 %v2021, 2147483648
    %v2030 = vmul.f32 %v2022, 1.442695
    %v2031 = vpow.pop %v2030
    %v2032 = vmul.f32 %v2023, 1.442695
    %v2033 = vpow.pop %v2032
    %v2034 = vmul.f32 %v2024, 1.442695
    %v2035 = vpow.pop %v2034
    %v2036 = vmul.f32 %v2025, 1.442695
    %v2037 = vpow.pop %v2036
    %v2038 = vmul.f32 %v2026, 1.442695
    %v2039 = vpow.pop %v2038
    %v2040 = vmul.f32 %v2027, 1.442695
    %v2041 = vpow.pop %v2040
    %v2042 = vmul.f32 %v2028, 1.442695
    %v2043 = vpow.pop %v2042
    %v2044 = vmul.f32 %v2029, 1.442695
    %v2045 = vpow.pop %v2044
    %v2046 = vadd.f32 %v2031, 1.0
    %v2047 = vadd.f32 %v2033, 1.0
    %v2048 = vadd.f32 %v2035, 1.0
    %v2049 = vadd.f32 %v2037, 1.0
    %v2050 = vadd.f32 %v2039, 1.0
    %v2051 = vadd.f32 %v2041, 1.0
    %v2052 = vadd.f32 %v2043, 1.0
    %v2053 = vadd.f32 %v2045, 1.0
    %v2054 = vrcp.pop %v2046
    %v2055 = vmul.f32 %v2046, %v2054
    %v2056 = vsub.f32 1.0, %v2055
    %v2057 = vmul.f32 %v2054, %v2056
    %v2058 = vadd.f32 %v2054, %v2057
    %vm2059 = vweird.f32 %v2046
    %vm2060 = vweird.f32 %v2054
    %vm2061 = vmor %vm2059, %vm2060
    %v2062 = vsel %vm2061, %v2054, %v2058
    %v2063 = vand.u32 2147483647, %v2046
    %vm2064 = vcmp.eq.f32.partialorder %v2063, 8.507059e+37
    %v2065 = vand.u32 %v2046, 2147483648
    %v2066 = vor.u32 1.1754944e-38, %v2065
    %v2067 = vsel %vm2064, %v2066, %v2062
    %v2068 = vmul.f32 1.0, %v2067
    %v2069 = vrcp.pop %v2047
    %v2070 = vmul.f32 %v2047, %v2069
    %v2071 = vsub.f32 1.0, %v2070
    %v2072 = vmul.f32 %v2069, %v2071
    %v2073 = vadd.f32 %v2069, %v2072
    %vm2074 = vweird.f32 %v2047
    %vm2075 = vweird.f32 %v2069
    %vm2076 = vmor %vm2074, %vm2075
    %v2077 = vsel %vm2076, %v2069, %v2073
    %v2078 = vand.u32 2147483647, %v2047
    %vm2079 = vcmp.eq.f32.partialorder %v2078, 8.507059e+37
    %v2080 = vand.u32 %v2047, 2147483648
    %v2081 = vor.u32 1.1754944e-38, %v2080
    %v2082 = vsel %vm2079, %v2081, %v2077
    %v2083 = vmul.f32 1.0, %v2082
    %v2084 = vrcp.pop %v2048
    %v2085 = vmul.f32 %v2048, %v2084
    %v2086 = vsub.f32 1.0, %v2085
    %v2087 = vmul.f32 %v2084, %v2086
    %v2088 = vadd.f32 %v2084, %v2087
    %vm2089 = vweird.f32 %v2048
    %vm2090 = vweird.f32 %v2084
    %vm2091 = vmor %vm2089, %vm2090
    %v2092 = vsel %vm2091, %v2084, %v2088
    %v2093 = vand.u32 2147483647, %v2048
    %vm2094 = vcmp.eq.f32.partialorder %v2093, 8.507059e+37
    %v2095 = vand.u32 %v2048, 2147483648
    %v2096 = vor.u32 1.1754944e-38, %v2095
    %v2097 = vsel %vm2094, %v2096, %v2092
    %v2098 = vmul.f32 1.0, %v2097
    %v2099 = vrcp.pop %v2049
    %v2100 = vmul.f32 %v2049, %v2099
    %v2101 = vsub.f32 1.0, %v2100
    %v2102 = vmul.f32 %v2099, %v2101
    %v2103 = vadd.f32 %v2099, %v2102
    %vm2104 = vweird.f32 %v2049
    %vm2105 = vweird.f32 %v2099
    %vm2106 = vmor %vm2104, %vm2105
    %v2107 = vsel %vm2106, %v2099, %v2103
    %v2108 = vand.u32 2147483647, %v2049
    %vm2109 = vcmp.eq.f32.partialorder %v2108, 8.507059e+37
    %v2110 = vand.u32 %v2049, 2147483648
    %v2111 = vor.u32 1.1754944e-38, %v2110
    %v2112 = vsel %vm2109, %v2111, %v2107
    %v2113 = vmul.f32 1.0, %v2112
    %v2114 = vrcp.pop %v2050
    %v2115 = vmul.f32 %v2050, %v2114
    %v2116 = vsub.f32 1.0, %v2115
    %v2117 = vmul.f32 %v2114, %v2116
    %v2118 = vadd.f32 %v2114, %v2117
    %vm2119 = vweird.f32 %v2050
    %vm2120 = vweird.f32 %v2114
    %vm2121 = vmor %vm2119, %vm2120
    %v2122 = vsel %vm2121, %v2114, %v2118
    %v2123 = vand.u32 2147483647, %v2050
    %vm2124 = vcmp.eq.f32.partialorder %v2123, 8.507059e+37
    %v2125 = vand.u32 %v2050, 2147483648
    %v2126 = vor.u32 1.1754944e-38, %v2125
    %v2127 = vsel %vm2124, %v2126, %v2122
    %v2128 = vmul.f32 1.0, %v2127
    %v2129 = vrcp.pop %v2051
    %v2130 = vmul.f32 %v2051, %v2129
    %v2131 = vsub.f32 1.0, %v2130
    %v2132 = vmul.f32 %v2129, %v2131
    %v2133 = vadd.f32 %v2129, %v2132
    %vm2134 = vweird.f32 %v2051
    %vm2135 = vweird.f32 %v2129
    %vm2136 = vmor %vm2134, %vm2135
    %v2137 = vsel %vm2136, %v2129, %v2133
    %v2138 = vand.u32 2147483647, %v2051
    %vm2139 = vcmp.eq.f32.partialorder %v2138, 8.507059e+37
    %v2140 = vand.u32 %v2051, 2147483648
    %v2141 = vor.u32 1.1754944e-38, %v2140
    %v2142 = vsel %vm2139, %v2141, %v2137
    %v2143 = vmul.f32 1.0, %v2142
    %v2144 = vrcp.pop %v2052
    %v2145 = vmul.f32 %v2052, %v2144
    %v2146 = vsub.f32 1.0, %v2145
    %v2147 = vmul.f32 %v2144, %v2146
    %v2148 = vadd.f32 %v2144, %v2147
    %vm2149 = vweird.f32 %v2052
    %vm2150 = vweird.f32 %v2144
    %vm2151 = vmor %vm2149, %vm2150
    %v2152 = vsel %vm2151, %v2144, %v2148
    %v2153 = vand.u32 2147483647, %v2052
    %vm2154 = vcmp.eq.f32.partialorder %v2153, 8.507059e+37
    %v2155 = vand.u32 %v2052, 2147483648
    %v2156 = vor.u32 1.1754944e-38, %v2155
    %v2157 = vsel %vm2154, %v2156, %v2152
    %v2158 = vmul.f32 1.0, %v2157
    %v2159 = vrcp.pop %v2053
    %v2160 = vmul.f32 %v2053, %v2159
    %v2161 = vsub.f32 1.0, %v2160
    %v2162 = vmul.f32 %v2159, %v2161
    %v2163 = vadd.f32 %v2159, %v2162
    %vm2164 = vweird.f32 %v2053
    %vm2165 = vweird.f32 %v2159
    %vm2166 = vmor %vm2164, %vm2165
    %v2167 = vsel %vm2166, %v2159, %v2163
    %v2168 = vand.u32 2147483647, %v2053
    %vm2169 = vcmp.eq.f32.partialorder %v2168, 8.507059e+37
    %v2170 = vand.u32 %v2053, 2147483648
    %v2171 = vor.u32 1.1754944e-38, %v2170
    %v2172 = vsel %vm2169, %v2171, %v2167
    %v2173 = vmul.f32 1.0, %v2172
    %v2174 = vtanh.pop %v2014
    %v2175 = vtanh.pop %v2015
    %v2176 = vtanh.pop %v2016
    %v2177 = vtanh.pop %v2017
    %v2178 = vtanh.pop %v2018
    %v2179 = vtanh.pop %v2019
    %v2180 = vtanh.pop %v2020
    %v2181 = vtanh.pop %v2021
    %v2190 = vrot.slane %v1844, 7
    %v2191 = vrot.slane %v1845, 7
    %v2192 = vrot.slane %v1846, 7
    %v2193 = vrot.slane %v1847, 7
    %v2194 = vrot.slane %v1848, 7
    %v2195 = vrot.slane %v1849, 7
    %v2196 = vrot.slane %v1850, 7
    %v2197 = vrot.slane %v1851, 7
    %v2206 = vmul.f32 %v2068, %v2190
    %v2207 = vmul.f32 %v2083, %v2191
    %v2208 = vmul.f32 %v2098, %v2192
    %v2209 = vmul.f32 %v2113, %v2193
    %v2210 = vmul.f32 %v2128, %v2194
    %v2211 = vmul.f32 %v2143, %v2195
    %v2212 = vmul.f32 %v2158, %v2196
    %v2213 = vmul.f32 %v2173, %v2197
    %2222 = vrot.lane.b32.xlu0 %v2174, 32
    %v2223 = vpop.permute.xlu0 %2222
    %2224 = vrot.lane.b32.xlu0 %v2175, 32
    %v2225 = vpop.permute.xlu0 %2224
    %2226 = vrot.lane.b32.xlu0 %v2176, 32
    %v2227 = vpop.permute.xlu0 %2226
    %2228 = vrot.lane.b32.xlu0 %v2177, 32
    %v2229 = vpop.permute.xlu0 %2228
    %2230 = vrot.lane.b32.xlu0 %v2178, 32
    %v2231 = vpop.permute.xlu0 %2230
    %2232 = vrot.lane.b32.xlu0 %v2179, 32
    %v2233 = vpop.permute.xlu0 %2232
    %2234 = vrot.lane.b32.xlu0 %v2180, 32
    %v2235 = vpop.permute.xlu0 %2234
    %2236 = vrot.lane.b32.xlu0 %v2181, 32
    %v2237 = vpop.permute.xlu0 %2236
    %v2246 = vmul.f32 %v2068, %v2223
    %v2247 = vmul.f32 %v2083, %v2225
    %v2248 = vmul.f32 %v2098, %v2227
    %v2249 = vmul.f32 %v2113, %v2229
    %v2250 = vmul.f32 %v2128, %v2231
    %v2251 = vmul.f32 %v2143, %v2233
    %v2252 = vmul.f32 %v2158, %v2235
    %v2253 = vmul.f32 %v2173, %v2237
    %2262 = vrot.lane.b32.xlu0 %v2246, 32
    %v2263 = vpop.permute.xlu0 %2262
    %2264 = vrot.lane.b32.xlu0 %v2247, 32
    %v2265 = vpop.permute.xlu0 %2264
    %2266 = vrot.lane.b32.xlu0 %v2248, 32
    %v2267 = vpop.permute.xlu0 %2266
    %2268 = vrot.lane.b32.xlu0 %v2249, 32
    %v2269 = vpop.permute.xlu0 %2268
    %2270 = vrot.lane.b32.xlu0 %v2250, 32
    %v2271 = vpop.permute.xlu0 %2270
    %2272 = vrot.lane.b32.xlu0 %v2251, 32
    %v2273 = vpop.permute.xlu0 %2272
    %2274 = vrot.lane.b32.xlu0 %v2252, 32
    %v2275 = vpop.permute.xlu0 %2274
    %2276 = vrot.lane.b32.xlu0 %v2253, 32
    %v2277 = vpop.permute.xlu0 %2276
    %v2286 = vadd.f32 %v2206, %v2263
    %v2287 = vadd.f32 %v2207, %v2265
    %v2288 = vadd.f32 %v2208, %v2267
    %v2289 = vadd.f32 %v2209, %v2269
    %v2290 = vadd.f32 %v2210, %v2271
    %v2291 = vadd.f32 %v2211, %v2273
    %v2292 = vadd.f32 %v2212, %v2275
    %v2293 = vadd.f32 %v2213, %v2277
    %v2294 = vtanh.pop %v2286
    %v2295 = vtanh.pop %v2287
    %v2296 = vtanh.pop %v2288
    %v2297 = vtanh.pop %v2289
    %v2298 = vtanh.pop %v2290
    %v2299 = vtanh.pop %v2291
    %v2300 = vtanh.pop %v2292
    %v2301 = vtanh.pop %v2293
    %2310 = vrot.lane.b32.xlu0 %v2294, 32
    %v2311 = vpop.permute.xlu0 %2310
    %2312 = vrot.lane.b32.xlu0 %v2295, 32
    %v2313 = vpop.permute.xlu0 %2312
    %2314 = vrot.lane.b32.xlu0 %v2296, 32
    %v2315 = vpop.permute.xlu0 %2314
    %2316 = vrot.lane.b32.xlu0 %v2297, 32
    %v2317 = vpop.permute.xlu0 %2316
    %2318 = vrot.lane.b32.xlu0 %v2298, 32
    %v2319 = vpop.permute.xlu0 %2318
    %2320 = vrot.lane.b32.xlu0 %v2299, 32
    %v2321 = vpop.permute.xlu0 %2320
    %2322 = vrot.lane.b32.xlu0 %v2300, 32
    %v2323 = vpop.permute.xlu0 %2322
    %2324 = vrot.lane.b32.xlu0 %v2301, 32
    %v2325 = vpop.permute.xlu0 %2324
    %v2334 = vmul.f32 %v2068, %v2311
    %v2335 = vmul.f32 %v2083, %v2313
    %v2336 = vmul.f32 %v2098, %v2315
    %v2337 = vmul.f32 %v2113, %v2317
    %v2338 = vmul.f32 %v2128, %v2319
    %v2339 = vmul.f32 %v2143, %v2321
    %v2340 = vmul.f32 %v2158, %v2323
    %v2341 = vmul.f32 %v2173, %v2325
    %2350 = vrot.lane.b32.xlu0 %v2334, 64
    %v2351 = vpop.permute.xlu0 %2350
    %2352 = vrot.lane.b32.xlu0 %v2335, 64
    %v2353 = vpop.permute.xlu0 %2352
    %2354 = vrot.lane.b32.xlu0 %v2336, 64
    %v2355 = vpop.permute.xlu0 %2354
    %2356 = vrot.lane.b32.xlu0 %v2337, 64
    %v2357 = vpop.permute.xlu0 %2356
    %2358 = vrot.lane.b32.xlu0 %v2338, 64
    %v2359 = vpop.permute.xlu0 %2358
    %2360 = vrot.lane.b32.xlu0 %v2339, 64
    %v2361 = vpop.permute.xlu0 %2360
    %2362 = vrot.lane.b32.xlu0 %v2340, 64
    %v2363 = vpop.permute.xlu0 %2362
    %2364 = vrot.lane.b32.xlu0 %v2341, 64
    %v2365 = vpop.permute.xlu0 %2364
    %vm2374 = vcmask 258052
    %2375 = vst.msk [vmem:[#allocation2] sm:$0x10] %vm2374, %v2351
    %2376 = vst.msk [vmem:[#allocation2 + $0x8] sm:$0x10] %vm2374, %v2353
    %2377 = vst.msk [vmem:[#allocation2 + $0x10] sm:$0x10] %vm2374, %v2355
    %2378 = vst.msk [vmem:[#allocation2 + $0x18] sm:$0x10] %vm2374, %v2357
    %2379 = vst.msk [vmem:[#allocation2 + $0x20] sm:$0x10] %vm2374, %v2359
    %2380 = vst.msk [vmem:[#allocation2 + $0x28] sm:$0x10] %vm2374, %v2361
    %2381 = vst.msk [vmem:[#allocation2 + $0x30] sm:$0x10] %vm2374, %v2363
    %2382 = vst.msk [vmem:[#allocation2 + $0x38] sm:$0x10] %vm2374, %v2365
    %v2383 = vpack.c.bf16 %v2334, %v2334
    %v2384 = vpack.c.bf16 %v2335, %v2335
    %v2385 = vpack.c.bf16 %v2336, %v2336
    %v2386 = vpack.c.bf16 %v2337, %v2337
    %v2387 = vpack.c.bf16 %v2338, %v2338
    %v2388 = vpack.c.bf16 %v2339, %v2339
    %v2389 = vpack.c.bf16 %v2340, %v2340
    %v2390 = vpack.c.bf16 %v2341, %v2341
    %v2399 = vunpack.c.l.b16 %v2383
    %v2400 = vunpack.c.l.b16 %v2384
    %v2401 = vunpack.c.l.b16 %v2385
    %v2402 = vunpack.c.l.b16 %v2386
    %v2403 = vunpack.c.l.b16 %v2387
    %v2404 = vunpack.c.l.b16 %v2388
    %v2405 = vunpack.c.l.b16 %v2389
    %v2406 = vunpack.c.l.b16 %v2390
    %v2407 = vrot.slane %v2399, 4
    %v2408 = vrot.slane %v2400, 3
    %v2409 = vsel %vm633, %v2408, %v2407
    %v2410 = vrot.slane %v2401, 2
    %v2411 = vsel %vm636, %v2410, %v2409
    %v2412 = vrot.slane %v2402, 1
    %v2413 = vsel %vm639, %v2412, %v2411
    %v2414 = vsel %vm642, %v2403, %v2413
    %v2415 = vrot.slane %v2404, 7
    %v2416 = vsel %vm645, %v2415, %v2414
    %v2417 = vrot.slane %v2405, 6
    %v2418 = vsel %vm648, %v2417, %v2416
    %v2419 = vrot.slane %v2406, 5
    %v2420 = vsel %vm651, %v2419, %v2418
    %v2421 = vpack.c.b16 %v2420, %v2420
    %2422 = vrot.lane.b32.xlu0 %v2421, 64
    %v2423 = vpop.permute.xlu0 %2422
    %v2425 = vsel %vm230, %v2423, 0
    %2427 = vmatpush.bf16.msra.mxu0 0
    %2428 = vmatpush.bf16.msra.mxu0 0
    %2429 = vmatpush.bf16.msra.mxu0 0
    %2430 = vmatpush.bf16.msra.mxu0 0
    %2431 = vmatpush.bf16.msra.mxu0 0
    %2432 = vmatpush.bf16.msra.mxu0 0
    %2433 = vmatpush.bf16.msra.mxu0 %v227
    %2434 = vmatpush.bf16.msra.mxu0 %v226
    %2435 = vmatmul.bf16.gmra.mxu0 %v2425
    %v2436 = vpop.f32.mrf.mxu0
    %v2437 = vadd.f32 0.0, %v2436
    %v2438 = vpop.f32.mrf.mxu0
    %2439 = vdwg.mxu0
    %v2441 = vrot.slane %v2437, 3
    %v2442 = vrot.slane %v2437, 4
    %v2443 = vrot.slane %v2437, 5
    %v2444 = vrot.slane %v2437, 6
    %v2445 = vrot.slane %v2437, 7
    %v2446 = vrot.slane %v2437, 1
    %v2447 = vrot.slane %v2437, 2
    %v2456 = vadd.f32 %v199, %v2441
    %v2457 = vadd.f32 %v201, %v2442
    %v2458 = vadd.f32 %v204, %v2443
    %v2459 = vadd.f32 %v206, %v2444
    %v2460 = vadd.f32 %v209, %v2445
    %v2461 = vadd.f32 %v211, %v2437
    %v2462 = vadd.f32 %v214, %v2446
    %v2463 = vadd.f32 %v216, %v2447
    %v2464 = vxor.u32 %v2456, 2147483648
    %v2465 = vxor.u32 %v2457, 2147483648
    %v2466 = vxor.u32 %v2458, 2147483648
    %v2467 = vxor.u32 %v2459, 2147483648
    %v2468 = vxor.u32 %v2460, 2147483648
    %v2469 = vxor.u32 %v2461, 2147483648
    %v2470 = vxor.u32 %v2462, 2147483648
    %v2471 = vxor.u32 %v2463, 2147483648
    %v2472 = vmul.f32 %v2464, 1.442695
    %v2473 = vpow.pop %v2472
    %v2474 = vmul.f32 %v2465, 1.442695
    %v2475 = vpow.pop %v2474
    %v2476 = vmul.f32 %v2466, 1.442695
    %v2477 = vpow.pop %v2476
    %v2478 = vmul.f32 %v2467, 1.442695
    %v2479 = vpow.pop %v2478
    %v2480 = vmul.f32 %v2468, 1.442695
    %v2481 = vpow.pop %v2480
    %v2482 = vmul.f32 %v2469, 1.442695
    %v2483 = vpow.pop %v2482
    %v2484 = vmul.f32 %v2470, 1.442695
    %v2485 = vpow.pop %v2484
    %v2486 = vmul.f32 %v2471, 1.442695
    %v2487 = vpow.pop %v2486
    %v2488 = vadd.f32 %v2473, 1.0
    %v2489 = vadd.f32 %v2475, 1.0
    %v2490 = vadd.f32 %v2477, 1.0
    %v2491 = vadd.f32 %v2479, 1.0
    %v2492 = vadd.f32 %v2481, 1.0
    %v2493 = vadd.f32 %v2483, 1.0
    %v2494 = vadd.f32 %v2485, 1.0
    %v2495 = vadd.f32 %v2487, 1.0
    %v2496 = vrcp.pop %v2488
    %v2497 = vmul.f32 %v2488, %v2496
    %v2498 = vsub.f32 1.0, %v2497
    %v2499 = vmul.f32 %v2496, %v2498
    %v2500 = vadd.f32 %v2496, %v2499
    %vm2501 = vweird.f32 %v2488
    %vm2502 = vweird.f32 %v2496
    %vm2503 = vmor %vm2501, %vm2502
    %v2504 = vsel %vm2503, %v2496, %v2500
    %v2505 = vand.u32 2147483647, %v2488
    %vm2506 = vcmp.eq.f32.partialorder %v2505, 8.507059e+37
    %v2507 = vand.u32 %v2488, 2147483648
    %v2508 = vor.u32 1.1754944e-38, %v2507
    %v2509 = vsel %vm2506, %v2508, %v2504
    %v2510 = vmul.f32 1.0, %v2509
    %v2511 = vrcp.pop %v2489
    %v2512 = vmul.f32 %v2489, %v2511
    %v2513 = vsub.f32 1.0, %v2512
    %v2514 = vmul.f32 %v2511, %v2513
    %v2515 = vadd.f32 %v2511, %v2514
    %vm2516 = vweird.f32 %v2489
    %vm2517 = vweird.f32 %v2511
    %vm2518 = vmor %vm2516, %vm2517
    %v2519 = vsel %vm2518, %v2511, %v2515
    %v2520 = vand.u32 2147483647, %v2489
    %vm2521 = vcmp.eq.f32.partialorder %v2520, 8.507059e+37
    %v2522 = vand.u32 %v2489, 2147483648
    %v2523 = vor.u32 1.1754944e-38, %v2522
    %v2524 = vsel %vm2521, %v2523, %v2519
    %v2525 = vmul.f32 1.0, %v2524
    %v2526 = vrcp.pop %v2490
    %v2527 = vmul.f32 %v2490, %v2526
    %v2528 = vsub.f32 1.0, %v2527
    %v2529 = vmul.f32 %v2526, %v2528
    %v2530 = vadd.f32 %v2526, %v2529
    %vm2531 = vweird.f32 %v2490
    %vm2532 = vweird.f32 %v2526
    %vm2533 = vmor %vm2531, %vm2532
    %v2534 = vsel %vm2533, %v2526, %v2530
    %v2535 = vand.u32 2147483647, %v2490
    %vm2536 = vcmp.eq.f32.partialorder %v2535, 8.507059e+37
    %v2537 = vand.u32 %v2490, 2147483648
    %v2538 = vor.u32 1.1754944e-38, %v2537
    %v2539 = vsel %vm2536, %v2538, %v2534
    %v2540 = vmul.f32 1.0, %v2539
    %v2541 = vrcp.pop %v2491
    %v2542 = vmul.f32 %v2491, %v2541
    %v2543 = vsub.f32 1.0, %v2542
    %v2544 = vmul.f32 %v2541, %v2543
    %v2545 = vadd.f32 %v2541, %v2544
    %vm2546 = vweird.f32 %v2491
    %vm2547 = vweird.f32 %v2541
    %vm2548 = vmor %vm2546, %vm2547
    %v2549 = vsel %vm2548, %v2541, %v2545
    %v2550 = vand.u32 2147483647, %v2491
    %vm2551 = vcmp.eq.f32.partialorder %v2550, 8.507059e+37
    %v2552 = vand.u32 %v2491, 2147483648
    %v2553 = vor.u32 1.1754944e-38, %v2552
    %v2554 = vsel %vm2551, %v2553, %v2549
    %v2555 = vmul.f32 1.0, %v2554
    %v2556 = vrcp.pop %v2492
    %v2557 = vmul.f32 %v2492, %v2556
    %v2558 = vsub.f32 1.0, %v2557
    %v2559 = vmul.f32 %v2556, %v2558
    %v2560 = vadd.f32 %v2556, %v2559
    %vm2561 = vweird.f32 %v2492
    %vm2562 = vweird.f32 %v2556
    %vm2563 = vmor %vm2561, %vm2562
    %v2564 = vsel %vm2563, %v2556, %v2560
    %v2565 = vand.u32 2147483647, %v2492
    %vm2566 = vcmp.eq.f32.partialorder %v2565, 8.507059e+37
    %v2567 = vand.u32 %v2492, 2147483648
    %v2568 = vor.u32 1.1754944e-38, %v2567
    %v2569 = vsel %vm2566, %v2568, %v2564
    %v2570 = vmul.f32 1.0, %v2569
    %v2571 = vrcp.pop %v2493
    %v2572 = vmul.f32 %v2493, %v2571
    %v2573 = vsub.f32 1.0, %v2572
    %v2574 = vmul.f32 %v2571, %v2573
    %v2575 = vadd.f32 %v2571, %v2574
    %vm2576 = vweird.f32 %v2493
    %vm2577 = vweird.f32 %v2571
    %vm2578 = vmor %vm2576, %vm2577
    %v2579 = vsel %vm2578, %v2571, %v2575
    %v2580 = vand.u32 2147483647, %v2493
    %vm2581 = vcmp.eq.f32.partialorder %v2580, 8.507059e+37
    %v2582 = vand.u32 %v2493, 2147483648
    %v2583 = vor.u32 1.1754944e-38, %v2582
    %v2584 = vsel %vm2581, %v2583, %v2579
    %v2585 = vmul.f32 1.0, %v2584
    %v2586 = vrcp.pop %v2494
    %v2587 = vmul.f32 %v2494, %v2586
    %v2588 = vsub.f32 1.0, %v2587
    %v2589 = vmul.f32 %v2586, %v2588
    %v2590 = vadd.f32 %v2586, %v2589
    %vm2591 = vweird.f32 %v2494
    %vm2592 = vweird.f32 %v2586
    %vm2593 = vmor %vm2591, %vm2592
    %v2594 = vsel %vm2593, %v2586, %v2590
    %v2595 = vand.u32 2147483647, %v2494
    %vm2596 = vcmp.eq.f32.partialorder %v2595, 8.507059e+37
    %v2597 = vand.u32 %v2494, 2147483648
    %v2598 = vor.u32 1.1754944e-38, %v2597
    %v2599 = vsel %vm2596, %v2598, %v2594
    %v2600 = vmul.f32 1.0, %v2599
    %v2601 = vrcp.pop %v2495
    %v2602 = vmul.f32 %v2495, %v2601
    %v2603 = vsub.f32 1.0, %v2602
    %v2604 = vmul.f32 %v2601, %v2603
    %v2605 = vadd.f32 %v2601, %v2604
    %vm2606 = vweird.f32 %v2495
    %vm2607 = vweird.f32 %v2601
    %vm2608 = vmor %vm2606, %vm2607
    %v2609 = vsel %vm2608, %v2601, %v2605
    %v2610 = vand.u32 2147483647, %v2495
    %vm2611 = vcmp.eq.f32.partialorder %v2610, 8.507059e+37
    %v2612 = vand.u32 %v2495, 2147483648
    %v2613 = vor.u32 1.1754944e-38, %v2612
    %v2614 = vsel %vm2611, %v2613, %v2609
    %v2615 = vmul.f32 1.0, %v2614
    %v2616 = vtanh.pop %v2456
    %v2617 = vtanh.pop %v2457
    %v2618 = vtanh.pop %v2458
    %v2619 = vtanh.pop %v2459
    %v2620 = vtanh.pop %v2460
    %v2621 = vtanh.pop %v2461
    %v2622 = vtanh.pop %v2462
    %v2623 = vtanh.pop %v2463
    %v2632 = vrot.slane %v2286, 7
    %v2633 = vrot.slane %v2287, 7
    %v2634 = vrot.slane %v2288, 7
    %v2635 = vrot.slane %v2289, 7
    %v2636 = vrot.slane %v2290, 7
    %v2637 = vrot.slane %v2291, 7
    %v2638 = vrot.slane %v2292, 7
    %v2639 = vrot.slane %v2293, 7
    %v2648 = vmul.f32 %v2510, %v2632
    %v2649 = vmul.f32 %v2525, %v2633
    %v2650 = vmul.f32 %v2540, %v2634
    %v2651 = vmul.f32 %v2555, %v2635
    %v2652 = vmul.f32 %v2570, %v2636
    %v2653 = vmul.f32 %v2585, %v2637
    %v2654 = vmul.f32 %v2600, %v2638
    %v2655 = vmul.f32 %v2615, %v2639
    %2664 = vrot.lane.b32.xlu0 %v2616, 32
    %v2665 = vpop.permute.xlu0 %2664
    %2666 = vrot.lane.b32.xlu0 %v2617, 32
    %v2667 = vpop.permute.xlu0 %2666
    %2668 = vrot.lane.b32.xlu0 %v2618, 32
    %v2669 = vpop.permute.xlu0 %2668
    %2670 = vrot.lane.b32.xlu0 %v2619, 32
    %v2671 = vpop.permute.xlu0 %2670
    %2672 = vrot.lane.b32.xlu0 %v2620, 32
    %v2673 = vpop.permute.xlu0 %2672
    %2674 = vrot.lane.b32.xlu0 %v2621, 32
    %v2675 = vpop.permute.xlu0 %2674
    %2676 = vrot.lane.b32.xlu0 %v2622, 32
    %v2677 = vpop.permute.xlu0 %2676
    %2678 = vrot.lane.b32.xlu0 %v2623, 32
    %v2679 = vpop.permute.xlu0 %2678
    %v2688 = vmul.f32 %v2510, %v2665
    %v2689 = vmul.f32 %v2525, %v2667
    %v2690 = vmul.f32 %v2540, %v2669
    %v2691 = vmul.f32 %v2555, %v2671
    %v2692 = vmul.f32 %v2570, %v2673
    %v2693 = vmul.f32 %v2585, %v2675
    %v2694 = vmul.f32 %v2600, %v2677
    %v2695 = vmul.f32 %v2615, %v2679
    %2704 = vrot.lane.b32.xlu0 %v2688, 32
    %v2705 = vpop.permute.xlu0 %2704
    %2706 = vrot.lane.b32.xlu0 %v2689, 32
    %v2707 = vpop.permute.xlu0 %2706
    %2708 = vrot.lane.b32.xlu0 %v2690, 32
    %v2709 = vpop.permute.xlu0 %2708
    %2710 = vrot.lane.b32.xlu0 %v2691, 32
    %v2711 = vpop.permute.xlu0 %2710
    %2712 = vrot.lane.b32.xlu0 %v2692, 32
    %v2713 = vpop.permute.xlu0 %2712
    %2714 = vrot.lane.b32.xlu0 %v2693, 32
    %v2715 = vpop.permute.xlu0 %2714
    %2716 = vrot.lane.b32.xlu0 %v2694, 32
    %v2717 = vpop.permute.xlu0 %2716
    %2718 = vrot.lane.b32.xlu0 %v2695, 32
    %v2719 = vpop.permute.xlu0 %2718
    %v2728 = vadd.f32 %v2648, %v2705
    %v2729 = vadd.f32 %v2649, %v2707
    %v2730 = vadd.f32 %v2650, %v2709
    %v2731 = vadd.f32 %v2651, %v2711
    %v2732 = vadd.f32 %v2652, %v2713
    %v2733 = vadd.f32 %v2653, %v2715
    %v2734 = vadd.f32 %v2654, %v2717
    %v2735 = vadd.f32 %v2655, %v2719
    %v2736 = vtanh.pop %v2728
    %v2737 = vtanh.pop %v2729
    %v2738 = vtanh.pop %v2730
    %v2739 = vtanh.pop %v2731
    %v2740 = vtanh.pop %v2732
    %v2741 = vtanh.pop %v2733
    %v2742 = vtanh.pop %v2734
    %v2743 = vtanh.pop %v2735
    %2752 = vrot.lane.b32.xlu0 %v2736, 32
    %v2753 = vpop.permute.xlu0 %2752
    %2754 = vrot.lane.b32.xlu0 %v2737, 32
    %v2755 = vpop.permute.xlu0 %2754
    %2756 = vrot.lane.b32.xlu0 %v2738, 32
    %v2757 = vpop.permute.xlu0 %2756
    %2758 = vrot.lane.b32.xlu0 %v2739, 32
    %v2759 = vpop.permute.xlu0 %2758
    %2760 = vrot.lane.b32.xlu0 %v2740, 32
    %v2761 = vpop.permute.xlu0 %2760
    %2762 = vrot.lane.b32.xlu0 %v2741, 32
    %v2763 = vpop.permute.xlu0 %2762
    %2764 = vrot.lane.b32.xlu0 %v2742, 32
    %v2765 = vpop.permute.xlu0 %2764
    %2766 = vrot.lane.b32.xlu0 %v2743, 32
    %v2767 = vpop.permute.xlu0 %2766
    %v2776 = vmul.f32 %v2510, %v2753
    %v2777 = vmul.f32 %v2525, %v2755
    %v2778 = vmul.f32 %v2540, %v2757
    %v2779 = vmul.f32 %v2555, %v2759
    %v2780 = vmul.f32 %v2570, %v2761
    %v2781 = vmul.f32 %v2585, %v2763
    %v2782 = vmul.f32 %v2600, %v2765
    %v2783 = vmul.f32 %v2615, %v2767
    %2792 = vrot.lane.b32.xlu0 %v2776, 64
    %v2793 = vpop.permute.xlu0 %2792
    %2794 = vrot.lane.b32.xlu0 %v2777, 64
    %v2795 = vpop.permute.xlu0 %2794
    %2796 = vrot.lane.b32.xlu0 %v2778, 64
    %v2797 = vpop.permute.xlu0 %2796
    %2798 = vrot.lane.b32.xlu0 %v2779, 64
    %v2799 = vpop.permute.xlu0 %2798
    %2800 = vrot.lane.b32.xlu0 %v2780, 64
    %v2801 = vpop.permute.xlu0 %2800
    %2802 = vrot.lane.b32.xlu0 %v2781, 64
    %v2803 = vpop.permute.xlu0 %2802
    %2804 = vrot.lane.b32.xlu0 %v2782, 64
    %v2805 = vpop.permute.xlu0 %2804
    %2806 = vrot.lane.b32.xlu0 %v2783, 64
    %v2807 = vpop.permute.xlu0 %2806
    %vm2816 = vcmask 259077
    %2817 = vst.msk [vmem:[#allocation2] sm:$0x20] %vm2816, %v2793
    %2818 = vst.msk [vmem:[#allocation2 + $0x8] sm:$0x20] %vm2816, %v2795
    %2819 = vst.msk [vmem:[#allocation2 + $0x10] sm:$0x20] %vm2816, %v2797
    %2820 = vst.msk [vmem:[#allocation2 + $0x18] sm:$0x20] %vm2816, %v2799
    %2821 = vst.msk [vmem:[#allocation2 + $0x20] sm:$0x20] %vm2816, %v2801
    %2822 = vst.msk [vmem:[#allocation2 + $0x28] sm:$0x20] %vm2816, %v2803
    %2823 = vst.msk [vmem:[#allocation2 + $0x30] sm:$0x20] %vm2816, %v2805
    %2824 = vst.msk [vmem:[#allocation2 + $0x38] sm:$0x20] %vm2816, %v2807
    %v2825 = vpack.c.bf16 %v2776, %v2776
    %v2826 = vpack.c.bf16 %v2777, %v2777
    %v2827 = vpack.c.bf16 %v2778, %v2778
    %v2828 = vpack.c.bf16 %v2779, %v2779
    %v2829 = vpack.c.bf16 %v2780, %v2780
    %v2830 = vpack.c.bf16 %v2781, %v2781
    %v2831 = vpack.c.bf16 %v2782, %v2782
    %v2832 = vpack.c.bf16 %v2783, %v2783
    %v2841 = vunpack.c.l.b16 %v2825
    %v2842 = vunpack.c.l.b16 %v2826
    %v2843 = vunpack.c.l.b16 %v2827
    %v2844 = vunpack.c.l.b16 %v2828
    %v2845 = vunpack.c.l.b16 %v2829
    %v2846 = vunpack.c.l.b16 %v2830
    %v2847 = vunpack.c.l.b16 %v2831
    %v2848 = vunpack.c.l.b16 %v2832
    %v2849 = vrot.slane %v2841, 5
    %v2850 = vrot.slane %v2842, 4
    %v2851 = vsel %vm633, %v2850, %v2849
    %v2852 = vrot.slane %v2843, 3
    %v2853 = vsel %vm636, %v2852, %v2851
    %v2854 = vrot.slane %v2844, 2
    %v2855 = vsel %vm639, %v2854, %v2853
    %v2856 = vrot.slane %v2845, 1
    %v2857 = vsel %vm642, %v2856, %v2855
    %v2858 = vsel %vm645, %v2846, %v2857
    %v2859 = vrot.slane %v2847, 7
    %v2860 = vsel %vm648, %v2859, %v2858
    %v2861 = vrot.slane %v2848, 6
    %v2862 = vsel %vm651, %v2861, %v2860
    %v2863 = vpack.c.b16 %v2862, %v2862
    %2864 = vrot.lane.b32.xlu0 %v2863, 64
    %v2865 = vpop.permute.xlu0 %2864
    %v2867 = vsel %vm230, %v2865, 0
    %2869 = vmatpush.bf16.msra.mxu0 0
    %2870 = vmatpush.bf16.msra.mxu0 0
    %2871 = vmatpush.bf16.msra.mxu0 0
    %2872 = vmatpush.bf16.msra.mxu0 0
    %2873 = vmatpush.bf16.msra.mxu0 0
    %2874 = vmatpush.bf16.msra.mxu0 0
    %2875 = vmatpush.bf16.msra.mxu0 %v227
    %2876 = vmatpush.bf16.msra.mxu0 %v226
    %2877 = vmatmul.bf16.gmra.mxu0 %v2867
    %v2878 = vpop.f32.mrf.mxu0
    %v2879 = vadd.f32 0.0, %v2878
    %v2880 = vpop.f32.mrf.mxu0
    %2881 = vdwg.mxu0
    %v2883 = vrot.slane %v2879, 2
    %v2884 = vrot.slane %v2879, 3
    %v2885 = vrot.slane %v2879, 4
    %v2886 = vrot.slane %v2879, 5
    %v2887 = vrot.slane %v2879, 6
    %v2888 = vrot.slane %v2879, 7
    %v2889 = vrot.slane %v2879, 1
    %v2898 = vadd.f32 %v199, %v2883
    %v2899 = vadd.f32 %v201, %v2884
    %v2900 = vadd.f32 %v204, %v2885
    %v2901 = vadd.f32 %v206, %v2886
    %v2902 = vadd.f32 %v209, %v2887
    %v2903 = vadd.f32 %v211, %v2888
    %v2904 = vadd.f32 %v214, %v2879
    %v2905 = vadd.f32 %v216, %v2889
    %v2906 = vxor.u32 %v2898, 2147483648
    %v2907 = vxor.u32 %v2899, 2147483648
    %v2908 = vxor.u32 %v2900, 2147483648
    %v2909 = vxor.u32 %v2901, 2147483648
    %v2910 = vxor.u32 %v2902, 2147483648
    %v2911 = vxor.u32 %v2903, 2147483648
    %v2912 = vxor.u32 %v2904, 2147483648
    %v2913 = vxor.u32 %v2905, 2147483648
    %v2914 = vmul.f32 %v2906, 1.442695
    %v2915 = vpow.pop %v2914
    %v2916 = vmul.f32 %v2907, 1.442695
    %v2917 = vpow.pop %v2916
    %v2918 = vmul.f32 %v2908, 1.442695
    %v2919 = vpow.pop %v2918
    %v2920 = vmul.f32 %v2909, 1.442695
    %v2921 = vpow.pop %v2920
    %v2922 = vmul.f32 %v2910, 1.442695
    %v2923 = vpow.pop %v2922
    %v2924 = vmul.f32 %v2911, 1.442695
    %v2925 = vpow.pop %v2924
    %v2926 = vmul.f32 %v2912, 1.442695
    %v2927 = vpow.pop %v2926
    %v2928 = vmul.f32 %v2913, 1.442695
    %v2929 = vpow.pop %v2928
    %v2930 = vadd.f32 %v2915, 1.0
    %v2931 = vadd.f32 %v2917, 1.0
    %v2932 = vadd.f32 %v2919, 1.0
    %v2933 = vadd.f32 %v2921, 1.0
    %v2934 = vadd.f32 %v2923, 1.0
    %v2935 = vadd.f32 %v2925, 1.0
    %v2936 = vadd.f32 %v2927, 1.0
    %v2937 = vadd.f32 %v2929, 1.0
    %v2938 = vrcp.pop %v2930
    %v2939 = vmul.f32 %v2930, %v2938
    %v2940 = vsub.f32 1.0, %v2939
    %v2941 = vmul.f32 %v2938, %v2940
    %v2942 = vadd.f32 %v2938, %v2941
    %vm2943 = vweird.f32 %v2930
    %vm2944 = vweird.f32 %v2938
    %vm2945 = vmor %vm2943, %vm2944
    %v2946 = vsel %vm2945, %v2938, %v2942
    %v2947 = vand.u32 2147483647, %v2930
    %vm2948 = vcmp.eq.f32.partialorder %v2947, 8.507059e+37
    %v2949 = vand.u32 %v2930, 2147483648
    %v2950 = vor.u32 1.1754944e-38, %v2949
    %v2951 = vsel %vm2948, %v2950, %v2946
    %v2952 = vmul.f32 1.0, %v2951
    %v2953 = vrcp.pop %v2931
    %v2954 = vmul.f32 %v2931, %v2953
    %v2955 = vsub.f32 1.0, %v2954
    %v2956 = vmul.f32 %v2953, %v2955
    %v2957 = vadd.f32 %v2953, %v2956
    %vm2958 = vweird.f32 %v2931
    %vm2959 = vweird.f32 %v2953
    %vm2960 = vmor %vm2958, %vm2959
    %v2961 = vsel %vm2960, %v2953, %v2957
    %v2962 = vand.u32 2147483647, %v2931
    %vm2963 = vcmp.eq.f32.partialorder %v2962, 8.507059e+37
    %v2964 = vand.u32 %v2931, 2147483648
    %v2965 = vor.u32 1.1754944e-38, %v2964
    %v2966 = vsel %vm2963, %v2965, %v2961
    %v2967 = vmul.f32 1.0, %v2966
    %v2968 = vrcp.pop %v2932
    %v2969 = vmul.f32 %v2932, %v2968
    %v2970 = vsub.f32 1.0, %v2969
    %v2971 = vmul.f32 %v2968, %v2970
    %v2972 = vadd.f32 %v2968, %v2971
    %vm2973 = vweird.f32 %v2932
    %vm2974 = vweird.f32 %v2968
    %vm2975 = vmor %vm2973, %vm2974
    %v2976 = vsel %vm2975, %v2968, %v2972
    %v2977 = vand.u32 2147483647, %v2932
    %vm2978 = vcmp.eq.f32.partialorder %v2977, 8.507059e+37
    %v2979 = vand.u32 %v2932, 2147483648
    %v2980 = vor.u32 1.1754944e-38, %v2979
    %v2981 = vsel %vm2978, %v2980, %v2976
    %v2982 = vmul.f32 1.0, %v2981
    %v2983 = vrcp.pop %v2933
    %v2984 = vmul.f32 %v2933, %v2983
    %v2985 = vsub.f32 1.0, %v2984
    %v2986 = vmul.f32 %v2983, %v2985
    %v2987 = vadd.f32 %v2983, %v2986
    %vm2988 = vweird.f32 %v2933
    %vm2989 = vweird.f32 %v2983
    %vm2990 = vmor %vm2988, %vm2989
    %v2991 = vsel %vm2990, %v2983, %v2987
    %v2992 = vand.u32 2147483647, %v2933
    %vm2993 = vcmp.eq.f32.partialorder %v2992, 8.507059e+37
    %v2994 = vand.u32 %v2933, 2147483648
    %v2995 = vor.u32 1.1754944e-38, %v2994
    %v2996 = vsel %vm2993, %v2995, %v2991
    %v2997 = vmul.f32 1.0, %v2996
    %v2998 = vrcp.pop %v2934
    %v2999 = vmul.f32 %v2934, %v2998
    %v3000 = vsub.f32 1.0, %v2999
    %v3001 = vmul.f32 %v2998, %v3000
    %v3002 = vadd.f32 %v2998, %v3001
    %vm3003 = vweird.f32 %v2934
    %vm3004 = vweird.f32 %v2998
    %vm3005 = vmor %vm3003, %vm3004
    %v3006 = vsel %vm3005, %v2998, %v3002
    %v3007 = vand.u32 2147483647, %v2934
    %vm3008 = vcmp.eq.f32.partialorder %v3007, 8.507059e+37
    %v3009 = vand.u32 %v2934, 2147483648
    %v3010 = vor.u32 1.1754944e-38, %v3009
    %v3011 = vsel %vm3008, %v3010, %v3006
    %v3012 = vmul.f32 1.0, %v3011
    %v3013 = vrcp.pop %v2935
    %v3014 = vmul.f32 %v2935, %v3013
    %v3015 = vsub.f32 1.0, %v3014
    %v3016 = vmul.f32 %v3013, %v3015
    %v3017 = vadd.f32 %v3013, %v3016
    %vm3018 = vweird.f32 %v2935
    %vm3019 = vweird.f32 %v3013
    %vm3020 = vmor %vm3018, %vm3019
    %v3021 = vsel %vm3020, %v3013, %v3017
    %v3022 = vand.u32 2147483647, %v2935
    %vm3023 = vcmp.eq.f32.partialorder %v3022, 8.507059e+37
    %v3024 = vand.u32 %v2935, 2147483648
    %v3025 = vor.u32 1.1754944e-38, %v3024
    %v3026 = vsel %vm3023, %v3025, %v3021
    %v3027 = vmul.f32 1.0, %v3026
    %v3028 = vrcp.pop %v2936
    %v3029 = vmul.f32 %v2936, %v3028
    %v3030 = vsub.f32 1.0, %v3029
    %v3031 = vmul.f32 %v3028, %v3030
    %v3032 = vadd.f32 %v3028, %v3031
    %vm3033 = vweird.f32 %v2936
    %vm3034 = vweird.f32 %v3028
    %vm3035 = vmor %vm3033, %vm3034
    %v3036 = vsel %vm3035, %v3028, %v3032
    %v3037 = vand.u32 2147483647, %v2936
    %vm3038 = vcmp.eq.f32.partialorder %v3037, 8.507059e+37
    %v3039 = vand.u32 %v2936, 2147483648
    %v3040 = vor.u32 1.1754944e-38, %v3039
    %v3041 = vsel %vm3038, %v3040, %v3036
    %v3042 = vmul.f32 1.0, %v3041
    %v3043 = vrcp.pop %v2937
    %v3044 = vmul.f32 %v2937, %v3043
    %v3045 = vsub.f32 1.0, %v3044
    %v3046 = vmul.f32 %v3043, %v3045
    %v3047 = vadd.f32 %v3043, %v3046
    %vm3048 = vweird.f32 %v2937
    %vm3049 = vweird.f32 %v3043
    %vm3050 = vmor %vm3048, %vm3049
    %v3051 = vsel %vm3050, %v3043, %v3047
    %v3052 = vand.u32 2147483647, %v2937
    %vm3053 = vcmp.eq.f32.partialorder %v3052, 8.507059e+37
    %v3054 = vand.u32 %v2937, 2147483648
    %v3055 = vor.u32 1.1754944e-38, %v3054
    %v3056 = vsel %vm3053, %v3055, %v3051
    %v3057 = vmul.f32 1.0, %v3056
    %v3058 = vtanh.pop %v2898
    %v3059 = vtanh.pop %v2899
    %v3060 = vtanh.pop %v2900
    %v3061 = vtanh.pop %v2901
    %v3062 = vtanh.pop %v2902
    %v3063 = vtanh.pop %v2903
    %v3064 = vtanh.pop %v2904
    %v3065 = vtanh.pop %v2905
    %v3074 = vrot.slane %v2728, 7
    %v3075 = vrot.slane %v2729, 7
    %v3076 = vrot.slane %v2730, 7
    %v3077 = vrot.slane %v2731, 7
    %v3078 = vrot.slane %v2732, 7
    %v3079 = vrot.slane %v2733, 7
    %v3080 = vrot.slane %v2734, 7
    %v3081 = vrot.slane %v2735, 7
    %v3090 = vmul.f32 %v2952, %v3074
    %v3091 = vmul.f32 %v2967, %v3075
    %v3092 = vmul.f32 %v2982, %v3076
    %v3093 = vmul.f32 %v2997, %v3077
    %v3094 = vmul.f32 %v3012, %v3078
    %v3095 = vmul.f32 %v3027, %v3079
    %v3096 = vmul.f32 %v3042, %v3080
    %v3097 = vmul.f32 %v3057, %v3081
    %3106 = vrot.lane.b32.xlu0 %v3058, 32
    %v3107 = vpop.permute.xlu0 %3106
    %3108 = vrot.lane.b32.xlu0 %v3059, 32
    %v3109 = vpop.permute.xlu0 %3108
    %3110 = vrot.lane.b32.xlu0 %v3060, 32
    %v3111 = vpop.permute.xlu0 %3110
    %3112 = vrot.lane.b32.xlu0 %v3061, 32
    %v3113 = vpop.permute.xlu0 %3112
    %3114 = vrot.lane.b32.xlu0 %v3062, 32
    %v3115 = vpop.permute.xlu0 %3114
    %3116 = vrot.lane.b32.xlu0 %v3063, 32
    %v3117 = vpop.permute.xlu0 %3116
    %3118 = vrot.lane.b32.xlu0 %v3064, 32
    %v3119 = vpop.permute.xlu0 %3118
    %3120 = vrot.lane.b32.xlu0 %v3065, 32
    %v3121 = vpop.permute.xlu0 %3120
    %v3130 = vmul.f32 %v2952, %v3107
    %v3131 = vmul.f32 %v2967, %v3109
    %v3132 = vmul.f32 %v2982, %v3111
    %v3133 = vmul.f32 %v2997, %v3113
    %v3134 = vmul.f32 %v3012, %v3115
    %v3135 = vmul.f32 %v3027, %v3117
    %v3136 = vmul.f32 %v3042, %v3119
    %v3137 = vmul.f32 %v3057, %v3121
    %3146 = vrot.lane.b32.xlu0 %v3130, 32
    %v3147 = vpop.permute.xlu0 %3146
    %3148 = vrot.lane.b32.xlu0 %v3131, 32
    %v3149 = vpop.permute.xlu0 %3148
    %3150 = vrot.lane.b32.xlu0 %v3132, 32
    %v3151 = vpop.permute.xlu0 %3150
    %3152 = vrot.lane.b32.xlu0 %v3133, 32
    %v3153 = vpop.permute.xlu0 %3152
    %3154 = vrot.lane.b32.xlu0 %v3134, 32
    %v3155 = vpop.permute.xlu0 %3154
    %3156 = vrot.lane.b32.xlu0 %v3135, 32
    %v3157 = vpop.permute.xlu0 %3156
    %3158 = vrot.lane.b32.xlu0 %v3136, 32
    %v3159 = vpop.permute.xlu0 %3158
    %3160 = vrot.lane.b32.xlu0 %v3137, 32
    %v3161 = vpop.permute.xlu0 %3160
    %v3170 = vadd.f32 %v3090, %v3147
    %v3171 = vadd.f32 %v3091, %v3149
    %v3172 = vadd.f32 %v3092, %v3151
    %v3173 = vadd.f32 %v3093, %v3153
    %v3174 = vadd.f32 %v3094, %v3155
    %v3175 = vadd.f32 %v3095, %v3157
    %v3176 = vadd.f32 %v3096, %v3159
    %v3177 = vadd.f32 %v3097, %v3161
    %v3178 = vtanh.pop %v3170
    %v3179 = vtanh.pop %v3171
    %v3180 = vtanh.pop %v3172
    %v3181 = vtanh.pop %v3173
    %v3182 = vtanh.pop %v3174
    %v3183 = vtanh.pop %v3175
    %v3184 = vtanh.pop %v3176
    %v3185 = vtanh.pop %v3177
    %3194 = vrot.lane.b32.xlu0 %v3178, 32
    %v3195 = vpop.permute.xlu0 %3194
    %3196 = vrot.lane.b32.xlu0 %v3179, 32
    %v3197 = vpop.permute.xlu0 %3196
    %3198 = vrot.lane.b32.xlu0 %v3180, 32
    %v3199 = vpop.permute.xlu0 %3198
    %3200 = vrot.lane.b32.xlu0 %v3181, 32
    %v3201 = vpop.permute.xlu0 %3200
    %3202 = vrot.lane.b32.xlu0 %v3182, 32
    %v3203 = vpop.permute.xlu0 %3202
    %3204 = vrot.lane.b32.xlu0 %v3183, 32
    %v3205 = vpop.permute.xlu0 %3204
    %3206 = vrot.lane.b32.xlu0 %v3184, 32
    %v3207 = vpop.permute.xlu0 %3206
    %3208 = vrot.lane.b32.xlu0 %v3185, 32
    %v3209 = vpop.permute.xlu0 %3208
    %v3218 = vmul.f32 %v2952, %v3195
    %v3219 = vmul.f32 %v2967, %v3197
    %v3220 = vmul.f32 %v2982, %v3199
    %v3221 = vmul.f32 %v2997, %v3201
    %v3222 = vmul.f32 %v3012, %v3203
    %v3223 = vmul.f32 %v3027, %v3205
    %v3224 = vmul.f32 %v3042, %v3207
    %v3225 = vmul.f32 %v3057, %v3209
    %3234 = vrot.lane.b32.xlu0 %v3218, 64
    %v3235 = vpop.permute.xlu0 %3234
    %3236 = vrot.lane.b32.xlu0 %v3219, 64
    %v3237 = vpop.permute.xlu0 %3236
    %3238 = vrot.lane.b32.xlu0 %v3220, 64
    %v3239 = vpop.permute.xlu0 %3238
    %3240 = vrot.lane.b32.xlu0 %v3221, 64
    %v3241 = vpop.permute.xlu0 %3240
    %3242 = vrot.lane.b32.xlu0 %v3222, 64
    %v3243 = vpop.permute.xlu0 %3242
    %3244 = vrot.lane.b32.xlu0 %v3223, 64
    %v3245 = vpop.permute.xlu0 %3244
    %3246 = vrot.lane.b32.xlu0 %v3224, 64
    %v3247 = vpop.permute.xlu0 %3246
    %3248 = vrot.lane.b32.xlu0 %v3225, 64
    %v3249 = vpop.permute.xlu0 %3248
    %vm3258 = vcmask 260102
    %3259 = vst.msk [vmem:[#allocation2] sm:$0x40] %vm3258, %v3235
    %3260 = vst.msk [vmem:[#allocation2 + $0x8] sm:$0x40] %vm3258, %v3237
    %3261 = vst.msk [vmem:[#allocation2 + $0x10] sm:$0x40] %vm3258, %v3239
    %3262 = vst.msk [vmem:[#allocation2 + $0x18] sm:$0x40] %vm3258, %v3241
    %3263 = vst.msk [vmem:[#allocation2 + $0x20] sm:$0x40] %vm3258, %v3243
    %3264 = vst.msk [vmem:[#allocation2 + $0x28] sm:$0x40] %vm3258, %v3245
    %3265 = vst.msk [vmem:[#allocation2 + $0x30] sm:$0x40] %vm3258, %v3247
    %3266 = vst.msk [vmem:[#allocation2 + $0x38] sm:$0x40] %vm3258, %v3249
    %v3267 = vpack.c.bf16 %v3218, %v3218
    %v3268 = vpack.c.bf16 %v3219, %v3219
    %v3269 = vpack.c.bf16 %v3220, %v3220
    %v3270 = vpack.c.bf16 %v3221, %v3221
    %v3271 = vpack.c.bf16 %v3222, %v3222
    %v3272 = vpack.c.bf16 %v3223, %v3223
    %v3273 = vpack.c.bf16 %v3224, %v3224
    %v3274 = vpack.c.bf16 %v3225, %v3225
    %v3283 = vunpack.c.l.b16 %v3267
    %v3284 = vunpack.c.l.b16 %v3268
    %v3285 = vunpack.c.l.b16 %v3269
    %v3286 = vunpack.c.l.b16 %v3270
    %v3287 = vunpack.c.l.b16 %v3271
    %v3288 = vunpack.c.l.b16 %v3272
    %v3289 = vunpack.c.l.b16 %v3273
    %v3290 = vunpack.c.l.b16 %v3274
    %v3291 = vrot.slane %v3283, 6
    %v3292 = vrot.slane %v3284, 5
    %v3293 = vsel %vm633, %v3292, %v3291
    %v3294 = vrot.slane %v3285, 4
    %v3295 = vsel %vm636, %v3294, %v3293
    %v3296 = vrot.slane %v3286, 3
    %v3297 = vsel %vm639, %v3296, %v3295
    %v3298 = vrot.slane %v3287, 2
    %v3299 = vsel %vm642, %v3298, %v3297
    %v3300 = vrot.slane %v3288, 1
    %v3301 = vsel %vm645, %v3300, %v3299
    %v3302 = vsel %vm648, %v3289, %v3301
    %v3303 = vrot.slane %v3290, 7
    %v3304 = vsel %vm651, %v3303, %v3302
    %v3305 = vpack.c.b16 %v3304, %v3304
    %3306 = vrot.lane.b32.xlu0 %v3305, 64
    %v3307 = vpop.permute.xlu0 %3306
    %v3309 = vsel %vm230, %v3307, 0
    %3311 = vmatpush.bf16.msra.mxu0 0
    %3312 = vmatpush.bf16.msra.mxu0 0
    %3313 = vmatpush.bf16.msra.mxu0 0
    %3314 = vmatpush.bf16.msra.mxu0 0
    %3315 = vmatpush.bf16.msra.mxu0 0
    %3316 = vmatpush.bf16.msra.mxu0 0
    %3317 = vmatpush.bf16.msra.mxu0 %v227
    %3318 = vmatpush.bf16.msra.mxu0 %v226
    %3319 = vmatmul.bf16.gmra.mxu0 %v3309
    %v3320 = vpop.f32.mrf.mxu0
    %v3321 = vadd.f32 0.0, %v3320
    %v3322 = vpop.f32.mrf.mxu0
    %3323 = vdwg.mxu0
    %v3325 = vrot.slane %v3321, 1
    %v3326 = vrot.slane %v3321, 2
    %v3327 = vrot.slane %v3321, 3
    %v3328 = vrot.slane %v3321, 4
    %v3329 = vrot.slane %v3321, 5
    %v3330 = vrot.slane %v3321, 6
    %v3331 = vrot.slane %v3321, 7
    %v3340 = vadd.f32 %v199, %v3325
    %v3341 = vadd.f32 %v201, %v3326
    %v3342 = vadd.f32 %v204, %v3327
    %v3343 = vadd.f32 %v206, %v3328
    %v3344 = vadd.f32 %v209, %v3329
    %v3345 = vadd.f32 %v211, %v3330
    %v3346 = vadd.f32 %v214, %v3331
    %v3347 = vadd.f32 %v216, %v3321
    %v3348 = vxor.u32 %v3340, 2147483648
    %v3349 = vxor.u32 %v3341, 2147483648
    %v3350 = vxor.u32 %v3342, 2147483648
    %v3351 = vxor.u32 %v3343, 2147483648
    %v3352 = vxor.u32 %v3344, 2147483648
    %v3353 = vxor.u32 %v3345, 2147483648
    %v3354 = vxor.u32 %v3346, 2147483648
    %v3355 = vxor.u32 %v3347, 2147483648
    %v3356 = vmul.f32 %v3348, 1.442695
    %v3357 = vpow.pop %v3356
    %v3358 = vmul.f32 %v3349, 1.442695
    %v3359 = vpow.pop %v3358
    %v3360 = vmul.f32 %v3350, 1.442695
    %v3361 = vpow.pop %v3360
    %v3362 = vmul.f32 %v3351, 1.442695
    %v3363 = vpow.pop %v3362
    %v3364 = vmul.f32 %v3352, 1.442695
    %v3365 = vpow.pop %v3364
    %v3366 = vmul.f32 %v3353, 1.442695
    %v3367 = vpow.pop %v3366
    %v3368 = vmul.f32 %v3354, 1.442695
    %v3369 = vpow.pop %v3368
    %v3370 = vmul.f32 %v3355, 1.442695
    %v3371 = vpow.pop %v3370
    %v3372 = vadd.f32 %v3357, 1.0
    %v3373 = vadd.f32 %v3359, 1.0
    %v3374 = vadd.f32 %v3361, 1.0
    %v3375 = vadd.f32 %v3363, 1.0
    %v3376 = vadd.f32 %v3365, 1.0
    %v3377 = vadd.f32 %v3367, 1.0
    %v3378 = vadd.f32 %v3369, 1.0
    %v3379 = vadd.f32 %v3371, 1.0
    %v3380 = vrcp.pop %v3372
    %v3381 = vmul.f32 %v3372, %v3380
    %v3382 = vsub.f32 1.0, %v3381
    %v3383 = vmul.f32 %v3380, %v3382
    %v3384 = vadd.f32 %v3380, %v3383
    %vm3385 = vweird.f32 %v3372
    %vm3386 = vweird.f32 %v3380
    %vm3387 = vmor %vm3385, %vm3386
    %v3388 = vsel %vm3387, %v3380, %v3384
    %v3389 = vand.u32 2147483647, %v3372
    %vm3390 = vcmp.eq.f32.partialorder %v3389, 8.507059e+37
    %v3391 = vand.u32 %v3372, 2147483648
    %v3392 = vor.u32 1.1754944e-38, %v3391
    %v3393 = vsel %vm3390, %v3392, %v3388
    %v3394 = vmul.f32 1.0, %v3393
    %v3395 = vrcp.pop %v3373
    %v3396 = vmul.f32 %v3373, %v3395
    %v3397 = vsub.f32 1.0, %v3396
    %v3398 = vmul.f32 %v3395, %v3397
    %v3399 = vadd.f32 %v3395, %v3398
    %vm3400 = vweird.f32 %v3373
    %vm3401 = vweird.f32 %v3395
    %vm3402 = vmor %vm3400, %vm3401
    %v3403 = vsel %vm3402, %v3395, %v3399
    %v3404 = vand.u32 2147483647, %v3373
    %vm3405 = vcmp.eq.f32.partialorder %v3404, 8.507059e+37
    %v3406 = vand.u32 %v3373, 2147483648
    %v3407 = vor.u32 1.1754944e-38, %v3406
    %v3408 = vsel %vm3405, %v3407, %v3403
    %v3409 = vmul.f32 1.0, %v3408
    %v3410 = vrcp.pop %v3374
    %v3411 = vmul.f32 %v3374, %v3410
    %v3412 = vsub.f32 1.0, %v3411
    %v3413 = vmul.f32 %v3410, %v3412
    %v3414 = vadd.f32 %v3410, %v3413
    %vm3415 = vweird.f32 %v3374
    %vm3416 = vweird.f32 %v3410
    %vm3417 = vmor %vm3415, %vm3416
    %v3418 = vsel %vm3417, %v3410, %v3414
    %v3419 = vand.u32 2147483647, %v3374
    %vm3420 = vcmp.eq.f32.partialorder %v3419, 8.507059e+37
    %v3421 = vand.u32 %v3374, 2147483648
    %v3422 = vor.u32 1.1754944e-38, %v3421
    %v3423 = vsel %vm3420, %v3422, %v3418
    %v3424 = vmul.f32 1.0, %v3423
    %v3425 = vrcp.pop %v3375
    %v3426 = vmul.f32 %v3375, %v3425
    %v3427 = vsub.f32 1.0, %v3426
    %v3428 = vmul.f32 %v3425, %v3427
    %v3429 = vadd.f32 %v3425, %v3428
    %vm3430 = vweird.f32 %v3375
    %vm3431 = vweird.f32 %v3425
    %vm3432 = vmor %vm3430, %vm3431
    %v3433 = vsel %vm3432, %v3425, %v3429
    %v3434 = vand.u32 2147483647, %v3375
    %vm3435 = vcmp.eq.f32.partialorder %v3434, 8.507059e+37
    %v3436 = vand.u32 %v3375, 2147483648
    %v3437 = vor.u32 1.1754944e-38, %v3436
    %v3438 = vsel %vm3435, %v3437, %v3433
    %v3439 = vmul.f32 1.0, %v3438
    %v3440 = vrcp.pop %v3376
    %v3441 = vmul.f32 %v3376, %v3440
    %v3442 = vsub.f32 1.0, %v3441
    %v3443 = vmul.f32 %v3440, %v3442
    %v3444 = vadd.f32 %v3440, %v3443
    %vm3445 = vweird.f32 %v3376
    %vm3446 = vweird.f32 %v3440
    %vm3447 = vmor %vm3445, %vm3446
    %v3448 = vsel %vm3447, %v3440, %v3444
    %v3449 = vand.u32 2147483647, %v3376
    %vm3450 = vcmp.eq.f32.partialorder %v3449, 8.507059e+37
    %v3451 = vand.u32 %v3376, 2147483648
    %v3452 = vor.u32 1.1754944e-38, %v3451
    %v3453 = vsel %vm3450, %v3452, %v3448
    %v3454 = vmul.f32 1.0, %v3453
    %v3455 = vrcp.pop %v3377
    %v3456 = vmul.f32 %v3377, %v3455
    %v3457 = vsub.f32 1.0, %v3456
    %v3458 = vmul.f32 %v3455, %v3457
    %v3459 = vadd.f32 %v3455, %v3458
    %vm3460 = vweird.f32 %v3377
    %vm3461 = vweird.f32 %v3455
    %vm3462 = vmor %vm3460, %vm3461
    %v3463 = vsel %vm3462, %v3455, %v3459
    %v3464 = vand.u32 2147483647, %v3377
    %vm3465 = vcmp.eq.f32.partialorder %v3464, 8.507059e+37
    %v3466 = vand.u32 %v3377, 2147483648
    %v3467 = vor.u32 1.1754944e-38, %v3466
    %v3468 = vsel %vm3465, %v3467, %v3463
    %v3469 = vmul.f32 1.0, %v3468
    %v3470 = vrcp.pop %v3378
    %v3471 = vmul.f32 %v3378, %v3470
    %v3472 = vsub.f32 1.0, %v3471
    %v3473 = vmul.f32 %v3470, %v3472
    %v3474 = vadd.f32 %v3470, %v3473
    %vm3475 = vweird.f32 %v3378
    %vm3476 = vweird.f32 %v3470
    %vm3477 = vmor %vm3475, %vm3476
    %v3478 = vsel %vm3477, %v3470, %v3474
    %v3479 = vand.u32 2147483647, %v3378
    %vm3480 = vcmp.eq.f32.partialorder %v3479, 8.507059e+37
    %v3481 = vand.u32 %v3378, 2147483648
    %v3482 = vor.u32 1.1754944e-38, %v3481
    %v3483 = vsel %vm3480, %v3482, %v3478
    %v3484 = vmul.f32 1.0, %v3483
    %v3485 = vrcp.pop %v3379
    %v3486 = vmul.f32 %v3379, %v3485
    %v3487 = vsub.f32 1.0, %v3486
    %v3488 = vmul.f32 %v3485, %v3487
    %v3489 = vadd.f32 %v3485, %v3488
    %vm3490 = vweird.f32 %v3379
    %vm3491 = vweird.f32 %v3485
    %vm3492 = vmor %vm3490, %vm3491
    %v3493 = vsel %vm3492, %v3485, %v3489
    %v3494 = vand.u32 2147483647, %v3379
    %vm3495 = vcmp.eq.f32.partialorder %v3494, 8.507059e+37
    %v3496 = vand.u32 %v3379, 2147483648
    %v3497 = vor.u32 1.1754944e-38, %v3496
    %v3498 = vsel %vm3495, %v3497, %v3493
    %v3499 = vmul.f32 1.0, %v3498
    %v3500 = vtanh.pop %v3340
    %v3501 = vtanh.pop %v3341
    %v3502 = vtanh.pop %v3342
    %v3503 = vtanh.pop %v3343
    %v3504 = vtanh.pop %v3344
    %v3505 = vtanh.pop %v3345
    %v3506 = vtanh.pop %v3346
    %v3507 = vtanh.pop %v3347
    %v3516 = vrot.slane %v3170, 7
    %v3517 = vrot.slane %v3171, 7
    %v3518 = vrot.slane %v3172, 7
    %v3519 = vrot.slane %v3173, 7
    %v3520 = vrot.slane %v3174, 7
    %v3521 = vrot.slane %v3175, 7
    %v3522 = vrot.slane %v3176, 7
    %v3523 = vrot.slane %v3177, 7
    %v3532 = vmul.f32 %v3394, %v3516
    %v3533 = vmul.f32 %v3409, %v3517
    %v3534 = vmul.f32 %v3424, %v3518
    %v3535 = vmul.f32 %v3439, %v3519
    %v3536 = vmul.f32 %v3454, %v3520
    %v3537 = vmul.f32 %v3469, %v3521
    %v3538 = vmul.f32 %v3484, %v3522
    %v3539 = vmul.f32 %v3499, %v3523
    %3548 = vrot.lane.b32.xlu0 %v3500, 32
    %v3549 = vpop.permute.xlu0 %3548
    %3550 = vrot.lane.b32.xlu0 %v3501, 32
    %v3551 = vpop.permute.xlu0 %3550
    %3552 = vrot.lane.b32.xlu0 %v3502, 32
    %v3553 = vpop.permute.xlu0 %3552
    %3554 = vrot.lane.b32.xlu0 %v3503, 32
    %v3555 = vpop.permute.xlu0 %3554
    %3556 = vrot.lane.b32.xlu0 %v3504, 32
    %v3557 = vpop.permute.xlu0 %3556
    %3558 = vrot.lane.b32.xlu0 %v3505, 32
    %v3559 = vpop.permute.xlu0 %3558
    %3560 = vrot.lane.b32.xlu0 %v3506, 32
    %v3561 = vpop.permute.xlu0 %3560
    %3562 = vrot.lane.b32.xlu0 %v3507, 32
    %v3563 = vpop.permute.xlu0 %3562
    %v3572 = vmul.f32 %v3394, %v3549
    %v3573 = vmul.f32 %v3409, %v3551
    %v3574 = vmul.f32 %v3424, %v3553
    %v3575 = vmul.f32 %v3439, %v3555
    %v3576 = vmul.f32 %v3454, %v3557
    %v3577 = vmul.f32 %v3469, %v3559
    %v3578 = vmul.f32 %v3484, %v3561
    %v3579 = vmul.f32 %v3499, %v3563
    %3588 = vrot.lane.b32.xlu0 %v3572, 32
    %v3589 = vpop.permute.xlu0 %3588
    %3590 = vrot.lane.b32.xlu0 %v3573, 32
    %v3591 = vpop.permute.xlu0 %3590
    %3592 = vrot.lane.b32.xlu0 %v3574, 32
    %v3593 = vpop.permute.xlu0 %3592
    %3594 = vrot.lane.b32.xlu0 %v3575, 32
    %v3595 = vpop.permute.xlu0 %3594
    %3596 = vrot.lane.b32.xlu0 %v3576, 32
    %v3597 = vpop.permute.xlu0 %3596
    %3598 = vrot.lane.b32.xlu0 %v3577, 32
    %v3599 = vpop.permute.xlu0 %3598
    %3600 = vrot.lane.b32.xlu0 %v3578, 32
    %v3601 = vpop.permute.xlu0 %3600
    %3602 = vrot.lane.b32.xlu0 %v3579, 32
    %v3603 = vpop.permute.xlu0 %3602
    %v3612 = vadd.f32 %v3532, %v3589
    %v3613 = vadd.f32 %v3533, %v3591
    %v3614 = vadd.f32 %v3534, %v3593
    %v3615 = vadd.f32 %v3535, %v3595
    %v3616 = vadd.f32 %v3536, %v3597
    %v3617 = vadd.f32 %v3537, %v3599
    %v3618 = vadd.f32 %v3538, %v3601
    %v3619 = vadd.f32 %v3539, %v3603
    %v3620 = vtanh.pop %v3612
    %v3621 = vtanh.pop %v3613
    %v3622 = vtanh.pop %v3614
    %v3623 = vtanh.pop %v3615
    %v3624 = vtanh.pop %v3616
    %v3625 = vtanh.pop %v3617
    %v3626 = vtanh.pop %v3618
    %v3627 = vtanh.pop %v3619
    %3636 = vrot.lane.b32.xlu0 %v3620, 32
    %v3637 = vpop.permute.xlu0 %3636
    %3638 = vrot.lane.b32.xlu0 %v3621, 32
    %v3639 = vpop.permute.xlu0 %3638
    %3640 = vrot.lane.b32.xlu0 %v3622, 32
    %v3641 = vpop.permute.xlu0 %3640
    %3642 = vrot.lane.b32.xlu0 %v3623, 32
    %v3643 = vpop.permute.xlu0 %3642
    %3644 = vrot.lane.b32.xlu0 %v3624, 32
    %v3645 = vpop.permute.xlu0 %3644
    %3646 = vrot.lane.b32.xlu0 %v3625, 32
    %v3647 = vpop.permute.xlu0 %3646
    %3648 = vrot.lane.b32.xlu0 %v3626, 32
    %v3649 = vpop.permute.xlu0 %3648
    %3650 = vrot.lane.b32.xlu0 %v3627, 32
    %v3651 = vpop.permute.xlu0 %3650
    %v3660 = vmul.f32 %v3394, %v3637
    %v3661 = vmul.f32 %v3409, %v3639
    %v3662 = vmul.f32 %v3424, %v3641
    %v3663 = vmul.f32 %v3439, %v3643
    %v3664 = vmul.f32 %v3454, %v3645
    %v3665 = vmul.f32 %v3469, %v3647
    %v3666 = vmul.f32 %v3484, %v3649
    %v3667 = vmul.f32 %v3499, %v3651
    %3676 = vrot.lane.b32.xlu0 %v3660, 64
    %v3677 = vpop.permute.xlu0 %3676
    %3678 = vrot.lane.b32.xlu0 %v3661, 64
    %v3679 = vpop.permute.xlu0 %3678
    %3680 = vrot.lane.b32.xlu0 %v3662, 64
    %v3681 = vpop.permute.xlu0 %3680
    %3682 = vrot.lane.b32.xlu0 %v3663, 64
    %v3683 = vpop.permute.xlu0 %3682
    %3684 = vrot.lane.b32.xlu0 %v3664, 64
    %v3685 = vpop.permute.xlu0 %3684
    %3686 = vrot.lane.b32.xlu0 %v3665, 64
    %v3687 = vpop.permute.xlu0 %3686
    %3688 = vrot.lane.b32.xlu0 %v3666, 64
    %v3689 = vpop.permute.xlu0 %3688
    %3690 = vrot.lane.b32.xlu0 %v3667, 64
    %v3691 = vpop.permute.xlu0 %3690
    %vm3700 = vcmask 261127
    %3701 = vst.msk [vmem:[#allocation2] sm:$0x80] %vm3700, %v3677
    %3702 = vst.msk [vmem:[#allocation2 + $0x8] sm:$0x80] %vm3700, %v3679
    %3703 = vst.msk [vmem:[#allocation2 + $0x10] sm:$0x80] %vm3700, %v3681
    %3704 = vst.msk [vmem:[#allocation2 + $0x18] sm:$0x80] %vm3700, %v3683
    %3705 = vst.msk [vmem:[#allocation2 + $0x20] sm:$0x80] %vm3700, %v3685
    %3706 = vst.msk [vmem:[#allocation2 + $0x28] sm:$0x80] %vm3700, %v3687
    %3707 = vst.msk [vmem:[#allocation2 + $0x30] sm:$0x80] %vm3700, %v3689
    %3708 = vst.msk [vmem:[#allocation2 + $0x38] sm:$0x80] %vm3700, %v3691
    %v3709 = vld [vmem:[#allocation11] sm:$0xf]
    %v3710 = vld [vmem:[#allocation11 + $0x4] sm:$0xf]
    %v3711 = vld [vmem:[#allocation11 + $0x8] sm:$0xf]
    %v3712 = vld [vmem:[#allocation11 + $0xc] sm:$0xf]
    %v3713 = vld [vmem:[#allocation12] sm:$0xf]
    %v3714 = vld [vmem:[#allocation12 + $0x4] sm:$0xf]
    %v3715 = vld [vmem:[#allocation12 + $0x8] sm:$0xf]
    %v3716 = vld [vmem:[#allocation12 + $0xc] sm:$0xf]
    %v3717 = vld [vmem:[#allocation14] sm:$0x1]
    %v3718 = vld [vmem:[#allocation2] sm:$0xff]
    %v3719 = vld [vmem:[#allocation2 + $0x8] sm:$0xff]
    %v3720 = vld [vmem:[#allocation2 + $0x10] sm:$0xff]
    %v3721 = vld [vmem:[#allocation2 + $0x18] sm:$0xff]
    %v3722 = vld [vmem:[#allocation2 + $0x20] sm:$0xff]
    %v3723 = vld [vmem:[#allocation2 + $0x28] sm:$0xff]
    %v3724 = vld [vmem:[#allocation2 + $0x30] sm:$0xff]
    %v3725 = vld [vmem:[#allocation2 + $0x38] sm:$0xff]
    %v3726 = vpack.c.bf16 %v3719, %v3718
    %v3727 = vpack.c.bf16 %v3721, %v3720
    %v3728 = vpack.c.bf16 %v3723, %v3722
    %v3729 = vpack.c.bf16 %v3725, %v3724
    %v3731 = vperm.slane %v3717, 0
    %v3737 = vunpack.c.l.b16 %v3709
    %v3738 = vunpack.c.l.b16 %v3710
    %v3739 = vunpack.c.l.b16 %v3711
    %v3740 = vunpack.c.l.b16 %v3712
    %v3741 = vpack.c.b16 %v3738, %v3737
    %v3742 = vpack.c.b16 %v3740, %v3739
    %v3746 = vsel %vm230, %v3726, 0
    %v3749 = vsel %vm230, %v3727, 0
    %v3752 = vsel %vm230, %v3728, 0
    %v3755 = vsel %vm230, %v3729, 0
    %3757 = vmatpush.bf16.msra.mxu0 0
    %3758 = vmatpush.bf16.msra.mxu0 0
    %3759 = vmatpush.bf16.msra.mxu0 0
    %3760 = vmatpush.bf16.msra.mxu0 0
    %3761 = vmatpush.bf16.msra.mxu0 0
    %3762 = vmatpush.bf16.msra.mxu0 0
    %3763 = vmatpush.bf16.msra.mxu0 %v3742
    %3764 = vmatpush.bf16.msra.mxu0 %v3741
    %3765 = vmatmul.bf16.gmra.mxu0 %v3746
    %v3766 = vpop.f32.mrf.mxu0
    %v3767 = vadd.f32 %v3731, %v3766
    %v3768 = vpop.f32.mrf.mxu0
    %v3769 = vadd.f32 %v3731, %v3768
    %3770 = vmatmul.bf16.gmra.mxu0 %v3749
    %v3771 = vpop.f32.mrf.mxu0
    %v3772 = vadd.f32 %v3731, %v3771
    %v3773 = vpop.f32.mrf.mxu0
    %v3774 = vadd.f32 %v3731, %v3773
    %3775 = vmatmul.bf16.gmra.mxu0 %v3752
    %v3776 = vpop.f32.mrf.mxu0
    %v3777 = vadd.f32 %v3731, %v3776
    %v3778 = vpop.f32.mrf.mxu0
    %v3779 = vadd.f32 %v3731, %v3778
    %3780 = vmatmul.bf16.gmra.mxu0 %v3755
    %v3781 = vpop.f32.mrf.mxu0
    %v3782 = vadd.f32 %v3731, %v3781
    %v3783 = vpop.f32.mrf.mxu0
    %v3784 = vadd.f32 %v3731, %v3783
    %3785 = vdwg.mxu0
    %v3790 = vunpack.c.l.b16 %v3713
    %v3791 = vunpack.c.l.b16 %v3714
    %v3792 = vunpack.c.l.b16 %v3715
    %v3793 = vunpack.c.l.b16 %v3716
    %v3794 = vpack.c.b16 %v3791, %v3790
    %v3795 = vpack.c.b16 %v3793, %v3792
    %3798 = vmatpush.bf16.msra.mxu0 0
    %3799 = vmatpush.bf16.msra.mxu0 0
    %3800 = vmatpush.bf16.msra.mxu0 0
    %3801 = vmatpush.bf16.msra.mxu0 0
    %3802 = vmatpush.bf16.msra.mxu0 0
    %3803 = vmatpush.bf16.msra.mxu0 0
    %3804 = vmatpush.bf16.msra.mxu0 %v3795
    %3805 = vmatpush.bf16.msra.mxu0 %v3794
    %3806 = vmatmul.bf16.gmra.mxu0 %v232
    %v3807 = vpop.f32.mrf.mxu0
    %v3808 = vadd.f32 0.0, %v3807
    %v3809 = vpop.f32.mrf.mxu0
    %3810 = vdwg.mxu0
    %v3812 = vrot.slane %v3808, 1
    %v3813 = vrot.slane %v3808, 2
    %v3814 = vrot.slane %v3808, 3
    %v3815 = vrot.slane %v3808, 4
    %v3816 = vrot.slane %v3808, 5
    %v3817 = vrot.slane %v3808, 6
    %v3818 = vrot.slane %v3808, 7
    %v3827 = vadd.f32 %v3767, %v3808
    %v3828 = vadd.f32 %v3769, %v3812
    %v3829 = vadd.f32 %v3772, %v3813
    %v3830 = vadd.f32 %v3774, %v3814
    %v3831 = vadd.f32 %v3777, %v3815
    %v3832 = vadd.f32 %v3779, %v3816
    %v3833 = vadd.f32 %v3782, %v3817
    %v3834 = vadd.f32 %v3784, %v3818
    %v3835 = vxor.u32 %v3827, 2147483648
    %v3836 = vxor.u32 %v3828, 2147483648
    %v3837 = vxor.u32 %v3829, 2147483648
    %v3838 = vxor.u32 %v3830, 2147483648
    %v3839 = vxor.u32 %v3831, 2147483648
    %v3840 = vxor.u32 %v3832, 2147483648
    %v3841 = vxor.u32 %v3833, 2147483648
    %v3842 = vxor.u32 %v3834, 2147483648
    %v3843 = vmul.f32 %v3835, 1.442695
    %v3844 = vpow.pop %v3843
    %v3845 = vmul.f32 %v3836, 1.442695
    %v3846 = vpow.pop %v3845
    %v3847 = vmul.f32 %v3837, 1.442695
    %v3848 = vpow.pop %v3847
    %v3849 = vmul.f32 %v3838, 1.442695
    %v3850 = vpow.pop %v3849
    %v3851 = vmul.f32 %v3839, 1.442695
    %v3852 = vpow.pop %v3851
    %v3853 = vmul.f32 %v3840, 1.442695
    %v3854 = vpow.pop %v3853
    %v3855 = vmul.f32 %v3841, 1.442695
    %v3856 = vpow.pop %v3855
    %v3857 = vmul.f32 %v3842, 1.442695
    %v3858 = vpow.pop %v3857
    %v3859 = vadd.f32 %v3844, 1.0
    %v3860 = vadd.f32 %v3846, 1.0
    %v3861 = vadd.f32 %v3848, 1.0
    %v3862 = vadd.f32 %v3850, 1.0
    %v3863 = vadd.f32 %v3852, 1.0
    %v3864 = vadd.f32 %v3854, 1.0
    %v3865 = vadd.f32 %v3856, 1.0
    %v3866 = vadd.f32 %v3858, 1.0
    %v3867 = vrcp.pop %v3859
    %v3868 = vmul.f32 %v3859, %v3867
    %v3869 = vsub.f32 1.0, %v3868
    %v3870 = vmul.f32 %v3867, %v3869
    %v3871 = vadd.f32 %v3867, %v3870
    %vm3872 = vweird.f32 %v3859
    %vm3873 = vweird.f32 %v3867
    %vm3874 = vmor %vm3872, %vm3873
    %v3875 = vsel %vm3874, %v3867, %v3871
    %v3876 = vand.u32 2147483647, %v3859
    %vm3877 = vcmp.eq.f32.partialorder %v3876, 8.507059e+37
    %v3878 = vand.u32 %v3859, 2147483648
    %v3879 = vor.u32 1.1754944e-38, %v3878
    %v3880 = vsel %vm3877, %v3879, %v3875
    %v3881 = vmul.f32 1.0, %v3880
    %v3882 = vrcp.pop %v3860
    %v3883 = vmul.f32 %v3860, %v3882
    %v3884 = vsub.f32 1.0, %v3883
    %v3885 = vmul.f32 %v3882, %v3884
    %v3886 = vadd.f32 %v3882, %v3885
    %vm3887 = vweird.f32 %v3860
    %vm3888 = vweird.f32 %v3882
    %vm3889 = vmor %vm3887, %vm3888
    %v3890 = vsel %vm3889, %v3882, %v3886
    %v3891 = vand.u32 2147483647, %v3860
    %vm3892 = vcmp.eq.f32.partialorder %v3891, 8.507059e+37
    %v3893 = vand.u32 %v3860, 2147483648
    %v3894 = vor.u32 1.1754944e-38, %v3893
    %v3895 = vsel %vm3892, %v3894, %v3890
    %v3896 = vmul.f32 1.0, %v3895
    %v3897 = vrcp.pop %v3861
    %v3898 = vmul.f32 %v3861, %v3897
    %v3899 = vsub.f32 1.0, %v3898
    %v3900 = vmul.f32 %v3897, %v3899
    %v3901 = vadd.f32 %v3897, %v3900
    %vm3902 = vweird.f32 %v3861
    %vm3903 = vweird.f32 %v3897
    %vm3904 = vmor %vm3902, %vm3903
    %v3905 = vsel %vm3904, %v3897, %v3901
    %v3906 = vand.u32 2147483647, %v3861
    %vm3907 = vcmp.eq.f32.partialorder %v3906, 8.507059e+37
    %v3908 = vand.u32 %v3861, 2147483648
    %v3909 = vor.u32 1.1754944e-38, %v3908
    %v3910 = vsel %vm3907, %v3909, %v3905
    %v3911 = vmul.f32 1.0, %v3910
    %v3912 = vrcp.pop %v3862
    %v3913 = vmul.f32 %v3862, %v3912
    %v3914 = vsub.f32 1.0, %v3913
    %v3915 = vmul.f32 %v3912, %v3914
    %v3916 = vadd.f32 %v3912, %v3915
    %vm3917 = vweird.f32 %v3862
    %vm3918 = vweird.f32 %v3912
    %vm3919 = vmor %vm3917, %vm3918
    %v3920 = vsel %vm3919, %v3912, %v3916
    %v3921 = vand.u32 2147483647, %v3862
    %vm3922 = vcmp.eq.f32.partialorder %v3921, 8.507059e+37
    %v3923 = vand.u32 %v3862, 2147483648
    %v3924 = vor.u32 1.1754944e-38, %v3923
    %v3925 = vsel %vm3922, %v3924, %v3920
    %v3926 = vmul.f32 1.0, %v3925
    %v3927 = vrcp.pop %v3863
    %v3928 = vmul.f32 %v3863, %v3927
    %v3929 = vsub.f32 1.0, %v3928
    %v3930 = vmul.f32 %v3927, %v3929
    %v3931 = vadd.f32 %v3927, %v3930
    %vm3932 = vweird.f32 %v3863
    %vm3933 = vweird.f32 %v3927
    %vm3934 = vmor %vm3932, %vm3933
    %v3935 = vsel %vm3934, %v3927, %v3931
    %v3936 = vand.u32 2147483647, %v3863
    %vm3937 = vcmp.eq.f32.partialorder %v3936, 8.507059e+37
    %v3938 = vand.u32 %v3863, 2147483648
    %v3939 = vor.u32 1.1754944e-38, %v3938
    %v3940 = vsel %vm3937, %v3939, %v3935
    %v3941 = vmul.f32 1.0, %v3940
    %v3942 = vrcp.pop %v3864
    %v3943 = vmul.f32 %v3864, %v3942
    %v3944 = vsub.f32 1.0, %v3943
    %v3945 = vmul.f32 %v3942, %v3944
    %v3946 = vadd.f32 %v3942, %v3945
    %vm3947 = vweird.f32 %v3864
    %vm3948 = vweird.f32 %v3942
    %vm3949 = vmor %vm3947, %vm3948
    %v3950 = vsel %vm3949, %v3942, %v3946
    %v3951 = vand.u32 2147483647, %v3864
    %vm3952 = vcmp.eq.f32.partialorder %v3951, 8.507059e+37
    %v3953 = vand.u32 %v3864, 2147483648
    %v3954 = vor.u32 1.1754944e-38, %v3953
    %v3955 = vsel %vm3952, %v3954, %v3950
    %v3956 = vmul.f32 1.0, %v3955
    %v3957 = vrcp.pop %v3865
    %v3958 = vmul.f32 %v3865, %v3957
    %v3959 = vsub.f32 1.0, %v3958
    %v3960 = vmul.f32 %v3957, %v3959
    %v3961 = vadd.f32 %v3957, %v3960
    %vm3962 = vweird.f32 %v3865
    %vm3963 = vweird.f32 %v3957
    %vm3964 = vmor %vm3962, %vm3963
    %v3965 = vsel %vm3964, %v3957, %v3961
    %v3966 = vand.u32 2147483647, %v3865
    %vm3967 = vcmp.eq.f32.partialorder %v3966, 8.507059e+37
    %v3968 = vand.u32 %v3865, 2147483648
    %v3969 = vor.u32 1.1754944e-38, %v3968
    %v3970 = vsel %vm3967, %v3969, %v3965
    %v3971 = vmul.f32 1.0, %v3970
    %v3972 = vrcp.pop %v3866
    %v3973 = vmul.f32 %v3866, %v3972
    %v3974 = vsub.f32 1.0, %v3973
    %v3975 = vmul.f32 %v3972, %v3974
    %v3976 = vadd.f32 %v3972, %v3975
    %vm3977 = vweird.f32 %v3866
    %vm3978 = vweird.f32 %v3972
    %vm3979 = vmor %vm3977, %vm3978
    %v3980 = vsel %vm3979, %v3972, %v3976
    %v3981 = vand.u32 2147483647, %v3866
    %vm3982 = vcmp.eq.f32.partialorder %v3981, 8.507059e+37
    %v3983 = vand.u32 %v3866, 2147483648
    %v3984 = vor.u32 1.1754944e-38, %v3983
    %v3985 = vsel %vm3982, %v3984, %v3980
    %v3986 = vmul.f32 1.0, %v3985
    %v3987 = vtanh.pop %v3827
    %v3988 = vtanh.pop %v3828
    %v3989 = vtanh.pop %v3829
    %v3990 = vtanh.pop %v3830
    %v3991 = vtanh.pop %v3831
    %v3992 = vtanh.pop %v3832
    %v3993 = vtanh.pop %v3833
    %v3994 = vtanh.pop %v3834
    %v3995 = vmul.f32 %v3881, 0.0
    %v3996 = vmul.f32 %v3896, 0.0
    %v3997 = vmul.f32 %v3911, 0.0
    %v3998 = vmul.f32 %v3926, 0.0
    %v3999 = vmul.f32 %v3941, 0.0
    %v4000 = vmul.f32 %v3956, 0.0
    %v4001 = vmul.f32 %v3971, 0.0
    %v4002 = vmul.f32 %v3986, 0.0
    %4011 = vrot.lane.b32.xlu0 %v3987, 32
    %v4012 = vpop.permute.xlu0 %4011
    %4013 = vrot.lane.b32.xlu0 %v3988, 32
    %v4014 = vpop.permute.xlu0 %4013
    %4015 = vrot.lane.b32.xlu0 %v3989, 32
    %v4016 = vpop.permute.xlu0 %4015
    %4017 = vrot.lane.b32.xlu0 %v3990, 32
    %v4018 = vpop.permute.xlu0 %4017
    %4019 = vrot.lane.b32.xlu0 %v3991, 32
    %v4020 = vpop.permute.xlu0 %4019
    %4021 = vrot.lane.b32.xlu0 %v3992, 32
    %v4022 = vpop.permute.xlu0 %4021
    %4023 = vrot.lane.b32.xlu0 %v3993, 32
    %v4024 = vpop.permute.xlu0 %4023
    %4025 = vrot.lane.b32.xlu0 %v3994, 32
    %v4026 = vpop.permute.xlu0 %4025
    %v4035 = vmul.f32 %v3881, %v4012
    %v4036 = vmul.f32 %v3896, %v4014
    %v4037 = vmul.f32 %v3911, %v4016
    %v4038 = vmul.f32 %v3926, %v4018
    %v4039 = vmul.f32 %v3941, %v4020
    %v4040 = vmul.f32 %v3956, %v4022
    %v4041 = vmul.f32 %v3971, %v4024
    %v4042 = vmul.f32 %v3986, %v4026
    %4051 = vrot.lane.b32.xlu0 %v4035, 32
    %v4052 = vpop.permute.xlu0 %4051
    %4053 = vrot.lane.b32.xlu0 %v4036, 32
    %v4054 = vpop.permute.xlu0 %4053
    %4055 = vrot.lane.b32.xlu0 %v4037, 32
    %v4056 = vpop.permute.xlu0 %4055
    %4057 = vrot.lane.b32.xlu0 %v4038, 32
    %v4058 = vpop.permute.xlu0 %4057
    %4059 = vrot.lane.b32.xlu0 %v4039, 32
    %v4060 = vpop.permute.xlu0 %4059
    %4061 = vrot.lane.b32.xlu0 %v4040, 32
    %v4062 = vpop.permute.xlu0 %4061
    %4063 = vrot.lane.b32.xlu0 %v4041, 32
    %v4064 = vpop.permute.xlu0 %4063
    %4065 = vrot.lane.b32.xlu0 %v4042, 32
    %v4066 = vpop.permute.xlu0 %4065
    %v4075 = vadd.f32 %v3995, %v4052
    %v4076 = vadd.f32 %v3996, %v4054
    %v4077 = vadd.f32 %v3997, %v4056
    %v4078 = vadd.f32 %v3998, %v4058
    %v4079 = vadd.f32 %v3999, %v4060
    %v4080 = vadd.f32 %v4000, %v4062
    %v4081 = vadd.f32 %v4001, %v4064
    %v4082 = vadd.f32 %v4002, %v4066
    %v4083 = vtanh.pop %v4075
    %v4084 = vtanh.pop %v4076
    %v4085 = vtanh.pop %v4077
    %v4086 = vtanh.pop %v4078
    %v4087 = vtanh.pop %v4079
    %v4088 = vtanh.pop %v4080
    %v4089 = vtanh.pop %v4081
    %v4090 = vtanh.pop %v4082
    %4099 = vrot.lane.b32.xlu0 %v4083, 32
    %v4100 = vpop.permute.xlu0 %4099
    %4101 = vrot.lane.b32.xlu0 %v4084, 32
    %v4102 = vpop.permute.xlu0 %4101
    %4103 = vrot.lane.b32.xlu0 %v4085, 32
    %v4104 = vpop.permute.xlu0 %4103
    %4105 = vrot.lane.b32.xlu0 %v4086, 32
    %v4106 = vpop.permute.xlu0 %4105
    %4107 = vrot.lane.b32.xlu0 %v4087, 32
    %v4108 = vpop.permute.xlu0 %4107
    %4109 = vrot.lane.b32.xlu0 %v4088, 32
    %v4110 = vpop.permute.xlu0 %4109
    %4111 = vrot.lane.b32.xlu0 %v4089, 32
    %v4112 = vpop.permute.xlu0 %4111
    %4113 = vrot.lane.b32.xlu0 %v4090, 32
    %v4114 = vpop.permute.xlu0 %4113
    %v4123 = vmul.f32 %v3881, %v4100
    %v4124 = vmul.f32 %v3896, %v4102
    %v4125 = vmul.f32 %v3911, %v4104
    %v4126 = vmul.f32 %v3926, %v4106
    %v4127 = vmul.f32 %v3941, %v4108
    %v4128 = vmul.f32 %v3956, %v4110
    %v4129 = vmul.f32 %v3971, %v4112
    %v4130 = vmul.f32 %v3986, %v4114
    %v4131 = vpack.c.bf16 %v4123, %v4123
    %v4132 = vpack.c.bf16 %v4124, %v4124
    %v4133 = vpack.c.bf16 %v4125, %v4125
    %v4134 = vpack.c.bf16 %v4126, %v4126
    %v4135 = vpack.c.bf16 %v4127, %v4127
    %v4136 = vpack.c.bf16 %v4128, %v4128
    %v4137 = vpack.c.bf16 %v4129, %v4129
    %v4138 = vpack.c.bf16 %v4130, %v4130
    %v4147 = vunpack.c.l.b16 %v4131
    %v4148 = vunpack.c.l.b16 %v4132
    %v4149 = vunpack.c.l.b16 %v4133
    %v4150 = vunpack.c.l.b16 %v4134
    %v4151 = vunpack.c.l.b16 %v4135
    %v4152 = vunpack.c.l.b16 %v4136
    %v4153 = vunpack.c.l.b16 %v4137
    %v4154 = vunpack.c.l.b16 %v4138
    %v4155 = vrot.slane %v4148, 7
    %v4156 = vsel %vm633, %v4155, %v4147
    %v4157 = vrot.slane %v4149, 6
    %v4158 = vsel %vm636, %v4157, %v4156
    %v4159 = vrot.slane %v4150, 5
    %v4160 = vsel %vm639, %v4159, %v4158
    %v4161 = vrot.slane %v4151, 4
    %v4162 = vsel %vm642, %v4161, %v4160
    %v4163 = vrot.slane %v4152, 3
    %v4164 = vsel %vm645, %v4163, %v4162
    %v4165 = vrot.slane %v4153, 2
    %v4166 = vsel %vm648, %v4165, %v4164
    %v4167 = vrot.slane %v4154, 1
    %v4168 = vsel %vm651, %v4167, %v4166
    %v4169 = vpack.c.b16 %v4168, %v4168
    %4170 = vrot.lane.b32.xlu0 %v4169, 64
    %v4171 = vpop.permute.xlu0 %4170
    %v4173 = vsel %vm230, %v4171, 0
    %4175 = vmatpush.bf16.msra.mxu0 0
    %4176 = vmatpush.bf16.msra.mxu0 0
    %4177 = vmatpush.bf16.msra.mxu0 0
    %4178 = vmatpush.bf16.msra.mxu0 0
    %4179 = vmatpush.bf16.msra.mxu0 0
    %4180 = vmatpush.bf16.msra.mxu0 0
    %4181 = vmatpush.bf16.msra.mxu0 %v3795
    %4182 = vmatpush.bf16.msra.mxu0 %v3794
    %4183 = vmatmul.bf16.gmra.mxu0 %v4173
    %v4184 = vpop.f32.mrf.mxu0
    %v4185 = vadd.f32 0.0, %v4184
    %v4186 = vpop.f32.mrf.mxu0
    %4187 = vdwg.mxu0
    %v4189 = vrot.slane %v4185, 7
    %v4190 = vrot.slane %v4185, 1
    %v4191 = vrot.slane %v4185, 2
    %v4192 = vrot.slane %v4185, 3
    %v4193 = vrot.slane %v4185, 4
    %v4194 = vrot.slane %v4185, 5
    %v4195 = vrot.slane %v4185, 6
    %v4204 = vadd.f32 %v3767, %v4189
    %v4205 = vadd.f32 %v3769, %v4185
    %v4206 = vadd.f32 %v3772, %v4190
    %v4207 = vadd.f32 %v3774, %v4191
    %v4208 = vadd.f32 %v3777, %v4192
    %v4209 = vadd.f32 %v3779, %v4193
    %v4210 = vadd.f32 %v3782, %v4194
    %v4211 = vadd.f32 %v3784, %v4195
    %v4212 = vxor.u32 %v4204, 2147483648
    %v4213 = vxor.u32 %v4205, 2147483648
    %v4214 = vxor.u32 %v4206, 2147483648
    %v4215 = vxor.u32 %v4207, 2147483648
    %v4216 = vxor.u32 %v4208, 2147483648
    %v4217 = vxor.u32 %v4209, 2147483648
    %v4218 = vxor.u32 %v4210, 2147483648
    %v4219 = vxor.u32 %v4211, 2147483648
    %v4220 = vmul.f32 %v4212, 1.442695
    %v4221 = vpow.pop %v4220
    %v4222 = vmul.f32 %v4213, 1.442695
    %v4223 = vpow.pop %v4222
    %v4224 = vmul.f32 %v4214, 1.442695
    %v4225 = vpow.pop %v4224
    %v4226 = vmul.f32 %v4215, 1.442695
    %v4227 = vpow.pop %v4226
    %v4228 = vmul.f32 %v4216, 1.442695
    %v4229 = vpow.pop %v4228
    %v4230 = vmul.f32 %v4217, 1.442695
    %v4231 = vpow.pop %v4230
    %v4232 = vmul.f32 %v4218, 1.442695
    %v4233 = vpow.pop %v4232
    %v4234 = vmul.f32 %v4219, 1.442695
    %v4235 = vpow.pop %v4234
    %v4236 = vadd.f32 %v4221, 1.0
    %v4237 = vadd.f32 %v4223, 1.0
    %v4238 = vadd.f32 %v4225, 1.0
    %v4239 = vadd.f32 %v4227, 1.0
    %v4240 = vadd.f32 %v4229, 1.0
    %v4241 = vadd.f32 %v4231, 1.0
    %v4242 = vadd.f32 %v4233, 1.0
    %v4243 = vadd.f32 %v4235, 1.0
    %v4244 = vrcp.pop %v4236
    %v4245 = vmul.f32 %v4236, %v4244
    %v4246 = vsub.f32 1.0, %v4245
    %v4247 = vmul.f32 %v4244, %v4246
    %v4248 = vadd.f32 %v4244, %v4247
    %vm4249 = vweird.f32 %v4236
    %vm4250 = vweird.f32 %v4244
    %vm4251 = vmor %vm4249, %vm4250
    %v4252 = vsel %vm4251, %v4244, %v4248
    %v4253 = vand.u32 2147483647, %v4236
    %vm4254 = vcmp.eq.f32.partialorder %v4253, 8.507059e+37
    %v4255 = vand.u32 %v4236, 2147483648
    %v4256 = vor.u32 1.1754944e-38, %v4255
    %v4257 = vsel %vm4254, %v4256, %v4252
    %v4258 = vmul.f32 1.0, %v4257
    %v4259 = vrcp.pop %v4237
    %v4260 = vmul.f32 %v4237, %v4259
    %v4261 = vsub.f32 1.0, %v4260
    %v4262 = vmul.f32 %v4259, %v4261
    %v4263 = vadd.f32 %v4259, %v4262
    %vm4264 = vweird.f32 %v4237
    %vm4265 = vweird.f32 %v4259
    %vm4266 = vmor %vm4264, %vm4265
    %v4267 = vsel %vm4266, %v4259, %v4263
    %v4268 = vand.u32 2147483647, %v4237
    %vm4269 = vcmp.eq.f32.partialorder %v4268, 8.507059e+37
    %v4270 = vand.u32 %v4237, 2147483648
    %v4271 = vor.u32 1.1754944e-38, %v4270
    %v4272 = vsel %vm4269, %v4271, %v4267
    %v4273 = vmul.f32 1.0, %v4272
    %v4274 = vrcp.pop %v4238
    %v4275 = vmul.f32 %v4238, %v4274
    %v4276 = vsub.f32 1.0, %v4275
    %v4277 = vmul.f32 %v4274, %v4276
    %v4278 = vadd.f32 %v4274, %v4277
    %vm4279 = vweird.f32 %v4238
    %vm4280 = vweird.f32 %v4274
    %vm4281 = vmor %vm4279, %vm4280
    %v4282 = vsel %vm4281, %v4274, %v4278
    %v4283 = vand.u32 2147483647, %v4238
    %vm4284 = vcmp.eq.f32.partialorder %v4283, 8.507059e+37
    %v4285 = vand.u32 %v4238, 2147483648
    %v4286 = vor.u32 1.1754944e-38, %v4285
    %v4287 = vsel %vm4284, %v4286, %v4282
    %v4288 = vmul.f32 1.0, %v4287
    %v4289 = vrcp.pop %v4239
    %v4290 = vmul.f32 %v4239, %v4289
    %v4291 = vsub.f32 1.0, %v4290
    %v4292 = vmul.f32 %v4289, %v4291
    %v4293 = vadd.f32 %v4289, %v4292
    %vm4294 = vweird.f32 %v4239
    %vm4295 = vweird.f32 %v4289
    %vm4296 = vmor %vm4294, %vm4295
    %v4297 = vsel %vm4296, %v4289, %v4293
    %v4298 = vand.u32 2147483647, %v4239
    %vm4299 = vcmp.eq.f32.partialorder %v4298, 8.507059e+37
    %v4300 = vand.u32 %v4239, 2147483648
    %v4301 = vor.u32 1.1754944e-38, %v4300
    %v4302 = vsel %vm4299, %v4301, %v4297
    %v4303 = vmul.f32 1.0, %v4302
    %v4304 = vrcp.pop %v4240
    %v4305 = vmul.f32 %v4240, %v4304
    %v4306 = vsub.f32 1.0, %v4305
    %v4307 = vmul.f32 %v4304, %v4306
    %v4308 = vadd.f32 %v4304, %v4307
    %vm4309 = vweird.f32 %v4240
    %vm4310 = vweird.f32 %v4304
    %vm4311 = vmor %vm4309, %vm4310
    %v4312 = vsel %vm4311, %v4304, %v4308
    %v4313 = vand.u32 2147483647, %v4240
    %vm4314 = vcmp.eq.f32.partialorder %v4313, 8.507059e+37
    %v4315 = vand.u32 %v4240, 2147483648
    %v4316 = vor.u32 1.1754944e-38, %v4315
    %v4317 = vsel %vm4314, %v4316, %v4312
    %v4318 = vmul.f32 1.0, %v4317
    %v4319 = vrcp.pop %v4241
    %v4320 = vmul.f32 %v4241, %v4319
    %v4321 = vsub.f32 1.0, %v4320
    %v4322 = vmul.f32 %v4319, %v4321
    %v4323 = vadd.f32 %v4319, %v4322
    %vm4324 = vweird.f32 %v4241
    %vm4325 = vweird.f32 %v4319
    %vm4326 = vmor %vm4324, %vm4325
    %v4327 = vsel %vm4326, %v4319, %v4323
    %v4328 = vand.u32 2147483647, %v4241
    %vm4329 = vcmp.eq.f32.partialorder %v4328, 8.507059e+37
    %v4330 = vand.u32 %v4241, 2147483648
    %v4331 = vor.u32 1.1754944e-38, %v4330
    %v4332 = vsel %vm4329, %v4331, %v4327
    %v4333 = vmul.f32 1.0, %v4332
    %v4334 = vrcp.pop %v4242
    %v4335 = vmul.f32 %v4242, %v4334
    %v4336 = vsub.f32 1.0, %v4335
    %v4337 = vmul.f32 %v4334, %v4336
    %v4338 = vadd.f32 %v4334, %v4337
    %vm4339 = vweird.f32 %v4242
    %vm4340 = vweird.f32 %v4334
    %vm4341 = vmor %vm4339, %vm4340
    %v4342 = vsel %vm4341, %v4334, %v4338
    %v4343 = vand.u32 2147483647, %v4242
    %vm4344 = vcmp.eq.f32.partialorder %v4343, 8.507059e+37
    %v4345 = vand.u32 %v4242, 2147483648
    %v4346 = vor.u32 1.1754944e-38, %v4345
    %v4347 = vsel %vm4344, %v4346, %v4342
    %v4348 = vmul.f32 1.0, %v4347
    %v4349 = vrcp.pop %v4243
    %v4350 = vmul.f32 %v4243, %v4349
    %v4351 = vsub.f32 1.0, %v4350
    %v4352 = vmul.f32 %v4349, %v4351
    %v4353 = vadd.f32 %v4349, %v4352
    %vm4354 = vweird.f32 %v4243
    %vm4355 = vweird.f32 %v4349
    %vm4356 = vmor %vm4354, %vm4355
    %v4357 = vsel %vm4356, %v4349, %v4353
    %v4358 = vand.u32 2147483647, %v4243
    %vm4359 = vcmp.eq.f32.partialorder %v4358, 8.507059e+37
    %v4360 = vand.u32 %v4243, 2147483648
    %v4361 = vor.u32 1.1754944e-38, %v4360
    %v4362 = vsel %vm4359, %v4361, %v4357
    %v4363 = vmul.f32 1.0, %v4362
    %v4364 = vtanh.pop %v4204
    %v4365 = vtanh.pop %v4205
    %v4366 = vtanh.pop %v4206
    %v4367 = vtanh.pop %v4207
    %v4368 = vtanh.pop %v4208
    %v4369 = vtanh.pop %v4209
    %v4370 = vtanh.pop %v4210
    %v4371 = vtanh.pop %v4211
    %v4380 = vrot.slane %v4075, 7
    %v4381 = vrot.slane %v4076, 7
    %v4382 = vrot.slane %v4077, 7
    %v4383 = vrot.slane %v4078, 7
    %v4384 = vrot.slane %v4079, 7
    %v4385 = vrot.slane %v4080, 7
    %v4386 = vrot.slane %v4081, 7
    %v4387 = vrot.slane %v4082, 7
    %v4396 = vmul.f32 %v4258, %v4380
    %v4397 = vmul.f32 %v4273, %v4381
    %v4398 = vmul.f32 %v4288, %v4382
    %v4399 = vmul.f32 %v4303, %v4383
    %v4400 = vmul.f32 %v4318, %v4384
    %v4401 = vmul.f32 %v4333, %v4385
    %v4402 = vmul.f32 %v4348, %v4386
    %v4403 = vmul.f32 %v4363, %v4387
    %4412 = vrot.lane.b32.xlu0 %v4364, 32
    %v4413 = vpop.permute.xlu0 %4412
    %4414 = vrot.lane.b32.xlu0 %v4365, 32
    %v4415 = vpop.permute.xlu0 %4414
    %4416 = vrot.lane.b32.xlu0 %v4366, 32
    %v4417 = vpop.permute.xlu0 %4416
    %4418 = vrot.lane.b32.xlu0 %v4367, 32
    %v4419 = vpop.permute.xlu0 %4418
    %4420 = vrot.lane.b32.xlu0 %v4368, 32
    %v4421 = vpop.permute.xlu0 %4420
    %4422 = vrot.lane.b32.xlu0 %v4369, 32
    %v4423 = vpop.permute.xlu0 %4422
    %4424 = vrot.lane.b32.xlu0 %v4370, 32
    %v4425 = vpop.permute.xlu0 %4424
    %4426 = vrot.lane.b32.xlu0 %v4371, 32
    %v4427 = vpop.permute.xlu0 %4426
    %v4436 = vmul.f32 %v4258, %v4413
    %v4437 = vmul.f32 %v4273, %v4415
    %v4438 = vmul.f32 %v4288, %v4417
    %v4439 = vmul.f32 %v4303, %v4419
    %v4440 = vmul.f32 %v4318, %v4421
    %v4441 = vmul.f32 %v4333, %v4423
    %v4442 = vmul.f32 %v4348, %v4425
    %v4443 = vmul.f32 %v4363, %v4427
    %4452 = vrot.lane.b32.xlu0 %v4436, 32
    %v4453 = vpop.permute.xlu0 %4452
    %4454 = vrot.lane.b32.xlu0 %v4437, 32
    %v4455 = vpop.permute.xlu0 %4454
    %4456 = vrot.lane.b32.xlu0 %v4438, 32
    %v4457 = vpop.permute.xlu0 %4456
    %4458 = vrot.lane.b32.xlu0 %v4439, 32
    %v4459 = vpop.permute.xlu0 %4458
    %4460 = vrot.lane.b32.xlu0 %v4440, 32
    %v4461 = vpop.permute.xlu0 %4460
    %4462 = vrot.lane.b32.xlu0 %v4441, 32
    %v4463 = vpop.permute.xlu0 %4462
    %4464 = vrot.lane.b32.xlu0 %v4442, 32
    %v4465 = vpop.permute.xlu0 %4464
    %4466 = vrot.lane.b32.xlu0 %v4443, 32
    %v4467 = vpop.permute.xlu0 %4466
    %v4476 = vadd.f32 %v4396, %v4453
    %v4477 = vadd.f32 %v4397, %v4455
    %v4478 = vadd.f32 %v4398, %v4457
    %v4479 = vadd.f32 %v4399, %v4459
    %v4480 = vadd.f32 %v4400, %v4461
    %v4481 = vadd.f32 %v4401, %v4463
    %v4482 = vadd.f32 %v4402, %v4465
    %v4483 = vadd.f32 %v4403, %v4467
    %v4484 = vtanh.pop %v4476
    %v4485 = vtanh.pop %v4477
    %v4486 = vtanh.pop %v4478
    %v4487 = vtanh.pop %v4479
    %v4488 = vtanh.pop %v4480
    %v4489 = vtanh.pop %v4481
    %v4490 = vtanh.pop %v4482
    %v4491 = vtanh.pop %v4483
    %4500 = vrot.lane.b32.xlu0 %v4484, 32
    %v4501 = vpop.permute.xlu0 %4500
    %4502 = vrot.lane.b32.xlu0 %v4485, 32
    %v4503 = vpop.permute.xlu0 %4502
    %4504 = vrot.lane.b32.xlu0 %v4486, 32
    %v4505 = vpop.permute.xlu0 %4504
    %4506 = vrot.lane.b32.xlu0 %v4487, 32
    %v4507 = vpop.permute.xlu0 %4506
    %4508 = vrot.lane.b32.xlu0 %v4488, 32
    %v4509 = vpop.permute.xlu0 %4508
    %4510 = vrot.lane.b32.xlu0 %v4489, 32
    %v4511 = vpop.permute.xlu0 %4510
    %4512 = vrot.lane.b32.xlu0 %v4490, 32
    %v4513 = vpop.permute.xlu0 %4512
    %4514 = vrot.lane.b32.xlu0 %v4491, 32
    %v4515 = vpop.permute.xlu0 %4514
    %v4524 = vmul.f32 %v4258, %v4501
    %v4525 = vmul.f32 %v4273, %v4503
    %v4526 = vmul.f32 %v4288, %v4505
    %v4527 = vmul.f32 %v4303, %v4507
    %v4528 = vmul.f32 %v4318, %v4509
    %v4529 = vmul.f32 %v4333, %v4511
    %v4530 = vmul.f32 %v4348, %v4513
    %v4531 = vmul.f32 %v4363, %v4515
    %v4532 = vpack.c.bf16 %v4524, %v4524
    %v4533 = vpack.c.bf16 %v4525, %v4525
    %v4534 = vpack.c.bf16 %v4526, %v4526
    %v4535 = vpack.c.bf16 %v4527, %v4527
    %v4536 = vpack.c.bf16 %v4528, %v4528
    %v4537 = vpack.c.bf16 %v4529, %v4529
    %v4538 = vpack.c.bf16 %v4530, %v4530
    %v4539 = vpack.c.bf16 %v4531, %v4531
    %v4548 = vunpack.c.l.b16 %v4532
    %v4549 = vunpack.c.l.b16 %v4533
    %v4550 = vunpack.c.l.b16 %v4534
    %v4551 = vunpack.c.l.b16 %v4535
    %v4552 = vunpack.c.l.b16 %v4536
    %v4553 = vunpack.c.l.b16 %v4537
    %v4554 = vunpack.c.l.b16 %v4538
    %v4555 = vunpack.c.l.b16 %v4539
    %v4556 = vrot.slane %v4548, 1
    %v4557 = vsel %vm633, %v4549, %v4556
    %v4558 = vrot.slane %v4550, 7
    %v4559 = vsel %vm636, %v4558, %v4557
    %v4560 = vrot.slane %v4551, 6
    %v4561 = vsel %vm639, %v4560, %v4559
    %v4562 = vrot.slane %v4552, 5
    %v4563 = vsel %vm642, %v4562, %v4561
    %v4564 = vrot.slane %v4553, 4
    %v4565 = vsel %vm645, %v4564, %v4563
    %v4566 = vrot.slane %v4554, 3
    %v4567 = vsel %vm648, %v4566, %v4565
    %v4568 = vrot.slane %v4555, 2
    %v4569 = vsel %vm651, %v4568, %v4567
    %v4570 = vpack.c.b16 %v4569, %v4569
    %4571 = vrot.lane.b32.xlu0 %v4570, 64
    %v4572 = vpop.permute.xlu0 %4571
    %v4574 = vsel %vm230, %v4572, 0
    %4576 = vmatpush.bf16.msra.mxu0 0
    %4577 = vmatpush.bf16.msra.mxu0 0
    %4578 = vmatpush.bf16.msra.mxu0 0
    %4579 = vmatpush.bf16.msra.mxu0 0
    %4580 = vmatpush.bf16.msra.mxu0 0
    %4581 = vmatpush.bf16.msra.mxu0 0
    %4582 = vmatpush.bf16.msra.mxu0 %v3795
    %4583 = vmatpush.bf16.msra.mxu0 %v3794
    %4584 = vmatmul.bf16.gmra.mxu0 %v4574
    %v4585 = vpop.f32.mrf.mxu0
    %v4586 = vadd.f32 0.0, %v4585
    %v4587 = vpop.f32.mrf.mxu0
    %4588 = vdwg.mxu0
    %v4590 = vrot.slane %v4586, 6
    %v4591 = vrot.slane %v4586, 7
    %v4592 = vrot.slane %v4586, 1
    %v4593 = vrot.slane %v4586, 2
    %v4594 = vrot.slane %v4586, 3
    %v4595 = vrot.slane %v4586, 4
    %v4596 = vrot.slane %v4586, 5
    %v4605 = vadd.f32 %v3767, %v4590
    %v4606 = vadd.f32 %v3769, %v4591
    %v4607 = vadd.f32 %v3772, %v4586
    %v4608 = vadd.f32 %v3774, %v4592
    %v4609 = vadd.f32 %v3777, %v4593
    %v4610 = vadd.f32 %v3779, %v4594
    %v4611 = vadd.f32 %v3782, %v4595
    %v4612 = vadd.f32 %v3784, %v4596
    %v4613 = vxor.u32 %v4605, 2147483648
    %v4614 = vxor.u32 %v4606, 2147483648
    %v4615 = vxor.u32 %v4607, 2147483648
    %v4616 = vxor.u32 %v4608, 2147483648
    %v4617 = vxor.u32 %v4609, 2147483648
    %v4618 = vxor.u32 %v4610, 2147483648
    %v4619 = vxor.u32 %v4611, 2147483648
    %v4620 = vxor.u32 %v4612, 2147483648
    %v4621 = vmul.f32 %v4613, 1.442695
    %v4622 = vpow.pop %v4621
    %v4623 = vmul.f32 %v4614, 1.442695
    %v4624 = vpow.pop %v4623
    %v4625 = vmul.f32 %v4615, 1.442695
    %v4626 = vpow.pop %v4625
    %v4627 = vmul.f32 %v4616, 1.442695
    %v4628 = vpow.pop %v4627
    %v4629 = vmul.f32 %v4617, 1.442695
    %v4630 = vpow.pop %v4629
    %v4631 = vmul.f32 %v4618, 1.442695
    %v4632 = vpow.pop %v4631
    %v4633 = vmul.f32 %v4619, 1.442695
    %v4634 = vpow.pop %v4633
    %v4635 = vmul.f32 %v4620, 1.442695
    %v4636 = vpow.pop %v4635
    %v4637 = vadd.f32 %v4622, 1.0
    %v4638 = vadd.f32 %v4624, 1.0
    %v4639 = vadd.f32 %v4626, 1.0
    %v4640 = vadd.f32 %v4628, 1.0
    %v4641 = vadd.f32 %v4630, 1.0
    %v4642 = vadd.f32 %v4632, 1.0
    %v4643 = vadd.f32 %v4634, 1.0
    %v4644 = vadd.f32 %v4636, 1.0
    %v4645 = vrcp.pop %v4637
    %v4646 = vmul.f32 %v4637, %v4645
    %v4647 = vsub.f32 1.0, %v4646
    %v4648 = vmul.f32 %v4645, %v4647
    %v4649 = vadd.f32 %v4645, %v4648
    %vm4650 = vweird.f32 %v4637
    %vm4651 = vweird.f32 %v4645
    %vm4652 = vmor %vm4650, %vm4651
    %v4653 = vsel %vm4652, %v4645, %v4649
    %v4654 = vand.u32 2147483647, %v4637
    %vm4655 = vcmp.eq.f32.partialorder %v4654, 8.507059e+37
    %v4656 = vand.u32 %v4637, 2147483648
    %v4657 = vor.u32 1.1754944e-38, %v4656
    %v4658 = vsel %vm4655, %v4657, %v4653
    %v4659 = vmul.f32 1.0, %v4658
    %v4660 = vrcp.pop %v4638
    %v4661 = vmul.f32 %v4638, %v4660
    %v4662 = vsub.f32 1.0, %v4661
    %v4663 = vmul.f32 %v4660, %v4662
    %v4664 = vadd.f32 %v4660, %v4663
    %vm4665 = vweird.f32 %v4638
    %vm4666 = vweird.f32 %v4660
    %vm4667 = vmor %vm4665, %vm4666
    %v4668 = vsel %vm4667, %v4660, %v4664
    %v4669 = vand.u32 2147483647, %v4638
    %vm4670 = vcmp.eq.f32.partialorder %v4669, 8.507059e+37
    %v4671 = vand.u32 %v4638, 2147483648
    %v4672 = vor.u32 1.1754944e-38, %v4671
    %v4673 = vsel %vm4670, %v4672, %v4668
    %v4674 = vmul.f32 1.0, %v4673
    %v4675 = vrcp.pop %v4639
    %v4676 = vmul.f32 %v4639, %v4675
    %v4677 = vsub.f32 1.0, %v4676
    %v4678 = vmul.f32 %v4675, %v4677
    %v4679 = vadd.f32 %v4675, %v4678
    %vm4680 = vweird.f32 %v4639
    %vm4681 = vweird.f32 %v4675
    %vm4682 = vmor %vm4680, %vm4681
    %v4683 = vsel %vm4682, %v4675, %v4679
    %v4684 = vand.u32 2147483647, %v4639
    %vm4685 = vcmp.eq.f32.partialorder %v4684, 8.507059e+37
    %v4686 = vand.u32 %v4639, 2147483648
    %v4687 = vor.u32 1.1754944e-38, %v4686
    %v4688 = vsel %vm4685, %v4687, %v4683
    %v4689 = vmul.f32 1.0, %v4688
    %v4690 = vrcp.pop %v4640
    %v4691 = vmul.f32 %v4640, %v4690
    %v4692 = vsub.f32 1.0, %v4691
    %v4693 = vmul.f32 %v4690, %v4692
    %v4694 = vadd.f32 %v4690, %v4693
    %vm4695 = vweird.f32 %v4640
    %vm4696 = vweird.f32 %v4690
    %vm4697 = vmor %vm4695, %vm4696
    %v4698 = vsel %vm4697, %v4690, %v4694
    %v4699 = vand.u32 2147483647, %v4640
    %vm4700 = vcmp.eq.f32.partialorder %v4699, 8.507059e+37
    %v4701 = vand.u32 %v4640, 2147483648
    %v4702 = vor.u32 1.1754944e-38, %v4701
    %v4703 = vsel %vm4700, %v4702, %v4698
    %v4704 = vmul.f32 1.0, %v4703
    %v4705 = vrcp.pop %v4641
    %v4706 = vmul.f32 %v4641, %v4705
    %v4707 = vsub.f32 1.0, %v4706
    %v4708 = vmul.f32 %v4705, %v4707
    %v4709 = vadd.f32 %v4705, %v4708
    %vm4710 = vweird.f32 %v4641
    %vm4711 = vweird.f32 %v4705
    %vm4712 = vmor %vm4710, %vm4711
    %v4713 = vsel %vm4712, %v4705, %v4709
    %v4714 = vand.u32 2147483647, %v4641
    %vm4715 = vcmp.eq.f32.partialorder %v4714, 8.507059e+37
    %v4716 = vand.u32 %v4641, 2147483648
    %v4717 = vor.u32 1.1754944e-38, %v4716
    %v4718 = vsel %vm4715, %v4717, %v4713
    %v4719 = vmul.f32 1.0, %v4718
    %v4720 = vrcp.pop %v4642
    %v4721 = vmul.f32 %v4642, %v4720
    %v4722 = vsub.f32 1.0, %v4721
    %v4723 = vmul.f32 %v4720, %v4722
    %v4724 = vadd.f32 %v4720, %v4723
    %vm4725 = vweird.f32 %v4642
    %vm4726 = vweird.f32 %v4720
    %vm4727 = vmor %vm4725, %vm4726
    %v4728 = vsel %vm4727, %v4720, %v4724
    %v4729 = vand.u32 2147483647, %v4642
    %vm4730 = vcmp.eq.f32.partialorder %v4729, 8.507059e+37
    %v4731 = vand.u32 %v4642, 2147483648
    %v4732 = vor.u32 1.1754944e-38, %v4731
    %v4733 = vsel %vm4730, %v4732, %v4728
    %v4734 = vmul.f32 1.0, %v4733
    %v4735 = vrcp.pop %v4643
    %v4736 = vmul.f32 %v4643, %v4735
    %v4737 = vsub.f32 1.0, %v4736
    %v4738 = vmul.f32 %v4735, %v4737
    %v4739 = vadd.f32 %v4735, %v4738
    %vm4740 = vweird.f32 %v4643
    %vm4741 = vweird.f32 %v4735
    %vm4742 = vmor %vm4740, %vm4741
    %v4743 = vsel %vm4742, %v4735, %v4739
    %v4744 = vand.u32 2147483647, %v4643
    %vm4745 = vcmp.eq.f32.partialorder %v4744, 8.507059e+37
    %v4746 = vand.u32 %v4643, 2147483648
    %v4747 = vor.u32 1.1754944e-38, %v4746
    %v4748 = vsel %vm4745, %v4747, %v4743
    %v4749 = vmul.f32 1.0, %v4748
    %v4750 = vrcp.pop %v4644
    %v4751 = vmul.f32 %v4644, %v4750
    %v4752 = vsub.f32 1.0, %v4751
    %v4753 = vmul.f32 %v4750, %v4752
    %v4754 = vadd.f32 %v4750, %v4753
    %vm4755 = vweird.f32 %v4644
    %vm4756 = vweird.f32 %v4750
    %vm4757 = vmor %vm4755, %vm4756
    %v4758 = vsel %vm4757, %v4750, %v4754
    %v4759 = vand.u32 2147483647, %v4644
    %vm4760 = vcmp.eq.f32.partialorder %v4759, 8.507059e+37
    %v4761 = vand.u32 %v4644, 2147483648
    %v4762 = vor.u32 1.1754944e-38, %v4761
    %v4763 = vsel %vm4760, %v4762, %v4758
    %v4764 = vmul.f32 1.0, %v4763
    %v4765 = vtanh.pop %v4605
    %v4766 = vtanh.pop %v4606
    %v4767 = vtanh.pop %v4607
    %v4768 = vtanh.pop %v4608
    %v4769 = vtanh.pop %v4609
    %v4770 = vtanh.pop %v4610
    %v4771 = vtanh.pop %v4611
    %v4772 = vtanh.pop %v4612
    %v4781 = vrot.slane %v4476, 7
    %v4782 = vrot.slane %v4477, 7
    %v4783 = vrot.slane %v4478, 7
    %v4784 = vrot.slane %v4479, 7
    %v4785 = vrot.slane %v4480, 7
    %v4786 = vrot.slane %v4481, 7
    %v4787 = vrot.slane %v4482, 7
    %v4788 = vrot.slane %v4483, 7
    %v4797 = vmul.f32 %v4659, %v4781
    %v4798 = vmul.f32 %v4674, %v4782
    %v4799 = vmul.f32 %v4689, %v4783
    %v4800 = vmul.f32 %v4704, %v4784
    %v4801 = vmul.f32 %v4719, %v4785
    %v4802 = vmul.f32 %v4734, %v4786
    %v4803 = vmul.f32 %v4749, %v4787
    %v4804 = vmul.f32 %v4764, %v4788
    %4813 = vrot.lane.b32.xlu0 %v4765, 32
    %v4814 = vpop.permute.xlu0 %4813
    %4815 = vrot.lane.b32.xlu0 %v4766, 32
    %v4816 = vpop.permute.xlu0 %4815
    %4817 = vrot.lane.b32.xlu0 %v4767, 32
    %v4818 = vpop.permute.xlu0 %4817
    %4819 = vrot.lane.b32.xlu0 %v4768, 32
    %v4820 = vpop.permute.xlu0 %4819
    %4821 = vrot.lane.b32.xlu0 %v4769, 32
    %v4822 = vpop.permute.xlu0 %4821
    %4823 = vrot.lane.b32.xlu0 %v4770, 32
    %v4824 = vpop.permute.xlu0 %4823
    %4825 = vrot.lane.b32.xlu0 %v4771, 32
    %v4826 = vpop.permute.xlu0 %4825
    %4827 = vrot.lane.b32.xlu0 %v4772, 32
    %v4828 = vpop.permute.xlu0 %4827
    %v4837 = vmul.f32 %v4659, %v4814
    %v4838 = vmul.f32 %v4674, %v4816
    %v4839 = vmul.f32 %v4689, %v4818
    %v4840 = vmul.f32 %v4704, %v4820
    %v4841 = vmul.f32 %v4719, %v4822
    %v4842 = vmul.f32 %v4734, %v4824
    %v4843 = vmul.f32 %v4749, %v4826
    %v4844 = vmul.f32 %v4764, %v4828
    %4853 = vrot.lane.b32.xlu0 %v4837, 32
    %v4854 = vpop.permute.xlu0 %4853
    %4855 = vrot.lane.b32.xlu0 %v4838, 32
    %v4856 = vpop.permute.xlu0 %4855
    %4857 = vrot.lane.b32.xlu0 %v4839, 32
    %v4858 = vpop.permute.xlu0 %4857
    %4859 = vrot.lane.b32.xlu0 %v4840, 32
    %v4860 = vpop.permute.xlu0 %4859
    %4861 = vrot.lane.b32.xlu0 %v4841, 32
    %v4862 = vpop.permute.xlu0 %4861
    %4863 = vrot.lane.b32.xlu0 %v4842, 32
    %v4864 = vpop.permute.xlu0 %4863
    %4865 = vrot.lane.b32.xlu0 %v4843, 32
    %v4866 = vpop.permute.xlu0 %4865
    %4867 = vrot.lane.b32.xlu0 %v4844, 32
    %v4868 = vpop.permute.xlu0 %4867
    %v4877 = vadd.f32 %v4797, %v4854
    %v4878 = vadd.f32 %v4798, %v4856
    %v4879 = vadd.f32 %v4799, %v4858
    %v4880 = vadd.f32 %v4800, %v4860
    %v4881 = vadd.f32 %v4801, %v4862
    %v4882 = vadd.f32 %v4802, %v4864
    %v4883 = vadd.f32 %v4803, %v4866
    %v4884 = vadd.f32 %v4804, %v4868
    %v4885 = vtanh.pop %v4877
    %v4886 = vtanh.pop %v4878
    %v4887 = vtanh.pop %v4879
    %v4888 = vtanh.pop %v4880
    %v4889 = vtanh.pop %v4881
    %v4890 = vtanh.pop %v4882
    %v4891 = vtanh.pop %v4883
    %v4892 = vtanh.pop %v4884
    %4901 = vrot.lane.b32.xlu0 %v4885, 32
    %v4902 = vpop.permute.xlu0 %4901
    %4903 = vrot.lane.b32.xlu0 %v4886, 32
    %v4904 = vpop.permute.xlu0 %4903
    %4905 = vrot.lane.b32.xlu0 %v4887, 32
    %v4906 = vpop.permute.xlu0 %4905
    %4907 = vrot.lane.b32.xlu0 %v4888, 32
    %v4908 = vpop.permute.xlu0 %4907
    %4909 = vrot.lane.b32.xlu0 %v4889, 32
    %v4910 = vpop.permute.xlu0 %4909
    %4911 = vrot.lane.b32.xlu0 %v4890, 32
    %v4912 = vpop.permute.xlu0 %4911
    %4913 = vrot.lane.b32.xlu0 %v4891, 32
    %v4914 = vpop.permute.xlu0 %4913
    %4915 = vrot.lane.b32.xlu0 %v4892, 32
    %v4916 = vpop.permute.xlu0 %4915
    %v4925 = vmul.f32 %v4659, %v4902
    %v4926 = vmul.f32 %v4674, %v4904
    %v4927 = vmul.f32 %v4689, %v4906
    %v4928 = vmul.f32 %v4704, %v4908
    %v4929 = vmul.f32 %v4719, %v4910
    %v4930 = vmul.f32 %v4734, %v4912
    %v4931 = vmul.f32 %v4749, %v4914
    %v4932 = vmul.f32 %v4764, %v4916
    %v4933 = vpack.c.bf16 %v4925, %v4925
    %v4934 = vpack.c.bf16 %v4926, %v4926
    %v4935 = vpack.c.bf16 %v4927, %v4927
    %v4936 = vpack.c.bf16 %v4928, %v4928
    %v4937 = vpack.c.bf16 %v4929, %v4929
    %v4938 = vpack.c.bf16 %v4930, %v4930
    %v4939 = vpack.c.bf16 %v4931, %v4931
    %v4940 = vpack.c.bf16 %v4932, %v4932
    %v4949 = vunpack.c.l.b16 %v4933
    %v4950 = vunpack.c.l.b16 %v4934
    %v4951 = vunpack.c.l.b16 %v4935
    %v4952 = vunpack.c.l.b16 %v4936
    %v4953 = vunpack.c.l.b16 %v4937
    %v4954 = vunpack.c.l.b16 %v4938
    %v4955 = vunpack.c.l.b16 %v4939
    %v4956 = vunpack.c.l.b16 %v4940
    %v4957 = vrot.slane %v4949, 2
    %v4958 = vrot.slane %v4950, 1
    %v4959 = vsel %vm633, %v4958, %v4957
    %v4960 = vsel %vm636, %v4951, %v4959
    %v4961 = vrot.slane %v4952, 7
    %v4962 = vsel %vm639, %v4961, %v4960
    %v4963 = vrot.slane %v4953, 6
    %v4964 = vsel %vm642, %v4963, %v4962
    %v4965 = vrot.slane %v4954, 5
    %v4966 = vsel %vm645, %v4965, %v4964
    %v4967 = vrot.slane %v4955, 4
    %v4968 = vsel %vm648, %v4967, %v4966
    %v4969 = vrot.slane %v4956, 3
    %v4970 = vsel %vm651, %v4969, %v4968
    %v4971 = vpack.c.b16 %v4970, %v4970
    %4972 = vrot.lane.b32.xlu0 %v4971, 64
    %v4973 = vpop.permute.xlu0 %4972
    %v4975 = vsel %vm230, %v4973, 0
    %4977 = vmatpush.bf16.msra.mxu0 0
    %4978 = vmatpush.bf16.msra.mxu0 0
    %4979 = vmatpush.bf16.msra.mxu0 0
    %4980 = vmatpush.bf16.msra.mxu0 0
    %4981 = vmatpush.bf16.msra.mxu0 0
    %4982 = vmatpush.bf16.msra.mxu0 0
    %4983 = vmatpush.bf16.msra.mxu0 %v3795
    %4984 = vmatpush.bf16.msra.mxu0 %v3794
    %4985 = vmatmul.bf16.gmra.mxu0 %v4975
    %v4986 = vpop.f32.mrf.mxu0
    %v4987 = vadd.f32 0.0, %v4986
    %v4988 = vpop.f32.mrf.mxu0
    %4989 = vdwg.mxu0
    %v4991 = vrot.slane %v4987, 5
    %v4992 = vrot.slane %v4987, 6
    %v4993 = vrot.slane %v4987, 7
    %v4994 = vrot.slane %v4987, 1
    %v4995 = vrot.slane %v4987, 2
    %v4996 = vrot.slane %v4987, 3
    %v4997 = vrot.slane %v4987, 4
    %v5006 = vadd.f32 %v3767, %v4991
    %v5007 = vadd.f32 %v3769, %v4992
    %v5008 = vadd.f32 %v3772, %v4993
    %v5009 = vadd.f32 %v3774, %v4987
    %v5010 = vadd.f32 %v3777, %v4994
    %v5011 = vadd.f32 %v3779, %v4995
    %v5012 = vadd.f32 %v3782, %v4996
    %v5013 = vadd.f32 %v3784, %v4997
    %v5014 = vxor.u32 %v5006, 2147483648
    %v5015 = vxor.u32 %v5007, 2147483648
    %v5016 = vxor.u32 %v5008, 2147483648
    %v5017 = vxor.u32 %v5009, 2147483648
    %v5018 = vxor.u32 %v5010, 2147483648
    %v5019 = vxor.u32 %v5011, 2147483648
    %v5020 = vxor.u32 %v5012, 2147483648
    %v5021 = vxor.u32 %v5013, 2147483648
    %v5022 = vmul.f32 %v5014, 1.442695
    %v5023 = vpow.pop %v5022
    %v5024 = vmul.f32 %v5015, 1.442695
    %v5025 = vpow.pop %v5024
    %v5026 = vmul.f32 %v5016, 1.442695
    %v5027 = vpow.pop %v5026
    %v5028 = vmul.f32 %v5017, 1.442695
    %v5029 = vpow.pop %v5028
    %v5030 = vmul.f32 %v5018, 1.442695
    %v5031 = vpow.pop %v5030
    %v5032 = vmul.f32 %v5019, 1.442695
    %v5033 = vpow.pop %v5032
    %v5034 = vmul.f32 %v5020, 1.442695
    %v5035 = vpow.pop %v5034
    %v5036 = vmul.f32 %v5021, 1.442695
    %v5037 = vpow.pop %v5036
    %v5038 = vadd.f32 %v5023, 1.0
    %v5039 = vadd.f32 %v5025, 1.0
    %v5040 = vadd.f32 %v5027, 1.0
    %v5041 = vadd.f32 %v5029, 1.0
    %v5042 = vadd.f32 %v5031, 1.0
    %v5043 = vadd.f32 %v5033, 1.0
    %v5044 = vadd.f32 %v5035, 1.0
    %v5045 = vadd.f32 %v5037, 1.0
    %v5046 = vrcp.pop %v5038
    %v5047 = vmul.f32 %v5038, %v5046
    %v5048 = vsub.f32 1.0, %v5047
    %v5049 = vmul.f32 %v5046, %v5048
    %v5050 = vadd.f32 %v5046, %v5049
    %vm5051 = vweird.f32 %v5038
    %vm5052 = vweird.f32 %v5046
    %vm5053 = vmor %vm5051, %vm5052
    %v5054 = vsel %vm5053, %v5046, %v5050
    %v5055 = vand.u32 2147483647, %v5038
    %vm5056 = vcmp.eq.f32.partialorder %v5055, 8.507059e+37
    %v5057 = vand.u32 %v5038, 2147483648
    %v5058 = vor.u32 1.1754944e-38, %v5057
    %v5059 = vsel %vm5056, %v5058, %v5054
    %v5060 = vmul.f32 1.0, %v5059
    %v5061 = vrcp.pop %v5039
    %v5062 = vmul.f32 %v5039, %v5061
    %v5063 = vsub.f32 1.0, %v5062
    %v5064 = vmul.f32 %v5061, %v5063
    %v5065 = vadd.f32 %v5061, %v5064
    %vm5066 = vweird.f32 %v5039
    %vm5067 = vweird.f32 %v5061
    %vm5068 = vmor %vm5066, %vm5067
    %v5069 = vsel %vm5068, %v5061, %v5065
    %v5070 = vand.u32 2147483647, %v5039
    %vm5071 = vcmp.eq.f32.partialorder %v5070, 8.507059e+37
    %v5072 = vand.u32 %v5039, 2147483648
    %v5073 = vor.u32 1.1754944e-38, %v5072
    %v5074 = vsel %vm5071, %v5073, %v5069
    %v5075 = vmul.f32 1.0, %v5074
    %v5076 = vrcp.pop %v5040
    %v5077 = vmul.f32 %v5040, %v5076
    %v5078 = vsub.f32 1.0, %v5077
    %v5079 = vmul.f32 %v5076, %v5078
    %v5080 = vadd.f32 %v5076, %v5079
    %vm5081 = vweird.f32 %v5040
    %vm5082 = vweird.f32 %v5076
    %vm5083 = vmor %vm5081, %vm5082
    %v5084 = vsel %vm5083, %v5076, %v5080
    %v5085 = vand.u32 2147483647, %v5040
    %vm5086 = vcmp.eq.f32.partialorder %v5085, 8.507059e+37
    %v5087 = vand.u32 %v5040, 2147483648
    %v5088 = vor.u32 1.1754944e-38, %v5087
    %v5089 = vsel %vm5086, %v5088, %v5084
    %v5090 = vmul.f32 1.0, %v5089
    %v5091 = vrcp.pop %v5041
    %v5092 = vmul.f32 %v5041, %v5091
    %v5093 = vsub.f32 1.0, %v5092
    %v5094 = vmul.f32 %v5091, %v5093
    %v5095 = vadd.f32 %v5091, %v5094
    %vm5096 = vweird.f32 %v5041
    %vm5097 = vweird.f32 %v5091
    %vm5098 = vmor %vm5096, %vm5097
    %v5099 = vsel %vm5098, %v5091, %v5095
    %v5100 = vand.u32 2147483647, %v5041
    %vm5101 = vcmp.eq.f32.partialorder %v5100, 8.507059e+37
    %v5102 = vand.u32 %v5041, 2147483648
    %v5103 = vor.u32 1.1754944e-38, %v5102
    %v5104 = vsel %vm5101, %v5103, %v5099
    %v5105 = vmul.f32 1.0, %v5104
    %v5106 = vrcp.pop %v5042
    %v5107 = vmul.f32 %v5042, %v5106
    %v5108 = vsub.f32 1.0, %v5107
    %v5109 = vmul.f32 %v5106, %v5108
    %v5110 = vadd.f32 %v5106, %v5109
    %vm5111 = vweird.f32 %v5042
    %vm5112 = vweird.f32 %v5106
    %vm5113 = vmor %vm5111, %vm5112
    %v5114 = vsel %vm5113, %v5106, %v5110
    %v5115 = vand.u32 2147483647, %v5042
    %vm5116 = vcmp.eq.f32.partialorder %v5115, 8.507059e+37
    %v5117 = vand.u32 %v5042, 2147483648
    %v5118 = vor.u32 1.1754944e-38, %v5117
    %v5119 = vsel %vm5116, %v5118, %v5114
    %v5120 = vmul.f32 1.0, %v5119
    %v5121 = vrcp.pop %v5043
    %v5122 = vmul.f32 %v5043, %v5121
    %v5123 = vsub.f32 1.0, %v5122
    %v5124 = vmul.f32 %v5121, %v5123
    %v5125 = vadd.f32 %v5121, %v5124
    %vm5126 = vweird.f32 %v5043
    %vm5127 = vweird.f32 %v5121
    %vm5128 = vmor %vm5126, %vm5127
    %v5129 = vsel %vm5128, %v5121, %v5125
    %v5130 = vand.u32 2147483647, %v5043
    %vm5131 = vcmp.eq.f32.partialorder %v5130, 8.507059e+37
    %v5132 = vand.u32 %v5043, 2147483648
    %v5133 = vor.u32 1.1754944e-38, %v5132
    %v5134 = vsel %vm5131, %v5133, %v5129
    %v5135 = vmul.f32 1.0, %v5134
    %v5136 = vrcp.pop %v5044
    %v5137 = vmul.f32 %v5044, %v5136
    %v5138 = vsub.f32 1.0, %v5137
    %v5139 = vmul.f32 %v5136, %v5138
    %v5140 = vadd.f32 %v5136, %v5139
    %vm5141 = vweird.f32 %v5044
    %vm5142 = vweird.f32 %v5136
    %vm5143 = vmor %vm5141, %vm5142
    %v5144 = vsel %vm5143, %v5136, %v5140
    %v5145 = vand.u32 2147483647, %v5044
    %vm5146 = vcmp.eq.f32.partialorder %v5145, 8.507059e+37
    %v5147 = vand.u32 %v5044, 2147483648
    %v5148 = vor.u32 1.1754944e-38, %v5147
    %v5149 = vsel %vm5146, %v5148, %v5144
    %v5150 = vmul.f32 1.0, %v5149
    %v5151 = vrcp.pop %v5045
    %v5152 = vmul.f32 %v5045, %v5151
    %v5153 = vsub.f32 1.0, %v5152
    %v5154 = vmul.f32 %v5151, %v5153
    %v5155 = vadd.f32 %v5151, %v5154
    %vm5156 = vweird.f32 %v5045
    %vm5157 = vweird.f32 %v5151
    %vm5158 = vmor %vm5156, %vm5157
    %v5159 = vsel %vm5158, %v5151, %v5155
    %v5160 = vand.u32 2147483647, %v5045
    %vm5161 = vcmp.eq.f32.partialorder %v5160, 8.507059e+37
    %v5162 = vand.u32 %v5045, 2147483648
    %v5163 = vor.u32 1.1754944e-38, %v5162
    %v5164 = vsel %vm5161, %v5163, %v5159
    %v5165 = vmul.f32 1.0, %v5164
    %v5166 = vtanh.pop %v5006
    %v5167 = vtanh.pop %v5007
    %v5168 = vtanh.pop %v5008
    %v5169 = vtanh.pop %v5009
    %v5170 = vtanh.pop %v5010
    %v5171 = vtanh.pop %v5011
    %v5172 = vtanh.pop %v5012
    %v5173 = vtanh.pop %v5013
    %v5182 = vrot.slane %v4877, 7
    %v5183 = vrot.slane %v4878, 7
    %v5184 = vrot.slane %v4879, 7
    %v5185 = vrot.slane %v4880, 7
    %v5186 = vrot.slane %v4881, 7
    %v5187 = vrot.slane %v4882, 7
    %v5188 = vrot.slane %v4883, 7
    %v5189 = vrot.slane %v4884, 7
    %v5198 = vmul.f32 %v5060, %v5182
    %v5199 = vmul.f32 %v5075, %v5183
    %v5200 = vmul.f32 %v5090, %v5184
    %v5201 = vmul.f32 %v5105, %v5185
    %v5202 = vmul.f32 %v5120, %v5186
    %v5203 = vmul.f32 %v5135, %v5187
    %v5204 = vmul.f32 %v5150, %v5188
    %v5205 = vmul.f32 %v5165, %v5189
    %5214 = vrot.lane.b32.xlu0 %v5166, 32
    %v5215 = vpop.permute.xlu0 %5214
    %5216 = vrot.lane.b32.xlu0 %v5167, 32
    %v5217 = vpop.permute.xlu0 %5216
    %5218 = vrot.lane.b32.xlu0 %v5168, 32
    %v5219 = vpop.permute.xlu0 %5218
    %5220 = vrot.lane.b32.xlu0 %v5169, 32
    %v5221 = vpop.permute.xlu0 %5220
    %5222 = vrot.lane.b32.xlu0 %v5170, 32
    %v5223 = vpop.permute.xlu0 %5222
    %5224 = vrot.lane.b32.xlu0 %v5171, 32
    %v5225 = vpop.permute.xlu0 %5224
    %5226 = vrot.lane.b32.xlu0 %v5172, 32
    %v5227 = vpop.permute.xlu0 %5226
    %5228 = vrot.lane.b32.xlu0 %v5173, 32
    %v5229 = vpop.permute.xlu0 %5228
    %v5238 = vmul.f32 %v5060, %v5215
    %v5239 = vmul.f32 %v5075, %v5217
    %v5240 = vmul.f32 %v5090, %v5219
    %v5241 = vmul.f32 %v5105, %v5221
    %v5242 = vmul.f32 %v5120, %v5223
    %v5243 = vmul.f32 %v5135, %v5225
    %v5244 = vmul.f32 %v5150, %v5227
    %v5245 = vmul.f32 %v5165, %v5229
    %5254 = vrot.lane.b32.xlu0 %v5238, 32
    %v5255 = vpop.permute.xlu0 %5254
    %5256 = vrot.lane.b32.xlu0 %v5239, 32
    %v5257 = vpop.permute.xlu0 %5256
    %5258 = vrot.lane.b32.xlu0 %v5240, 32
    %v5259 = vpop.permute.xlu0 %5258
    %5260 = vrot.lane.b32.xlu0 %v5241, 32
    %v5261 = vpop.permute.xlu0 %5260
    %5262 = vrot.lane.b32.xlu0 %v5242, 32
    %v5263 = vpop.permute.xlu0 %5262
    %5264 = vrot.lane.b32.xlu0 %v5243, 32
    %v5265 = vpop.permute.xlu0 %5264
    %5266 = vrot.lane.b32.xlu0 %v5244, 32
    %v5267 = vpop.permute.xlu0 %5266
    %5268 = vrot.lane.b32.xlu0 %v5245, 32
    %v5269 = vpop.permute.xlu0 %5268
    %v5278 = vadd.f32 %v5198, %v5255
    %v5279 = vadd.f32 %v5199, %v5257
    %v5280 = vadd.f32 %v5200, %v5259
    %v5281 = vadd.f32 %v5201, %v5261
    %v5282 = vadd.f32 %v5202, %v5263
    %v5283 = vadd.f32 %v5203, %v5265
    %v5284 = vadd.f32 %v5204, %v5267
    %v5285 = vadd.f32 %v5205, %v5269
    %v5286 = vtanh.pop %v5278
    %v5287 = vtanh.pop %v5279
    %v5288 = vtanh.pop %v5280
    %v5289 = vtanh.pop %v5281
    %v5290 = vtanh.pop %v5282
    %v5291 = vtanh.pop %v5283
    %v5292 = vtanh.pop %v5284
    %v5293 = vtanh.pop %v5285
    %5302 = vrot.lane.b32.xlu0 %v5286, 32
    %v5303 = vpop.permute.xlu0 %5302
    %5304 = vrot.lane.b32.xlu0 %v5287, 32
    %v5305 = vpop.permute.xlu0 %5304
    %5306 = vrot.lane.b32.xlu0 %v5288, 32
    %v5307 = vpop.permute.xlu0 %5306
    %5308 = vrot.lane.b32.xlu0 %v5289, 32
    %v5309 = vpop.permute.xlu0 %5308
    %5310 = vrot.lane.b32.xlu0 %v5290, 32
    %v5311 = vpop.permute.xlu0 %5310
    %5312 = vrot.lane.b32.xlu0 %v5291, 32
    %v5313 = vpop.permute.xlu0 %5312
    %5314 = vrot.lane.b32.xlu0 %v5292, 32
    %v5315 = vpop.permute.xlu0 %5314
    %5316 = vrot.lane.b32.xlu0 %v5293, 32
    %v5317 = vpop.permute.xlu0 %5316
    %v5326 = vmul.f32 %v5060, %v5303
    %v5327 = vmul.f32 %v5075, %v5305
    %v5328 = vmul.f32 %v5090, %v5307
    %v5329 = vmul.f32 %v5105, %v5309
    %v5330 = vmul.f32 %v5120, %v5311
    %v5331 = vmul.f32 %v5135, %v5313
    %v5332 = vmul.f32 %v5150, %v5315
    %v5333 = vmul.f32 %v5165, %v5317
    %v5334 = vpack.c.bf16 %v5326, %v5326
    %v5335 = vpack.c.bf16 %v5327, %v5327
    %v5336 = vpack.c.bf16 %v5328, %v5328
    %v5337 = vpack.c.bf16 %v5329, %v5329
    %v5338 = vpack.c.bf16 %v5330, %v5330
    %v5339 = vpack.c.bf16 %v5331, %v5331
    %v5340 = vpack.c.bf16 %v5332, %v5332
    %v5341 = vpack.c.bf16 %v5333, %v5333
    %v5350 = vunpack.c.l.b16 %v5334
    %v5351 = vunpack.c.l.b16 %v5335
    %v5352 = vunpack.c.l.b16 %v5336
    %v5353 = vunpack.c.l.b16 %v5337
    %v5354 = vunpack.c.l.b16 %v5338
    %v5355 = vunpack.c.l.b16 %v5339
    %v5356 = vunpack.c.l.b16 %v5340
    %v5357 = vunpack.c.l.b16 %v5341
    %v5358 = vrot.slane %v5350, 3
    %v5359 = vrot.slane %v5351, 2
    %v5360 = vsel %vm633, %v5359, %v5358
    %v5361 = vrot.slane %v5352, 1
    %v5362 = vsel %vm636, %v5361, %v5360
    %v5363 = vsel %vm639, %v5353, %v5362
    %v5364 = vrot.slane %v5354, 7
    %v5365 = vsel %vm642, %v5364, %v5363
    %v5366 = vrot.slane %v5355, 6
    %v5367 = vsel %vm645, %v5366, %v5365
    %v5368 = vrot.slane %v5356, 5
    %v5369 = vsel %vm648, %v5368, %v5367
    %v5370 = vrot.slane %v5357, 4
    %v5371 = vsel %vm651, %v5370, %v5369
    %v5372 = vpack.c.b16 %v5371, %v5371
    %5373 = vrot.lane.b32.xlu0 %v5372, 64
    %v5374 = vpop.permute.xlu0 %5373
    %v5376 = vsel %vm230, %v5374, 0
    %5378 = vmatpush.bf16.msra.mxu0 0
    %5379 = vmatpush.bf16.msra.mxu0 0
    %5380 = vmatpush.bf16.msra.mxu0 0
    %5381 = vmatpush.bf16.msra.mxu0 0
    %5382 = vmatpush.bf16.msra.mxu0 0
    %5383 = vmatpush.bf16.msra.mxu0 0
    %5384 = vmatpush.bf16.msra.mxu0 %v3795
    %5385 = vmatpush.bf16.msra.mxu0 %v3794
    %5386 = vmatmul.bf16.gmra.mxu0 %v5376
    %v5387 = vpop.f32.mrf.mxu0
    %v5388 = vadd.f32 0.0, %v5387
    %v5389 = vpop.f32.mrf.mxu0
    %5390 = vdwg.mxu0
    %v5392 = vrot.slane %v5388, 4
    %v5393 = vrot.slane %v5388, 5
    %v5394 = vrot.slane %v5388, 6
    %v5395 = vrot.slane %v5388, 7
    %v5396 = vrot.slane %v5388, 1
    %v5397 = vrot.slane %v5388, 2
    %v5398 = vrot.slane %v5388, 3
    %v5407 = vadd.f32 %v3767, %v5392
    %v5408 = vadd.f32 %v3769, %v5393
    %v5409 = vadd.f32 %v3772, %v5394
    %v5410 = vadd.f32 %v3774, %v5395
    %v5411 = vadd.f32 %v3777, %v5388
    %v5412 = vadd.f32 %v3779, %v5396
    %v5413 = vadd.f32 %v3782, %v5397
    %v5414 = vadd.f32 %v3784, %v5398
    %v5415 = vxor.u32 %v5407, 2147483648
    %v5416 = vxor.u32 %v5408, 2147483648
    %v5417 = vxor.u32 %v5409, 2147483648
    %v5418 = vxor.u32 %v5410, 2147483648
    %v5419 = vxor.u32 %v5411, 2147483648
    %v5420 = vxor.u32 %v5412, 2147483648
    %v5421 = vxor.u32 %v5413, 2147483648
    %v5422 = vxor.u32 %v5414, 2147483648
    %v5423 = vmul.f32 %v5415, 1.442695
    %v5424 = vpow.pop %v5423
    %v5425 = vmul.f32 %v5416, 1.442695
    %v5426 = vpow.pop %v5425
    %v5427 = vmul.f32 %v5417, 1.442695
    %v5428 = vpow.pop %v5427
    %v5429 = vmul.f32 %v5418, 1.442695
    %v5430 = vpow.pop %v5429
    %v5431 = vmul.f32 %v5419, 1.442695
    %v5432 = vpow.pop %v5431
    %v5433 = vmul.f32 %v5420, 1.442695
    %v5434 = vpow.pop %v5433
    %v5435 = vmul.f32 %v5421, 1.442695
    %v5436 = vpow.pop %v5435
    %v5437 = vmul.f32 %v5422, 1.442695
    %v5438 = vpow.pop %v5437
    %v5439 = vadd.f32 %v5424, 1.0
    %v5440 = vadd.f32 %v5426, 1.0
    %v5441 = vadd.f32 %v5428, 1.0
    %v5442 = vadd.f32 %v5430, 1.0
    %v5443 = vadd.f32 %v5432, 1.0
    %v5444 = vadd.f32 %v5434, 1.0
    %v5445 = vadd.f32 %v5436, 1.0
    %v5446 = vadd.f32 %v5438, 1.0
    %v5447 = vrcp.pop %v5439
    %v5448 = vmul.f32 %v5439, %v5447
    %v5449 = vsub.f32 1.0, %v5448
    %v5450 = vmul.f32 %v5447, %v5449
    %v5451 = vadd.f32 %v5447, %v5450
    %vm5452 = vweird.f32 %v5439
    %vm5453 = vweird.f32 %v5447
    %vm5454 = vmor %vm5452, %vm5453
    %v5455 = vsel %vm5454, %v5447, %v5451
    %v5456 = vand.u32 2147483647, %v5439
    %vm5457 = vcmp.eq.f32.partialorder %v5456, 8.507059e+37
    %v5458 = vand.u32 %v5439, 2147483648
    %v5459 = vor.u32 1.1754944e-38, %v5458
    %v5460 = vsel %vm5457, %v5459, %v5455
    %v5461 = vmul.f32 1.0, %v5460
    %v5462 = vrcp.pop %v5440
    %v5463 = vmul.f32 %v5440, %v5462
    %v5464 = vsub.f32 1.0, %v5463
    %v5465 = vmul.f32 %v5462, %v5464
    %v5466 = vadd.f32 %v5462, %v5465
    %vm5467 = vweird.f32 %v5440
    %vm5468 = vweird.f32 %v5462
    %vm5469 = vmor %vm5467, %vm5468
    %v5470 = vsel %vm5469, %v5462, %v5466
    %v5471 = vand.u32 2147483647, %v5440
    %vm5472 = vcmp.eq.f32.partialorder %v5471, 8.507059e+37
    %v5473 = vand.u32 %v5440, 2147483648
    %v5474 = vor.u32 1.1754944e-38, %v5473
    %v5475 = vsel %vm5472, %v5474, %v5470
    %v5476 = vmul.f32 1.0, %v5475
    %v5477 = vrcp.pop %v5441
    %v5478 = vmul.f32 %v5441, %v5477
    %v5479 = vsub.f32 1.0, %v5478
    %v5480 = vmul.f32 %v5477, %v5479
    %v5481 = vadd.f32 %v5477, %v5480
    %vm5482 = vweird.f32 %v5441
    %vm5483 = vweird.f32 %v5477
    %vm5484 = vmor %vm5482, %vm5483
    %v5485 = vsel %vm5484, %v5477, %v5481
    %v5486 = vand.u32 2147483647, %v5441
    %vm5487 = vcmp.eq.f32.partialorder %v5486, 8.507059e+37
    %v5488 = vand.u32 %v5441, 2147483648
    %v5489 = vor.u32 1.1754944e-38, %v5488
    %v5490 = vsel %vm5487, %v5489, %v5485
    %v5491 = vmul.f32 1.0, %v5490
    %v5492 = vrcp.pop %v5442
    %v5493 = vmul.f32 %v5442, %v5492
    %v5494 = vsub.f32 1.0, %v5493
    %v5495 = vmul.f32 %v5492, %v5494
    %v5496 = vadd.f32 %v5492, %v5495
    %vm5497 = vweird.f32 %v5442
    %vm5498 = vweird.f32 %v5492
    %vm5499 = vmor %vm5497, %vm5498
    %v5500 = vsel %vm5499, %v5492, %v5496
    %v5501 = vand.u32 2147483647, %v5442
    %vm5502 = vcmp.eq.f32.partialorder %v5501, 8.507059e+37
    %v5503 = vand.u32 %v5442, 2147483648
    %v5504 = vor.u32 1.1754944e-38, %v5503
    %v5505 = vsel %vm5502, %v5504, %v5500
    %v5506 = vmul.f32 1.0, %v5505
    %v5507 = vrcp.pop %v5443
    %v5508 = vmul.f32 %v5443, %v5507
    %v5509 = vsub.f32 1.0, %v5508
    %v5510 = vmul.f32 %v5507, %v5509
    %v5511 = vadd.f32 %v5507, %v5510
    %vm5512 = vweird.f32 %v5443
    %vm5513 = vweird.f32 %v5507
    %vm5514 = vmor %vm5512, %vm5513
    %v5515 = vsel %vm5514, %v5507, %v5511
    %v5516 = vand.u32 2147483647, %v5443
    %vm5517 = vcmp.eq.f32.partialorder %v5516, 8.507059e+37
    %v5518 = vand.u32 %v5443, 2147483648
    %v5519 = vor.u32 1.1754944e-38, %v5518
    %v5520 = vsel %vm5517, %v5519, %v5515
    %v5521 = vmul.f32 1.0, %v5520
    %v5522 = vrcp.pop %v5444
    %v5523 = vmul.f32 %v5444, %v5522
    %v5524 = vsub.f32 1.0, %v5523
    %v5525 = vmul.f32 %v5522, %v5524
    %v5526 = vadd.f32 %v5522, %v5525
    %vm5527 = vweird.f32 %v5444
    %vm5528 = vweird.f32 %v5522
    %vm5529 = vmor %vm5527, %vm5528
    %v5530 = vsel %vm5529, %v5522, %v5526
    %v5531 = vand.u32 2147483647, %v5444
    %vm5532 = vcmp.eq.f32.partialorder %v5531, 8.507059e+37
    %v5533 = vand.u32 %v5444, 2147483648
    %v5534 = vor.u32 1.1754944e-38, %v5533
    %v5535 = vsel %vm5532, %v5534, %v5530
    %v5536 = vmul.f32 1.0, %v5535
    %v5537 = vrcp.pop %v5445
    %v5538 = vmul.f32 %v5445, %v5537
    %v5539 = vsub.f32 1.0, %v5538
    %v5540 = vmul.f32 %v5537, %v5539
    %v5541 = vadd.f32 %v5537, %v5540
    %vm5542 = vweird.f32 %v5445
    %vm5543 = vweird.f32 %v5537
    %vm5544 = vmor %vm5542, %vm5543
    %v5545 = vsel %vm5544, %v5537, %v5541
    %v5546 = vand.u32 2147483647, %v5445
    %vm5547 = vcmp.eq.f32.partialorder %v5546, 8.507059e+37
    %v5548 = vand.u32 %v5445, 2147483648
    %v5549 = vor.u32 1.1754944e-38, %v5548
    %v5550 = vsel %vm5547, %v5549, %v5545
    %v5551 = vmul.f32 1.0, %v5550
    %v5552 = vrcp.pop %v5446
    %v5553 = vmul.f32 %v5446, %v5552
    %v5554 = vsub.f32 1.0, %v5553
    %v5555 = vmul.f32 %v5552, %v5554
    %v5556 = vadd.f32 %v5552, %v5555
    %vm5557 = vweird.f32 %v5446
    %vm5558 = vweird.f32 %v5552
    %vm5559 = vmor %vm5557, %vm5558
    %v5560 = vsel %vm5559, %v5552, %v5556
    %v5561 = vand.u32 2147483647, %v5446
    %vm5562 = vcmp.eq.f32.partialorder %v5561, 8.507059e+37
    %v5563 = vand.u32 %v5446, 2147483648
    %v5564 = vor.u32 1.1754944e-38, %v5563
    %v5565 = vsel %vm5562, %v5564, %v5560
    %v5566 = vmul.f32 1.0, %v5565
    %v5567 = vtanh.pop %v5407
    %v5568 = vtanh.pop %v5408
    %v5569 = vtanh.pop %v5409
    %v5570 = vtanh.pop %v5410
    %v5571 = vtanh.pop %v5411
    %v5572 = vtanh.pop %v5412
    %v5573 = vtanh.pop %v5413
    %v5574 = vtanh.pop %v5414
    %v5583 = vrot.slane %v5278, 7
    %v5584 = vrot.slane %v5279, 7
    %v5585 = vrot.slane %v5280, 7
    %v5586 = vrot.slane %v5281, 7
    %v5587 = vrot.slane %v5282, 7
    %v5588 = vrot.slane %v5283, 7
    %v5589 = vrot.slane %v5284, 7
    %v5590 = vrot.slane %v5285, 7
    %v5599 = vmul.f32 %v5461, %v5583
    %v5600 = vmul.f32 %v5476, %v5584
    %v5601 = vmul.f32 %v5491, %v5585
    %v5602 = vmul.f32 %v5506, %v5586
    %v5603 = vmul.f32 %v5521, %v5587
    %v5604 = vmul.f32 %v5536, %v5588
    %v5605 = vmul.f32 %v5551, %v5589
    %v5606 = vmul.f32 %v5566, %v5590
    %5615 = vrot.lane.b32.xlu0 %v5567, 32
    %v5616 = vpop.permute.xlu0 %5615
    %5617 = vrot.lane.b32.xlu0 %v5568, 32
    %v5618 = vpop.permute.xlu0 %5617
    %5619 = vrot.lane.b32.xlu0 %v5569, 32
    %v5620 = vpop.permute.xlu0 %5619
    %5621 = vrot.lane.b32.xlu0 %v5570, 32
    %v5622 = vpop.permute.xlu0 %5621
    %5623 = vrot.lane.b32.xlu0 %v5571, 32
    %v5624 = vpop.permute.xlu0 %5623
    %5625 = vrot.lane.b32.xlu0 %v5572, 32
    %v5626 = vpop.permute.xlu0 %5625
    %5627 = vrot.lane.b32.xlu0 %v5573, 32
    %v5628 = vpop.permute.xlu0 %5627
    %5629 = vrot.lane.b32.xlu0 %v5574, 32
    %v5630 = vpop.permute.xlu0 %5629
    %v5639 = vmul.f32 %v5461, %v5616
    %v5640 = vmul.f32 %v5476, %v5618
    %v5641 = vmul.f32 %v5491, %v5620
    %v5642 = vmul.f32 %v5506, %v5622
    %v5643 = vmul.f32 %v5521, %v5624
    %v5644 = vmul.f32 %v5536, %v5626
    %v5645 = vmul.f32 %v5551, %v5628
    %v5646 = vmul.f32 %v5566, %v5630
    %5655 = vrot.lane.b32.xlu0 %v5639, 32
    %v5656 = vpop.permute.xlu0 %5655
    %5657 = vrot.lane.b32.xlu0 %v5640, 32
    %v5658 = vpop.permute.xlu0 %5657
    %5659 = vrot.lane.b32.xlu0 %v5641, 32
    %v5660 = vpop.permute.xlu0 %5659
    %5661 = vrot.lane.b32.xlu0 %v5642, 32
    %v5662 = vpop.permute.xlu0 %5661
    %5663 = vrot.lane.b32.xlu0 %v5643, 32
    %v5664 = vpop.permute.xlu0 %5663
    %5665 = vrot.lane.b32.xlu0 %v5644, 32
    %v5666 = vpop.permute.xlu0 %5665
    %5667 = vrot.lane.b32.xlu0 %v5645, 32
    %v5668 = vpop.permute.xlu0 %5667
    %5669 = vrot.lane.b32.xlu0 %v5646, 32
    %v5670 = vpop.permute.xlu0 %5669
    %v5679 = vadd.f32 %v5599, %v5656
    %v5680 = vadd.f32 %v5600, %v5658
    %v5681 = vadd.f32 %v5601, %v5660
    %v5682 = vadd.f32 %v5602, %v5662
    %v5683 = vadd.f32 %v5603, %v5664
    %v5684 = vadd.f32 %v5604, %v5666
    %v5685 = vadd.f32 %v5605, %v5668
    %v5686 = vadd.f32 %v5606, %v5670
    %v5687 = vtanh.pop %v5679
    %v5688 = vtanh.pop %v5680
    %v5689 = vtanh.pop %v5681
    %v5690 = vtanh.pop %v5682
    %v5691 = vtanh.pop %v5683
    %v5692 = vtanh.pop %v5684
    %v5693 = vtanh.pop %v5685
    %v5694 = vtanh.pop %v5686
    %5703 = vrot.lane.b32.xlu0 %v5687, 32
    %v5704 = vpop.permute.xlu0 %5703
    %5705 = vrot.lane.b32.xlu0 %v5688, 32
    %v5706 = vpop.permute.xlu0 %5705
    %5707 = vrot.lane.b32.xlu0 %v5689, 32
    %v5708 = vpop.permute.xlu0 %5707
    %5709 = vrot.lane.b32.xlu0 %v5690, 32
    %v5710 = vpop.permute.xlu0 %5709
    %5711 = vrot.lane.b32.xlu0 %v5691, 32
    %v5712 = vpop.permute.xlu0 %5711
    %5713 = vrot.lane.b32.xlu0 %v5692, 32
    %v5714 = vpop.permute.xlu0 %5713
    %5715 = vrot.lane.b32.xlu0 %v5693, 32
    %v5716 = vpop.permute.xlu0 %5715
    %5717 = vrot.lane.b32.xlu0 %v5694, 32
    %v5718 = vpop.permute.xlu0 %5717
    %v5727 = vmul.f32 %v5461, %v5704
    %v5728 = vmul.f32 %v5476, %v5706
    %v5729 = vmul.f32 %v5491, %v5708
    %v5730 = vmul.f32 %v5506, %v5710
    %v5731 = vmul.f32 %v5521, %v5712
    %v5732 = vmul.f32 %v5536, %v5714
    %v5733 = vmul.f32 %v5551, %v5716
    %v5734 = vmul.f32 %v5566, %v5718
    %v5735 = vpack.c.bf16 %v5727, %v5727
    %v5736 = vpack.c.bf16 %v5728, %v5728
    %v5737 = vpack.c.bf16 %v5729, %v5729
    %v5738 = vpack.c.bf16 %v5730, %v5730
    %v5739 = vpack.c.bf16 %v5731, %v5731
    %v5740 = vpack.c.bf16 %v5732, %v5732
    %v5741 = vpack.c.bf16 %v5733, %v5733
    %v5742 = vpack.c.bf16 %v5734, %v5734
    %v5751 = vunpack.c.l.b16 %v5735
    %v5752 = vunpack.c.l.b16 %v5736
    %v5753 = vunpack.c.l.b16 %v5737
    %v5754 = vunpack.c.l.b16 %v5738
    %v5755 = vunpack.c.l.b16 %v5739
    %v5756 = vunpack.c.l.b16 %v5740
    %v5757 = vunpack.c.l.b16 %v5741
    %v5758 = vunpack.c.l.b16 %v5742
    %v5759 = vrot.slane %v5751, 4
    %v5760 = vrot.slane %v5752, 3
    %v5761 = vsel %vm633, %v5760, %v5759
    %v5762 = vrot.slane %v5753, 2
    %v5763 = vsel %vm636, %v5762, %v5761
    %v5764 = vrot.slane %v5754, 1
    %v5765 = vsel %vm639, %v5764, %v5763
    %v5766 = vsel %vm642, %v5755, %v5765
    %v5767 = vrot.slane %v5756, 7
    %v5768 = vsel %vm645, %v5767, %v5766
    %v5769 = vrot.slane %v5757, 6
    %v5770 = vsel %vm648, %v5769, %v5768
    %v5771 = vrot.slane %v5758, 5
    %v5772 = vsel %vm651, %v5771, %v5770
    %v5773 = vpack.c.b16 %v5772, %v5772
    %5774 = vrot.lane.b32.xlu0 %v5773, 64
    %v5775 = vpop.permute.xlu0 %5774
    %v5777 = vsel %vm230, %v5775, 0
    %5779 = vmatpush.bf16.msra.mxu0 0
    %5780 = vmatpush.bf16.msra.mxu0 0
    %5781 = vmatpush.bf16.msra.mxu0 0
    %5782 = vmatpush.bf16.msra.mxu0 0
    %5783 = vmatpush.bf16.msra.mxu0 0
    %5784 = vmatpush.bf16.msra.mxu0 0
    %5785 = vmatpush.bf16.msra.mxu0 %v3795
    %5786 = vmatpush.bf16.msra.mxu0 %v3794
    %5787 = vmatmul.bf16.gmra.mxu0 %v5777
    %v5788 = vpop.f32.mrf.mxu0
    %v5789 = vadd.f32 0.0, %v5788
    %v5790 = vpop.f32.mrf.mxu0
    %5791 = vdwg.mxu0
    %v5793 = vrot.slane %v5789, 3
    %v5794 = vrot.slane %v5789, 4
    %v5795 = vrot.slane %v5789, 5
    %v5796 = vrot.slane %v5789, 6
    %v5797 = vrot.slane %v5789, 7
    %v5798 = vrot.slane %v5789, 1
    %v5799 = vrot.slane %v5789, 2
    %v5808 = vadd.f32 %v3767, %v5793
    %v5809 = vadd.f32 %v3769, %v5794
    %v5810 = vadd.f32 %v3772, %v5795
    %v5811 = vadd.f32 %v3774, %v5796
    %v5812 = vadd.f32 %v3777, %v5797
    %v5813 = vadd.f32 %v3779, %v5789
    %v5814 = vadd.f32 %v3782, %v5798
    %v5815 = vadd.f32 %v3784, %v5799
    %v5816 = vxor.u32 %v5808, 2147483648
    %v5817 = vxor.u32 %v5809, 2147483648
    %v5818 = vxor.u32 %v5810, 2147483648
    %v5819 = vxor.u32 %v5811, 2147483648
    %v5820 = vxor.u32 %v5812, 2147483648
    %v5821 = vxor.u32 %v5813, 2147483648
    %v5822 = vxor.u32 %v5814, 2147483648
    %v5823 = vxor.u32 %v5815, 2147483648
    %v5824 = vmul.f32 %v5816, 1.442695
    %v5825 = vpow.pop %v5824
    %v5826 = vmul.f32 %v5817, 1.442695
    %v5827 = vpow.pop %v5826
    %v5828 = vmul.f32 %v5818, 1.442695
    %v5829 = vpow.pop %v5828
    %v5830 = vmul.f32 %v5819, 1.442695
    %v5831 = vpow.pop %v5830
    %v5832 = vmul.f32 %v5820, 1.442695
    %v5833 = vpow.pop %v5832
    %v5834 = vmul.f32 %v5821, 1.442695
    %v5835 = vpow.pop %v5834
    %v5836 = vmul.f32 %v5822, 1.442695
    %v5837 = vpow.pop %v5836
    %v5838 = vmul.f32 %v5823, 1.442695
    %v5839 = vpow.pop %v5838
    %v5840 = vadd.f32 %v5825, 1.0
    %v5841 = vadd.f32 %v5827, 1.0
    %v5842 = vadd.f32 %v5829, 1.0
    %v5843 = vadd.f32 %v5831, 1.0
    %v5844 = vadd.f32 %v5833, 1.0
    %v5845 = vadd.f32 %v5835, 1.0
    %v5846 = vadd.f32 %v5837, 1.0
    %v5847 = vadd.f32 %v5839, 1.0
    %v5848 = vrcp.pop %v5840
    %v5849 = vmul.f32 %v5840, %v5848
    %v5850 = vsub.f32 1.0, %v5849
    %v5851 = vmul.f32 %v5848, %v5850
    %v5852 = vadd.f32 %v5848, %v5851
    %vm5853 = vweird.f32 %v5840
    %vm5854 = vweird.f32 %v5848
    %vm5855 = vmor %vm5853, %vm5854
    %v5856 = vsel %vm5855, %v5848, %v5852
    %v5857 = vand.u32 2147483647, %v5840
    %vm5858 = vcmp.eq.f32.partialorder %v5857, 8.507059e+37
    %v5859 = vand.u32 %v5840, 2147483648
    %v5860 = vor.u32 1.1754944e-38, %v5859
    %v5861 = vsel %vm5858, %v5860, %v5856
    %v5862 = vmul.f32 1.0, %v5861
    %v5863 = vrcp.pop %v5841
    %v5864 = vmul.f32 %v5841, %v5863
    %v5865 = vsub.f32 1.0, %v5864
    %v5866 = vmul.f32 %v5863, %v5865
    %v5867 = vadd.f32 %v5863, %v5866
    %vm5868 = vweird.f32 %v5841
    %vm5869 = vweird.f32 %v5863
    %vm5870 = vmor %vm5868, %vm5869
    %v5871 = vsel %vm5870, %v5863, %v5867
    %v5872 = vand.u32 2147483647, %v5841
    %vm5873 = vcmp.eq.f32.partialorder %v5872, 8.507059e+37
    %v5874 = vand.u32 %v5841, 2147483648
    %v5875 = vor.u32 1.1754944e-38, %v5874
    %v5876 = vsel %vm5873, %v5875, %v5871
    %v5877 = vmul.f32 1.0, %v5876
    %v5878 = vrcp.pop %v5842
    %v5879 = vmul.f32 %v5842, %v5878
    %v5880 = vsub.f32 1.0, %v5879
    %v5881 = vmul.f32 %v5878, %v5880
    %v5882 = vadd.f32 %v5878, %v5881
    %vm5883 = vweird.f32 %v5842
    %vm5884 = vweird.f32 %v5878
    %vm5885 = vmor %vm5883, %vm5884
    %v5886 = vsel %vm5885, %v5878, %v5882
    %v5887 = vand.u32 2147483647, %v5842
    %vm5888 = vcmp.eq.f32.partialorder %v5887, 8.507059e+37
    %v5889 = vand.u32 %v5842, 2147483648
    %v5890 = vor.u32 1.1754944e-38, %v5889
    %v5891 = vsel %vm5888, %v5890, %v5886
    %v5892 = vmul.f32 1.0, %v5891
    %v5893 = vrcp.pop %v5843
    %v5894 = vmul.f32 %v5843, %v5893
    %v5895 = vsub.f32 1.0, %v5894
    %v5896 = vmul.f32 %v5893, %v5895
    %v5897 = vadd.f32 %v5893, %v5896
    %vm5898 = vweird.f32 %v5843
    %vm5899 = vweird.f32 %v5893
    %vm5900 = vmor %vm5898, %vm5899
    %v5901 = vsel %vm5900, %v5893, %v5897
    %v5902 = vand.u32 2147483647, %v5843
    %vm5903 = vcmp.eq.f32.partialorder %v5902, 8.507059e+37
    %v5904 = vand.u32 %v5843, 2147483648
    %v5905 = vor.u32 1.1754944e-38, %v5904
    %v5906 = vsel %vm5903, %v5905, %v5901
    %v5907 = vmul.f32 1.0, %v5906
    %v5908 = vrcp.pop %v5844
    %v5909 = vmul.f32 %v5844, %v5908
    %v5910 = vsub.f32 1.0, %v5909
    %v5911 = vmul.f32 %v5908, %v5910
    %v5912 = vadd.f32 %v5908, %v5911
    %vm5913 = vweird.f32 %v5844
    %vm5914 = vweird.f32 %v5908
    %vm5915 = vmor %vm5913, %vm5914
    %v5916 = vsel %vm5915, %v5908, %v5912
    %v5917 = vand.u32 2147483647, %v5844
    %vm5918 = vcmp.eq.f32.partialorder %v5917, 8.507059e+37
    %v5919 = vand.u32 %v5844, 2147483648
    %v5920 = vor.u32 1.1754944e-38, %v5919
    %v5921 = vsel %vm5918, %v5920, %v5916
    %v5922 = vmul.f32 1.0, %v5921
    %v5923 = vrcp.pop %v5845
    %v5924 = vmul.f32 %v5845, %v5923
    %v5925 = vsub.f32 1.0, %v5924
    %v5926 = vmul.f32 %v5923, %v5925
    %v5927 = vadd.f32 %v5923, %v5926
    %vm5928 = vweird.f32 %v5845
    %vm5929 = vweird.f32 %v5923
    %vm5930 = vmor %vm5928, %vm5929
    %v5931 = vsel %vm5930, %v5923, %v5927
    %v5932 = vand.u32 2147483647, %v5845
    %vm5933 = vcmp.eq.f32.partialorder %v5932, 8.507059e+37
    %v5934 = vand.u32 %v5845, 2147483648
    %v5935 = vor.u32 1.1754944e-38, %v5934
    %v5936 = vsel %vm5933, %v5935, %v5931
    %v5937 = vmul.f32 1.0, %v5936
    %v5938 = vrcp.pop %v5846
    %v5939 = vmul.f32 %v5846, %v5938
    %v5940 = vsub.f32 1.0, %v5939
    %v5941 = vmul.f32 %v5938, %v5940
    %v5942 = vadd.f32 %v5938, %v5941
    %vm5943 = vweird.f32 %v5846
    %vm5944 = vweird.f32 %v5938
    %vm5945 = vmor %vm5943, %vm5944
    %v5946 = vsel %vm5945, %v5938, %v5942
    %v5947 = vand.u32 2147483647, %v5846
    %vm5948 = vcmp.eq.f32.partialorder %v5947, 8.507059e+37
    %v5949 = vand.u32 %v5846, 2147483648
    %v5950 = vor.u32 1.1754944e-38, %v5949
    %v5951 = vsel %vm5948, %v5950, %v5946
    %v5952 = vmul.f32 1.0, %v5951
    %v5953 = vrcp.pop %v5847
    %v5954 = vmul.f32 %v5847, %v5953
    %v5955 = vsub.f32 1.0, %v5954
    %v5956 = vmul.f32 %v5953, %v5955
    %v5957 = vadd.f32 %v5953, %v5956
    %vm5958 = vweird.f32 %v5847
    %vm5959 = vweird.f32 %v5953
    %vm5960 = vmor %vm5958, %vm5959
    %v5961 = vsel %vm5960, %v5953, %v5957
    %v5962 = vand.u32 2147483647, %v5847
    %vm5963 = vcmp.eq.f32.partialorder %v5962, 8.507059e+37
    %v5964 = vand.u32 %v5847, 2147483648
    %v5965 = vor.u32 1.1754944e-38, %v5964
    %v5966 = vsel %vm5963, %v5965, %v5961
    %v5967 = vmul.f32 1.0, %v5966
    %v5968 = vtanh.pop %v5808
    %v5969 = vtanh.pop %v5809
    %v5970 = vtanh.pop %v5810
    %v5971 = vtanh.pop %v5811
    %v5972 = vtanh.pop %v5812
    %v5973 = vtanh.pop %v5813
    %v5974 = vtanh.pop %v5814
    %v5975 = vtanh.pop %v5815
    %v5984 = vrot.slane %v5679, 7
    %v5985 = vrot.slane %v5680, 7
    %v5986 = vrot.slane %v5681, 7
    %v5987 = vrot.slane %v5682, 7
    %v5988 = vrot.slane %v5683, 7
    %v5989 = vrot.slane %v5684, 7
    %v5990 = vrot.slane %v5685, 7
    %v5991 = vrot.slane %v5686, 7
    %v6000 = vmul.f32 %v5862, %v5984
    %v6001 = vmul.f32 %v5877, %v5985
    %v6002 = vmul.f32 %v5892, %v5986
    %v6003 = vmul.f32 %v5907, %v5987
    %v6004 = vmul.f32 %v5922, %v5988
    %v6005 = vmul.f32 %v5937, %v5989
    %v6006 = vmul.f32 %v5952, %v5990
    %v6007 = vmul.f32 %v5967, %v5991
    %6016 = vrot.lane.b32.xlu0 %v5968, 32
    %v6017 = vpop.permute.xlu0 %6016
    %6018 = vrot.lane.b32.xlu0 %v5969, 32
    %v6019 = vpop.permute.xlu0 %6018
    %6020 = vrot.lane.b32.xlu0 %v5970, 32
    %v6021 = vpop.permute.xlu0 %6020
    %6022 = vrot.lane.b32.xlu0 %v5971, 32
    %v6023 = vpop.permute.xlu0 %6022
    %6024 = vrot.lane.b32.xlu0 %v5972, 32
    %v6025 = vpop.permute.xlu0 %6024
    %6026 = vrot.lane.b32.xlu0 %v5973, 32
    %v6027 = vpop.permute.xlu0 %6026
    %6028 = vrot.lane.b32.xlu0 %v5974, 32
    %v6029 = vpop.permute.xlu0 %6028
    %6030 = vrot.lane.b32.xlu0 %v5975, 32
    %v6031 = vpop.permute.xlu0 %6030
    %v6040 = vmul.f32 %v5862, %v6017
    %v6041 = vmul.f32 %v5877, %v6019
    %v6042 = vmul.f32 %v5892, %v6021
    %v6043 = vmul.f32 %v5907, %v6023
    %v6044 = vmul.f32 %v5922, %v6025
    %v6045 = vmul.f32 %v5937, %v6027
    %v6046 = vmul.f32 %v5952, %v6029
    %v6047 = vmul.f32 %v5967, %v6031
    %6056 = vrot.lane.b32.xlu0 %v6040, 32
    %v6057 = vpop.permute.xlu0 %6056
    %6058 = vrot.lane.b32.xlu0 %v6041, 32
    %v6059 = vpop.permute.xlu0 %6058
    %6060 = vrot.lane.b32.xlu0 %v6042, 32
    %v6061 = vpop.permute.xlu0 %6060
    %6062 = vrot.lane.b32.xlu0 %v6043, 32
    %v6063 = vpop.permute.xlu0 %6062
    %6064 = vrot.lane.b32.xlu0 %v6044, 32
    %v6065 = vpop.permute.xlu0 %6064
    %6066 = vrot.lane.b32.xlu0 %v6045, 32
    %v6067 = vpop.permute.xlu0 %6066
    %6068 = vrot.lane.b32.xlu0 %v6046, 32
    %v6069 = vpop.permute.xlu0 %6068
    %6070 = vrot.lane.b32.xlu0 %v6047, 32
    %v6071 = vpop.permute.xlu0 %6070
    %v6080 = vadd.f32 %v6000, %v6057
    %v6081 = vadd.f32 %v6001, %v6059
    %v6082 = vadd.f32 %v6002, %v6061
    %v6083 = vadd.f32 %v6003, %v6063
    %v6084 = vadd.f32 %v6004, %v6065
    %v6085 = vadd.f32 %v6005, %v6067
    %v6086 = vadd.f32 %v6006, %v6069
    %v6087 = vadd.f32 %v6007, %v6071
    %v6088 = vtanh.pop %v6080
    %v6089 = vtanh.pop %v6081
    %v6090 = vtanh.pop %v6082
    %v6091 = vtanh.pop %v6083
    %v6092 = vtanh.pop %v6084
    %v6093 = vtanh.pop %v6085
    %v6094 = vtanh.pop %v6086
    %v6095 = vtanh.pop %v6087
    %6104 = vrot.lane.b32.xlu0 %v6088, 32
    %v6105 = vpop.permute.xlu0 %6104
    %6106 = vrot.lane.b32.xlu0 %v6089, 32
    %v6107 = vpop.permute.xlu0 %6106
    %6108 = vrot.lane.b32.xlu0 %v6090, 32
    %v6109 = vpop.permute.xlu0 %6108
    %6110 = vrot.lane.b32.xlu0 %v6091, 32
    %v6111 = vpop.permute.xlu0 %6110
    %6112 = vrot.lane.b32.xlu0 %v6092, 32
    %v6113 = vpop.permute.xlu0 %6112
    %6114 = vrot.lane.b32.xlu0 %v6093, 32
    %v6115 = vpop.permute.xlu0 %6114
    %6116 = vrot.lane.b32.xlu0 %v6094, 32
    %v6117 = vpop.permute.xlu0 %6116
    %6118 = vrot.lane.b32.xlu0 %v6095, 32
    %v6119 = vpop.permute.xlu0 %6118
    %v6128 = vmul.f32 %v5862, %v6105
    %v6129 = vmul.f32 %v5877, %v6107
    %v6130 = vmul.f32 %v5892, %v6109
    %v6131 = vmul.f32 %v5907, %v6111
    %v6132 = vmul.f32 %v5922, %v6113
    %v6133 = vmul.f32 %v5937, %v6115
    %v6134 = vmul.f32 %v5952, %v6117
    %v6135 = vmul.f32 %v5967, %v6119
    %v6136 = vpack.c.bf16 %v6128, %v6128
    %v6137 = vpack.c.bf16 %v6129, %v6129
    %v6138 = vpack.c.bf16 %v6130, %v6130
    %v6139 = vpack.c.bf16 %v6131, %v6131
    %v6140 = vpack.c.bf16 %v6132, %v6132
    %v6141 = vpack.c.bf16 %v6133, %v6133
    %v6142 = vpack.c.bf16 %v6134, %v6134
    %v6143 = vpack.c.bf16 %v6135, %v6135
    %v6152 = vunpack.c.l.b16 %v6136
    %v6153 = vunpack.c.l.b16 %v6137
    %v6154 = vunpack.c.l.b16 %v6138
    %v6155 = vunpack.c.l.b16 %v6139
    %v6156 = vunpack.c.l.b16 %v6140
    %v6157 = vunpack.c.l.b16 %v6141
    %v6158 = vunpack.c.l.b16 %v6142
    %v6159 = vunpack.c.l.b16 %v6143
    %v6160 = vrot.slane %v6152, 5
    %v6161 = vrot.slane %v6153, 4
    %v6162 = vsel %vm633, %v6161, %v6160
    %v6163 = vrot.slane %v6154, 3
    %v6164 = vsel %vm636, %v6163, %v6162
    %v6165 = vrot.slane %v6155, 2
    %v6166 = vsel %vm639, %v6165, %v6164
    %v6167 = vrot.slane %v6156, 1
    %v6168 = vsel %vm642, %v6167, %v6166
    %v6169 = vsel %vm645, %v6157, %v6168
    %v6170 = vrot.slane %v6158, 7
    %v6171 = vsel %vm648, %v6170, %v6169
    %v6172 = vrot.slane %v6159, 6
    %v6173 = vsel %vm651, %v6172, %v6171
    %v6174 = vpack.c.b16 %v6173, %v6173
    %6175 = vrot.lane.b32.xlu0 %v6174, 64
    %v6176 = vpop.permute.xlu0 %6175
    %v6178 = vsel %vm230, %v6176, 0
    %6180 = vmatpush.bf16.msra.mxu0 0
    %6181 = vmatpush.bf16.msra.mxu0 0
    %6182 = vmatpush.bf16.msra.mxu0 0
    %6183 = vmatpush.bf16.msra.mxu0 0
    %6184 = vmatpush.bf16.msra.mxu0 0
    %6185 = vmatpush.bf16.msra.mxu0 0
    %6186 = vmatpush.bf16.msra.mxu0 %v3795
    %6187 = vmatpush.bf16.msra.mxu0 %v3794
    %6188 = vmatmul.bf16.gmra.mxu0 %v6178
    %v6189 = vpop.f32.mrf.mxu0
    %v6190 = vadd.f32 0.0, %v6189
    %v6191 = vpop.f32.mrf.mxu0
    %6192 = vdwg.mxu0
    %v6194 = vrot.slane %v6190, 2
    %v6195 = vrot.slane %v6190, 3
    %v6196 = vrot.slane %v6190, 4
    %v6197 = vrot.slane %v6190, 5
    %v6198 = vrot.slane %v6190, 6
    %v6199 = vrot.slane %v6190, 7
    %v6200 = vrot.slane %v6190, 1
    %v6209 = vadd.f32 %v3767, %v6194
    %v6210 = vadd.f32 %v3769, %v6195
    %v6211 = vadd.f32 %v3772, %v6196
    %v6212 = vadd.f32 %v3774, %v6197
    %v6213 = vadd.f32 %v3777, %v6198
    %v6214 = vadd.f32 %v3779, %v6199
    %v6215 = vadd.f32 %v3782, %v6190
    %v6216 = vadd.f32 %v3784, %v6200
    %v6217 = vxor.u32 %v6209, 2147483648
    %v6218 = vxor.u32 %v6210, 2147483648
    %v6219 = vxor.u32 %v6211, 2147483648
    %v6220 = vxor.u32 %v6212, 2147483648
    %v6221 = vxor.u32 %v6213, 2147483648
    %v6222 = vxor.u32 %v6214, 2147483648
    %v6223 = vxor.u32 %v6215, 2147483648
    %v6224 = vxor.u32 %v6216, 2147483648
    %v6225 = vmul.f32 %v6217, 1.442695
    %v6226 = vpow.pop %v6225
    %v6227 = vmul.f32 %v6218, 1.442695
    %v6228 = vpow.pop %v6227
    %v6229 = vmul.f32 %v6219, 1.442695
    %v6230 = vpow.pop %v6229
    %v6231 = vmul.f32 %v6220, 1.442695
    %v6232 = vpow.pop %v6231
    %v6233 = vmul.f32 %v6221, 1.442695
    %v6234 = vpow.pop %v6233
    %v6235 = vmul.f32 %v6222, 1.442695
    %v6236 = vpow.pop %v6235
    %v6237 = vmul.f32 %v6223, 1.442695
    %v6238 = vpow.pop %v6237
    %v6239 = vmul.f32 %v6224, 1.442695
    %v6240 = vpow.pop %v6239
    %v6241 = vadd.f32 %v6226, 1.0
    %v6242 = vadd.f32 %v6228, 1.0
    %v6243 = vadd.f32 %v6230, 1.0
    %v6244 = vadd.f32 %v6232, 1.0
    %v6245 = vadd.f32 %v6234, 1.0
    %v6246 = vadd.f32 %v6236, 1.0
    %v6247 = vadd.f32 %v6238, 1.0
    %v6248 = vadd.f32 %v6240, 1.0
    %v6249 = vrcp.pop %v6241
    %v6250 = vmul.f32 %v6241, %v6249
    %v6251 = vsub.f32 1.0, %v6250
    %v6252 = vmul.f32 %v6249, %v6251
    %v6253 = vadd.f32 %v6249, %v6252
    %vm6254 = vweird.f32 %v6241
    %vm6255 = vweird.f32 %v6249
    %vm6256 = vmor %vm6254, %vm6255
    %v6257 = vsel %vm6256, %v6249, %v6253
    %v6258 = vand.u32 2147483647, %v6241
    %vm6259 = vcmp.eq.f32.partialorder %v6258, 8.507059e+37
    %v6260 = vand.u32 %v6241, 2147483648
    %v6261 = vor.u32 1.1754944e-38, %v6260
    %v6262 = vsel %vm6259, %v6261, %v6257
    %v6263 = vmul.f32 1.0, %v6262
    %v6264 = vrcp.pop %v6242
    %v6265 = vmul.f32 %v6242, %v6264
    %v6266 = vsub.f32 1.0, %v6265
    %v6267 = vmul.f32 %v6264, %v6266
    %v6268 = vadd.f32 %v6264, %v6267
    %vm6269 = vweird.f32 %v6242
    %vm6270 = vweird.f32 %v6264
    %vm6271 = vmor %vm6269, %vm6270
    %v6272 = vsel %vm6271, %v6264, %v6268
    %v6273 = vand.u32 2147483647, %v6242
    %vm6274 = vcmp.eq.f32.partialorder %v6273, 8.507059e+37
    %v6275 = vand.u32 %v6242, 2147483648
    %v6276 = vor.u32 1.1754944e-38, %v6275
    %v6277 = vsel %vm6274, %v6276, %v6272
    %v6278 = vmul.f32 1.0, %v6277
    %v6279 = vrcp.pop %v6243
    %v6280 = vmul.f32 %v6243, %v6279
    %v6281 = vsub.f32 1.0, %v6280
    %v6282 = vmul.f32 %v6279, %v6281
    %v6283 = vadd.f32 %v6279, %v6282
    %vm6284 = vweird.f32 %v6243
    %vm6285 = vweird.f32 %v6279
    %vm6286 = vmor %vm6284, %vm6285
    %v6287 = vsel %vm6286, %v6279, %v6283
    %v6288 = vand.u32 2147483647, %v6243
    %vm6289 = vcmp.eq.f32.partialorder %v6288, 8.507059e+37
    %v6290 = vand.u32 %v6243, 2147483648
    %v6291 = vor.u32 1.1754944e-38, %v6290
    %v6292 = vsel %vm6289, %v6291, %v6287
    %v6293 = vmul.f32 1.0, %v6292
    %v6294 = vrcp.pop %v6244
    %v6295 = vmul.f32 %v6244, %v6294
    %v6296 = vsub.f32 1.0, %v6295
    %v6297 = vmul.f32 %v6294, %v6296
    %v6298 = vadd.f32 %v6294, %v6297
    %vm6299 = vweird.f32 %v6244
    %vm6300 = vweird.f32 %v6294
    %vm6301 = vmor %vm6299, %vm6300
    %v6302 = vsel %vm6301, %v6294, %v6298
    %v6303 = vand.u32 2147483647, %v6244
    %vm6304 = vcmp.eq.f32.partialorder %v6303, 8.507059e+37
    %v6305 = vand.u32 %v6244, 2147483648
    %v6306 = vor.u32 1.1754944e-38, %v6305
    %v6307 = vsel %vm6304, %v6306, %v6302
    %v6308 = vmul.f32 1.0, %v6307
    %v6309 = vrcp.pop %v6245
    %v6310 = vmul.f32 %v6245, %v6309
    %v6311 = vsub.f32 1.0, %v6310
    %v6312 = vmul.f32 %v6309, %v6311
    %v6313 = vadd.f32 %v6309, %v6312
    %vm6314 = vweird.f32 %v6245
    %vm6315 = vweird.f32 %v6309
    %vm6316 = vmor %vm6314, %vm6315
    %v6317 = vsel %vm6316, %v6309, %v6313
    %v6318 = vand.u32 2147483647, %v6245
    %vm6319 = vcmp.eq.f32.partialorder %v6318, 8.507059e+37
    %v6320 = vand.u32 %v6245, 2147483648
    %v6321 = vor.u32 1.1754944e-38, %v6320
    %v6322 = vsel %vm6319, %v6321, %v6317
    %v6323 = vmul.f32 1.0, %v6322
    %v6324 = vrcp.pop %v6246
    %v6325 = vmul.f32 %v6246, %v6324
    %v6326 = vsub.f32 1.0, %v6325
    %v6327 = vmul.f32 %v6324, %v6326
    %v6328 = vadd.f32 %v6324, %v6327
    %vm6329 = vweird.f32 %v6246
    %vm6330 = vweird.f32 %v6324
    %vm6331 = vmor %vm6329, %vm6330
    %v6332 = vsel %vm6331, %v6324, %v6328
    %v6333 = vand.u32 2147483647, %v6246
    %vm6334 = vcmp.eq.f32.partialorder %v6333, 8.507059e+37
    %v6335 = vand.u32 %v6246, 2147483648
    %v6336 = vor.u32 1.1754944e-38, %v6335
    %v6337 = vsel %vm6334, %v6336, %v6332
    %v6338 = vmul.f32 1.0, %v6337
    %v6339 = vrcp.pop %v6247
    %v6340 = vmul.f32 %v6247, %v6339
    %v6341 = vsub.f32 1.0, %v6340
    %v6342 = vmul.f32 %v6339, %v6341
    %v6343 = vadd.f32 %v6339, %v6342
    %vm6344 = vweird.f32 %v6247
    %vm6345 = vweird.f32 %v6339
    %vm6346 = vmor %vm6344, %vm6345
    %v6347 = vsel %vm6346, %v6339, %v6343
    %v6348 = vand.u32 2147483647, %v6247
    %vm6349 = vcmp.eq.f32.partialorder %v6348, 8.507059e+37
    %v6350 = vand.u32 %v6247, 2147483648
    %v6351 = vor.u32 1.1754944e-38, %v6350
    %v6352 = vsel %vm6349, %v6351, %v6347
    %v6353 = vmul.f32 1.0, %v6352
    %v6354 = vrcp.pop %v6248
    %v6355 = vmul.f32 %v6248, %v6354
    %v6356 = vsub.f32 1.0, %v6355
    %v6357 = vmul.f32 %v6354, %v6356
    %v6358 = vadd.f32 %v6354, %v6357
    %vm6359 = vweird.f32 %v6248
    %vm6360 = vweird.f32 %v6354
    %vm6361 = vmor %vm6359, %vm6360
    %v6362 = vsel %vm6361, %v6354, %v6358
    %v6363 = vand.u32 2147483647, %v6248
    %vm6364 = vcmp.eq.f32.partialorder %v6363, 8.507059e+37
    %v6365 = vand.u32 %v6248, 2147483648
    %v6366 = vor.u32 1.1754944e-38, %v6365
    %v6367 = vsel %vm6364, %v6366, %v6362
    %v6368 = vmul.f32 1.0, %v6367
    %v6369 = vtanh.pop %v6209
    %v6370 = vtanh.pop %v6210
    %v6371 = vtanh.pop %v6211
    %v6372 = vtanh.pop %v6212
    %v6373 = vtanh.pop %v6213
    %v6374 = vtanh.pop %v6214
    %v6375 = vtanh.pop %v6215
    %v6376 = vtanh.pop %v6216
    %v6385 = vrot.slane %v6080, 7
    %v6386 = vrot.slane %v6081, 7
    %v6387 = vrot.slane %v6082, 7
    %v6388 = vrot.slane %v6083, 7
    %v6389 = vrot.slane %v6084, 7
    %v6390 = vrot.slane %v6085, 7
    %v6391 = vrot.slane %v6086, 7
    %v6392 = vrot.slane %v6087, 7
    %v6401 = vmul.f32 %v6263, %v6385
    %v6402 = vmul.f32 %v6278, %v6386
    %v6403 = vmul.f32 %v6293, %v6387
    %v6404 = vmul.f32 %v6308, %v6388
    %v6405 = vmul.f32 %v6323, %v6389
    %v6406 = vmul.f32 %v6338, %v6390
    %v6407 = vmul.f32 %v6353, %v6391
    %v6408 = vmul.f32 %v6368, %v6392
    %6417 = vrot.lane.b32.xlu0 %v6369, 32
    %v6418 = vpop.permute.xlu0 %6417
    %6419 = vrot.lane.b32.xlu0 %v6370, 32
    %v6420 = vpop.permute.xlu0 %6419
    %6421 = vrot.lane.b32.xlu0 %v6371, 32
    %v6422 = vpop.permute.xlu0 %6421
    %6423 = vrot.lane.b32.xlu0 %v6372, 32
    %v6424 = vpop.permute.xlu0 %6423
    %6425 = vrot.lane.b32.xlu0 %v6373, 32
    %v6426 = vpop.permute.xlu0 %6425
    %6427 = vrot.lane.b32.xlu0 %v6374, 32
    %v6428 = vpop.permute.xlu0 %6427
    %6429 = vrot.lane.b32.xlu0 %v6375, 32
    %v6430 = vpop.permute.xlu0 %6429
    %6431 = vrot.lane.b32.xlu0 %v6376, 32
    %v6432 = vpop.permute.xlu0 %6431
    %v6441 = vmul.f32 %v6263, %v6418
    %v6442 = vmul.f32 %v6278, %v6420
    %v6443 = vmul.f32 %v6293, %v6422
    %v6444 = vmul.f32 %v6308, %v6424
    %v6445 = vmul.f32 %v6323, %v6426
    %v6446 = vmul.f32 %v6338, %v6428
    %v6447 = vmul.f32 %v6353, %v6430
    %v6448 = vmul.f32 %v6368, %v6432
    %6457 = vrot.lane.b32.xlu0 %v6441, 32
    %v6458 = vpop.permute.xlu0 %6457
    %6459 = vrot.lane.b32.xlu0 %v6442, 32
    %v6460 = vpop.permute.xlu0 %6459
    %6461 = vrot.lane.b32.xlu0 %v6443, 32
    %v6462 = vpop.permute.xlu0 %6461
    %6463 = vrot.lane.b32.xlu0 %v6444, 32
    %v6464 = vpop.permute.xlu0 %6463
    %6465 = vrot.lane.b32.xlu0 %v6445, 32
    %v6466 = vpop.permute.xlu0 %6465
    %6467 = vrot.lane.b32.xlu0 %v6446, 32
    %v6468 = vpop.permute.xlu0 %6467
    %6469 = vrot.lane.b32.xlu0 %v6447, 32
    %v6470 = vpop.permute.xlu0 %6469
    %6471 = vrot.lane.b32.xlu0 %v6448, 32
    %v6472 = vpop.permute.xlu0 %6471
    %v6481 = vadd.f32 %v6401, %v6458
    %v6482 = vadd.f32 %v6402, %v6460
    %v6483 = vadd.f32 %v6403, %v6462
    %v6484 = vadd.f32 %v6404, %v6464
    %v6485 = vadd.f32 %v6405, %v6466
    %v6486 = vadd.f32 %v6406, %v6468
    %v6487 = vadd.f32 %v6407, %v6470
    %v6488 = vadd.f32 %v6408, %v6472
    %v6489 = vtanh.pop %v6481
    %v6490 = vtanh.pop %v6482
    %v6491 = vtanh.pop %v6483
    %v6492 = vtanh.pop %v6484
    %v6493 = vtanh.pop %v6485
    %v6494 = vtanh.pop %v6486
    %v6495 = vtanh.pop %v6487
    %v6496 = vtanh.pop %v6488
    %6505 = vrot.lane.b32.xlu0 %v6489, 32
    %v6506 = vpop.permute.xlu0 %6505
    %6507 = vrot.lane.b32.xlu0 %v6490, 32
    %v6508 = vpop.permute.xlu0 %6507
    %6509 = vrot.lane.b32.xlu0 %v6491, 32
    %v6510 = vpop.permute.xlu0 %6509
    %6511 = vrot.lane.b32.xlu0 %v6492, 32
    %v6512 = vpop.permute.xlu0 %6511
    %6513 = vrot.lane.b32.xlu0 %v6493, 32
    %v6514 = vpop.permute.xlu0 %6513
    %6515 = vrot.lane.b32.xlu0 %v6494, 32
    %v6516 = vpop.permute.xlu0 %6515
    %6517 = vrot.lane.b32.xlu0 %v6495, 32
    %v6518 = vpop.permute.xlu0 %6517
    %6519 = vrot.lane.b32.xlu0 %v6496, 32
    %v6520 = vpop.permute.xlu0 %6519
    %v6529 = vmul.f32 %v6263, %v6506
    %v6530 = vmul.f32 %v6278, %v6508
    %v6531 = vmul.f32 %v6293, %v6510
    %v6532 = vmul.f32 %v6308, %v6512
    %v6533 = vmul.f32 %v6323, %v6514
    %v6534 = vmul.f32 %v6338, %v6516
    %v6535 = vmul.f32 %v6353, %v6518
    %v6536 = vmul.f32 %v6368, %v6520
    %v6537 = vpack.c.bf16 %v6529, %v6529
    %v6538 = vpack.c.bf16 %v6530, %v6530
    %v6539 = vpack.c.bf16 %v6531, %v6531
    %v6540 = vpack.c.bf16 %v6532, %v6532
    %v6541 = vpack.c.bf16 %v6533, %v6533
    %v6542 = vpack.c.bf16 %v6534, %v6534
    %v6543 = vpack.c.bf16 %v6535, %v6535
    %v6544 = vpack.c.bf16 %v6536, %v6536
    %v6553 = vunpack.c.l.b16 %v6537
    %v6554 = vunpack.c.l.b16 %v6538
    %v6555 = vunpack.c.l.b16 %v6539
    %v6556 = vunpack.c.l.b16 %v6540
    %v6557 = vunpack.c.l.b16 %v6541
    %v6558 = vunpack.c.l.b16 %v6542
    %v6559 = vunpack.c.l.b16 %v6543
    %v6560 = vunpack.c.l.b16 %v6544
    %v6561 = vrot.slane %v6553, 6
    %v6562 = vrot.slane %v6554, 5
    %v6563 = vsel %vm633, %v6562, %v6561
    %v6564 = vrot.slane %v6555, 4
    %v6565 = vsel %vm636, %v6564, %v6563
    %v6566 = vrot.slane %v6556, 3
    %v6567 = vsel %vm639, %v6566, %v6565
    %v6568 = vrot.slane %v6557, 2
    %v6569 = vsel %vm642, %v6568, %v6567
    %v6570 = vrot.slane %v6558, 1
    %v6571 = vsel %vm645, %v6570, %v6569
    %v6572 = vsel %vm648, %v6559, %v6571
    %v6573 = vrot.slane %v6560, 7
    %v6574 = vsel %vm651, %v6573, %v6572
    %v6575 = vpack.c.b16 %v6574, %v6574
    %6576 = vrot.lane.b32.xlu0 %v6575, 64
    %v6577 = vpop.permute.xlu0 %6576
    %v6579 = vsel %vm230, %v6577, 0
    %6581 = vmatpush.bf16.msra.mxu0 0
    %6582 = vmatpush.bf16.msra.mxu0 0
    %6583 = vmatpush.bf16.msra.mxu0 0
    %6584 = vmatpush.bf16.msra.mxu0 0
    %6585 = vmatpush.bf16.msra.mxu0 0
    %6586 = vmatpush.bf16.msra.mxu0 0
    %6587 = vmatpush.bf16.msra.mxu0 %v3795
    %6588 = vmatpush.bf16.msra.mxu0 %v3794
    %6589 = vmatmul.bf16.gmra.mxu0 %v6579
    %v6590 = vpop.f32.mrf.mxu0
    %v6591 = vadd.f32 0.0, %v6590
    %v6592 = vpop.f32.mrf.mxu0
    %6593 = vdwg.mxu0
    %v6595 = vrot.slane %v6591, 1
    %v6596 = vrot.slane %v6591, 2
    %v6597 = vrot.slane %v6591, 3
    %v6598 = vrot.slane %v6591, 4
    %v6599 = vrot.slane %v6591, 5
    %v6600 = vrot.slane %v6591, 6
    %v6601 = vrot.slane %v6591, 7
    %v6610 = vadd.f32 %v3767, %v6595
    %v6611 = vadd.f32 %v3769, %v6596
    %v6612 = vadd.f32 %v3772, %v6597
    %v6613 = vadd.f32 %v3774, %v6598
    %v6614 = vadd.f32 %v3777, %v6599
    %v6615 = vadd.f32 %v3779, %v6600
    %v6616 = vadd.f32 %v3782, %v6601
    %v6617 = vadd.f32 %v3784, %v6591
    %v6618 = vxor.u32 %v6610, 2147483648
    %v6619 = vxor.u32 %v6611, 2147483648
    %v6620 = vxor.u32 %v6612, 2147483648
    %v6621 = vxor.u32 %v6613, 2147483648
    %v6622 = vxor.u32 %v6614, 2147483648
    %v6623 = vxor.u32 %v6615, 2147483648
    %v6624 = vxor.u32 %v6616, 2147483648
    %v6625 = vxor.u32 %v6617, 2147483648
    %v6626 = vmul.f32 %v6618, 1.442695
    %v6627 = vpow.pop %v6626
    %v6628 = vmul.f32 %v6619, 1.442695
    %v6629 = vpow.pop %v6628
    %v6630 = vmul.f32 %v6620, 1.442695
    %v6631 = vpow.pop %v6630
    %v6632 = vmul.f32 %v6621, 1.442695
    %v6633 = vpow.pop %v6632
    %v6634 = vmul.f32 %v6622, 1.442695
    %v6635 = vpow.pop %v6634
    %v6636 = vmul.f32 %v6623, 1.442695
    %v6637 = vpow.pop %v6636
    %v6638 = vmul.f32 %v6624, 1.442695
    %v6639 = vpow.pop %v6638
    %v6640 = vmul.f32 %v6625, 1.442695
    %v6641 = vpow.pop %v6640
    %v6642 = vadd.f32 %v6627, 1.0
    %v6643 = vadd.f32 %v6629, 1.0
    %v6644 = vadd.f32 %v6631, 1.0
    %v6645 = vadd.f32 %v6633, 1.0
    %v6646 = vadd.f32 %v6635, 1.0
    %v6647 = vadd.f32 %v6637, 1.0
    %v6648 = vadd.f32 %v6639, 1.0
    %v6649 = vadd.f32 %v6641, 1.0
    %v6650 = vrcp.pop %v6642
    %v6651 = vmul.f32 %v6642, %v6650
    %v6652 = vsub.f32 1.0, %v6651
    %v6653 = vmul.f32 %v6650, %v6652
    %v6654 = vadd.f32 %v6650, %v6653
    %vm6655 = vweird.f32 %v6642
    %vm6656 = vweird.f32 %v6650
    %vm6657 = vmor %vm6655, %vm6656
    %v6658 = vsel %vm6657, %v6650, %v6654
    %v6659 = vand.u32 2147483647, %v6642
    %vm6660 = vcmp.eq.f32.partialorder %v6659, 8.507059e+37
    %v6661 = vand.u32 %v6642, 2147483648
    %v6662 = vor.u32 1.1754944e-38, %v6661
    %v6663 = vsel %vm6660, %v6662, %v6658
    %v6664 = vmul.f32 1.0, %v6663
    %v6665 = vrcp.pop %v6643
    %v6666 = vmul.f32 %v6643, %v6665
    %v6667 = vsub.f32 1.0, %v6666
    %v6668 = vmul.f32 %v6665, %v6667
    %v6669 = vadd.f32 %v6665, %v6668
    %vm6670 = vweird.f32 %v6643
    %vm6671 = vweird.f32 %v6665
    %vm6672 = vmor %vm6670, %vm6671
    %v6673 = vsel %vm6672, %v6665, %v6669
    %v6674 = vand.u32 2147483647, %v6643
    %vm6675 = vcmp.eq.f32.partialorder %v6674, 8.507059e+37
    %v6676 = vand.u32 %v6643, 2147483648
    %v6677 = vor.u32 1.1754944e-38, %v6676
    %v6678 = vsel %vm6675, %v6677, %v6673
    %v6679 = vmul.f32 1.0, %v6678
    %v6680 = vrcp.pop %v6644
    %v6681 = vmul.f32 %v6644, %v6680
    %v6682 = vsub.f32 1.0, %v6681
    %v6683 = vmul.f32 %v6680, %v6682
    %v6684 = vadd.f32 %v6680, %v6683
    %vm6685 = vweird.f32 %v6644
    %vm6686 = vweird.f32 %v6680
    %vm6687 = vmor %vm6685, %vm6686
    %v6688 = vsel %vm6687, %v6680, %v6684
    %v6689 = vand.u32 2147483647, %v6644
    %vm6690 = vcmp.eq.f32.partialorder %v6689, 8.507059e+37
    %v6691 = vand.u32 %v6644, 2147483648
    %v6692 = vor.u32 1.1754944e-38, %v6691
    %v6693 = vsel %vm6690, %v6692, %v6688
    %v6694 = vmul.f32 1.0, %v6693
    %v6695 = vrcp.pop %v6645
    %v6696 = vmul.f32 %v6645, %v6695
    %v6697 = vsub.f32 1.0, %v6696
    %v6698 = vmul.f32 %v6695, %v6697
    %v6699 = vadd.f32 %v6695, %v6698
    %vm6700 = vweird.f32 %v6645
    %vm6701 = vweird.f32 %v6695
    %vm6702 = vmor %vm6700, %vm6701
    %v6703 = vsel %vm6702, %v6695, %v6699
    %v6704 = vand.u32 2147483647, %v6645
    %vm6705 = vcmp.eq.f32.partialorder %v6704, 8.507059e+37
    %v6706 = vand.u32 %v6645, 2147483648
    %v6707 = vor.u32 1.1754944e-38, %v6706
    %v6708 = vsel %vm6705, %v6707, %v6703
    %v6709 = vmul.f32 1.0, %v6708
    %v6710 = vrcp.pop %v6646
    %v6711 = vmul.f32 %v6646, %v6710
    %v6712 = vsub.f32 1.0, %v6711
    %v6713 = vmul.f32 %v6710, %v6712
    %v6714 = vadd.f32 %v6710, %v6713
    %vm6715 = vweird.f32 %v6646
    %vm6716 = vweird.f32 %v6710
    %vm6717 = vmor %vm6715, %vm6716
    %v6718 = vsel %vm6717, %v6710, %v6714
    %v6719 = vand.u32 2147483647, %v6646
    %vm6720 = vcmp.eq.f32.partialorder %v6719, 8.507059e+37
    %v6721 = vand.u32 %v6646, 2147483648
    %v6722 = vor.u32 1.1754944e-38, %v6721
    %v6723 = vsel %vm6720, %v6722, %v6718
    %v6724 = vmul.f32 1.0, %v6723
    %v6725 = vrcp.pop %v6647
    %v6726 = vmul.f32 %v6647, %v6725
    %v6727 = vsub.f32 1.0, %v6726
    %v6728 = vmul.f32 %v6725, %v6727
    %v6729 = vadd.f32 %v6725, %v6728
    %vm6730 = vweird.f32 %v6647
    %vm6731 = vweird.f32 %v6725
    %vm6732 = vmor %vm6730, %vm6731
    %v6733 = vsel %vm6732, %v6725, %v6729
    %v6734 = vand.u32 2147483647, %v6647
    %vm6735 = vcmp.eq.f32.partialorder %v6734, 8.507059e+37
    %v6736 = vand.u32 %v6647, 2147483648
    %v6737 = vor.u32 1.1754944e-38, %v6736
    %v6738 = vsel %vm6735, %v6737, %v6733
    %v6739 = vmul.f32 1.0, %v6738
    %v6740 = vrcp.pop %v6648
    %v6741 = vmul.f32 %v6648, %v6740
    %v6742 = vsub.f32 1.0, %v6741
    %v6743 = vmul.f32 %v6740, %v6742
    %v6744 = vadd.f32 %v6740, %v6743
    %vm6745 = vweird.f32 %v6648
    %vm6746 = vweird.f32 %v6740
    %vm6747 = vmor %vm6745, %vm6746
    %v6748 = vsel %vm6747, %v6740, %v6744
    %v6749 = vand.u32 2147483647, %v6648
    %vm6750 = vcmp.eq.f32.partialorder %v6749, 8.507059e+37
    %v6751 = vand.u32 %v6648, 2147483648
    %v6752 = vor.u32 1.1754944e-38, %v6751
    %v6753 = vsel %vm6750, %v6752, %v6748
    %v6754 = vmul.f32 1.0, %v6753
    %v6755 = vrcp.pop %v6649
    %v6756 = vmul.f32 %v6649, %v6755
    %v6757 = vsub.f32 1.0, %v6756
    %v6758 = vmul.f32 %v6755, %v6757
    %v6759 = vadd.f32 %v6755, %v6758
    %vm6760 = vweird.f32 %v6649
    %vm6761 = vweird.f32 %v6755
    %vm6762 = vmor %vm6760, %vm6761
    %v6763 = vsel %vm6762, %v6755, %v6759
    %v6764 = vand.u32 2147483647, %v6649
    %vm6765 = vcmp.eq.f32.partialorder %v6764, 8.507059e+37
    %v6766 = vand.u32 %v6649, 2147483648
    %v6767 = vor.u32 1.1754944e-38, %v6766
    %v6768 = vsel %vm6765, %v6767, %v6763
    %v6769 = vmul.f32 1.0, %v6768
    %v6770 = vtanh.pop %v6610
    %v6771 = vtanh.pop %v6611
    %v6772 = vtanh.pop %v6612
    %v6773 = vtanh.pop %v6613
    %v6774 = vtanh.pop %v6614
    %v6775 = vtanh.pop %v6615
    %v6776 = vtanh.pop %v6616
    %v6777 = vtanh.pop %v6617
    %v6786 = vrot.slane %v6481, 7
    %v6787 = vrot.slane %v6482, 7
    %v6788 = vrot.slane %v6483, 7
    %v6789 = vrot.slane %v6484, 7
    %v6790 = vrot.slane %v6485, 7
    %v6791 = vrot.slane %v6486, 7
    %v6792 = vrot.slane %v6487, 7
    %v6793 = vrot.slane %v6488, 7
    %v6802 = vmul.f32 %v6664, %v6786
    %v6803 = vmul.f32 %v6679, %v6787
    %v6804 = vmul.f32 %v6694, %v6788
    %v6805 = vmul.f32 %v6709, %v6789
    %v6806 = vmul.f32 %v6724, %v6790
    %v6807 = vmul.f32 %v6739, %v6791
    %v6808 = vmul.f32 %v6754, %v6792
    %v6809 = vmul.f32 %v6769, %v6793
    %6818 = vrot.lane.b32.xlu0 %v6770, 32
    %v6819 = vpop.permute.xlu0 %6818
    %6820 = vrot.lane.b32.xlu0 %v6771, 32
    %v6821 = vpop.permute.xlu0 %6820
    %6822 = vrot.lane.b32.xlu0 %v6772, 32
    %v6823 = vpop.permute.xlu0 %6822
    %6824 = vrot.lane.b32.xlu0 %v6773, 32
    %v6825 = vpop.permute.xlu0 %6824
    %6826 = vrot.lane.b32.xlu0 %v6774, 32
    %v6827 = vpop.permute.xlu0 %6826
    %6828 = vrot.lane.b32.xlu0 %v6775, 32
    %v6829 = vpop.permute.xlu0 %6828
    %6830 = vrot.lane.b32.xlu0 %v6776, 32
    %v6831 = vpop.permute.xlu0 %6830
    %6832 = vrot.lane.b32.xlu0 %v6777, 32
    %v6833 = vpop.permute.xlu0 %6832
    %v6842 = vmul.f32 %v6664, %v6819
    %v6843 = vmul.f32 %v6679, %v6821
    %v6844 = vmul.f32 %v6694, %v6823
    %v6845 = vmul.f32 %v6709, %v6825
    %v6846 = vmul.f32 %v6724, %v6827
    %v6847 = vmul.f32 %v6739, %v6829
    %v6848 = vmul.f32 %v6754, %v6831
    %v6849 = vmul.f32 %v6769, %v6833
    %6858 = vrot.lane.b32.xlu0 %v6842, 32
    %v6859 = vpop.permute.xlu0 %6858
    %6860 = vrot.lane.b32.xlu0 %v6843, 32
    %v6861 = vpop.permute.xlu0 %6860
    %6862 = vrot.lane.b32.xlu0 %v6844, 32
    %v6863 = vpop.permute.xlu0 %6862
    %6864 = vrot.lane.b32.xlu0 %v6845, 32
    %v6865 = vpop.permute.xlu0 %6864
    %6866 = vrot.lane.b32.xlu0 %v6846, 32
    %v6867 = vpop.permute.xlu0 %6866
    %6868 = vrot.lane.b32.xlu0 %v6847, 32
    %v6869 = vpop.permute.xlu0 %6868
    %6870 = vrot.lane.b32.xlu0 %v6848, 32
    %v6871 = vpop.permute.xlu0 %6870
    %6872 = vrot.lane.b32.xlu0 %v6849, 32
    %v6873 = vpop.permute.xlu0 %6872
    %v6882 = vadd.f32 %v6802, %v6859
    %v6883 = vadd.f32 %v6803, %v6861
    %v6884 = vadd.f32 %v6804, %v6863
    %v6885 = vadd.f32 %v6805, %v6865
    %v6886 = vadd.f32 %v6806, %v6867
    %v6887 = vadd.f32 %v6807, %v6869
    %v6888 = vadd.f32 %v6808, %v6871
    %v6889 = vadd.f32 %v6809, %v6873
    %v6890 = vtanh.pop %v6882
    %v6891 = vtanh.pop %v6883
    %v6892 = vtanh.pop %v6884
    %v6893 = vtanh.pop %v6885
    %v6894 = vtanh.pop %v6886
    %v6895 = vtanh.pop %v6887
    %v6896 = vtanh.pop %v6888
    %v6897 = vtanh.pop %v6889
    %6906 = vrot.lane.b32.xlu0 %v6890, 32
    %v6907 = vpop.permute.xlu0 %6906
    %6908 = vrot.lane.b32.xlu0 %v6891, 32
    %v6909 = vpop.permute.xlu0 %6908
    %6910 = vrot.lane.b32.xlu0 %v6892, 32
    %v6911 = vpop.permute.xlu0 %6910
    %6912 = vrot.lane.b32.xlu0 %v6893, 32
    %v6913 = vpop.permute.xlu0 %6912
    %6914 = vrot.lane.b32.xlu0 %v6894, 32
    %v6915 = vpop.permute.xlu0 %6914
    %6916 = vrot.lane.b32.xlu0 %v6895, 32
    %v6917 = vpop.permute.xlu0 %6916
    %6918 = vrot.lane.b32.xlu0 %v6896, 32
    %v6919 = vpop.permute.xlu0 %6918
    %6920 = vrot.lane.b32.xlu0 %v6897, 32
    %v6921 = vpop.permute.xlu0 %6920
    %v6930 = vmul.f32 %v6664, %v6907
    %v6931 = vmul.f32 %v6679, %v6909
    %v6932 = vmul.f32 %v6694, %v6911
    %v6933 = vmul.f32 %v6709, %v6913
    %v6934 = vmul.f32 %v6724, %v6915
    %v6935 = vmul.f32 %v6739, %v6917
    %v6936 = vmul.f32 %v6754, %v6919
    %v6937 = vmul.f32 %v6769, %v6921
    %v6938 = vld [vmem:[#allocation6] sm:$0xf]
    %v6939 = vld [vmem:[#allocation6 + $0x4] sm:$0xf]
    %v6940 = vld [vmem:[#allocation6 + $0x8] sm:$0xf]
    %v6941 = vld [vmem:[#allocation6 + $0xc] sm:$0xf]
    %v6942 = vld [vmem:[#allocation6 + $0x10] sm:$0xf]
    %v6943 = vld [vmem:[#allocation6 + $0x14] sm:$0xf]
    %v6944 = vld [vmem:[#allocation6 + $0x18] sm:$0xf]
    %v6945 = vld [vmem:[#allocation6 + $0x1c] sm:$0xf]
    %vm6946 = vcmask 60416
    %v6947 = vsel %vm6946, %v6938, 0.0
    %v6948 = vrot.slane %v6947, 4
    %v6949 = vadd.f32 %v6947, %v6948
    %v6950 = vrot.slane %v6949, 2
    %v6951 = vadd.f32 %v6949, %v6950
    %v6952 = vrot.slane %v6951, 1
    %v6953 = vadd.f32 %v6951, %v6952
    %v6954 = vsel %vm6946, %v6939, 0.0
    %v6955 = vrot.slane %v6954, 4
    %v6956 = vadd.f32 %v6954, %v6955
    %v6957 = vrot.slane %v6956, 2
    %v6958 = vadd.f32 %v6956, %v6957
    %v6959 = vrot.slane %v6958, 1
    %v6960 = vadd.f32 %v6958, %v6959
    %v6961 = vsel %vm6946, %v6940, 0.0
    %v6962 = vrot.slane %v6961, 4
    %v6963 = vadd.f32 %v6961, %v6962
    %v6964 = vrot.slane %v6963, 2
    %v6965 = vadd.f32 %v6963, %v6964
    %v6966 = vrot.slane %v6965, 1
    %v6967 = vadd.f32 %v6965, %v6966
    %v6968 = vsel %vm6946, %v6941, 0.0
    %v6969 = vrot.slane %v6968, 4
    %v6970 = vadd.f32 %v6968, %v6969
    %v6971 = vrot.slane %v6970, 2
    %v6972 = vadd.f32 %v6970, %v6971
    %v6973 = vrot.slane %v6972, 1
    %v6974 = vadd.f32 %v6972, %v6973
    %v6975 = vsel %vm6946, %v6942, 0.0
    %v6976 = vrot.slane %v6975, 4
    %v6977 = vadd.f32 %v6975, %v6976
    %v6978 = vrot.slane %v6977, 2
    %v6979 = vadd.f32 %v6977, %v6978
    %v6980 = vrot.slane %v6979, 1
    %v6981 = vadd.f32 %v6979, %v6980
    %v6982 = vsel %vm6946, %v6943, 0.0
    %v6983 = vrot.slane %v6982, 4
    %v6984 = vadd.f32 %v6982, %v6983
    %v6985 = vrot.slane %v6984, 2
    %v6986 = vadd.f32 %v6984, %v6985
    %v6987 = vrot.slane %v6986, 1
    %v6988 = vadd.f32 %v6986, %v6987
    %v6989 = vsel %vm6946, %v6944, 0.0
    %v6990 = vrot.slane %v6989, 4
    %v6991 = vadd.f32 %v6989, %v6990
    %v6992 = vrot.slane %v6991, 2
    %v6993 = vadd.f32 %v6991, %v6992
    %v6994 = vrot.slane %v6993, 1
    %v6995 = vadd.f32 %v6993, %v6994
    %v6996 = vsel %vm6946, %v6945, 0.0
    %v6997 = vrot.slane %v6996, 4
    %v6998 = vadd.f32 %v6996, %v6997
    %v6999 = vrot.slane %v6998, 2
    %v7000 = vadd.f32 %v6998, %v6999
    %v7001 = vrot.slane %v7000, 1
    %v7002 = vadd.f32 %v7000, %v7001
    %v7003 = vrcp.pop 4.0
    %v7004 = vmul.f32 4.0, %v7003
    %v7005 = vsub.f32 1.0, %v7004
    %v7006 = vmul.f32 %v7003, %v7005
    %v7007 = vadd.f32 %v7003, %v7006
    %vm7008 = vweird.f32 %v7003
    %v7009 = vsel %vm7008, %v7003, %v7007
    %v7010 = vmul.f32 %v6953, %v7009
    %v7011 = vmul.f32 %v6960, %v7009
    %v7012 = vmul.f32 %v6967, %v7009
    %v7013 = vmul.f32 %v6974, %v7009
    %v7014 = vmul.f32 %v6981, %v7009
    %v7015 = vmul.f32 %v6988, %v7009
    %v7016 = vmul.f32 %v6995, %v7009
    %v7017 = vmul.f32 %v7002, %v7009
    %v7018 = vsel %vm6946, %v6938, -inf
    %v7019 = vrot.slane %v7018, 4
    %v7020 = vmax.f32 %v7018, %v7019
    %v7021 = vrot.slane %v7020, 2
    %v7022 = vmax.f32 %v7020, %v7021
    %v7023 = vrot.slane %v7022, 1
    %v7024 = vmax.f32 %v7022, %v7023
    %v7025 = vsel %vm6946, %v6939, -inf
    %v7026 = vrot.slane %v7025, 4
    %v7027 = vmax.f32 %v7025, %v7026
    %v7028 = vrot.slane %v7027, 2
    %v7029 = vmax.f32 %v7027, %v7028
    %v7030 = vrot.slane %v7029, 1
    %v7031 = vmax.f32 %v7029, %v7030
    %v7032 = vsel %vm6946, %v6940, -inf
    %v7033 = vrot.slane %v7032, 4
    %v7034 = vmax.f32 %v7032, %v7033
    %v7035 = vrot.slane %v7034, 2
    %v7036 = vmax.f32 %v7034, %v7035
    %v7037 = vrot.slane %v7036, 1
    %v7038 = vmax.f32 %v7036, %v7037
    %v7039 = vsel %vm6946, %v6941, -inf
    %v7040 = vrot.slane %v7039, 4
    %v7041 = vmax.f32 %v7039, %v7040
    %v7042 = vrot.slane %v7041, 2
    %v7043 = vmax.f32 %v7041, %v7042
    %v7044 = vrot.slane %v7043, 1
    %v7045 = vmax.f32 %v7043, %v7044
    %v7046 = vsel %vm6946, %v6942, -inf
    %v7047 = vrot.slane %v7046, 4
    %v7048 = vmax.f32 %v7046, %v7047
    %v7049 = vrot.slane %v7048, 2
    %v7050 = vmax.f32 %v7048, %v7049
    %v7051 = vrot.slane %v7050, 1
    %v7052 = vmax.f32 %v7050, %v7051
    %v7053 = vsel %vm6946, %v6943, -inf
    %v7054 = vrot.slane %v7053, 4
    %v7055 = vmax.f32 %v7053, %v7054
    %v7056 = vrot.slane %v7055, 2
    %v7057 = vmax.f32 %v7055, %v7056
    %v7058 = vrot.slane %v7057, 1
    %v7059 = vmax.f32 %v7057, %v7058
    %v7060 = vsel %vm6946, %v6944, -inf
    %v7061 = vrot.slane %v7060, 4
    %v7062 = vmax.f32 %v7060, %v7061
    %v7063 = vrot.slane %v7062, 2
    %v7064 = vmax.f32 %v7062, %v7063
    %v7065 = vrot.slane %v7064, 1
    %v7066 = vmax.f32 %v7064, %v7065
    %v7067 = vsel %vm6946, %v6945, -inf
    %v7068 = vrot.slane %v7067, 4
    %v7069 = vmax.f32 %v7067, %v7068
    %v7070 = vrot.slane %v7069, 2
    %v7071 = vmax.f32 %v7069, %v7070
    %v7072 = vrot.slane %v7071, 1
    %v7073 = vmax.f32 %v7071, %v7072
    %v7074 = vpack.c.bf16 %v6930, %v6930
    %v7075 = vpack.c.bf16 %v6931, %v6931
    %v7076 = vpack.c.bf16 %v6932, %v6932
    %v7077 = vpack.c.bf16 %v6933, %v6933
    %v7078 = vpack.c.bf16 %v6934, %v6934
    %v7079 = vpack.c.bf16 %v6935, %v6935
    %v7080 = vpack.c.bf16 %v6936, %v6936
    %v7081 = vpack.c.bf16 %v6937, %v6937
    %v7082 = vld [vmem:[%s8] sm:$0xf]
    %v7083 = vld [vmem:[%s8 + $0x4] sm:$0xf]
    %v7084 = vld [vmem:[%s8 + $0x8] sm:$0xf]
    %v7085 = vld [vmem:[%s8 + $0xc] sm:$0xf]
    %v7086 = vpack.c.bf16 %v7010, %v7010
    %v7087 = vpack.c.bf16 %v7011, %v7011
    %v7088 = vpack.c.bf16 %v7012, %v7012
    %v7089 = vpack.c.bf16 %v7013, %v7013
    %v7090 = vpack.c.bf16 %v7014, %v7014
    %v7091 = vpack.c.bf16 %v7015, %v7015
    %v7092 = vpack.c.bf16 %v7016, %v7016
    %v7093 = vpack.c.bf16 %v7017, %v7017
    %v7094 = vld [vmem:[%s9] sm:$0xf]
    %v7103 = vunpack.c.l.b16 %v7086
    %v7104 = vunpack.c.l.b16 %v7087
    %v7105 = vunpack.c.l.b16 %v7088
    %v7106 = vunpack.c.l.b16 %v7089
    %v7107 = vunpack.c.l.b16 %v7090
    %v7108 = vunpack.c.l.b16 %v7091
    %v7109 = vunpack.c.l.b16 %v7092
    %v7110 = vunpack.c.l.b16 %v7093
    %v7111 = vsel %vm633, %v7104, %v7103
    %v7112 = vsel %vm636, %v7105, %v7111
    %v7113 = vsel %vm639, %v7106, %v7112
    %v7114 = vsel %vm642, %v7107, %v7113
    %v7115 = vsel %vm645, %v7108, %v7114
    %v7116 = vsel %vm648, %v7109, %v7115
    %v7117 = vsel %vm651, %v7110, %v7116
    %v7118 = vpack.c.b16 %v7117, %v7117
    %vm7119 = vcmask 64512
    %v7121 = vsel %vm7119, %v7118, 0
    %vm7123 = vcmask 1043456
    %v7125 = vsel %vm7123, %v7094, 0
    %7127 = vmatpush.bf16.msra.mxu0 0
    %7128 = vmatpush.bf16.msra.mxu0 0
    %7129 = vmatpush.bf16.msra.mxu0 0
    %7130 = vmatpush.bf16.msra.mxu0 0
    %7131 = vmatpush.bf16.msra.mxu0 0
    %7132 = vmatpush.bf16.msra.mxu0 0
    %7133 = vmatpush.bf16.msra.mxu0 0
    %7134 = vmatpush.bf16.msra.mxu0 %v7125
    %7135 = vmatmul.bf16.gmra.mxu0 %v7121
    %v7136 = vpop.f32.mrf.mxu0
    %v7137 = vadd.f32 0.0, %v7136
    %v7138 = vpop.f32.mrf.mxu0
    %7139 = vdwg.mxu0
    %v7148 = vunpack.c.l.b16 %v7074
    %v7149 = vunpack.c.l.b16 %v7075
    %v7150 = vunpack.c.l.b16 %v7076
    %v7151 = vunpack.c.l.b16 %v7077
    %v7152 = vunpack.c.l.b16 %v7078
    %v7153 = vunpack.c.l.b16 %v7079
    %v7154 = vunpack.c.l.b16 %v7080
    %v7155 = vunpack.c.l.b16 %v7081
    %v7156 = vrot.slane %v7148, 7
    %v7157 = vrot.slane %v7149, 6
    %v7158 = vsel %vm633, %v7157, %v7156
    %v7159 = vrot.slane %v7150, 5
    %v7160 = vsel %vm636, %v7159, %v7158
    %v7161 = vrot.slane %v7151, 4
    %v7162 = vsel %vm639, %v7161, %v7160
    %v7163 = vrot.slane %v7152, 3
    %v7164 = vsel %vm642, %v7163, %v7162
    %v7165 = vrot.slane %v7153, 2
    %v7166 = vsel %vm645, %v7165, %v7164
    %v7167 = vrot.slane %v7154, 1
    %v7168 = vsel %vm648, %v7167, %v7166
    %v7169 = vsel %vm651, %v7155, %v7168
    %v7170 = vpack.c.b16 %v7169, %v7169
    %7171 = vrot.lane.b32.xlu0 %v7170, 64
    %v7172 = vpop.permute.xlu0 %7171
    %v7177 = vunpack.c.l.b16 %v7082
    %v7178 = vunpack.c.l.b16 %v7083
    %v7179 = vunpack.c.l.b16 %v7084
    %v7180 = vunpack.c.l.b16 %v7085
    %v7181 = vpack.c.b16 %v7178, %v7177
    %v7182 = vpack.c.b16 %v7180, %v7179
    %v7186 = vsel %vm230, %v7172, 0
    %7188 = vmatpush.bf16.msra.mxu0 0
    %7189 = vmatpush.bf16.msra.mxu0 0
    %7190 = vmatpush.bf16.msra.mxu0 0
    %7191 = vmatpush.bf16.msra.mxu0 0
    %7192 = vmatpush.bf16.msra.mxu0 0
    %7193 = vmatpush.bf16.msra.mxu0 0
    %7194 = vmatpush.bf16.msra.mxu0 %v7182
    %7195 = vmatpush.bf16.msra.mxu0 %v7181
    %7196 = vmatmul.bf16.gmra.mxu0 %v7186
    %v7197 = vpop.f32.mrf.mxu0
    %v7198 = vadd.f32 %v7137, %v7197
    %v7199 = vpop.f32.mrf.mxu0
    %7200 = vdwg.mxu0
    %v7201 = vpack.c.bf16 %v7024, %v7024
    %v7202 = vpack.c.bf16 %v7031, %v7031
    %v7203 = vpack.c.bf16 %v7038, %v7038
    %v7204 = vpack.c.bf16 %v7045, %v7045
    %v7205 = vpack.c.bf16 %v7052, %v7052
    %v7206 = vpack.c.bf16 %v7059, %v7059
    %v7207 = vpack.c.bf16 %v7066, %v7066
    %v7208 = vpack.c.bf16 %v7073, %v7073
    %v7209 = vld [vmem:[%s10] sm:$0xf]
    %v7218 = vunpack.c.l.b16 %v7201
    %v7219 = vunpack.c.l.b16 %v7202
    %v7220 = vunpack.c.l.b16 %v7203
    %v7221 = vunpack.c.l.b16 %v7204
    %v7222 = vunpack.c.l.b16 %v7205
    %v7223 = vunpack.c.l.b16 %v7206
    %v7224 = vunpack.c.l.b16 %v7207
    %v7225 = vunpack.c.l.b16 %v7208
    %v7226 = vsel %vm633, %v7219, %v7218
    %v7227 = vsel %vm636, %v7220, %v7226
    %v7228 = vsel %vm639, %v7221, %v7227
    %v7229 = vsel %vm642, %v7222, %v7228
    %v7230 = vsel %vm645, %v7223, %v7229
    %v7231 = vsel %vm648, %v7224, %v7230
    %v7232 = vsel %vm651, %v7225, %v7231
    %v7233 = vpack.c.b16 %v7232, %v7232
    %v7235 = vsel %vm7119, %v7233, 0
    %v7238 = vsel %vm7123, %v7209, 0
    %7240 = vmatpush.bf16.msra.mxu0 0
    %7241 = vmatpush.bf16.msra.mxu0 0
    %7242 = vmatpush.bf16.msra.mxu0 0
    %7243 = vmatpush.bf16.msra.mxu0 0
    %7244 = vmatpush.bf16.msra.mxu0 0
    %7245 = vmatpush.bf16.msra.mxu0 0
    %7246 = vmatpush.bf16.msra.mxu0 0
    %7247 = vmatpush.bf16.msra.mxu0 %v7238
    %7248 = vmatmul.bf16.gmra.mxu0 %v7235
    %v7249 = vpop.f32.mrf.mxu0
    %v7250 = vadd.f32 0.0, %v7249
    %v7251 = vpop.f32.mrf.mxu0
    %7252 = vdwg.mxu0
    %v7253 = vadd.f32 %v7198, %v7250
    %v7254 = vld [vmem:[%s11] sm:$0x1]
    %v7256 = vperm.slane %v7254, 0
    %v7258 = vadd.f32 %v7253, %v7256
    %vm7259 = vcmask 39936
    %7260 = vst.msk [vmem:[#allocation15] sm:$0xff] %vm7259, %v7258
    // Predicated region
    $region78: #{tpu_custom_call.1} parent=1 // pred_check
      _
    $region79: #{tpu_custom_call.1} parent=1 // pred_check_branch
      %7262 = sbr.rel (0) target = $region81
    $region80: #{tpu_custom_call.1} parent=1 // pred_region
      %7264 = vsyncadd [#allocation5], 0
      %s7266 = sshll.u32 [#allocation15], 4
      %s7267 = int_to_ptr.vmem [resolvable:$true] %s7266
      %s7268 = sshll.u32 %s12, 4
      %s7269 = int_to_ptr.hbm [resolvable:$true] %s7268
      %7271 = dma.vmem_to_hbm [thread:$0]  %s7267, 128, %s7269, [#allocation5]
    $region81: #{tpu_custom_call.1} parent=1 // pred_fallthru
      _
    // Predicated region
    $region82: #{tpu_custom_call.1} parent=1 // pred_check
      _
    $region83: #{tpu_custom_call.1} parent=1 // pred_check_branch
      %7273 = sbr.rel (0) target = $region85
    $region84: #{tpu_custom_call.1} parent=1 // pred_region
      %7275 = dma.done [#allocation5], 128
    $region85: #{tpu_custom_call.1} parent=1 // pred_fallthru
      _
    %7276 = vsyncpa [#allocation4], 1
    %7277 = vsyncpa [#allocation7], 1
    %7278 = vsyncpa [#allocation10], 1
    %7279 = vsyncpa [#allocation13], 1
    %7280 = vsyncpa [#allocation5], 1

</llo_original>
